<compile_context>
chip_gen: v7x
topology: tpu7x:2x2x1
jax: 0.10.0
libtpu: 0.0.40
codegen_flags: <defaults>
</compile_context>

<pallas_src>
import jax
import jax.numpy as jnp
from jax.experimental import pallas as pl
from jax.experimental.pallas import tpu as pltpu


# ------------------------------ fused kernel --------------------------------

def _make_fused_kernel(H, W, N, PAD):
    """Builds the fused Threebranches_conv kernel for a fixed H, W."""

    def kernel(x_ref,
               w1a_ref, b1a_ref, w1b_ref, b1b_ref,
               w2_ref, b2_ref, w3_ref, b3_ref,
               w4_ref, b4_ref,
               ct1w_ref, ct1b_ref,
               ct2fw_ref, ct2w_ref, ct2b_ref,
               ct3w_ref, ct3b_ref,
               o_ref,
               xpad_ref, col_ref):
        f32 = jnp.float32
        x = x_ref[0]                                   # (Cin, N), lane-dense
        cin = x.shape[0]

        # Per-pixel coordinates along the lane axis (hoisted, computed once).
        p_idx = jax.lax.broadcasted_iota(jnp.int32, (1, N), 1)
        if (W & (W - 1)) == 0:                         # power-of-two fast path
            w_idx = p_idx & (W - 1)
        else:
            w_idx = p_idx % W

        mask_cache = {}

        def tap_mask(dh, dw):
            # valid <=> 0 <= h+dh < H  and  0 <= w+dw < W   (h = p // W, w = p % W)
            key = (dh, dw)
            if key not in mask_cache:
                mask_cache[key] = ((p_idx >= (-dh) * W) &
                                   (p_idx < (H - dh) * W) &
                                   (w_idx >= -dw) &
                                   (w_idx < W - dw))
            return mask_cache[key]

        def conv_relu(src, K, wt_ref, b_ref):
            """SAME KxK conv (BN folded into weight+bias) + ReLU, as a single
            im2col matmul with the N-pixel axis lane-dense."""
            C = src.shape[0]
            pd = (K - 1) // 2
            # Stage the source so shifted windows become static lane slices.
            xpad_ref[0:C, PAD:PAD + N] = src
            t = 0
            for kh in range(K):
                dh = kh - pd
                for kw in range(K):
                    dw = kw - pd
                    s = dh * W + dw
                    shifted = xpad_ref[0:C, PAD + s:PAD + s + N]
                    col_ref[t * C:(t + 1) * C, :] = jnp.where(
                        tap_mask(dh, dw), shifted, 0.0)
                    t += 1
            y = jnp.dot(wt_ref[...], col_ref[0:K * K * C, :],
                        preferred_element_type=f32)     # (Cout, N)
            return jnp.maximum(y + b_ref[...], 0.0)

        def pw(wt, src):                                # 1x1 conv: (Co,Ci)@(Ci,N)
            return jnp.dot(wt, src, preferred_element_type=f32)

        # ---- brance_1: conv3 -> conv3 -> channels_tran_1 -> +x -> ReLU -----
        t1 = conv_relu(x, 3, w1a_ref, b1a_ref)
        t1 = conv_relu(t1, 3, w1b_ref, b1b_ref)
        br1 = jnp.maximum(x + pw(ct1w_ref[...], t1) + ct1b_ref[...], 0.0)

        # ---- brance_2: conv5 -> ct2(cat(t2,t2)) folded into weight ---------
        t2 = conv_relu(x, 5, w2_ref, b2_ref)
        br2 = jnp.maximum(x + pw(ct2fw_ref[...], t2) + ct2b_ref[...], 0.0)

        # ---- brance_3: conv7 -> channels_tran_1 -> +x -> ReLU --------------
        t3 = conv_relu(x, 7, w3_ref, b3_ref)
        br3 = jnp.maximum(x + pw(ct1w_ref[...], t3) + ct1b_ref[...], 0.0)

        # ---- brance_4: 1x1 conv with bias, no activation -------------------
        br4 = pw(w4_ref[...], x) + b4_ref[...]

        # ---- fusion: channels_tran_2 over concat([b1,b2,b3,b4]) ------------
        # done as split matmuls over the weight columns (no in-kernel concat)
        ctw = ct2w_ref[...]                              # (Cin, 4*Cin)
        z = (pw(ctw[:, 0 * cin:1 * cin], br1) +
             pw(ctw[:, 1 * cin:2 * cin], br2) +
             pw(ctw[:, 2 * cin:3 * cin], br3) +
             pw(ctw[:, 3 * cin:4 * cin], br4))
        z = jnp.maximum(x + z + ct2b_ref[...], 0.0)

        # ---- channels_tran_3 ------------------------------------------------
        out = pw(ct3w_ref[...], z) + ct3b_ref[...]       # (Cout, N)
        o_ref[0] = out.astype(o_ref.dtype)

    return kernel


# ------------------------------ wrapper --------------------------------------

def threebranches_pallas(x_nchw, p):
    """x_nchw: (B, Cin, H, W) float32; p: PyTorch-layout params (BN folded)."""
    B, Cin, H, W = x_nchw.shape
    N = H * W
    Cout = p["b1_w1"].shape[0]

    # Halo needed for statically shifted lane slices (7x7 conv -> |s| <= 3W+3).
    halo = (7 // 2) * W + (7 // 2)
    PAD = ((halo + 127) // 128) * 128                   # lane-aligned staging offset

    # --- trace-time weight plumbing (layout only, no runtime cost) ----------
    def conv_wt(w):        # (Co, Ci, K, K) -> (Co, K*K*Ci), row order (kh, kw, ci)
        Co, Ci, K, _ = w.shape
        return jnp.transpose(w, (0, 2, 3, 1)).reshape(Co, K * K * Ci)

    def pw_wt(w):          # (Co, Ci, 1, 1) -> (Co, Ci)
        return w[:, :, 0, 0]

    def colv(b):           # per-channel bias -> (C, 1), broadcast over lanes
        return b.reshape(-1, 1)

    w1a, b1a = conv_wt(p["b1_w1"]), colv(p["b1_b1"])
    w1b, b1b = conv_wt(p["b1_w2"]), colv(p["b1_b2"])
    w2, b2 = conv_wt(p["b2_w"]), colv(p["b2_b"])
    w3, b3 = conv_wt(p["b3_w"]), colv(p["b3_b"])
    w4, b4 = pw_wt(p["b4_w"]), colv(p["b4_b"])
    ct1w, ct1b = pw_wt(p["ct1_w"]), colv(p["ct1_b"])
    ct2w, ct2b = pw_wt(p["ct2_w"]), colv(p["ct2_b"])
    ct2fw = ct2w[:, :Cout] + ct2w[:, Cout:]             # fold cat(t2, t2)
    ct3w, ct3b = pw_wt(p["ct3_w"]), colv(p["ct3_b"])

    weight_args = [w1a, b1a, w1b, b1b, w2, b2, w3, b3, w4, b4,
                   ct1w, ct1b, ct2fw, ct2w, ct2b, ct3w, ct3b]

    xf = x_nchw.reshape(B, Cin, N)                      # contiguous reshape

    c_max = max(Cin, Cout)
    col_rows = max(9 * Cout, 49 * Cin)                  # biggest im2col slab

    out = pl.pallas_call(
        _make_fused_kernel(H, W, N, PAD),
        out_shape=jax.ShapeDtypeStruct((B, Cout, N), x_nchw.dtype),
        grid=(B,),
        in_specs=(
            [pl.BlockSpec((1, Cin, N), lambda b: (b, 0, 0))]
            + [pl.BlockSpec(tuple(a.shape), lambda b: (0, 0)) for a in weight_args]
        ),
        out_specs=pl.BlockSpec((1, Cout, N), lambda b: (b, 0, 0)),
        scratch_shapes=[
            pltpu.VMEM((c_max, N + 2 * PAD), jnp.float32),   # shift staging buffer
            pltpu.VMEM((col_rows, N), jnp.float32),          # im2col slab (reused)
        ],
        compiler_params=pltpu.CompilerParams(
            dimension_semantics=("parallel",)),              # batch across TCs (v7x)
    )(xf, *weight_args)
    return out.reshape(B, Cout, H, W)


# --------------------------- pure-JAX reference -------------------------------

def _ref_forward(x, p):
    relu = lambda v: jnp.maximum(v, 0.0)

    def conv(inp, w, b, pad, act):
        y = jax.lax.conv_general_dilated(
            inp, w, window_strides=(1, 1),
            padding=[(pad, pad), (pad, pad)],
            dimension_numbers=("NCHW", "OIHW", "NCHW"))
        y = y + b[None, :, None, None]
        return relu(y) if act else y

    t1 = conv(x, p["b1_w1"], p["b1_b1"], 1, True)
    t1 = conv(t1, p["b1_w2"], p["b1_b2"], 1, True)
    b1 = relu(x + conv(t1, p["ct1_w"], p["ct1_b"], 0, False))
    t2 = conv(x, p["b2_w"], p["b2_b"], 2, True)
    b2 = relu(x + conv(jnp.concatenate([t2, t2], axis=1),
                       p["ct2_w"], p["ct2_b"], 0, False))
    t3 = conv(x, p["b3_w"], p["b3_b"], 3, True)
    b3 = relu(x + conv(t3, p["ct1_w"], p["ct1_b"], 0, False))
    b4 = conv(x, p["b4_w"], p["b4_b"], 0, False)
    bcat = jnp.concatenate([b1, b2, b3, b4], axis=1)
    z = relu(x + conv(bcat, p["ct2_w"], p["ct2_b"], 0, False))
    return conv(z, p["ct3_w"], p["ct3_b"], 0, False)


# ------------------------------- parameters -----------------------------------

def _fold_bn(w, gamma, beta, mean, var, eps=1e-5):
    s = gamma / jnp.sqrt(var + eps)
    return w * s[:, None, None, None], beta - mean * s


def init_params(key, cin, cout):
    keys = jax.random.split(key, 24)
    it = iter(keys)

    def conv_w(k, co, ci, K):
        fan = ci * K * K
        return jax.random.normal(k, (co, ci, K, K), jnp.float32) / jnp.sqrt(fan)

    def bn(k, c):
        kk = jax.random.split(k, 4)
        gamma = 1.0 + 0.1 * jax.random.normal(kk[0], (c,), jnp.float32)
        beta = 0.1 * jax.random.normal(kk[1], (c,), jnp.float32)
        mean = 0.1 * jax.random.normal(kk[2], (c,), jnp.float32)
        var = 0.5 + jnp.abs(jax.random.normal(kk[3], (c,), jnp.float32))
        return gamma, beta, mean, var

    p = {}
    p["b1_w1"], p["b1_b1"] = _fold_bn(conv_w(next(it), cout, cin, 3), *bn(next(it), cout))
    p["b1_w2"], p["b1_b2"] = _fold_bn(conv_w(next(it), cout, cout, 3), *bn(next(it), cout))
    p["b2_w"], p["b2_b"] = _fold_bn(conv_w(next(it), cout, cin, 5), *bn(next(it), cout))
    p["b3_w"], p["b3_b"] = _fold_bn(conv_w(next(it), cout, cin, 7), *bn(next(it), cout))
    p["b4_w"] = conv_w(next(it), cin, cin, 1)
    p["b4_b"] = 0.1 * jax.random.normal(next(it), (cin,), jnp.float32)
    p["ct1_w"] = conv_w(next(it), cin, 2 * cin, 1)
    p["ct1_b"] = 0.1 * jax.random.normal(next(it), (cin,), jnp.float32)
    p["ct2_w"] = conv_w(next(it), cin, 4 * cin, 1)
    p["ct2_b"] = 0.1 * jax.random.normal(next(it), (cin,), jnp.float32)
    p["ct3_w"] = conv_w(next(it), cout, cin, 1)
    p["ct3_b"] = 0.1 * jax.random.normal(next(it), (cout,), jnp.float32)
    return p


# ---------------------------------- main --------------------------------------

if __name__ == "__main__":
    B, H, W = 2, 16, 16
    CIN, COUT = 4, 8            # module requires COUT == 2 * CIN
    assert COUT == 2 * CIN

    key = jax.random.PRNGKey(0)
    kx, kp = jax.random.split(key)
    x = jax.random.normal(kx, (B, CIN, H, W), jnp.float32)     # NCHW like PyTorch
    params = init_params(kp, CIN, COUT)

    fwd = jax.jit(lambda xx: threebranches_pallas(xx, params))
    pallas_out = jax.block_until_ready(fwd(x))

    ref_out = jax.block_until_ready(_ref_forward(x, params))

    assert pallas_out.shape == (B, COUT, H, W)
    max_err = float(jnp.max(jnp.abs(pallas_out - ref_out)))
    assert jnp.allclose(pallas_out, ref_out, atol=2e-4, rtol=2e-4), max_err

    print("KERNEL_OK")
</pallas_src>

<mosaic_0001>
module attributes {stable_mosaic.version = 11 : i64} {
  func.func @kernel(%arg0: i32, %arg1: memref<1x4x256xf32, #tpu.memory_space<vmem>>, %arg2: memref<8x36xf32, #tpu.memory_space<vmem>>, %arg3: memref<8x1xf32, #tpu.memory_space<vmem>>, %arg4: memref<8x72xf32, #tpu.memory_space<vmem>>, %arg5: memref<8x1xf32, #tpu.memory_space<vmem>>, %arg6: memref<8x100xf32, #tpu.memory_space<vmem>>, %arg7: memref<8x1xf32, #tpu.memory_space<vmem>>, %arg8: memref<8x196xf32, #tpu.memory_space<vmem>>, %arg9: memref<8x1xf32, #tpu.memory_space<vmem>>, %arg10: memref<4x4xf32, #tpu.memory_space<vmem>>, %arg11: memref<4x1xf32, #tpu.memory_space<vmem>>, %arg12: memref<4x8xf32, #tpu.memory_space<vmem>>, %arg13: memref<4x1xf32, #tpu.memory_space<vmem>>, %arg14: memref<4x8xf32, #tpu.memory_space<vmem>>, %arg15: memref<4x16xf32, #tpu.memory_space<vmem>>, %arg16: memref<4x1xf32, #tpu.memory_space<vmem>>, %arg17: memref<8x4xf32, #tpu.memory_space<vmem>>, %arg18: memref<8x1xf32, #tpu.memory_space<vmem>>, %arg19: memref<1x8x256xf32, #tpu.memory_space<vmem>>, %arg20: memref<8x512xf32, #tpu.memory_space<vmem>>, %arg21: memref<196x256xf32, #tpu.memory_space<vmem>>) attributes {dimension_semantics = [#tpu.dimension_semantics<parallel>], iteration_bounds = array<i64: 2>, scalar_prefetch = 0 : i64, scratch_operands = 2 : i64, tpu.core_type = #tpu.core_type<tc>, window_params = [{transform_indices = @transform_0, window_bounds = array<i64: 1, 4, 256>}, {pipeline_mode = #tpu.pipeline_mode<synchronous>, transform_indices = @transform_1, window_bounds = array<i64: 8, 36>}, {pipeline_mode = #tpu.pipeline_mode<synchronous>, transform_indices = @transform_2, window_bounds = array<i64: 8, 1>}, {pipeline_mode = #tpu.pipeline_mode<synchronous>, transform_indices = @transform_3, window_bounds = array<i64: 8, 72>}, {pipeline_mode = #tpu.pipeline_mode<synchronous>, transform_indices = @transform_4, window_bounds = array<i64: 8, 1>}, {pipeline_mode = #tpu.pipeline_mode<synchronous>, transform_indices = @transform_5, window_bounds = array<i64: 8, 100>}, {pipeline_mode = #tpu.pipeline_mode<synchronous>, transform_indices = @transform_6, window_bounds = array<i64: 8, 1>}, {pipeline_mode = #tpu.pipeline_mode<synchronous>, transform_indices = @transform_7, window_bounds = array<i64: 8, 196>}, {pipeline_mode = #tpu.pipeline_mode<synchronous>, transform_indices = @transform_8, window_bounds = array<i64: 8, 1>}, {pipeline_mode = #tpu.pipeline_mode<synchronous>, transform_indices = @transform_9, window_bounds = array<i64: 4, 4>}, {pipeline_mode = #tpu.pipeline_mode<synchronous>, transform_indices = @transform_10, window_bounds = array<i64: 4, 1>}, {pipeline_mode = #tpu.pipeline_mode<synchronous>, transform_indices = @transform_11, window_bounds = array<i64: 4, 8>}, {pipeline_mode = #tpu.pipeline_mode<synchronous>, transform_indices = @transform_12, window_bounds = array<i64: 4, 1>}, {pipeline_mode = #tpu.pipeline_mode<synchronous>, transform_indices = @transform_13, window_bounds = array<i64: 4, 8>}, {pipeline_mode = #tpu.pipeline_mode<synchronous>, transform_indices = @transform_14, window_bounds = array<i64: 4, 16>}, {pipeline_mode = #tpu.pipeline_mode<synchronous>, transform_indices = @transform_15, window_bounds = array<i64: 4, 1>}, {pipeline_mode = #tpu.pipeline_mode<synchronous>, transform_indices = @transform_16, window_bounds = array<i64: 8, 4>}, {pipeline_mode = #tpu.pipeline_mode<synchronous>, transform_indices = @transform_17, window_bounds = array<i64: 8, 1>}, {transform_indices = @transform_18, window_bounds = array<i64: 1, 8, 256>}]} {
    %c0 = arith.constant 0 : index
    %c0_0 = arith.constant 0 : index
    %c0_1 = arith.constant 0 : index
    %0 = vector.load %arg1[%c0, %c0_0, %c0_1] : memref<1x4x256xf32, #tpu.memory_space<vmem>>, vector<1x4x256xf32>
    %1 = vector.shape_cast %0 : vector<1x4x256xf32> to vector<4x256xf32>
    %2 = tpu.iota {dimensions = array<i32: 1>} : vector<1x256xi32>
    %c15_i32 = arith.constant 15 : i32
    %3 = vector.broadcast %c15_i32 : i32 to vector<1x256xi32>
    %4 = arith.andi %2, %3 : vector<1x256xi32>
    %c0_2 = arith.constant 0 : index
    %c128 = arith.constant 128 : index
    %5 = vector.load %arg20[%c0_2, %c128] : memref<8x512xf32, #tpu.memory_space<vmem>>, vector<4x256xf32>
    tpu.vector_store %arg20[%c0_2, %c128], %1 {strides = array<i32>} : memref<8x512xf32, #tpu.memory_space<vmem>>, vector<4x256xf32>,
    %c0_3 = arith.constant 0 : index
    %c111 = arith.constant 111 : index
    %6 = vector.load %arg20[%c0_3, %c111] : memref<8x512xf32, #tpu.memory_space<vmem>>, vector<4x256xf32>
    %c16_i32 = arith.constant 16 : i32
    %7 = vector.broadcast %c16_i32 : i32 to vector<1x256xi32>
    %8 = arith.cmpi sge, %2, %7 : vector<1x256xi32>
    %c272_i32 = arith.constant 272 : i32
    %9 = vector.broadcast %c272_i32 : i32 to vector<1x256xi32>
    %10 = arith.cmpi slt, %2, %9 : vector<1x256xi32>
    %11 = arith.andi %8, %10 : vector<1x256xi1>
    %c1_i32 = arith.constant 1 : i32
    %12 = vector.broadcast %c1_i32 : i32 to vector<1x256xi32>
    %13 = arith.cmpi sge, %4, %12 : vector<1x256xi32>
    %14 = arith.andi %11, %13 : vector<1x256xi1>
    %c17_i32 = arith.constant 17 : i32
    %15 = vector.broadcast %c17_i32 : i32 to vector<1x256xi32>
    %16 = arith.cmpi slt, %4, %15 : vector<1x256xi32>
    %17 = arith.andi %14, %16 : vector<1x256xi1>
    %cst = arith.constant 0.000000e+00 : f32
    %18 = vector.shape_cast %17 : vector<1x256xi1> to vector<1x256xi1>
    %19 = vector.broadcast %18 : vector<1x256xi1> to vector<4x256xi1>
    %20 = vector.broadcast %cst : f32 to vector<4x256xf32>
    %21 = arith.select %19, %6, %20 : vector<4x256xi1>, vector<4x256xf32>
    %c0_4 = arith.constant 0 : index
    %c0_5 = arith.constant 0 : index
    %22 = vector.load %arg21[%c0_4, %c0_5] : memref<196x256xf32, #tpu.memory_space<vmem>>, vector<4x256xf32>
    tpu.vector_store %arg21[%c0_4, %c0_5], %21 {strides = array<i32>} : memref<196x256xf32, #tpu.memory_space<vmem>>, vector<4x256xf32>,
    %c0_6 = arith.constant 0 : index
    %c112 = arith.constant 112 : index
    %23 = vector.load %arg20[%c0_6, %c112] : memref<8x512xf32, #tpu.memory_space<vmem>>, vector<4x256xf32>
    %c16_i32_7 = arith.constant 16 : i32
    %24 = vector.broadcast %c16_i32_7 : i32 to vector<1x256xi32>
    %25 = arith.cmpi sge, %2, %24 : vector<1x256xi32>
    %c272_i32_8 = arith.constant 272 : i32
    %26 = vector.broadcast %c272_i32_8 : i32 to vector<1x256xi32>
    %27 = arith.cmpi slt, %2, %26 : vector<1x256xi32>
    %28 = arith.andi %25, %27 : vector<1x256xi1>
    %c0_i32 = arith.constant 0 : i32
    %29 = vector.broadcast %c0_i32 : i32 to vector<1x256xi32>
    %30 = arith.cmpi sge, %4, %29 : vector<1x256xi32>
    %31 = arith.andi %28, %30 : vector<1x256xi1>
    %c16_i32_9 = arith.constant 16 : i32
    %32 = vector.broadcast %c16_i32_9 : i32 to vector<1x256xi32>
    %33 = arith.cmpi slt, %4, %32 : vector<1x256xi32>
    %34 = arith.andi %31, %33 : vector<1x256xi1>
    %cst_10 = arith.constant 0.000000e+00 : f32
    %35 = vector.shape_cast %34 : vector<1x256xi1> to vector<1x256xi1>
    %36 = vector.broadcast %35 : vector<1x256xi1> to vector<4x256xi1>
    %37 = vector.broadcast %cst_10 : f32 to vector<4x256xf32>
    %38 = arith.select %36, %23, %37 : vector<4x256xi1>, vector<4x256xf32>
    %c4 = arith.constant 4 : index
    %c0_11 = arith.constant 0 : index
    %39 = vector.load %arg21[%c4, %c0_11] : memref<196x256xf32, #tpu.memory_space<vmem>>, vector<4x256xf32>
    tpu.vector_store %arg21[%c4, %c0_11], %38 {strides = array<i32>} : memref<196x256xf32, #tpu.memory_space<vmem>>, vector<4x256xf32>,
    %c0_12 = arith.constant 0 : index
    %c113 = arith.constant 113 : index
    %40 = vector.load %arg20[%c0_12, %c113] : memref<8x512xf32, #tpu.memory_space<vmem>>, vector<4x256xf32>
    %c16_i32_13 = arith.constant 16 : i32
    %41 = vector.broadcast %c16_i32_13 : i32 to vector<1x256xi32>
    %42 = arith.cmpi sge, %2, %41 : vector<1x256xi32>
    %c272_i32_14 = arith.constant 272 : i32
    %43 = vector.broadcast %c272_i32_14 : i32 to vector<1x256xi32>
    %44 = arith.cmpi slt, %2, %43 : vector<1x256xi32>
    %45 = arith.andi %42, %44 : vector<1x256xi1>
    %c-1_i32 = arith.constant -1 : i32
    %46 = vector.broadcast %c-1_i32 : i32 to vector<1x256xi32>
    %47 = arith.cmpi sge, %4, %46 : vector<1x256xi32>
    %48 = arith.andi %45, %47 : vector<1x256xi1>
    %c15_i32_15 = arith.constant 15 : i32
    %49 = vector.broadcast %c15_i32_15 : i32 to vector<1x256xi32>
    %50 = arith.cmpi slt, %4, %49 : vector<1x256xi32>
    %51 = arith.andi %48, %50 : vector<1x256xi1>
    %cst_16 = arith.constant 0.000000e+00 : f32
    %52 = vector.shape_cast %51 : vector<1x256xi1> to vector<1x256xi1>
    %53 = vector.broadcast %52 : vector<1x256xi1> to vector<4x256xi1>
    %54 = vector.broadcast %cst_16 : f32 to vector<4x256xf32>
    %55 = arith.select %53, %40, %54 : vector<4x256xi1>, vector<4x256xf32>
    %c8 = arith.constant 8 : index
    %c0_17 = arith.constant 0 : index
    %56 = vector.load %arg21[%c8, %c0_17] : memref<196x256xf32, #tpu.memory_space<vmem>>, vector<4x256xf32>
    tpu.vector_store %arg21[%c8, %c0_17], %55 {strides = array<i32>} : memref<196x256xf32, #tpu.memory_space<vmem>>, vector<4x256xf32>,
    %c0_18 = arith.constant 0 : index
    %c127 = arith.constant 127 : index
    %57 = vector.load %arg20[%c0_18, %c127] : memref<8x512xf32, #tpu.memory_space<vmem>>, vector<4x256xf32>
    %c0_i32_19 = arith.constant 0 : i32
    %58 = vector.broadcast %c0_i32_19 : i32 to vector<1x256xi32>
    %59 = arith.cmpi sge, %2, %58 : vector<1x256xi32>
    %c256_i32 = arith.constant 256 : i32
    %60 = vector.broadcast %c256_i32 : i32 to vector<1x256xi32>
    %61 = arith.cmpi slt, %2, %60 : vector<1x256xi32>
    %62 = arith.andi %59, %61 : vector<1x256xi1>
    %c1_i32_20 = arith.constant 1 : i32
    %63 = vector.broadcast %c1_i32_20 : i32 to vector<1x256xi32>
    %64 = arith.cmpi sge, %4, %63 : vector<1x256xi32>
    %65 = arith.andi %62, %64 : vector<1x256xi1>
    %c17_i32_21 = arith.constant 17 : i32
    %66 = vector.broadcast %c17_i32_21 : i32 to vector<1x256xi32>
    %67 = arith.cmpi slt, %4, %66 : vector<1x256xi32>
    %68 = arith.andi %65, %67 : vector<1x256xi1>
    %cst_22 = arith.constant 0.000000e+00 : f32
    %69 = vector.shape_cast %68 : vector<1x256xi1> to vector<1x256xi1>
    %70 = vector.broadcast %69 : vector<1x256xi1> to vector<4x256xi1>
    %71 = vector.broadcast %cst_22 : f32 to vector<4x256xf32>
    %72 = arith.select %70, %57, %71 : vector<4x256xi1>, vector<4x256xf32>
    %c12 = arith.constant 12 : index
    %c0_23 = arith.constant 0 : index
    %73 = vector.load %arg21[%c12, %c0_23] : memref<196x256xf32, #tpu.memory_space<vmem>>, vector<4x256xf32>
    tpu.vector_store %arg21[%c12, %c0_23], %72 {strides = array<i32>} : memref<196x256xf32, #tpu.memory_space<vmem>>, vector<4x256xf32>,
    %c0_24 = arith.constant 0 : index
    %c128_25 = arith.constant 128 : index
    %74 = vector.load %arg20[%c0_24, %c128_25] : memref<8x512xf32, #tpu.memory_space<vmem>>, vector<4x256xf32>
    %c0_i32_26 = arith.constant 0 : i32
    %75 = vector.broadcast %c0_i32_26 : i32 to vector<1x256xi32>
    %76 = arith.cmpi sge, %2, %75 : vector<1x256xi32>
    %c256_i32_27 = arith.constant 256 : i32
    %77 = vector.broadcast %c256_i32_27 : i32 to vector<1x256xi32>
    %78 = arith.cmpi slt, %2, %77 : vector<1x256xi32>
    %79 = arith.andi %76, %78 : vector<1x256xi1>
    %c0_i32_28 = arith.constant 0 : i32
    %80 = vector.broadcast %c0_i32_28 : i32 to vector<1x256xi32>
    %81 = arith.cmpi sge, %4, %80 : vector<1x256xi32>
    %82 = arith.andi %79, %81 : vector<1x256xi1>
    %c16_i32_29 = arith.constant 16 : i32
    %83 = vector.broadcast %c16_i32_29 : i32 to vector<1x256xi32>
    %84 = arith.cmpi slt, %4, %83 : vector<1x256xi32>
    %85 = arith.andi %82, %84 : vector<1x256xi1>
    %cst_30 = arith.constant 0.000000e+00 : f32
    %86 = vector.shape_cast %85 : vector<1x256xi1> to vector<1x256xi1>
    %87 = vector.broadcast %86 : vector<1x256xi1> to vector<4x256xi1>
    %88 = vector.broadcast %cst_30 : f32 to vector<4x256xf32>
    %89 = arith.select %87, %74, %88 : vector<4x256xi1>, vector<4x256xf32>
    %c16 = arith.constant 16 : index
    %c0_31 = arith.constant 0 : index
    %90 = vector.load %arg21[%c16, %c0_31] : memref<196x256xf32, #tpu.memory_space<vmem>>, vector<4x256xf32>
    tpu.vector_store %arg21[%c16, %c0_31], %89 {strides = array<i32>} : memref<196x256xf32, #tpu.memory_space<vmem>>, vector<4x256xf32>,
    %c0_32 = arith.constant 0 : index
    %c129 = arith.constant 129 : index
    %91 = vector.load %arg20[%c0_32, %c129] : memref<8x512xf32, #tpu.memory_space<vmem>>, vector<4x256xf32>
    %c0_i32_33 = arith.constant 0 : i32
    %92 = vector.broadcast %c0_i32_33 : i32 to vector<1x256xi32>
    %93 = arith.cmpi sge, %2, %92 : vector<1x256xi32>
    %c256_i32_34 = arith.constant 256 : i32
    %94 = vector.broadcast %c256_i32_34 : i32 to vector<1x256xi32>
    %95 = arith.cmpi slt, %2, %94 : vector<1x256xi32>
    %96 = arith.andi %93, %95 : vector<1x256xi1>
    %c-1_i32_35 = arith.constant -1 : i32
    %97 = vector.broadcast %c-1_i32_35 : i32 to vector<1x256xi32>
    %98 = arith.cmpi sge, %4, %97 : vector<1x256xi32>
    %99 = arith.andi %96, %98 : vector<1x256xi1>
    %c15_i32_36 = arith.constant 15 : i32
    %100 = vector.broadcast %c15_i32_36 : i32 to vector<1x256xi32>
    %101 = arith.cmpi slt, %4, %100 : vector<1x256xi32>
    %102 = arith.andi %99, %101 : vector<1x256xi1>
    %cst_37 = arith.constant 0.000000e+00 : f32
    %103 = vector.shape_cast %102 : vector<1x256xi1> to vector<1x256xi1>
    %104 = vector.broadcast %103 : vector<1x256xi1> to vector<4x256xi1>
    %105 = vector.broadcast %cst_37 : f32 to vector<4x256xf32>
    %106 = arith.select %104, %91, %105 : vector<4x256xi1>, vector<4x256xf32>
    %c20 = arith.constant 20 : index
    %c0_38 = arith.constant 0 : index
    %107 = vector.load %arg21[%c20, %c0_38] : memref<196x256xf32, #tpu.memory_space<vmem>>, vector<4x256xf32>
    tpu.vector_store %arg21[%c20, %c0_38], %106 {strides = array<i32>} : memref<196x256xf32, #tpu.memory_space<vmem>>, vector<4x256xf32>,
    %c0_39 = arith.constant 0 : index
    %c143 = arith.constant 143 : index
    %108 = vector.load %arg20[%c0_39, %c143] : memref<8x512xf32, #tpu.memory_space<vmem>>, vector<4x256xf32>
    %c-16_i32 = arith.constant -16 : i32
    %109 = vector.broadcast %c-16_i32 : i32 to vector<1x256xi32>
    %110 = arith.cmpi sge, %2, %109 : vector<1x256xi32>
    %c240_i32 = arith.constant 240 : i32
    %111 = vector.broadcast %c240_i32 : i32 to vector<1x256xi32>
    %112 = arith.cmpi slt, %2, %111 : vector<1x256xi32>
    %113 = arith.andi %110, %112 : vector<1x256xi1>
    %c1_i32_40 = arith.constant 1 : i32
    %114 = vector.broadcast %c1_i32_40 : i32 to vector<1x256xi32>
    %115 = arith.cmpi sge, %4, %114 : vector<1x256xi32>
    %116 = arith.andi %113, %115 : vector<1x256xi1>
    %c17_i32_41 = arith.constant 17 : i32
    %117 = vector.broadcast %c17_i32_41 : i32 to vector<1x256xi32>
    %118 = arith.cmpi slt, %4, %117 : vector<1x256xi32>
    %119 = arith.andi %116, %118 : vector<1x256xi1>
    %cst_42 = arith.constant 0.000000e+00 : f32
    %120 = vector.shape_cast %119 : vector<1x256xi1> to vector<1x256xi1>
    %121 = vector.broadcast %120 : vector<1x256xi1> to vector<4x256xi1>
    %122 = vector.broadcast %cst_42 : f32 to vector<4x256xf32>
    %123 = arith.select %121, %108, %122 : vector<4x256xi1>, vector<4x256xf32>
    %c24 = arith.constant 24 : index
    %c0_43 = arith.constant 0 : index
    %124 = vector.load %arg21[%c24, %c0_43] : memref<196x256xf32, #tpu.memory_space<vmem>>, vector<4x256xf32>
    tpu.vector_store %arg21[%c24, %c0_43], %123 {strides = array<i32>} : memref<196x256xf32, #tpu.memory_space<vmem>>, vector<4x256xf32>,
    %c0_44 = arith.constant 0 : index
    %c144 = arith.constant 144 : index
    %125 = vector.load %arg20[%c0_44, %c144] : memref<8x512xf32, #tpu.memory_space<vmem>>, vector<4x256xf32>
    %c-16_i32_45 = arith.constant -16 : i32
    %126 = vector.broadcast %c-16_i32_45 : i32 to vector<1x256xi32>
    %127 = arith.cmpi sge, %2, %126 : vector<1x256xi32>
    %c240_i32_46 = arith.constant 240 : i32
    %128 = vector.broadcast %c240_i32_46 : i32 to vector<1x256xi32>
    %129 = arith.cmpi slt, %2, %128 : vector<1x256xi32>
    %130 = arith.andi %127, %129 : vector<1x256xi1>
    %c0_i32_47 = arith.constant 0 : i32
    %131 = vector.broadcast %c0_i32_47 : i32 to vector<1x256xi32>
    %132 = arith.cmpi sge, %4, %131 : vector<1x256xi32>
    %133 = arith.andi %130, %132 : vector<1x256xi1>
    %c16_i32_48 = arith.constant 16 : i32
    %134 = vector.broadcast %c16_i32_48 : i32 to vector<1x256xi32>
    %135 = arith.cmpi slt, %4, %134 : vector<1x256xi32>
    %136 = arith.andi %133, %135 : vector<1x256xi1>
    %cst_49 = arith.constant 0.000000e+00 : f32
    %137 = vector.shape_cast %136 : vector<1x256xi1> to vector<1x256xi1>
    %138 = vector.broadcast %137 : vector<1x256xi1> to vector<4x256xi1>
    %139 = vector.broadcast %cst_49 : f32 to vector<4x256xf32>
    %140 = arith.select %138, %125, %139 : vector<4x256xi1>, vector<4x256xf32>
    %c28 = arith.constant 28 : index
    %c0_50 = arith.constant 0 : index
    %141 = vector.load %arg21[%c28, %c0_50] : memref<196x256xf32, #tpu.memory_space<vmem>>, vector<4x256xf32>
    tpu.vector_store %arg21[%c28, %c0_50], %140 {strides = array<i32>} : memref<196x256xf32, #tpu.memory_space<vmem>>, vector<4x256xf32>,
    %c0_51 = arith.constant 0 : index
    %c145 = arith.constant 145 : index
    %142 = vector.load %arg20[%c0_51, %c145] : memref<8x512xf32, #tpu.memory_space<vmem>>, vector<4x256xf32>
    %c-16_i32_52 = arith.constant -16 : i32
    %143 = vector.broadcast %c-16_i32_52 : i32 to vector<1x256xi32>
    %144 = arith.cmpi sge, %2, %143 : vector<1x256xi32>
    %c240_i32_53 = arith.constant 240 : i32
    %145 = vector.broadcast %c240_i32_53 : i32 to vector<1x256xi32>
    %146 = arith.cmpi slt, %2, %145 : vector<1x256xi32>
    %147 = arith.andi %144, %146 : vector<1x256xi1>
    %c-1_i32_54 = arith.constant -1 : i32
    %148 = vector.broadcast %c-1_i32_54 : i32 to vector<1x256xi32>
    %149 = arith.cmpi sge, %4, %148 : vector<1x256xi32>
    %150 = arith.andi %147, %149 : vector<1x256xi1>
    %c15_i32_55 = arith.constant 15 : i32
    %151 = vector.broadcast %c15_i32_55 : i32 to vector<1x256xi32>
    %152 = arith.cmpi slt, %4, %151 : vector<1x256xi32>
    %153 = arith.andi %150, %152 : vector<1x256xi1>
    %cst_56 = arith.constant 0.000000e+00 : f32
    %154 = vector.shape_cast %153 : vector<1x256xi1> to vector<1x256xi1>
    %155 = vector.broadcast %154 : vector<1x256xi1> to vector<4x256xi1>
    %156 = vector.broadcast %cst_56 : f32 to vector<4x256xf32>
    %157 = arith.select %155, %142, %156 : vector<4x256xi1>, vector<4x256xf32>
    %c32 = arith.constant 32 : index
    %c0_57 = arith.constant 0 : index
    %158 = vector.load %arg21[%c32, %c0_57] : memref<196x256xf32, #tpu.memory_space<vmem>>, vector<4x256xf32>
    tpu.vector_store %arg21[%c32, %c0_57], %157 {strides = array<i32>} : memref<196x256xf32, #tpu.memory_space<vmem>>, vector<4x256xf32>,
    %c0_58 = arith.constant 0 : index
    %c0_59 = arith.constant 0 : index
    %159 = vector.load %arg2[%c0_58, %c0_59] : memref<8x36xf32, #tpu.memory_space<vmem>>, vector<8x36xf32>
    %c0_60 = arith.constant 0 : index
    %c0_61 = arith.constant 0 : index
    %160 = vector.load %arg21[%c0_60, %c0_61] : memref<196x256xf32, #tpu.memory_space<vmem>>, vector<36x256xf32>
    %cst_62 = arith.constant dense<0.000000e+00> : vector<8x256xf32>
    %161 = tpu.matmul %159, %160, %cst_62 {dimension_numbers = #tpu.dot_dimension_numbers<[1], [0], [0], [1], [0, 0, 1, 1], [], []>} : vector<8x36xf32>, vector<36x256xf32>, vector<8x256xf32> -> vector<8x256xf32>
    %c0_63 = arith.constant 0 : index
    %c0_64 = arith.constant 0 : index
    %162 = vector.load %arg3[%c0_63, %c0_64] : memref<8x1xf32, #tpu.memory_space<vmem>>, vector<8x1xf32>
    %163 = vector.broadcast %162 : vector<8x1xf32> to vector<8x256xf32>
    %164 = arith.addf %161, %163 : vector<8x256xf32>
    %cst_65 = arith.constant 0.000000e+00 : f32
    %165 = vector.broadcast %cst_65 : f32 to vector<8x256xf32>
    %166 = arith.maximumf %164, %165 : vector<8x256xf32>
    %c0_66 = arith.constant 0 : index
    %c128_67 = arith.constant 128 : index
    %167 = vector.load %arg20[%c0_66, %c128_67] : memref<8x512xf32, #tpu.memory_space<vmem>>, vector<8x256xf32>
    tpu.vector_store %arg20[%c0_66, %c128_67], %166 {strides = array<i32>} : memref<8x512xf32, #tpu.memory_space<vmem>>, vector<8x256xf32>,
    %c0_68 = arith.constant 0 : index
    %c111_69 = arith.constant 111 : index
    %168 = vector.load %arg20[%c0_68, %c111_69] : memref<8x512xf32, #tpu.memory_space<vmem>>, vector<8x256xf32>
    %cst_70 = arith.constant 0.000000e+00 : f32
    %169 = vector.shape_cast %17 : vector<1x256xi1> to vector<1x256xi1>
    %170 = vector.broadcast %169 : vector<1x256xi1> to vector<8x256xi1>
    %171 = vector.broadcast %cst_70 : f32 to vector<8x256xf32>
    %172 = arith.select %170, %168, %171 : vector<8x256xi1>, vector<8x256xf32>
    %c0_71 = arith.constant 0 : index
    %c0_72 = arith.constant 0 : index
    %173 = vector.load %arg21[%c0_71, %c0_72] : memref<196x256xf32, #tpu.memory_space<vmem>>, vector<8x256xf32>
    tpu.vector_store %arg21[%c0_71, %c0_72], %172 {strides = array<i32>} : memref<196x256xf32, #tpu.memory_space<vmem>>, vector<8x256xf32>,
    %c0_73 = arith.constant 0 : index
    %c112_74 = arith.constant 112 : index
    %174 = vector.load %arg20[%c0_73, %c112_74] : memref<8x512xf32, #tpu.memory_space<vmem>>, vector<8x256xf32>
    %cst_75 = arith.constant 0.000000e+00 : f32
    %175 = vector.shape_cast %34 : vector<1x256xi1> to vector<1x256xi1>
    %176 = vector.broadcast %175 : vector<1x256xi1> to vector<8x256xi1>
    %177 = vector.broadcast %cst_75 : f32 to vector<8x256xf32>
    %178 = arith.select %176, %174, %177 : vector<8x256xi1>, vector<8x256xf32>
    %c8_76 = arith.constant 8 : index
    %c0_77 = arith.constant 0 : index
    %179 = vector.load %arg21[%c8_76, %c0_77] : memref<196x256xf32, #tpu.memory_space<vmem>>, vector<8x256xf32>
    tpu.vector_store %arg21[%c8_76, %c0_77], %178 {strides = array<i32>} : memref<196x256xf32, #tpu.memory_space<vmem>>, vector<8x256xf32>,
    %c0_78 = arith.constant 0 : index
    %c113_79 = arith.constant 113 : index
    %180 = vector.load %arg20[%c0_78, %c113_79] : memref<8x512xf32, #tpu.memory_space<vmem>>, vector<8x256xf32>
    %cst_80 = arith.constant 0.000000e+00 : f32
    %181 = vector.shape_cast %51 : vector<1x256xi1> to vector<1x256xi1>
    %182 = vector.broadcast %181 : vector<1x256xi1> to vector<8x256xi1>
    %183 = vector.broadcast %cst_80 : f32 to vector<8x256xf32>
    %184 = arith.select %182, %180, %183 : vector<8x256xi1>, vector<8x256xf32>
    %c16_81 = arith.constant 16 : index
    %c0_82 = arith.constant 0 : index
    %185 = vector.load %arg21[%c16_81, %c0_82] : memref<196x256xf32, #tpu.memory_space<vmem>>, vector<8x256xf32>
    tpu.vector_store %arg21[%c16_81, %c0_82], %184 {strides = array<i32>} : memref<196x256xf32, #tpu.memory_space<vmem>>, vector<8x256xf32>,
    %c0_83 = arith.constant 0 : index
    %c127_84 = arith.constant 127 : index
    %186 = vector.load %arg20[%c0_83, %c127_84] : memref<8x512xf32, #tpu.memory_space<vmem>>, vector<8x256xf32>
    %cst_85 = arith.constant 0.000000e+00 : f32
    %187 = vector.shape_cast %68 : vector<1x256xi1> to vector<1x256xi1>
    %188 = vector.broadcast %187 : vector<1x256xi1> to vector<8x256xi1>
    %189 = vector.broadcast %cst_85 : f32 to vector<8x256xf32>
    %190 = arith.select %188, %186, %189 : vector<8x256xi1>, vector<8x256xf32>
    %c24_86 = arith.constant 24 : index
    %c0_87 = arith.constant 0 : index
    %191 = vector.load %arg21[%c24_86, %c0_87] : memref<196x256xf32, #tpu.memory_space<vmem>>, vector<8x256xf32>
    tpu.vector_store %arg21[%c24_86, %c0_87], %190 {strides = array<i32>} : memref<196x256xf32, #tpu.memory_space<vmem>>, vector<8x256xf32>,
    %c0_88 = arith.constant 0 : index
    %c128_89 = arith.constant 128 : index
    %192 = vector.load %arg20[%c0_88, %c128_89] : memref<8x512xf32, #tpu.memory_space<vmem>>, vector<8x256xf32>
    %cst_90 = arith.constant 0.000000e+00 : f32
    %193 = vector.shape_cast %85 : vector<1x256xi1> to vector<1x256xi1>
    %194 = vector.broadcast %193 : vector<1x256xi1> to vector<8x256xi1>
    %195 = vector.broadcast %cst_90 : f32 to vector<8x256xf32>
    %196 = arith.select %194, %192, %195 : vector<8x256xi1>, vector<8x256xf32>
    %c32_91 = arith.constant 32 : index
    %c0_92 = arith.constant 0 : index
    %197 = vector.load %arg21[%c32_91, %c0_92] : memref<196x256xf32, #tpu.memory_space<vmem>>, vector<8x256xf32>
    tpu.vector_store %arg21[%c32_91, %c0_92], %196 {strides = array<i32>} : memref<196x256xf32, #tpu.memory_space<vmem>>, vector<8x256xf32>,
    %c0_93 = arith.constant 0 : index
    %c129_94 = arith.constant 129 : index
    %198 = vector.load %arg20[%c0_93, %c129_94] : memref<8x512xf32, #tpu.memory_space<vmem>>, vector<8x256xf32>
    %cst_95 = arith.constant 0.000000e+00 : f32
    %199 = vector.shape_cast %102 : vector<1x256xi1> to vector<1x256xi1>
    %200 = vector.broadcast %199 : vector<1x256xi1> to vector<8x256xi1>
    %201 = vector.broadcast %cst_95 : f32 to vector<8x256xf32>
    %202 = arith.select %200, %198, %201 : vector<8x256xi1>, vector<8x256xf32>
    %c40 = arith.constant 40 : index
    %c0_96 = arith.constant 0 : index
    %203 = vector.load %arg21[%c40, %c0_96] : memref<196x256xf32, #tpu.memory_space<vmem>>, vector<8x256xf32>
    tpu.vector_store %arg21[%c40, %c0_96], %202 {strides = array<i32>} : memref<196x256xf32, #tpu.memory_space<vmem>>, vector<8x256xf32>,
    %c0_97 = arith.constant 0 : index
    %c143_98 = arith.constant 143 : index
    %204 = vector.load %arg20[%c0_97, %c143_98] : memref<8x512xf32, #tpu.memory_space<vmem>>, vector<8x256xf32>
    %cst_99 = arith.constant 0.000000e+00 : f32
    %205 = vector.shape_cast %119 : vector<1x256xi1> to vector<1x256xi1>
    %206 = vector.broadcast %205 : vector<1x256xi1> to vector<8x256xi1>
    %207 = vector.broadcast %cst_99 : f32 to vector<8x256xf32>
    %208 = arith.select %206, %204, %207 : vector<8x256xi1>, vector<8x256xf32>
    %c48 = arith.constant 48 : index
    %c0_100 = arith.constant 0 : index
    %209 = vector.load %arg21[%c48, %c0_100] : memref<196x256xf32, #tpu.memory_space<vmem>>, vector<8x256xf32>
    tpu.vector_store %arg21[%c48, %c0_100], %208 {strides = array<i32>} : memref<196x256xf32, #tpu.memory_space<vmem>>, vector<8x256xf32>,
    %c0_101 = arith.constant 0 : index
    %c144_102 = arith.constant 144 : index
    %210 = vector.load %arg20[%c0_101, %c144_102] : memref<8x512xf32, #tpu.memory_space<vmem>>, vector<8x256xf32>
    %cst_103 = arith.constant 0.000000e+00 : f32
    %211 = vector.shape_cast %136 : vector<1x256xi1> to vector<1x256xi1>
    %212 = vector.broadcast %211 : vector<1x256xi1> to vector<8x256xi1>
    %213 = vector.broadcast %cst_103 : f32 to vector<8x256xf32>
    %214 = arith.select %212, %210, %213 : vector<8x256xi1>, vector<8x256xf32>
    %c56 = arith.constant 56 : index
    %c0_104 = arith.constant 0 : index
    %215 = vector.load %arg21[%c56, %c0_104] : memref<196x256xf32, #tpu.memory_space<vmem>>, vector<8x256xf32>
    tpu.vector_store %arg21[%c56, %c0_104], %214 {strides = array<i32>} : memref<196x256xf32, #tpu.memory_space<vmem>>, vector<8x256xf32>,
    %c0_105 = arith.constant 0 : index
    %c145_106 = arith.constant 145 : index
    %216 = vector.load %arg20[%c0_105, %c145_106] : memref<8x512xf32, #tpu.memory_space<vmem>>, vector<8x256xf32>
    %cst_107 = arith.constant 0.000000e+00 : f32
    %217 = vector.shape_cast %153 : vector<1x256xi1> to vector<1x256xi1>
    %218 = vector.broadcast %217 : vector<1x256xi1> to vector<8x256xi1>
    %219 = vector.broadcast %cst_107 : f32 to vector<8x256xf32>
    %220 = arith.select %218, %216, %219 : vector<8x256xi1>, vector<8x256xf32>
    %c64 = arith.constant 64 : index
    %c0_108 = arith.constant 0 : index
    %221 = vector.load %arg21[%c64, %c0_108] : memref<196x256xf32, #tpu.memory_space<vmem>>, vector<8x256xf32>
    tpu.vector_store %arg21[%c64, %c0_108], %220 {strides = array<i32>} : memref<196x256xf32, #tpu.memory_space<vmem>>, vector<8x256xf32>,
    %c0_109 = arith.constant 0 : index
    %c0_110 = arith.constant 0 : index
    %222 = vector.load %arg4[%c0_109, %c0_110] : memref<8x72xf32, #tpu.memory_space<vmem>>, vector<8x72xf32>
    %c0_111 = arith.constant 0 : index
    %c0_112 = arith.constant 0 : index
    %223 = vector.load %arg21[%c0_111, %c0_112] : memref<196x256xf32, #tpu.memory_space<vmem>>, vector<72x256xf32>
    %cst_113 = arith.constant dense<0.000000e+00> : vector<8x256xf32>
    %224 = tpu.matmul %222, %223, %cst_113 {dimension_numbers = #tpu.dot_dimension_numbers<[1], [0], [0], [1], [0, 0, 1, 1], [], []>} : vector<8x72xf32>, vector<72x256xf32>, vector<8x256xf32> -> vector<8x256xf32>
    %c0_114 = arith.constant 0 : index
    %c0_115 = arith.constant 0 : index
    %225 = vector.load %arg5[%c0_114, %c0_115] : memref<8x1xf32, #tpu.memory_space<vmem>>, vector<8x1xf32>
    %226 = vector.broadcast %225 : vector<8x1xf32> to vector<8x256xf32>
    %227 = arith.addf %224, %226 : vector<8x256xf32>
    %cst_116 = arith.constant 0.000000e+00 : f32
    %228 = vector.broadcast %cst_116 : f32 to vector<8x256xf32>
    %229 = arith.maximumf %227, %228 : vector<8x256xf32>
    %c0_117 = arith.constant 0 : index
    %c0_118 = arith.constant 0 : index
    %230 = vector.load %arg12[%c0_117, %c0_118] : memref<4x8xf32, #tpu.memory_space<vmem>>, vector<4x8xf32>
    %cst_119 = arith.constant dense<0.000000e+00> : vector<4x256xf32>
    %231 = tpu.matmul %230, %229, %cst_119 {dimension_numbers = #tpu.dot_dimension_numbers<[1], [0], [0], [1], [0, 0, 1, 1], [], []>} : vector<4x8xf32>, vector<8x256xf32>, vector<4x256xf32> -> vector<4x256xf32>
    %232 = arith.addf %1, %231 : vector<4x256xf32>
    %c0_120 = arith.constant 0 : index
    %c0_121 = arith.constant 0 : index
    %233 = vector.load %arg13[%c0_120, %c0_121] : memref<4x1xf32, #tpu.memory_space<vmem>>, vector<4x1xf32>
    %234 = vector.broadcast %233 : vector<4x1xf32> to vector<4x256xf32>
    %235 = arith.addf %232, %234 : vector<4x256xf32>
    %cst_122 = arith.constant 0.000000e+00 : f32
    %236 = vector.broadcast %cst_122 : f32 to vector<4x256xf32>
    %237 = arith.maximumf %235, %236 : vector<4x256xf32>
    %c0_123 = arith.constant 0 : index
    %c128_124 = arith.constant 128 : index
    %238 = vector.load %arg20[%c0_123, %c128_124] : memref<8x512xf32, #tpu.memory_space<vmem>>, vector<4x256xf32>
    tpu.vector_store %arg20[%c0_123, %c128_124], %1 {strides = array<i32>} : memref<8x512xf32, #tpu.memory_space<vmem>>, vector<4x256xf32>,
    %c0_125 = arith.constant 0 : index
    %c94 = arith.constant 94 : index
    %239 = vector.load %arg20[%c0_125, %c94] : memref<8x512xf32, #tpu.memory_space<vmem>>, vector<4x256xf32>
    %c32_i32 = arith.constant 32 : i32
    %240 = vector.broadcast %c32_i32 : i32 to vector<1x256xi32>
    %241 = arith.cmpi sge, %2, %240 : vector<1x256xi32>
    %c288_i32 = arith.constant 288 : i32
    %242 = vector.broadcast %c288_i32 : i32 to vector<1x256xi32>
    %243 = arith.cmpi slt, %2, %242 : vector<1x256xi32>
    %244 = arith.andi %241, %243 : vector<1x256xi1>
    %c2_i32 = arith.constant 2 : i32
    %245 = vector.broadcast %c2_i32 : i32 to vector<1x256xi32>
    %246 = arith.cmpi sge, %4, %245 : vector<1x256xi32>
    %247 = arith.andi %244, %246 : vector<1x256xi1>
    %c18_i32 = arith.constant 18 : i32
    %248 = vector.broadcast %c18_i32 : i32 to vector<1x256xi32>
    %249 = arith.cmpi slt, %4, %248 : vector<1x256xi32>
    %250 = arith.andi %247, %249 : vector<1x256xi1>
    %cst_126 = arith.constant 0.000000e+00 : f32
    %251 = vector.shape_cast %250 : vector<1x256xi1> to vector<1x256xi1>
    %252 = vector.broadcast %251 : vector<1x256xi1> to vector<4x256xi1>
    %253 = vector.broadcast %cst_126 : f32 to vector<4x256xf32>
    %254 = arith.select %252, %239, %253 : vector<4x256xi1>, vector<4x256xf32>
    %c0_127 = arith.constant 0 : index
    %c0_128 = arith.constant 0 : index
    %255 = vector.load %arg21[%c0_127, %c0_128] : memref<196x256xf32, #tpu.memory_space<vmem>>, vector<4x256xf32>
    tpu.vector_store %arg21[%c0_127, %c0_128], %254 {strides = array<i32>} : memref<196x256xf32, #tpu.memory_space<vmem>>, vector<4x256xf32>,
    %c0_129 = arith.constant 0 : index
    %c95 = arith.constant 95 : index
    %256 = vector.load %arg20[%c0_129, %c95] : memref<8x512xf32, #tpu.memory_space<vmem>>, vector<4x256xf32>
    %c32_i32_130 = arith.constant 32 : i32
    %257 = vector.broadcast %c32_i32_130 : i32 to vector<1x256xi32>
    %258 = arith.cmpi sge, %2, %257 : vector<1x256xi32>
    %c288_i32_131 = arith.constant 288 : i32
    %259 = vector.broadcast %c288_i32_131 : i32 to vector<1x256xi32>
    %260 = arith.cmpi slt, %2, %259 : vector<1x256xi32>
    %261 = arith.andi %258, %260 : vector<1x256xi1>
    %c1_i32_132 = arith.constant 1 : i32
    %262 = vector.broadcast %c1_i32_132 : i32 to vector<1x256xi32>
    %263 = arith.cmpi sge, %4, %262 : vector<1x256xi32>
    %264 = arith.andi %261, %263 : vector<1x256xi1>
    %c17_i32_133 = arith.constant 17 : i32
    %265 = vector.broadcast %c17_i32_133 : i32 to vector<1x256xi32>
    %266 = arith.cmpi slt, %4, %265 : vector<1x256xi32>
    %267 = arith.andi %264, %266 : vector<1x256xi1>
    %cst_134 = arith.constant 0.000000e+00 : f32
    %268 = vector.shape_cast %267 : vector<1x256xi1> to vector<1x256xi1>
    %269 = vector.broadcast %268 : vector<1x256xi1> to vector<4x256xi1>
    %270 = vector.broadcast %cst_134 : f32 to vector<4x256xf32>
    %271 = arith.select %269, %256, %270 : vector<4x256xi1>, vector<4x256xf32>
    %c4_135 = arith.constant 4 : index
    %c0_136 = arith.constant 0 : index
    %272 = vector.load %arg21[%c4_135, %c0_136] : memref<196x256xf32, #tpu.memory_space<vmem>>, vector<4x256xf32>
    tpu.vector_store %arg21[%c4_135, %c0_136], %271 {strides = array<i32>} : memref<196x256xf32, #tpu.memory_space<vmem>>, vector<4x256xf32>,
    %c0_137 = arith.constant 0 : index
    %c96 = arith.constant 96 : index
    %273 = vector.load %arg20[%c0_137, %c96] : memref<8x512xf32, #tpu.memory_space<vmem>>, vector<4x256xf32>
    %c32_i32_138 = arith.constant 32 : i32
    %274 = vector.broadcast %c32_i32_138 : i32 to vector<1x256xi32>
    %275 = arith.cmpi sge, %2, %274 : vector<1x256xi32>
    %c288_i32_139 = arith.constant 288 : i32
    %276 = vector.broadcast %c288_i32_139 : i32 to vector<1x256xi32>
    %277 = arith.cmpi slt, %2, %276 : vector<1x256xi32>
    %278 = arith.andi %275, %277 : vector<1x256xi1>
    %c0_i32_140 = arith.constant 0 : i32
    %279 = vector.broadcast %c0_i32_140 : i32 to vector<1x256xi32>
    %280 = arith.cmpi sge, %4, %279 : vector<1x256xi32>
    %281 = arith.andi %278, %280 : vector<1x256xi1>
    %c16_i32_141 = arith.constant 16 : i32
    %282 = vector.broadcast %c16_i32_141 : i32 to vector<1x256xi32>
    %283 = arith.cmpi slt, %4, %282 : vector<1x256xi32>
    %284 = arith.andi %281, %283 : vector<1x256xi1>
    %cst_142 = arith.constant 0.000000e+00 : f32
    %285 = vector.shape_cast %284 : vector<1x256xi1> to vector<1x256xi1>
    %286 = vector.broadcast %285 : vector<1x256xi1> to vector<4x256xi1>
    %287 = vector.broadcast %cst_142 : f32 to vector<4x256xf32>
    %288 = arith.select %286, %273, %287 : vector<4x256xi1>, vector<4x256xf32>
    %c8_143 = arith.constant 8 : index
    %c0_144 = arith.constant 0 : index
    %289 = vector.load %arg21[%c8_143, %c0_144] : memref<196x256xf32, #tpu.memory_space<vmem>>, vector<4x256xf32>
    tpu.vector_store %arg21[%c8_143, %c0_144], %288 {strides = array<i32>} : memref<196x256xf32, #tpu.memory_space<vmem>>, vector<4x256xf32>,
    %c0_145 = arith.constant 0 : index
    %c97 = arith.constant 97 : index
    %290 = vector.load %arg20[%c0_145, %c97] : memref<8x512xf32, #tpu.memory_space<vmem>>, vector<4x256xf32>
    %c32_i32_146 = arith.constant 32 : i32
    %291 = vector.broadcast %c32_i32_146 : i32 to vector<1x256xi32>
    %292 = arith.cmpi sge, %2, %291 : vector<1x256xi32>
    %c288_i32_147 = arith.constant 288 : i32
    %293 = vector.broadcast %c288_i32_147 : i32 to vector<1x256xi32>
    %294 = arith.cmpi slt, %2, %293 : vector<1x256xi32>
    %295 = arith.andi %292, %294 : vector<1x256xi1>
    %c-1_i32_148 = arith.constant -1 : i32
    %296 = vector.broadcast %c-1_i32_148 : i32 to vector<1x256xi32>
    %297 = arith.cmpi sge, %4, %296 : vector<1x256xi32>
    %298 = arith.andi %295, %297 : vector<1x256xi1>
    %c15_i32_149 = arith.constant 15 : i32
    %299 = vector.broadcast %c15_i32_149 : i32 to vector<1x256xi32>
    %300 = arith.cmpi slt, %4, %299 : vector<1x256xi32>
    %301 = arith.andi %298, %300 : vector<1x256xi1>
    %cst_150 = arith.constant 0.000000e+00 : f32
    %302 = vector.shape_cast %301 : vector<1x256xi1> to vector<1x256xi1>
    %303 = vector.broadcast %302 : vector<1x256xi1> to vector<4x256xi1>
    %304 = vector.broadcast %cst_150 : f32 to vector<4x256xf32>
    %305 = arith.select %303, %290, %304 : vector<4x256xi1>, vector<4x256xf32>
    %c12_151 = arith.constant 12 : index
    %c0_152 = arith.constant 0 : index
    %306 = vector.load %arg21[%c12_151, %c0_152] : memref<196x256xf32, #tpu.memory_space<vmem>>, vector<4x256xf32>
    tpu.vector_store %arg21[%c12_151, %c0_152], %305 {strides = array<i32>} : memref<196x256xf32, #tpu.memory_space<vmem>>, vector<4x256xf32>,
    %c0_153 = arith.constant 0 : index
    %c98 = arith.constant 98 : index
    %307 = vector.load %arg20[%c0_153, %c98] : memref<8x512xf32, #tpu.memory_space<vmem>>, vector<4x256xf32>
    %c32_i32_154 = arith.constant 32 : i32
    %308 = vector.broadcast %c32_i32_154 : i32 to vector<1x256xi32>
    %309 = arith.cmpi sge, %2, %308 : vector<1x256xi32>
    %c288_i32_155 = arith.constant 288 : i32
    %310 = vector.broadcast %c288_i32_155 : i32 to vector<1x256xi32>
    %311 = arith.cmpi slt, %2, %310 : vector<1x256xi32>
    %312 = arith.andi %309, %311 : vector<1x256xi1>
    %c-2_i32 = arith.constant -2 : i32
    %313 = vector.broadcast %c-2_i32 : i32 to vector<1x256xi32>
    %314 = arith.cmpi sge, %4, %313 : vector<1x256xi32>
    %315 = arith.andi %312, %314 : vector<1x256xi1>
    %c14_i32 = arith.constant 14 : i32
    %316 = vector.broadcast %c14_i32 : i32 to vector<1x256xi32>
    %317 = arith.cmpi slt, %4, %316 : vector<1x256xi32>
    %318 = arith.andi %315, %317 : vector<1x256xi1>
    %cst_156 = arith.constant 0.000000e+00 : f32
    %319 = vector.shape_cast %318 : vector<1x256xi1> to vector<1x256xi1>
    %320 = vector.broadcast %319 : vector<1x256xi1> to vector<4x256xi1>
    %321 = vector.broadcast %cst_156 : f32 to vector<4x256xf32>
    %322 = arith.select %320, %307, %321 : vector<4x256xi1>, vector<4x256xf32>
    %c16_157 = arith.constant 16 : index
    %c0_158 = arith.constant 0 : index
    %323 = vector.load %arg21[%c16_157, %c0_158] : memref<196x256xf32, #tpu.memory_space<vmem>>, vector<4x256xf32>
    tpu.vector_store %arg21[%c16_157, %c0_158], %322 {strides = array<i32>} : memref<196x256xf32, #tpu.memory_space<vmem>>, vector<4x256xf32>,
    %c0_159 = arith.constant 0 : index
    %c110 = arith.constant 110 : index
    %324 = vector.load %arg20[%c0_159, %c110] : memref<8x512xf32, #tpu.memory_space<vmem>>, vector<4x256xf32>
    %c16_i32_160 = arith.constant 16 : i32
    %325 = vector.broadcast %c16_i32_160 : i32 to vector<1x256xi32>
    %326 = arith.cmpi sge, %2, %325 : vector<1x256xi32>
    %c272_i32_161 = arith.constant 272 : i32
    %327 = vector.broadcast %c272_i32_161 : i32 to vector<1x256xi32>
    %328 = arith.cmpi slt, %2, %327 : vector<1x256xi32>
    %329 = arith.andi %326, %328 : vector<1x256xi1>
    %c2_i32_162 = arith.constant 2 : i32
    %330 = vector.broadcast %c2_i32_162 : i32 to vector<1x256xi32>
    %331 = arith.cmpi sge, %4, %330 : vector<1x256xi32>
    %332 = arith.andi %329, %331 : vector<1x256xi1>
    %c18_i32_163 = arith.constant 18 : i32
    %333 = vector.broadcast %c18_i32_163 : i32 to vector<1x256xi32>
    %334 = arith.cmpi slt, %4, %333 : vector<1x256xi32>
    %335 = arith.andi %332, %334 : vector<1x256xi1>
    %cst_164 = arith.constant 0.000000e+00 : f32
    %336 = vector.shape_cast %335 : vector<1x256xi1> to vector<1x256xi1>
    %337 = vector.broadcast %336 : vector<1x256xi1> to vector<4x256xi1>
    %338 = vector.broadcast %cst_164 : f32 to vector<4x256xf32>
    %339 = arith.select %337, %324, %338 : vector<4x256xi1>, vector<4x256xf32>
    %c20_165 = arith.constant 20 : index
    %c0_166 = arith.constant 0 : index
    %340 = vector.load %arg21[%c20_165, %c0_166] : memref<196x256xf32, #tpu.memory_space<vmem>>, vector<4x256xf32>
    tpu.vector_store %arg21[%c20_165, %c0_166], %339 {strides = array<i32>} : memref<196x256xf32, #tpu.memory_space<vmem>>, vector<4x256xf32>,
    %c0_167 = arith.constant 0 : index
    %c111_168 = arith.constant 111 : index
    %341 = vector.load %arg20[%c0_167, %c111_168] : memref<8x512xf32, #tpu.memory_space<vmem>>, vector<4x256xf32>
    %cst_169 = arith.constant 0.000000e+00 : f32
    %342 = vector.shape_cast %17 : vector<1x256xi1> to vector<1x256xi1>
    %343 = vector.broadcast %342 : vector<1x256xi1> to vector<4x256xi1>
    %344 = vector.broadcast %cst_169 : f32 to vector<4x256xf32>
    %345 = arith.select %343, %341, %344 : vector<4x256xi1>, vector<4x256xf32>
    %c24_170 = arith.constant 24 : index
    %c0_171 = arith.constant 0 : index
    %346 = vector.load %arg21[%c24_170, %c0_171] : memref<196x256xf32, #tpu.memory_space<vmem>>, vector<4x256xf32>
    tpu.vector_store %arg21[%c24_170, %c0_171], %345 {strides = array<i32>} : memref<196x256xf32, #tpu.memory_space<vmem>>, vector<4x256xf32>,
    %c0_172 = arith.constant 0 : index
    %c112_173 = arith.constant 112 : index
    %347 = vector.load %arg20[%c0_172, %c112_173] : memref<8x512xf32, #tpu.memory_space<vmem>>, vector<4x256xf32>
    %cst_174 = arith.constant 0.000000e+00 : f32
    %348 = vector.shape_cast %34 : vector<1x256xi1> to vector<1x256xi1>
    %349 = vector.broadcast %348 : vector<1x256xi1> to vector<4x256xi1>
    %350 = vector.broadcast %cst_174 : f32 to vector<4x256xf32>
    %351 = arith.select %349, %347, %350 : vector<4x256xi1>, vector<4x256xf32>
    %c28_175 = arith.constant 28 : index
    %c0_176 = arith.constant 0 : index
    %352 = vector.load %arg21[%c28_175, %c0_176] : memref<196x256xf32, #tpu.memory_space<vmem>>, vector<4x256xf32>
    tpu.vector_store %arg21[%c28_175, %c0_176], %351 {strides = array<i32>} : memref<196x256xf32, #tpu.memory_space<vmem>>, vector<4x256xf32>,
    %c0_177 = arith.constant 0 : index
    %c113_178 = arith.constant 113 : index
    %353 = vector.load %arg20[%c0_177, %c113_178] : memref<8x512xf32, #tpu.memory_space<vmem>>, vector<4x256xf32>
    %cst_179 = arith.constant 0.000000e+00 : f32
    %354 = vector.shape_cast %51 : vector<1x256xi1> to vector<1x256xi1>
    %355 = vector.broadcast %354 : vector<1x256xi1> to vector<4x256xi1>
    %356 = vector.broadcast %cst_179 : f32 to vector<4x256xf32>
    %357 = arith.select %355, %353, %356 : vector<4x256xi1>, vector<4x256xf32>
    %c32_180 = arith.constant 32 : index
    %c0_181 = arith.constant 0 : index
    %358 = vector.load %arg21[%c32_180, %c0_181] : memref<196x256xf32, #tpu.memory_space<vmem>>, vector<4x256xf32>
    tpu.vector_store %arg21[%c32_180, %c0_181], %357 {strides = array<i32>} : memref<196x256xf32, #tpu.memory_space<vmem>>, vector<4x256xf32>,
    %c0_182 = arith.constant 0 : index
    %c114 = arith.constant 114 : index
    %359 = vector.load %arg20[%c0_182, %c114] : memref<8x512xf32, #tpu.memory_space<vmem>>, vector<4x256xf32>
    %c16_i32_183 = arith.constant 16 : i32
    %360 = vector.broadcast %c16_i32_183 : i32 to vector<1x256xi32>
    %361 = arith.cmpi sge, %2, %360 : vector<1x256xi32>
    %c272_i32_184 = arith.constant 272 : i32
    %362 = vector.broadcast %c272_i32_184 : i32 to vector<1x256xi32>
    %363 = arith.cmpi slt, %2, %362 : vector<1x256xi32>
    %364 = arith.andi %361, %363 : vector<1x256xi1>
    %c-2_i32_185 = arith.constant -2 : i32
    %365 = vector.broadcast %c-2_i32_185 : i32 to vector<1x256xi32>
    %366 = arith.cmpi sge, %4, %365 : vector<1x256xi32>
    %367 = arith.andi %364, %366 : vector<1x256xi1>
    %c14_i32_186 = arith.constant 14 : i32
    %368 = vector.broadcast %c14_i32_186 : i32 to vector<1x256xi32>
    %369 = arith.cmpi slt, %4, %368 : vector<1x256xi32>
    %370 = arith.andi %367, %369 : vector<1x256xi1>
    %cst_187 = arith.constant 0.000000e+00 : f32
    %371 = vector.shape_cast %370 : vector<1x256xi1> to vector<1x256xi1>
    %372 = vector.broadcast %371 : vector<1x256xi1> to vector<4x256xi1>
    %373 = vector.broadcast %cst_187 : f32 to vector<4x256xf32>
    %374 = arith.select %372, %359, %373 : vector<4x256xi1>, vector<4x256xf32>
    %c36 = arith.constant 36 : index
    %c0_188 = arith.constant 0 : index
    %375 = vector.load %arg21[%c36, %c0_188] : memref<196x256xf32, #tpu.memory_space<vmem>>, vector<4x256xf32>
    tpu.vector_store %arg21[%c36, %c0_188], %374 {strides = array<i32>} : memref<196x256xf32, #tpu.memory_space<vmem>>, vector<4x256xf32>,
    %c0_189 = arith.constant 0 : index
    %c126 = arith.constant 126 : index
    %376 = vector.load %arg20[%c0_189, %c126] : memref<8x512xf32, #tpu.memory_space<vmem>>, vector<4x256xf32>
    %c0_i32_190 = arith.constant 0 : i32
    %377 = vector.broadcast %c0_i32_190 : i32 to vector<1x256xi32>
    %378 = arith.cmpi sge, %2, %377 : vector<1x256xi32>
    %c256_i32_191 = arith.constant 256 : i32
    %379 = vector.broadcast %c256_i32_191 : i32 to vector<1x256xi32>
    %380 = arith.cmpi slt, %2, %379 : vector<1x256xi32>
    %381 = arith.andi %378, %380 : vector<1x256xi1>
    %c2_i32_192 = arith.constant 2 : i32
    %382 = vector.broadcast %c2_i32_192 : i32 to vector<1x256xi32>
    %383 = arith.cmpi sge, %4, %382 : vector<1x256xi32>
    %384 = arith.andi %381, %383 : vector<1x256xi1>
    %c18_i32_193 = arith.constant 18 : i32
    %385 = vector.broadcast %c18_i32_193 : i32 to vector<1x256xi32>
    %386 = arith.cmpi slt, %4, %385 : vector<1x256xi32>
    %387 = arith.andi %384, %386 : vector<1x256xi1>
    %cst_194 = arith.constant 0.000000e+00 : f32
    %388 = vector.shape_cast %387 : vector<1x256xi1> to vector<1x256xi1>
    %389 = vector.broadcast %388 : vector<1x256xi1> to vector<4x256xi1>
    %390 = vector.broadcast %cst_194 : f32 to vector<4x256xf32>
    %391 = arith.select %389, %376, %390 : vector<4x256xi1>, vector<4x256xf32>
    %c40_195 = arith.constant 40 : index
    %c0_196 = arith.constant 0 : index
    %392 = vector.load %arg21[%c40_195, %c0_196] : memref<196x256xf32, #tpu.memory_space<vmem>>, vector<4x256xf32>
    tpu.vector_store %arg21[%c40_195, %c0_196], %391 {strides = array<i32>} : memref<196x256xf32, #tpu.memory_space<vmem>>, vector<4x256xf32>,
    %c0_197 = arith.constant 0 : index
    %c127_198 = arith.constant 127 : index
    %393 = vector.load %arg20[%c0_197, %c127_198] : memref<8x512xf32, #tpu.memory_space<vmem>>, vector<4x256xf32>
    %cst_199 = arith.constant 0.000000e+00 : f32
    %394 = vector.shape_cast %68 : vector<1x256xi1> to vector<1x256xi1>
    %395 = vector.broadcast %394 : vector<1x256xi1> to vector<4x256xi1>
    %396 = vector.broadcast %cst_199 : f32 to vector<4x256xf32>
    %397 = arith.select %395, %393, %396 : vector<4x256xi1>, vector<4x256xf32>
    %c44 = arith.constant 44 : index
    %c0_200 = arith.constant 0 : index
    %398 = vector.load %arg21[%c44, %c0_200] : memref<196x256xf32, #tpu.memory_space<vmem>>, vector<4x256xf32>
    tpu.vector_store %arg21[%c44, %c0_200], %397 {strides = array<i32>} : memref<196x256xf32, #tpu.memory_space<vmem>>, vector<4x256xf32>,
    %c0_201 = arith.constant 0 : index
    %c128_202 = arith.constant 128 : index
    %399 = vector.load %arg20[%c0_201, %c128_202] : memref<8x512xf32, #tpu.memory_space<vmem>>, vector<4x256xf32>
    %cst_203 = arith.constant 0.000000e+00 : f32
    %400 = vector.shape_cast %85 : vector<1x256xi1> to vector<1x256xi1>
    %401 = vector.broadcast %400 : vector<1x256xi1> to vector<4x256xi1>
    %402 = vector.broadcast %cst_203 : f32 to vector<4x256xf32>
    %403 = arith.select %401, %399, %402 : vector<4x256xi1>, vector<4x256xf32>
    %c48_204 = arith.constant 48 : index
    %c0_205 = arith.constant 0 : index
    %404 = vector.load %arg21[%c48_204, %c0_205] : memref<196x256xf32, #tpu.memory_space<vmem>>, vector<4x256xf32>
    tpu.vector_store %arg21[%c48_204, %c0_205], %403 {strides = array<i32>} : memref<196x256xf32, #tpu.memory_space<vmem>>, vector<4x256xf32>,
    %c0_206 = arith.constant 0 : index
    %c129_207 = arith.constant 129 : index
    %405 = vector.load %arg20[%c0_206, %c129_207] : memref<8x512xf32, #tpu.memory_space<vmem>>, vector<4x256xf32>
    %cst_208 = arith.constant 0.000000e+00 : f32
    %406 = vector.shape_cast %102 : vector<1x256xi1> to vector<1x256xi1>
    %407 = vector.broadcast %406 : vector<1x256xi1> to vector<4x256xi1>
    %408 = vector.broadcast %cst_208 : f32 to vector<4x256xf32>
    %409 = arith.select %407, %405, %408 : vector<4x256xi1>, vector<4x256xf32>
    %c52 = arith.constant 52 : index
    %c0_209 = arith.constant 0 : index
    %410 = vector.load %arg21[%c52, %c0_209] : memref<196x256xf32, #tpu.memory_space<vmem>>, vector<4x256xf32>
    tpu.vector_store %arg21[%c52, %c0_209], %409 {strides = array<i32>} : memref<196x256xf32, #tpu.memory_space<vmem>>, vector<4x256xf32>,
    %c0_210 = arith.constant 0 : index
    %c130 = arith.constant 130 : index
    %411 = vector.load %arg20[%c0_210, %c130] : memref<8x512xf32, #tpu.memory_space<vmem>>, vector<4x256xf32>
    %c0_i32_211 = arith.constant 0 : i32
    %412 = vector.broadcast %c0_i32_211 : i32 to vector<1x256xi32>
    %413 = arith.cmpi sge, %2, %412 : vector<1x256xi32>
    %c256_i32_212 = arith.constant 256 : i32
    %414 = vector.broadcast %c256_i32_212 : i32 to vector<1x256xi32>
    %415 = arith.cmpi slt, %2, %414 : vector<1x256xi32>
    %416 = arith.andi %413, %415 : vector<1x256xi1>
    %c-2_i32_213 = arith.constant -2 : i32
    %417 = vector.broadcast %c-2_i32_213 : i32 to vector<1x256xi32>
    %418 = arith.cmpi sge, %4, %417 : vector<1x256xi32>
    %419 = arith.andi %416, %418 : vector<1x256xi1>
    %c14_i32_214 = arith.constant 14 : i32
    %420 = vector.broadcast %c14_i32_214 : i32 to vector<1x256xi32>
    %421 = arith.cmpi slt, %4, %420 : vector<1x256xi32>
    %422 = arith.andi %419, %421 : vector<1x256xi1>
    %cst_215 = arith.constant 0.000000e+00 : f32
    %423 = vector.shape_cast %422 : vector<1x256xi1> to vector<1x256xi1>
    %424 = vector.broadcast %423 : vector<1x256xi1> to vector<4x256xi1>
    %425 = vector.broadcast %cst_215 : f32 to vector<4x256xf32>
    %426 = arith.select %424, %411, %425 : vector<4x256xi1>, vector<4x256xf32>
    %c56_216 = arith.constant 56 : index
    %c0_217 = arith.constant 0 : index
    %427 = vector.load %arg21[%c56_216, %c0_217] : memref<196x256xf32, #tpu.memory_space<vmem>>, vector<4x256xf32>
    tpu.vector_store %arg21[%c56_216, %c0_217], %426 {strides = array<i32>} : memref<196x256xf32, #tpu.memory_space<vmem>>, vector<4x256xf32>,
    %c0_218 = arith.constant 0 : index
    %c142 = arith.constant 142 : index
    %428 = vector.load %arg20[%c0_218, %c142] : memref<8x512xf32, #tpu.memory_space<vmem>>, vector<4x256xf32>
    %c-16_i32_219 = arith.constant -16 : i32
    %429 = vector.broadcast %c-16_i32_219 : i32 to vector<1x256xi32>
    %430 = arith.cmpi sge, %2, %429 : vector<1x256xi32>
    %c240_i32_220 = arith.constant 240 : i32
    %431 = vector.broadcast %c240_i32_220 : i32 to vector<1x256xi32>
    %432 = arith.cmpi slt, %2, %431 : vector<1x256xi32>
    %433 = arith.andi %430, %432 : vector<1x256xi1>
    %c2_i32_221 = arith.constant 2 : i32
    %434 = vector.broadcast %c2_i32_221 : i32 to vector<1x256xi32>
    %435 = arith.cmpi sge, %4, %434 : vector<1x256xi32>
    %436 = arith.andi %433, %435 : vector<1x256xi1>
    %c18_i32_222 = arith.constant 18 : i32
    %437 = vector.broadcast %c18_i32_222 : i32 to vector<1x256xi32>
    %438 = arith.cmpi slt, %4, %437 : vector<1x256xi32>
    %439 = arith.andi %436, %438 : vector<1x256xi1>
    %cst_223 = arith.constant 0.000000e+00 : f32
    %440 = vector.shape_cast %439 : vector<1x256xi1> to vector<1x256xi1>
    %441 = vector.broadcast %440 : vector<1x256xi1> to vector<4x256xi1>
    %442 = vector.broadcast %cst_223 : f32 to vector<4x256xf32>
    %443 = arith.select %441, %428, %442 : vector<4x256xi1>, vector<4x256xf32>
    %c60 = arith.constant 60 : index
    %c0_224 = arith.constant 0 : index
    %444 = vector.load %arg21[%c60, %c0_224] : memref<196x256xf32, #tpu.memory_space<vmem>>, vector<4x256xf32>
    tpu.vector_store %arg21[%c60, %c0_224], %443 {strides = array<i32>} : memref<196x256xf32, #tpu.memory_space<vmem>>, vector<4x256xf32>,
    %c0_225 = arith.constant 0 : index
    %c143_226 = arith.constant 143 : index
    %445 = vector.load %arg20[%c0_225, %c143_226] : memref<8x512xf32, #tpu.memory_space<vmem>>, vector<4x256xf32>
    %cst_227 = arith.constant 0.000000e+00 : f32
    %446 = vector.shape_cast %119 : vector<1x256xi1> to vector<1x256xi1>
    %447 = vector.broadcast %446 : vector<1x256xi1> to vector<4x256xi1>
    %448 = vector.broadcast %cst_227 : f32 to vector<4x256xf32>
    %449 = arith.select %447, %445, %448 : vector<4x256xi1>, vector<4x256xf32>
    %c64_228 = arith.constant 64 : index
    %c0_229 = arith.constant 0 : index
    %450 = vector.load %arg21[%c64_228, %c0_229] : memref<196x256xf32, #tpu.memory_space<vmem>>, vector<4x256xf32>
    tpu.vector_store %arg21[%c64_228, %c0_229], %449 {strides = array<i32>} : memref<196x256xf32, #tpu.memory_space<vmem>>, vector<4x256xf32>,
    %c0_230 = arith.constant 0 : index
    %c144_231 = arith.constant 144 : index
    %451 = vector.load %arg20[%c0_230, %c144_231] : memref<8x512xf32, #tpu.memory_space<vmem>>, vector<4x256xf32>
    %cst_232 = arith.constant 0.000000e+00 : f32
    %452 = vector.shape_cast %136 : vector<1x256xi1> to vector<1x256xi1>
    %453 = vector.broadcast %452 : vector<1x256xi1> to vector<4x256xi1>
    %454 = vector.broadcast %cst_232 : f32 to vector<4x256xf32>
    %455 = arith.select %453, %451, %454 : vector<4x256xi1>, vector<4x256xf32>
    %c68 = arith.constant 68 : index
    %c0_233 = arith.constant 0 : index
    %456 = vector.load %arg21[%c68, %c0_233] : memref<196x256xf32, #tpu.memory_space<vmem>>, vector<4x256xf32>
    tpu.vector_store %arg21[%c68, %c0_233], %455 {strides = array<i32>} : memref<196x256xf32, #tpu.memory_space<vmem>>, vector<4x256xf32>,
    %c0_234 = arith.constant 0 : index
    %c145_235 = arith.constant 145 : index
    %457 = vector.load %arg20[%c0_234, %c145_235] : memref<8x512xf32, #tpu.memory_space<vmem>>, vector<4x256xf32>
    %cst_236 = arith.constant 0.000000e+00 : f32
    %458 = vector.shape_cast %153 : vector<1x256xi1> to vector<1x256xi1>
    %459 = vector.broadcast %458 : vector<1x256xi1> to vector<4x256xi1>
    %460 = vector.broadcast %cst_236 : f32 to vector<4x256xf32>
    %461 = arith.select %459, %457, %460 : vector<4x256xi1>, vector<4x256xf32>
    %c72 = arith.constant 72 : index
    %c0_237 = arith.constant 0 : index
    %462 = vector.load %arg21[%c72, %c0_237] : memref<196x256xf32, #tpu.memory_space<vmem>>, vector<4x256xf32>
    tpu.vector_store %arg21[%c72, %c0_237], %461 {strides = array<i32>} : memref<196x256xf32, #tpu.memory_space<vmem>>, vector<4x256xf32>,
    %c0_238 = arith.constant 0 : index
    %c146 = arith.constant 146 : index
    %463 = vector.load %arg20[%c0_238, %c146] : memref<8x512xf32, #tpu.memory_space<vmem>>, vector<4x256xf32>
    %c-16_i32_239 = arith.constant -16 : i32
    %464 = vector.broadcast %c-16_i32_239 : i32 to vector<1x256xi32>
    %465 = arith.cmpi sge, %2, %464 : vector<1x256xi32>
    %c240_i32_240 = arith.constant 240 : i32
    %466 = vector.broadcast %c240_i32_240 : i32 to vector<1x256xi32>
    %467 = arith.cmpi slt, %2, %466 : vector<1x256xi32>
    %468 = arith.andi %465, %467 : vector<1x256xi1>
    %c-2_i32_241 = arith.constant -2 : i32
    %469 = vector.broadcast %c-2_i32_241 : i32 to vector<1x256xi32>
    %470 = arith.cmpi sge, %4, %469 : vector<1x256xi32>
    %471 = arith.andi %468, %470 : vector<1x256xi1>
    %c14_i32_242 = arith.constant 14 : i32
    %472 = vector.broadcast %c14_i32_242 : i32 to vector<1x256xi32>
    %473 = arith.cmpi slt, %4, %472 : vector<1x256xi32>
    %474 = arith.andi %471, %473 : vector<1x256xi1>
    %cst_243 = arith.constant 0.000000e+00 : f32
    %475 = vector.shape_cast %474 : vector<1x256xi1> to vector<1x256xi1>
    %476 = vector.broadcast %475 : vector<1x256xi1> to vector<4x256xi1>
    %477 = vector.broadcast %cst_243 : f32 to vector<4x256xf32>
    %478 = arith.select %476, %463, %477 : vector<4x256xi1>, vector<4x256xf32>
    %c76 = arith.constant 76 : index
    %c0_244 = arith.constant 0 : index
    %479 = vector.load %arg21[%c76, %c0_244] : memref<196x256xf32, #tpu.memory_space<vmem>>, vector<4x256xf32>
    tpu.vector_store %arg21[%c76, %c0_244], %478 {strides = array<i32>} : memref<196x256xf32, #tpu.memory_space<vmem>>, vector<4x256xf32>,
    %c0_245 = arith.constant 0 : index
    %c158 = arith.constant 158 : index
    %480 = vector.load %arg20[%c0_245, %c158] : memref<8x512xf32, #tpu.memory_space<vmem>>, vector<4x256xf32>
    %c-32_i32 = arith.constant -32 : i32
    %481 = vector.broadcast %c-32_i32 : i32 to vector<1x256xi32>
    %482 = arith.cmpi sge, %2, %481 : vector<1x256xi32>
    %c224_i32 = arith.constant 224 : i32
    %483 = vector.broadcast %c224_i32 : i32 to vector<1x256xi32>
    %484 = arith.cmpi slt, %2, %483 : vector<1x256xi32>
    %485 = arith.andi %482, %484 : vector<1x256xi1>
    %c2_i32_246 = arith.constant 2 : i32
    %486 = vector.broadcast %c2_i32_246 : i32 to vector<1x256xi32>
    %487 = arith.cmpi sge, %4, %486 : vector<1x256xi32>
    %488 = arith.andi %485, %487 : vector<1x256xi1>
    %c18_i32_247 = arith.constant 18 : i32
    %489 = vector.broadcast %c18_i32_247 : i32 to vector<1x256xi32>
    %490 = arith.cmpi slt, %4, %489 : vector<1x256xi32>
    %491 = arith.andi %488, %490 : vector<1x256xi1>
    %cst_248 = arith.constant 0.000000e+00 : f32
    %492 = vector.shape_cast %491 : vector<1x256xi1> to vector<1x256xi1>
    %493 = vector.broadcast %492 : vector<1x256xi1> to vector<4x256xi1>
    %494 = vector.broadcast %cst_248 : f32 to vector<4x256xf32>
    %495 = arith.select %493, %480, %494 : vector<4x256xi1>, vector<4x256xf32>
    %c80 = arith.constant 80 : index
    %c0_249 = arith.constant 0 : index
    %496 = vector.load %arg21[%c80, %c0_249] : memref<196x256xf32, #tpu.memory_space<vmem>>, vector<4x256xf32>
    tpu.vector_store %arg21[%c80, %c0_249], %495 {strides = array<i32>} : memref<196x256xf32, #tpu.memory_space<vmem>>, vector<4x256xf32>,
    %c0_250 = arith.constant 0 : index
    %c159 = arith.constant 159 : index
    %497 = vector.load %arg20[%c0_250, %c159] : memref<8x512xf32, #tpu.memory_space<vmem>>, vector<4x256xf32>
    %c-32_i32_251 = arith.constant -32 : i32
    %498 = vector.broadcast %c-32_i32_251 : i32 to vector<1x256xi32>
    %499 = arith.cmpi sge, %2, %498 : vector<1x256xi32>
    %c224_i32_252 = arith.constant 224 : i32
    %500 = vector.broadcast %c224_i32_252 : i32 to vector<1x256xi32>
    %501 = arith.cmpi slt, %2, %500 : vector<1x256xi32>
    %502 = arith.andi %499, %501 : vector<1x256xi1>
    %c1_i32_253 = arith.constant 1 : i32
    %503 = vector.broadcast %c1_i32_253 : i32 to vector<1x256xi32>
    %504 = arith.cmpi sge, %4, %503 : vector<1x256xi32>
    %505 = arith.andi %502, %504 : vector<1x256xi1>
    %c17_i32_254 = arith.constant 17 : i32
    %506 = vector.broadcast %c17_i32_254 : i32 to vector<1x256xi32>
    %507 = arith.cmpi slt, %4, %506 : vector<1x256xi32>
    %508 = arith.andi %505, %507 : vector<1x256xi1>
    %cst_255 = arith.constant 0.000000e+00 : f32
    %509 = vector.shape_cast %508 : vector<1x256xi1> to vector<1x256xi1>
    %510 = vector.broadcast %509 : vector<1x256xi1> to vector<4x256xi1>
    %511 = vector.broadcast %cst_255 : f32 to vector<4x256xf32>
    %512 = arith.select %510, %497, %511 : vector<4x256xi1>, vector<4x256xf32>
    %c84 = arith.constant 84 : index
    %c0_256 = arith.constant 0 : index
    %513 = vector.load %arg21[%c84, %c0_256] : memref<196x256xf32, #tpu.memory_space<vmem>>, vector<4x256xf32>
    tpu.vector_store %arg21[%c84, %c0_256], %512 {strides = array<i32>} : memref<196x256xf32, #tpu.memory_space<vmem>>, vector<4x256xf32>,
    %c0_257 = arith.constant 0 : index
    %c160 = arith.constant 160 : index
    %514 = vector.load %arg20[%c0_257, %c160] : memref<8x512xf32, #tpu.memory_space<vmem>>, vector<4x256xf32>
    %c-32_i32_258 = arith.constant -32 : i32
    %515 = vector.broadcast %c-32_i32_258 : i32 to vector<1x256xi32>
    %516 = arith.cmpi sge, %2, %515 : vector<1x256xi32>
    %c224_i32_259 = arith.constant 224 : i32
    %517 = vector.broadcast %c224_i32_259 : i32 to vector<1x256xi32>
    %518 = arith.cmpi slt, %2, %517 : vector<1x256xi32>
    %519 = arith.andi %516, %518 : vector<1x256xi1>
    %c0_i32_260 = arith.constant 0 : i32
    %520 = vector.broadcast %c0_i32_260 : i32 to vector<1x256xi32>
    %521 = arith.cmpi sge, %4, %520 : vector<1x256xi32>
    %522 = arith.andi %519, %521 : vector<1x256xi1>
    %c16_i32_261 = arith.constant 16 : i32
    %523 = vector.broadcast %c16_i32_261 : i32 to vector<1x256xi32>
    %524 = arith.cmpi slt, %4, %523 : vector<1x256xi32>
    %525 = arith.andi %522, %524 : vector<1x256xi1>
    %cst_262 = arith.constant 0.000000e+00 : f32
    %526 = vector.shape_cast %525 : vector<1x256xi1> to vector<1x256xi1>
    %527 = vector.broadcast %526 : vector<1x256xi1> to vector<4x256xi1>
    %528 = vector.broadcast %cst_262 : f32 to vector<4x256xf32>
    %529 = arith.select %527, %514, %528 : vector<4x256xi1>, vector<4x256xf32>
    %c88 = arith.constant 88 : index
    %c0_263 = arith.constant 0 : index
    %530 = vector.load %arg21[%c88, %c0_263] : memref<196x256xf32, #tpu.memory_space<vmem>>, vector<4x256xf32>
    tpu.vector_store %arg21[%c88, %c0_263], %529 {strides = array<i32>} : memref<196x256xf32, #tpu.memory_space<vmem>>, vector<4x256xf32>,
    %c0_264 = arith.constant 0 : index
    %c161 = arith.constant 161 : index
    %531 = vector.load %arg20[%c0_264, %c161] : memref<8x512xf32, #tpu.memory_space<vmem>>, vector<4x256xf32>
    %c-32_i32_265 = arith.constant -32 : i32
    %532 = vector.broadcast %c-32_i32_265 : i32 to vector<1x256xi32>
    %533 = arith.cmpi sge, %2, %532 : vector<1x256xi32>
    %c224_i32_266 = arith.constant 224 : i32
    %534 = vector.broadcast %c224_i32_266 : i32 to vector<1x256xi32>
    %535 = arith.cmpi slt, %2, %534 : vector<1x256xi32>
    %536 = arith.andi %533, %535 : vector<1x256xi1>
    %c-1_i32_267 = arith.constant -1 : i32
    %537 = vector.broadcast %c-1_i32_267 : i32 to vector<1x256xi32>
    %538 = arith.cmpi sge, %4, %537 : vector<1x256xi32>
    %539 = arith.andi %536, %538 : vector<1x256xi1>
    %c15_i32_268 = arith.constant 15 : i32
    %540 = vector.broadcast %c15_i32_268 : i32 to vector<1x256xi32>
    %541 = arith.cmpi slt, %4, %540 : vector<1x256xi32>
    %542 = arith.andi %539, %541 : vector<1x256xi1>
    %cst_269 = arith.constant 0.000000e+00 : f32
    %543 = vector.shape_cast %542 : vector<1x256xi1> to vector<1x256xi1>
    %544 = vector.broadcast %543 : vector<1x256xi1> to vector<4x256xi1>
    %545 = vector.broadcast %cst_269 : f32 to vector<4x256xf32>
    %546 = arith.select %544, %531, %545 : vector<4x256xi1>, vector<4x256xf32>
    %c92 = arith.constant 92 : index
    %c0_270 = arith.constant 0 : index
    %547 = vector.load %arg21[%c92, %c0_270] : memref<196x256xf32, #tpu.memory_space<vmem>>, vector<4x256xf32>
    tpu.vector_store %arg21[%c92, %c0_270], %546 {strides = array<i32>} : memref<196x256xf32, #tpu.memory_space<vmem>>, vector<4x256xf32>,
    %c0_271 = arith.constant 0 : index
    %c162 = arith.constant 162 : index
    %548 = vector.load %arg20[%c0_271, %c162] : memref<8x512xf32, #tpu.memory_space<vmem>>, vector<4x256xf32>
    %c-32_i32_272 = arith.constant -32 : i32
    %549 = vector.broadcast %c-32_i32_272 : i32 to vector<1x256xi32>
    %550 = arith.cmpi sge, %2, %549 : vector<1x256xi32>
    %c224_i32_273 = arith.constant 224 : i32
    %551 = vector.broadcast %c224_i32_273 : i32 to vector<1x256xi32>
    %552 = arith.cmpi slt, %2, %551 : vector<1x256xi32>
    %553 = arith.andi %550, %552 : vector<1x256xi1>
    %c-2_i32_274 = arith.constant -2 : i32
    %554 = vector.broadcast %c-2_i32_274 : i32 to vector<1x256xi32>
    %555 = arith.cmpi sge, %4, %554 : vector<1x256xi32>
    %556 = arith.andi %553, %555 : vector<1x256xi1>
    %c14_i32_275 = arith.constant 14 : i32
    %557 = vector.broadcast %c14_i32_275 : i32 to vector<1x256xi32>
    %558 = arith.cmpi slt, %4, %557 : vector<1x256xi32>
    %559 = arith.andi %556, %558 : vector<1x256xi1>
    %cst_276 = arith.constant 0.000000e+00 : f32
    %560 = vector.shape_cast %559 : vector<1x256xi1> to vector<1x256xi1>
    %561 = vector.broadcast %560 : vector<1x256xi1> to vector<4x256xi1>
    %562 = vector.broadcast %cst_276 : f32 to vector<4x256xf32>
    %563 = arith.select %561, %548, %562 : vector<4x256xi1>, vector<4x256xf32>
    %c96_277 = arith.constant 96 : index
    %c0_278 = arith.constant 0 : index
    %564 = vector.load %arg21[%c96_277, %c0_278] : memref<196x256xf32, #tpu.memory_space<vmem>>, vector<4x256xf32>
    tpu.vector_store %arg21[%c96_277, %c0_278], %563 {strides = array<i32>} : memref<196x256xf32, #tpu.memory_space<vmem>>, vector<4x256xf32>,
    %c0_279 = arith.constant 0 : index
    %c0_280 = arith.constant 0 : index
    %565 = vector.load %arg6[%c0_279, %c0_280] : memref<8x100xf32, #tpu.memory_space<vmem>>, vector<8x100xf32>
    %c0_281 = arith.constant 0 : index
    %c0_282 = arith.constant 0 : index
    %566 = vector.load %arg21[%c0_281, %c0_282] : memref<196x256xf32, #tpu.memory_space<vmem>>, vector<100x256xf32>
    %cst_283 = arith.constant dense<0.000000e+00> : vector<8x256xf32>
    %567 = tpu.matmul %565, %566, %cst_283 {dimension_numbers = #tpu.dot_dimension_numbers<[1], [0], [0], [1], [0, 0, 1, 1], [], []>} : vector<8x100xf32>, vector<100x256xf32>, vector<8x256xf32> -> vector<8x256xf32>
    %c0_284 = arith.constant 0 : index
    %c0_285 = arith.constant 0 : index
    %568 = vector.load %arg7[%c0_284, %c0_285] : memref<8x1xf32, #tpu.memory_space<vmem>>, vector<8x1xf32>
    %569 = vector.broadcast %568 : vector<8x1xf32> to vector<8x256xf32>
    %570 = arith.addf %567, %569 : vector<8x256xf32>
    %cst_286 = arith.constant 0.000000e+00 : f32
    %571 = vector.broadcast %cst_286 : f32 to vector<8x256xf32>
    %572 = arith.maximumf %570, %571 : vector<8x256xf32>
    %c0_287 = arith.constant 0 : index
    %c0_288 = arith.constant 0 : index
    %573 = vector.load %arg14[%c0_287, %c0_288] : memref<4x8xf32, #tpu.memory_space<vmem>>, vector<4x8xf32>
    %cst_289 = arith.constant dense<0.000000e+00> : vector<4x256xf32>
    %574 = tpu.matmul %573, %572, %cst_289 {dimension_numbers = #tpu.dot_dimension_numbers<[1], [0], [0], [1], [0, 0, 1, 1], [], []>} : vector<4x8xf32>, vector<8x256xf32>, vector<4x256xf32> -> vector<4x256xf32>
    %575 = arith.addf %1, %574 : vector<4x256xf32>
    %c0_290 = arith.constant 0 : index
    %c0_291 = arith.constant 0 : index
    %576 = vector.load %arg16[%c0_290, %c0_291] : memref<4x1xf32, #tpu.memory_space<vmem>>, vector<4x1xf32>
    %577 = vector.broadcast %576 : vector<4x1xf32> to vector<4x256xf32>
    %578 = arith.addf %575, %577 : vector<4x256xf32>
    %cst_292 = arith.constant 0.000000e+00 : f32
    %579 = vector.broadcast %cst_292 : f32 to vector<4x256xf32>
    %580 = arith.maximumf %578, %579 : vector<4x256xf32>
    %c0_293 = arith.constant 0 : index
    %c128_294 = arith.constant 128 : index
    %581 = vector.load %arg20[%c0_293, %c128_294] : memref<8x512xf32, #tpu.memory_space<vmem>>, vector<4x256xf32>
    tpu.vector_store %arg20[%c0_293, %c128_294], %1 {strides = array<i32>} : memref<8x512xf32, #tpu.memory_space<vmem>>, vector<4x256xf32>,
    %c0_295 = arith.constant 0 : index
    %c77 = arith.constant 77 : index
    %582 = vector.load %arg20[%c0_295, %c77] : memref<8x512xf32, #tpu.memory_space<vmem>>, vector<4x256xf32>
    %c48_i32 = arith.constant 48 : i32
    %583 = vector.broadcast %c48_i32 : i32 to vector<1x256xi32>
    %584 = arith.cmpi sge, %2, %583 : vector<1x256xi32>
    %c304_i32 = arith.constant 304 : i32
    %585 = vector.broadcast %c304_i32 : i32 to vector<1x256xi32>
    %586 = arith.cmpi slt, %2, %585 : vector<1x256xi32>
    %587 = arith.andi %584, %586 : vector<1x256xi1>
    %c3_i32 = arith.constant 3 : i32
    %588 = vector.broadcast %c3_i32 : i32 to vector<1x256xi32>
    %589 = arith.cmpi sge, %4, %588 : vector<1x256xi32>
    %590 = arith.andi %587, %589 : vector<1x256xi1>
    %c19_i32 = arith.constant 19 : i32
    %591 = vector.broadcast %c19_i32 : i32 to vector<1x256xi32>
    %592 = arith.cmpi slt, %4, %591 : vector<1x256xi32>
    %593 = arith.andi %590, %592 : vector<1x256xi1>
    %cst_296 = arith.constant 0.000000e+00 : f32
    %594 = vector.shape_cast %593 : vector<1x256xi1> to vector<1x256xi1>
    %595 = vector.broadcast %594 : vector<1x256xi1> to vector<4x256xi1>
    %596 = vector.broadcast %cst_296 : f32 to vector<4x256xf32>
    %597 = arith.select %595, %582, %596 : vector<4x256xi1>, vector<4x256xf32>
    %c0_297 = arith.constant 0 : index
    %c0_298 = arith.constant 0 : index
    %598 = vector.load %arg21[%c0_297, %c0_298] : memref<196x256xf32, #tpu.memory_space<vmem>>, vector<4x256xf32>
    tpu.vector_store %arg21[%c0_297, %c0_298], %597 {strides = array<i32>} : memref<196x256xf32, #tpu.memory_space<vmem>>, vector<4x256xf32>,
    %c0_299 = arith.constant 0 : index
    %c78 = arith.constant 78 : index
    %599 = vector.load %arg20[%c0_299, %c78] : memref<8x512xf32, #tpu.memory_space<vmem>>, vector<4x256xf32>
    %c48_i32_300 = arith.constant 48 : i32
    %600 = vector.broadcast %c48_i32_300 : i32 to vector<1x256xi32>
    %601 = arith.cmpi sge, %2, %600 : vector<1x256xi32>
    %c304_i32_301 = arith.constant 304 : i32
    %602 = vector.broadcast %c304_i32_301 : i32 to vector<1x256xi32>
    %603 = arith.cmpi slt, %2, %602 : vector<1x256xi32>
    %604 = arith.andi %601, %603 : vector<1x256xi1>
    %c2_i32_302 = arith.constant 2 : i32
    %605 = vector.broadcast %c2_i32_302 : i32 to vector<1x256xi32>
    %606 = arith.cmpi sge, %4, %605 : vector<1x256xi32>
    %607 = arith.andi %604, %606 : vector<1x256xi1>
    %c18_i32_303 = arith.constant 18 : i32
    %608 = vector.broadcast %c18_i32_303 : i32 to vector<1x256xi32>
    %609 = arith.cmpi slt, %4, %608 : vector<1x256xi32>
    %610 = arith.andi %607, %609 : vector<1x256xi1>
    %cst_304 = arith.constant 0.000000e+00 : f32
    %611 = vector.shape_cast %610 : vector<1x256xi1> to vector<1x256xi1>
    %612 = vector.broadcast %611 : vector<1x256xi1> to vector<4x256xi1>
    %613 = vector.broadcast %cst_304 : f32 to vector<4x256xf32>
    %614 = arith.select %612, %599, %613 : vector<4x256xi1>, vector<4x256xf32>
    %c4_305 = arith.constant 4 : index
    %c0_306 = arith.constant 0 : index
    %615 = vector.load %arg21[%c4_305, %c0_306] : memref<196x256xf32, #tpu.memory_space<vmem>>, vector<4x256xf32>
    tpu.vector_store %arg21[%c4_305, %c0_306], %614 {strides = array<i32>} : memref<196x256xf32, #tpu.memory_space<vmem>>, vector<4x256xf32>,
    %c0_307 = arith.constant 0 : index
    %c79 = arith.constant 79 : index
    %616 = vector.load %arg20[%c0_307, %c79] : memref<8x512xf32, #tpu.memory_space<vmem>>, vector<4x256xf32>
    %c48_i32_308 = arith.constant 48 : i32
    %617 = vector.broadcast %c48_i32_308 : i32 to vector<1x256xi32>
    %618 = arith.cmpi sge, %2, %617 : vector<1x256xi32>
    %c304_i32_309 = arith.constant 304 : i32
    %619 = vector.broadcast %c304_i32_309 : i32 to vector<1x256xi32>
    %620 = arith.cmpi slt, %2, %619 : vector<1x256xi32>
    %621 = arith.andi %618, %620 : vector<1x256xi1>
    %c1_i32_310 = arith.constant 1 : i32
    %622 = vector.broadcast %c1_i32_310 : i32 to vector<1x256xi32>
    %623 = arith.cmpi sge, %4, %622 : vector<1x256xi32>
    %624 = arith.andi %621, %623 : vector<1x256xi1>
    %c17_i32_311 = arith.constant 17 : i32
    %625 = vector.broadcast %c17_i32_311 : i32 to vector<1x256xi32>
    %626 = arith.cmpi slt, %4, %625 : vector<1x256xi32>
    %627 = arith.andi %624, %626 : vector<1x256xi1>
    %cst_312 = arith.constant 0.000000e+00 : f32
    %628 = vector.shape_cast %627 : vector<1x256xi1> to vector<1x256xi1>
    %629 = vector.broadcast %628 : vector<1x256xi1> to vector<4x256xi1>
    %630 = vector.broadcast %cst_312 : f32 to vector<4x256xf32>
    %631 = arith.select %629, %616, %630 : vector<4x256xi1>, vector<4x256xf32>
    %c8_313 = arith.constant 8 : index
    %c0_314 = arith.constant 0 : index
    %632 = vector.load %arg21[%c8_313, %c0_314] : memref<196x256xf32, #tpu.memory_space<vmem>>, vector<4x256xf32>
    tpu.vector_store %arg21[%c8_313, %c0_314], %631 {strides = array<i32>} : memref<196x256xf32, #tpu.memory_space<vmem>>, vector<4x256xf32>,
    %c0_315 = arith.constant 0 : index
    %c80_316 = arith.constant 80 : index
    %633 = vector.load %arg20[%c0_315, %c80_316] : memref<8x512xf32, #tpu.memory_space<vmem>>, vector<4x256xf32>
    %c48_i32_317 = arith.constant 48 : i32
    %634 = vector.broadcast %c48_i32_317 : i32 to vector<1x256xi32>
    %635 = arith.cmpi sge, %2, %634 : vector<1x256xi32>
    %c304_i32_318 = arith.constant 304 : i32
    %636 = vector.broadcast %c304_i32_318 : i32 to vector<1x256xi32>
    %637 = arith.cmpi slt, %2, %636 : vector<1x256xi32>
    %638 = arith.andi %635, %637 : vector<1x256xi1>
    %c0_i32_319 = arith.constant 0 : i32
    %639 = vector.broadcast %c0_i32_319 : i32 to vector<1x256xi32>
    %640 = arith.cmpi sge, %4, %639 : vector<1x256xi32>
    %641 = arith.andi %638, %640 : vector<1x256xi1>
    %c16_i32_320 = arith.constant 16 : i32
    %642 = vector.broadcast %c16_i32_320 : i32 to vector<1x256xi32>
    %643 = arith.cmpi slt, %4, %642 : vector<1x256xi32>
    %644 = arith.andi %641, %643 : vector<1x256xi1>
    %cst_321 = arith.constant 0.000000e+00 : f32
    %645 = vector.shape_cast %644 : vector<1x256xi1> to vector<1x256xi1>
    %646 = vector.broadcast %645 : vector<1x256xi1> to vector<4x256xi1>
    %647 = vector.broadcast %cst_321 : f32 to vector<4x256xf32>
    %648 = arith.select %646, %633, %647 : vector<4x256xi1>, vector<4x256xf32>
    %c12_322 = arith.constant 12 : index
    %c0_323 = arith.constant 0 : index
    %649 = vector.load %arg21[%c12_322, %c0_323] : memref<196x256xf32, #tpu.memory_space<vmem>>, vector<4x256xf32>
    tpu.vector_store %arg21[%c12_322, %c0_323], %648 {strides = array<i32>} : memref<196x256xf32, #tpu.memory_space<vmem>>, vector<4x256xf32>,
    %c0_324 = arith.constant 0 : index
    %c81 = arith.constant 81 : index
    %650 = vector.load %arg20[%c0_324, %c81] : memref<8x512xf32, #tpu.memory_space<vmem>>, vector<4x256xf32>
    %c48_i32_325 = arith.constant 48 : i32
    %651 = vector.broadcast %c48_i32_325 : i32 to vector<1x256xi32>
    %652 = arith.cmpi sge, %2, %651 : vector<1x256xi32>
    %c304_i32_326 = arith.constant 304 : i32
    %653 = vector.broadcast %c304_i32_326 : i32 to vector<1x256xi32>
    %654 = arith.cmpi slt, %2, %653 : vector<1x256xi32>
    %655 = arith.andi %652, %654 : vector<1x256xi1>
    %c-1_i32_327 = arith.constant -1 : i32
    %656 = vector.broadcast %c-1_i32_327 : i32 to vector<1x256xi32>
    %657 = arith.cmpi sge, %4, %656 : vector<1x256xi32>
    %658 = arith.andi %655, %657 : vector<1x256xi1>
    %c15_i32_328 = arith.constant 15 : i32
    %659 = vector.broadcast %c15_i32_328 : i32 to vector<1x256xi32>
    %660 = arith.cmpi slt, %4, %659 : vector<1x256xi32>
    %661 = arith.andi %658, %660 : vector<1x256xi1>
    %cst_329 = arith.constant 0.000000e+00 : f32
    %662 = vector.shape_cast %661 : vector<1x256xi1> to vector<1x256xi1>
    %663 = vector.broadcast %662 : vector<1x256xi1> to vector<4x256xi1>
    %664 = vector.broadcast %cst_329 : f32 to vector<4x256xf32>
    %665 = arith.select %663, %650, %664 : vector<4x256xi1>, vector<4x256xf32>
    %c16_330 = arith.constant 16 : index
    %c0_331 = arith.constant 0 : index
    %666 = vector.load %arg21[%c16_330, %c0_331] : memref<196x256xf32, #tpu.memory_space<vmem>>, vector<4x256xf32>
    tpu.vector_store %arg21[%c16_330, %c0_331], %665 {strides = array<i32>} : memref<196x256xf32, #tpu.memory_space<vmem>>, vector<4x256xf32>,
    %c0_332 = arith.constant 0 : index
    %c82 = arith.constant 82 : index
    %667 = vector.load %arg20[%c0_332, %c82] : memref<8x512xf32, #tpu.memory_space<vmem>>, vector<4x256xf32>
    %c48_i32_333 = arith.constant 48 : i32
    %668 = vector.broadcast %c48_i32_333 : i32 to vector<1x256xi32>
    %669 = arith.cmpi sge, %2, %668 : vector<1x256xi32>
    %c304_i32_334 = arith.constant 304 : i32
    %670 = vector.broadcast %c304_i32_334 : i32 to vector<1x256xi32>
    %671 = arith.cmpi slt, %2, %670 : vector<1x256xi32>
    %672 = arith.andi %669, %671 : vector<1x256xi1>
    %c-2_i32_335 = arith.constant -2 : i32
    %673 = vector.broadcast %c-2_i32_335 : i32 to vector<1x256xi32>
    %674 = arith.cmpi sge, %4, %673 : vector<1x256xi32>
    %675 = arith.andi %672, %674 : vector<1x256xi1>
    %c14_i32_336 = arith.constant 14 : i32
    %676 = vector.broadcast %c14_i32_336 : i32 to vector<1x256xi32>
    %677 = arith.cmpi slt, %4, %676 : vector<1x256xi32>
    %678 = arith.andi %675, %677 : vector<1x256xi1>
    %cst_337 = arith.constant 0.000000e+00 : f32
    %679 = vector.shape_cast %678 : vector<1x256xi1> to vector<1x256xi1>
    %680 = vector.broadcast %679 : vector<1x256xi1> to vector<4x256xi1>
    %681 = vector.broadcast %cst_337 : f32 to vector<4x256xf32>
    %682 = arith.select %680, %667, %681 : vector<4x256xi1>, vector<4x256xf32>
    %c20_338 = arith.constant 20 : index
    %c0_339 = arith.constant 0 : index
    %683 = vector.load %arg21[%c20_338, %c0_339] : memref<196x256xf32, #tpu.memory_space<vmem>>, vector<4x256xf32>
    tpu.vector_store %arg21[%c20_338, %c0_339], %682 {strides = array<i32>} : memref<196x256xf32, #tpu.memory_space<vmem>>, vector<4x256xf32>,
    %c0_340 = arith.constant 0 : index
    %c83 = arith.constant 83 : index
    %684 = vector.load %arg20[%c0_340, %c83] : memref<8x512xf32, #tpu.memory_space<vmem>>, vector<4x256xf32>
    %c48_i32_341 = arith.constant 48 : i32
    %685 = vector.broadcast %c48_i32_341 : i32 to vector<1x256xi32>
    %686 = arith.cmpi sge, %2, %685 : vector<1x256xi32>
    %c304_i32_342 = arith.constant 304 : i32
    %687 = vector.broadcast %c304_i32_342 : i32 to vector<1x256xi32>
    %688 = arith.cmpi slt, %2, %687 : vector<1x256xi32>
    %689 = arith.andi %686, %688 : vector<1x256xi1>
    %c-3_i32 = arith.constant -3 : i32
    %690 = vector.broadcast %c-3_i32 : i32 to vector<1x256xi32>
    %691 = arith.cmpi sge, %4, %690 : vector<1x256xi32>
    %692 = arith.andi %689, %691 : vector<1x256xi1>
    %c13_i32 = arith.constant 13 : i32
    %693 = vector.broadcast %c13_i32 : i32 to vector<1x256xi32>
    %694 = arith.cmpi slt, %4, %693 : vector<1x256xi32>
    %695 = arith.andi %692, %694 : vector<1x256xi1>
    %cst_343 = arith.constant 0.000000e+00 : f32
    %696 = vector.shape_cast %695 : vector<1x256xi1> to vector<1x256xi1>
    %697 = vector.broadcast %696 : vector<1x256xi1> to vector<4x256xi1>
    %698 = vector.broadcast %cst_343 : f32 to vector<4x256xf32>
    %699 = arith.select %697, %684, %698 : vector<4x256xi1>, vector<4x256xf32>
    %c24_344 = arith.constant 24 : index
    %c0_345 = arith.constant 0 : index
    %700 = vector.load %arg21[%c24_344, %c0_345] : memref<196x256xf32, #tpu.memory_space<vmem>>, vector<4x256xf32>
    tpu.vector_store %arg21[%c24_344, %c0_345], %699 {strides = array<i32>} : memref<196x256xf32, #tpu.memory_space<vmem>>, vector<4x256xf32>,
    %c0_346 = arith.constant 0 : index
    %c93 = arith.constant 93 : index
    %701 = vector.load %arg20[%c0_346, %c93] : memref<8x512xf32, #tpu.memory_space<vmem>>, vector<4x256xf32>
    %c32_i32_347 = arith.constant 32 : i32
    %702 = vector.broadcast %c32_i32_347 : i32 to vector<1x256xi32>
    %703 = arith.cmpi sge, %2, %702 : vector<1x256xi32>
    %c288_i32_348 = arith.constant 288 : i32
    %704 = vector.broadcast %c288_i32_348 : i32 to vector<1x256xi32>
    %705 = arith.cmpi slt, %2, %704 : vector<1x256xi32>
    %706 = arith.andi %703, %705 : vector<1x256xi1>
    %c3_i32_349 = arith.constant 3 : i32
    %707 = vector.broadcast %c3_i32_349 : i32 to vector<1x256xi32>
    %708 = arith.cmpi sge, %4, %707 : vector<1x256xi32>
    %709 = arith.andi %706, %708 : vector<1x256xi1>
    %c19_i32_350 = arith.constant 19 : i32
    %710 = vector.broadcast %c19_i32_350 : i32 to vector<1x256xi32>
    %711 = arith.cmpi slt, %4, %710 : vector<1x256xi32>
    %712 = arith.andi %709, %711 : vector<1x256xi1>
    %cst_351 = arith.constant 0.000000e+00 : f32
    %713 = vector.shape_cast %712 : vector<1x256xi1> to vector<1x256xi1>
    %714 = vector.broadcast %713 : vector<1x256xi1> to vector<4x256xi1>
    %715 = vector.broadcast %cst_351 : f32 to vector<4x256xf32>
    %716 = arith.select %714, %701, %715 : vector<4x256xi1>, vector<4x256xf32>
    %c28_352 = arith.constant 28 : index
    %c0_353 = arith.constant 0 : index
    %717 = vector.load %arg21[%c28_352, %c0_353] : memref<196x256xf32, #tpu.memory_space<vmem>>, vector<4x256xf32>
    tpu.vector_store %arg21[%c28_352, %c0_353], %716 {strides = array<i32>} : memref<196x256xf32, #tpu.memory_space<vmem>>, vector<4x256xf32>,
    %c0_354 = arith.constant 0 : index
    %c94_355 = arith.constant 94 : index
    %718 = vector.load %arg20[%c0_354, %c94_355] : memref<8x512xf32, #tpu.memory_space<vmem>>, vector<4x256xf32>
    %cst_356 = arith.constant 0.000000e+00 : f32
    %719 = vector.shape_cast %250 : vector<1x256xi1> to vector<1x256xi1>
    %720 = vector.broadcast %719 : vector<1x256xi1> to vector<4x256xi1>
    %721 = vector.broadcast %cst_356 : f32 to vector<4x256xf32>
    %722 = arith.select %720, %718, %721 : vector<4x256xi1>, vector<4x256xf32>
    %c32_357 = arith.constant 32 : index
    %c0_358 = arith.constant 0 : index
    %723 = vector.load %arg21[%c32_357, %c0_358] : memref<196x256xf32, #tpu.memory_space<vmem>>, vector<4x256xf32>
    tpu.vector_store %arg21[%c32_357, %c0_358], %722 {strides = array<i32>} : memref<196x256xf32, #tpu.memory_space<vmem>>, vector<4x256xf32>,
    %c0_359 = arith.constant 0 : index
    %c95_360 = arith.constant 95 : index
    %724 = vector.load %arg20[%c0_359, %c95_360] : memref<8x512xf32, #tpu.memory_space<vmem>>, vector<4x256xf32>
    %cst_361 = arith.constant 0.000000e+00 : f32
    %725 = vector.shape_cast %267 : vector<1x256xi1> to vector<1x256xi1>
    %726 = vector.broadcast %725 : vector<1x256xi1> to vector<4x256xi1>
    %727 = vector.broadcast %cst_361 : f32 to vector<4x256xf32>
    %728 = arith.select %726, %724, %727 : vector<4x256xi1>, vector<4x256xf32>
    %c36_362 = arith.constant 36 : index
    %c0_363 = arith.constant 0 : index
    %729 = vector.load %arg21[%c36_362, %c0_363] : memref<196x256xf32, #tpu.memory_space<vmem>>, vector<4x256xf32>
    tpu.vector_store %arg21[%c36_362, %c0_363], %728 {strides = array<i32>} : memref<196x256xf32, #tpu.memory_space<vmem>>, vector<4x256xf32>,
    %c0_364 = arith.constant 0 : index
    %c96_365 = arith.constant 96 : index
    %730 = vector.load %arg20[%c0_364, %c96_365] : memref<8x512xf32, #tpu.memory_space<vmem>>, vector<4x256xf32>
    %cst_366 = arith.constant 0.000000e+00 : f32
    %731 = vector.shape_cast %284 : vector<1x256xi1> to vector<1x256xi1>
    %732 = vector.broadcast %731 : vector<1x256xi1> to vector<4x256xi1>
    %733 = vector.broadcast %cst_366 : f32 to vector<4x256xf32>
    %734 = arith.select %732, %730, %733 : vector<4x256xi1>, vector<4x256xf32>
    %c40_367 = arith.constant 40 : index
    %c0_368 = arith.constant 0 : index
    %735 = vector.load %arg21[%c40_367, %c0_368] : memref<196x256xf32, #tpu.memory_space<vmem>>, vector<4x256xf32>
    tpu.vector_store %arg21[%c40_367, %c0_368], %734 {strides = array<i32>} : memref<196x256xf32, #tpu.memory_space<vmem>>, vector<4x256xf32>,
    %c0_369 = arith.constant 0 : index
    %c97_370 = arith.constant 97 : index
    %736 = vector.load %arg20[%c0_369, %c97_370] : memref<8x512xf32, #tpu.memory_space<vmem>>, vector<4x256xf32>
    %cst_371 = arith.constant 0.000000e+00 : f32
    %737 = vector.shape_cast %301 : vector<1x256xi1> to vector<1x256xi1>
    %738 = vector.broadcast %737 : vector<1x256xi1> to vector<4x256xi1>
    %739 = vector.broadcast %cst_371 : f32 to vector<4x256xf32>
    %740 = arith.select %738, %736, %739 : vector<4x256xi1>, vector<4x256xf32>
    %c44_372 = arith.constant 44 : index
    %c0_373 = arith.constant 0 : index
    %741 = vector.load %arg21[%c44_372, %c0_373] : memref<196x256xf32, #tpu.memory_space<vmem>>, vector<4x256xf32>
    tpu.vector_store %arg21[%c44_372, %c0_373], %740 {strides = array<i32>} : memref<196x256xf32, #tpu.memory_space<vmem>>, vector<4x256xf32>,
    %c0_374 = arith.constant 0 : index
    %c98_375 = arith.constant 98 : index
    %742 = vector.load %arg20[%c0_374, %c98_375] : memref<8x512xf32, #tpu.memory_space<vmem>>, vector<4x256xf32>
    %cst_376 = arith.constant 0.000000e+00 : f32
    %743 = vector.shape_cast %318 : vector<1x256xi1> to vector<1x256xi1>
    %744 = vector.broadcast %743 : vector<1x256xi1> to vector<4x256xi1>
    %745 = vector.broadcast %cst_376 : f32 to vector<4x256xf32>
    %746 = arith.select %744, %742, %745 : vector<4x256xi1>, vector<4x256xf32>
    %c48_377 = arith.constant 48 : index
    %c0_378 = arith.constant 0 : index
    %747 = vector.load %arg21[%c48_377, %c0_378] : memref<196x256xf32, #tpu.memory_space<vmem>>, vector<4x256xf32>
    tpu.vector_store %arg21[%c48_377, %c0_378], %746 {strides = array<i32>} : memref<196x256xf32, #tpu.memory_space<vmem>>, vector<4x256xf32>,
    %c0_379 = arith.constant 0 : index
    %c99 = arith.constant 99 : index
    %748 = vector.load %arg20[%c0_379, %c99] : memref<8x512xf32, #tpu.memory_space<vmem>>, vector<4x256xf32>
    %c32_i32_380 = arith.constant 32 : i32
    %749 = vector.broadcast %c32_i32_380 : i32 to vector<1x256xi32>
    %750 = arith.cmpi sge, %2, %749 : vector<1x256xi32>
    %c288_i32_381 = arith.constant 288 : i32
    %751 = vector.broadcast %c288_i32_381 : i32 to vector<1x256xi32>
    %752 = arith.cmpi slt, %2, %751 : vector<1x256xi32>
    %753 = arith.andi %750, %752 : vector<1x256xi1>
    %c-3_i32_382 = arith.constant -3 : i32
    %754 = vector.broadcast %c-3_i32_382 : i32 to vector<1x256xi32>
    %755 = arith.cmpi sge, %4, %754 : vector<1x256xi32>
    %756 = arith.andi %753, %755 : vector<1x256xi1>
    %c13_i32_383 = arith.constant 13 : i32
    %757 = vector.broadcast %c13_i32_383 : i32 to vector<1x256xi32>
    %758 = arith.cmpi slt, %4, %757 : vector<1x256xi32>
    %759 = arith.andi %756, %758 : vector<1x256xi1>
    %cst_384 = arith.constant 0.000000e+00 : f32
    %760 = vector.shape_cast %759 : vector<1x256xi1> to vector<1x256xi1>
    %761 = vector.broadcast %760 : vector<1x256xi1> to vector<4x256xi1>
    %762 = vector.broadcast %cst_384 : f32 to vector<4x256xf32>
    %763 = arith.select %761, %748, %762 : vector<4x256xi1>, vector<4x256xf32>
    %c52_385 = arith.constant 52 : index
    %c0_386 = arith.constant 0 : index
    %764 = vector.load %arg21[%c52_385, %c0_386] : memref<196x256xf32, #tpu.memory_space<vmem>>, vector<4x256xf32>
    tpu.vector_store %arg21[%c52_385, %c0_386], %763 {strides = array<i32>} : memref<196x256xf32, #tpu.memory_space<vmem>>, vector<4x256xf32>,
    %c0_387 = arith.constant 0 : index
    %c109 = arith.constant 109 : index
    %765 = vector.load %arg20[%c0_387, %c109] : memref<8x512xf32, #tpu.memory_space<vmem>>, vector<4x256xf32>
    %c16_i32_388 = arith.constant 16 : i32
    %766 = vector.broadcast %c16_i32_388 : i32 to vector<1x256xi32>
    %767 = arith.cmpi sge, %2, %766 : vector<1x256xi32>
    %c272_i32_389 = arith.constant 272 : i32
    %768 = vector.broadcast %c272_i32_389 : i32 to vector<1x256xi32>
    %769 = arith.cmpi slt, %2, %768 : vector<1x256xi32>
    %770 = arith.andi %767, %769 : vector<1x256xi1>
    %c3_i32_390 = arith.constant 3 : i32
    %771 = vector.broadcast %c3_i32_390 : i32 to vector<1x256xi32>
    %772 = arith.cmpi sge, %4, %771 : vector<1x256xi32>
    %773 = arith.andi %770, %772 : vector<1x256xi1>
    %c19_i32_391 = arith.constant 19 : i32
    %774 = vector.broadcast %c19_i32_391 : i32 to vector<1x256xi32>
    %775 = arith.cmpi slt, %4, %774 : vector<1x256xi32>
    %776 = arith.andi %773, %775 : vector<1x256xi1>
    %cst_392 = arith.constant 0.000000e+00 : f32
    %777 = vector.shape_cast %776 : vector<1x256xi1> to vector<1x256xi1>
    %778 = vector.broadcast %777 : vector<1x256xi1> to vector<4x256xi1>
    %779 = vector.broadcast %cst_392 : f32 to vector<4x256xf32>
    %780 = arith.select %778, %765, %779 : vector<4x256xi1>, vector<4x256xf32>
    %c56_393 = arith.constant 56 : index
    %c0_394 = arith.constant 0 : index
    %781 = vector.load %arg21[%c56_393, %c0_394] : memref<196x256xf32, #tpu.memory_space<vmem>>, vector<4x256xf32>
    tpu.vector_store %arg21[%c56_393, %c0_394], %780 {strides = array<i32>} : memref<196x256xf32, #tpu.memory_space<vmem>>, vector<4x256xf32>,
    %c0_395 = arith.constant 0 : index
    %c110_396 = arith.constant 110 : index
    %782 = vector.load %arg20[%c0_395, %c110_396] : memref<8x512xf32, #tpu.memory_space<vmem>>, vector<4x256xf32>
    %cst_397 = arith.constant 0.000000e+00 : f32
    %783 = vector.shape_cast %335 : vector<1x256xi1> to vector<1x256xi1>
    %784 = vector.broadcast %783 : vector<1x256xi1> to vector<4x256xi1>
    %785 = vector.broadcast %cst_397 : f32 to vector<4x256xf32>
    %786 = arith.select %784, %782, %785 : vector<4x256xi1>, vector<4x256xf32>
    %c60_398 = arith.constant 60 : index
    %c0_399 = arith.constant 0 : index
    %787 = vector.load %arg21[%c60_398, %c0_399] : memref<196x256xf32, #tpu.memory_space<vmem>>, vector<4x256xf32>
    tpu.vector_store %arg21[%c60_398, %c0_399], %786 {strides = array<i32>} : memref<196x256xf32, #tpu.memory_space<vmem>>, vector<4x256xf32>,
    %c0_400 = arith.constant 0 : index
    %c111_401 = arith.constant 111 : index
    %788 = vector.load %arg20[%c0_400, %c111_401] : memref<8x512xf32, #tpu.memory_space<vmem>>, vector<4x256xf32>
    %cst_402 = arith.constant 0.000000e+00 : f32
    %789 = vector.shape_cast %17 : vector<1x256xi1> to vector<1x256xi1>
    %790 = vector.broadcast %789 : vector<1x256xi1> to vector<4x256xi1>
    %791 = vector.broadcast %cst_402 : f32 to vector<4x256xf32>
    %792 = arith.select %790, %788, %791 : vector<4x256xi1>, vector<4x256xf32>
    %c64_403 = arith.constant 64 : index
    %c0_404 = arith.constant 0 : index
    %793 = vector.load %arg21[%c64_403, %c0_404] : memref<196x256xf32, #tpu.memory_space<vmem>>, vector<4x256xf32>
    tpu.vector_store %arg21[%c64_403, %c0_404], %792 {strides = array<i32>} : memref<196x256xf32, #tpu.memory_space<vmem>>, vector<4x256xf32>,
    %c0_405 = arith.constant 0 : index
    %c112_406 = arith.constant 112 : index
    %794 = vector.load %arg20[%c0_405, %c112_406] : memref<8x512xf32, #tpu.memory_space<vmem>>, vector<4x256xf32>
    %cst_407 = arith.constant 0.000000e+00 : f32
    %795 = vector.shape_cast %34 : vector<1x256xi1> to vector<1x256xi1>
    %796 = vector.broadcast %795 : vector<1x256xi1> to vector<4x256xi1>
    %797 = vector.broadcast %cst_407 : f32 to vector<4x256xf32>
    %798 = arith.select %796, %794, %797 : vector<4x256xi1>, vector<4x256xf32>
    %c68_408 = arith.constant 68 : index
    %c0_409 = arith.constant 0 : index
    %799 = vector.load %arg21[%c68_408, %c0_409] : memref<196x256xf32, #tpu.memory_space<vmem>>, vector<4x256xf32>
    tpu.vector_store %arg21[%c68_408, %c0_409], %798 {strides = array<i32>} : memref<196x256xf32, #tpu.memory_space<vmem>>, vector<4x256xf32>,
    %c0_410 = arith.constant 0 : index
    %c113_411 = arith.constant 113 : index
    %800 = vector.load %arg20[%c0_410, %c113_411] : memref<8x512xf32, #tpu.memory_space<vmem>>, vector<4x256xf32>
    %cst_412 = arith.constant 0.000000e+00 : f32
    %801 = vector.shape_cast %51 : vector<1x256xi1> to vector<1x256xi1>
    %802 = vector.broadcast %801 : vector<1x256xi1> to vector<4x256xi1>
    %803 = vector.broadcast %cst_412 : f32 to vector<4x256xf32>
    %804 = arith.select %802, %800, %803 : vector<4x256xi1>, vector<4x256xf32>
    %c72_413 = arith.constant 72 : index
    %c0_414 = arith.constant 0 : index
    %805 = vector.load %arg21[%c72_413, %c0_414] : memref<196x256xf32, #tpu.memory_space<vmem>>, vector<4x256xf32>
    tpu.vector_store %arg21[%c72_413, %c0_414], %804 {strides = array<i32>} : memref<196x256xf32, #tpu.memory_space<vmem>>, vector<4x256xf32>,
    %c0_415 = arith.constant 0 : index
    %c114_416 = arith.constant 114 : index
    %806 = vector.load %arg20[%c0_415, %c114_416] : memref<8x512xf32, #tpu.memory_space<vmem>>, vector<4x256xf32>
    %cst_417 = arith.constant 0.000000e+00 : f32
    %807 = vector.shape_cast %370 : vector<1x256xi1> to vector<1x256xi1>
    %808 = vector.broadcast %807 : vector<1x256xi1> to vector<4x256xi1>
    %809 = vector.broadcast %cst_417 : f32 to vector<4x256xf32>
    %810 = arith.select %808, %806, %809 : vector<4x256xi1>, vector<4x256xf32>
    %c76_418 = arith.constant 76 : index
    %c0_419 = arith.constant 0 : index
    %811 = vector.load %arg21[%c76_418, %c0_419] : memref<196x256xf32, #tpu.memory_space<vmem>>, vector<4x256xf32>
    tpu.vector_store %arg21[%c76_418, %c0_419], %810 {strides = array<i32>} : memref<196x256xf32, #tpu.memory_space<vmem>>, vector<4x256xf32>,
    %c0_420 = arith.constant 0 : index
    %c115 = arith.constant 115 : index
    %812 = vector.load %arg20[%c0_420, %c115] : memref<8x512xf32, #tpu.memory_space<vmem>>, vector<4x256xf32>
    %c16_i32_421 = arith.constant 16 : i32
    %813 = vector.broadcast %c16_i32_421 : i32 to vector<1x256xi32>
    %814 = arith.cmpi sge, %2, %813 : vector<1x256xi32>
    %c272_i32_422 = arith.constant 272 : i32
    %815 = vector.broadcast %c272_i32_422 : i32 to vector<1x256xi32>
    %816 = arith.cmpi slt, %2, %815 : vector<1x256xi32>
    %817 = arith.andi %814, %816 : vector<1x256xi1>
    %c-3_i32_423 = arith.constant -3 : i32
    %818 = vector.broadcast %c-3_i32_423 : i32 to vector<1x256xi32>
    %819 = arith.cmpi sge, %4, %818 : vector<1x256xi32>
    %820 = arith.andi %817, %819 : vector<1x256xi1>
    %c13_i32_424 = arith.constant 13 : i32
    %821 = vector.broadcast %c13_i32_424 : i32 to vector<1x256xi32>
    %822 = arith.cmpi slt, %4, %821 : vector<1x256xi32>
    %823 = arith.andi %820, %822 : vector<1x256xi1>
    %cst_425 = arith.constant 0.000000e+00 : f32
    %824 = vector.shape_cast %823 : vector<1x256xi1> to vector<1x256xi1>
    %825 = vector.broadcast %824 : vector<1x256xi1> to vector<4x256xi1>
    %826 = vector.broadcast %cst_425 : f32 to vector<4x256xf32>
    %827 = arith.select %825, %812, %826 : vector<4x256xi1>, vector<4x256xf32>
    %c80_426 = arith.constant 80 : index
    %c0_427 = arith.constant 0 : index
    %828 = vector.load %arg21[%c80_426, %c0_427] : memref<196x256xf32, #tpu.memory_space<vmem>>, vector<4x256xf32>
    tpu.vector_store %arg21[%c80_426, %c0_427], %827 {strides = array<i32>} : memref<196x256xf32, #tpu.memory_space<vmem>>, vector<4x256xf32>,
    %c0_428 = arith.constant 0 : index
    %c125 = arith.constant 125 : index
    %829 = vector.load %arg20[%c0_428, %c125] : memref<8x512xf32, #tpu.memory_space<vmem>>, vector<4x256xf32>
    %c0_i32_429 = arith.constant 0 : i32
    %830 = vector.broadcast %c0_i32_429 : i32 to vector<1x256xi32>
    %831 = arith.cmpi sge, %2, %830 : vector<1x256xi32>
    %c256_i32_430 = arith.constant 256 : i32
    %832 = vector.broadcast %c256_i32_430 : i32 to vector<1x256xi32>
    %833 = arith.cmpi slt, %2, %832 : vector<1x256xi32>
    %834 = arith.andi %831, %833 : vector<1x256xi1>
    %c3_i32_431 = arith.constant 3 : i32
    %835 = vector.broadcast %c3_i32_431 : i32 to vector<1x256xi32>
    %836 = arith.cmpi sge, %4, %835 : vector<1x256xi32>
    %837 = arith.andi %834, %836 : vector<1x256xi1>
    %c19_i32_432 = arith.constant 19 : i32
    %838 = vector.broadcast %c19_i32_432 : i32 to vector<1x256xi32>
    %839 = arith.cmpi slt, %4, %838 : vector<1x256xi32>
    %840 = arith.andi %837, %839 : vector<1x256xi1>
    %cst_433 = arith.constant 0.000000e+00 : f32
    %841 = vector.shape_cast %840 : vector<1x256xi1> to vector<1x256xi1>
    %842 = vector.broadcast %841 : vector<1x256xi1> to vector<4x256xi1>
    %843 = vector.broadcast %cst_433 : f32 to vector<4x256xf32>
    %844 = arith.select %842, %829, %843 : vector<4x256xi1>, vector<4x256xf32>
    %c84_434 = arith.constant 84 : index
    %c0_435 = arith.constant 0 : index
    %845 = vector.load %arg21[%c84_434, %c0_435] : memref<196x256xf32, #tpu.memory_space<vmem>>, vector<4x256xf32>
    tpu.vector_store %arg21[%c84_434, %c0_435], %844 {strides = array<i32>} : memref<196x256xf32, #tpu.memory_space<vmem>>, vector<4x256xf32>,
    %c0_436 = arith.constant 0 : index
    %c126_437 = arith.constant 126 : index
    %846 = vector.load %arg20[%c0_436, %c126_437] : memref<8x512xf32, #tpu.memory_space<vmem>>, vector<4x256xf32>
    %cst_438 = arith.constant 0.000000e+00 : f32
    %847 = vector.shape_cast %387 : vector<1x256xi1> to vector<1x256xi1>
    %848 = vector.broadcast %847 : vector<1x256xi1> to vector<4x256xi1>
    %849 = vector.broadcast %cst_438 : f32 to vector<4x256xf32>
    %850 = arith.select %848, %846, %849 : vector<4x256xi1>, vector<4x256xf32>
    %c88_439 = arith.constant 88 : index
    %c0_440 = arith.constant 0 : index
    %851 = vector.load %arg21[%c88_439, %c0_440] : memref<196x256xf32, #tpu.memory_space<vmem>>, vector<4x256xf32>
    tpu.vector_store %arg21[%c88_439, %c0_440], %850 {strides = array<i32>} : memref<196x256xf32, #tpu.memory_space<vmem>>, vector<4x256xf32>,
    %c0_441 = arith.constant 0 : index
    %c127_442 = arith.constant 127 : index
    %852 = vector.load %arg20[%c0_441, %c127_442] : memref<8x512xf32, #tpu.memory_space<vmem>>, vector<4x256xf32>
    %cst_443 = arith.constant 0.000000e+00 : f32
    %853 = vector.shape_cast %68 : vector<1x256xi1> to vector<1x256xi1>
    %854 = vector.broadcast %853 : vector<1x256xi1> to vector<4x256xi1>
    %855 = vector.broadcast %cst_443 : f32 to vector<4x256xf32>
    %856 = arith.select %854, %852, %855 : vector<4x256xi1>, vector<4x256xf32>
    %c92_444 = arith.constant 92 : index
    %c0_445 = arith.constant 0 : index
    %857 = vector.load %arg21[%c92_444, %c0_445] : memref<196x256xf32, #tpu.memory_space<vmem>>, vector<4x256xf32>
    tpu.vector_store %arg21[%c92_444, %c0_445], %856 {strides = array<i32>} : memref<196x256xf32, #tpu.memory_space<vmem>>, vector<4x256xf32>,
    %c0_446 = arith.constant 0 : index
    %c128_447 = arith.constant 128 : index
    %858 = vector.load %arg20[%c0_446, %c128_447] : memref<8x512xf32, #tpu.memory_space<vmem>>, vector<4x256xf32>
    %cst_448 = arith.constant 0.000000e+00 : f32
    %859 = vector.shape_cast %85 : vector<1x256xi1> to vector<1x256xi1>
    %860 = vector.broadcast %859 : vector<1x256xi1> to vector<4x256xi1>
    %861 = vector.broadcast %cst_448 : f32 to vector<4x256xf32>
    %862 = arith.select %860, %858, %861 : vector<4x256xi1>, vector<4x256xf32>
    %c96_449 = arith.constant 96 : index
    %c0_450 = arith.constant 0 : index
    %863 = vector.load %arg21[%c96_449, %c0_450] : memref<196x256xf32, #tpu.memory_space<vmem>>, vector<4x256xf32>
    tpu.vector_store %arg21[%c96_449, %c0_450], %862 {strides = array<i32>} : memref<196x256xf32, #tpu.memory_space<vmem>>, vector<4x256xf32>,
    %c0_451 = arith.constant 0 : index
    %c129_452 = arith.constant 129 : index
    %864 = vector.load %arg20[%c0_451, %c129_452] : memref<8x512xf32, #tpu.memory_space<vmem>>, vector<4x256xf32>
    %cst_453 = arith.constant 0.000000e+00 : f32
    %865 = vector.shape_cast %102 : vector<1x256xi1> to vector<1x256xi1>
    %866 = vector.broadcast %865 : vector<1x256xi1> to vector<4x256xi1>
    %867 = vector.broadcast %cst_453 : f32 to vector<4x256xf32>
    %868 = arith.select %866, %864, %867 : vector<4x256xi1>, vector<4x256xf32>
    %c100 = arith.constant 100 : index
    %c0_454 = arith.constant 0 : index
    %869 = vector.load %arg21[%c100, %c0_454] : memref<196x256xf32, #tpu.memory_space<vmem>>, vector<4x256xf32>
    tpu.vector_store %arg21[%c100, %c0_454], %868 {strides = array<i32>} : memref<196x256xf32, #tpu.memory_space<vmem>>, vector<4x256xf32>,
    %c0_455 = arith.constant 0 : index
    %c130_456 = arith.constant 130 : index
    %870 = vector.load %arg20[%c0_455, %c130_456] : memref<8x512xf32, #tpu.memory_space<vmem>>, vector<4x256xf32>
    %cst_457 = arith.constant 0.000000e+00 : f32
    %871 = vector.shape_cast %422 : vector<1x256xi1> to vector<1x256xi1>
    %872 = vector.broadcast %871 : vector<1x256xi1> to vector<4x256xi1>
    %873 = vector.broadcast %cst_457 : f32 to vector<4x256xf32>
    %874 = arith.select %872, %870, %873 : vector<4x256xi1>, vector<4x256xf32>
    %c104 = arith.constant 104 : index
    %c0_458 = arith.constant 0 : index
    %875 = vector.load %arg21[%c104, %c0_458] : memref<196x256xf32, #tpu.memory_space<vmem>>, vector<4x256xf32>
    tpu.vector_store %arg21[%c104, %c0_458], %874 {strides = array<i32>} : memref<196x256xf32, #tpu.memory_space<vmem>>, vector<4x256xf32>,
    %c0_459 = arith.constant 0 : index
    %c131 = arith.constant 131 : index
    %876 = vector.load %arg20[%c0_459, %c131] : memref<8x512xf32, #tpu.memory_space<vmem>>, vector<4x256xf32>
    %c0_i32_460 = arith.constant 0 : i32
    %877 = vector.broadcast %c0_i32_460 : i32 to vector<1x256xi32>
    %878 = arith.cmpi sge, %2, %877 : vector<1x256xi32>
    %c256_i32_461 = arith.constant 256 : i32
    %879 = vector.broadcast %c256_i32_461 : i32 to vector<1x256xi32>
    %880 = arith.cmpi slt, %2, %879 : vector<1x256xi32>
    %881 = arith.andi %878, %880 : vector<1x256xi1>
    %c-3_i32_462 = arith.constant -3 : i32
    %882 = vector.broadcast %c-3_i32_462 : i32 to vector<1x256xi32>
    %883 = arith.cmpi sge, %4, %882 : vector<1x256xi32>
    %884 = arith.andi %881, %883 : vector<1x256xi1>
    %c13_i32_463 = arith.constant 13 : i32
    %885 = vector.broadcast %c13_i32_463 : i32 to vector<1x256xi32>
    %886 = arith.cmpi slt, %4, %885 : vector<1x256xi32>
    %887 = arith.andi %884, %886 : vector<1x256xi1>
    %cst_464 = arith.constant 0.000000e+00 : f32
    %888 = vector.shape_cast %887 : vector<1x256xi1> to vector<1x256xi1>
    %889 = vector.broadcast %888 : vector<1x256xi1> to vector<4x256xi1>
    %890 = vector.broadcast %cst_464 : f32 to vector<4x256xf32>
    %891 = arith.select %889, %876, %890 : vector<4x256xi1>, vector<4x256xf32>
    %c108 = arith.constant 108 : index
    %c0_465 = arith.constant 0 : index
    %892 = vector.load %arg21[%c108, %c0_465] : memref<196x256xf32, #tpu.memory_space<vmem>>, vector<4x256xf32>
    tpu.vector_store %arg21[%c108, %c0_465], %891 {strides = array<i32>} : memref<196x256xf32, #tpu.memory_space<vmem>>, vector<4x256xf32>,
    %c0_466 = arith.constant 0 : index
    %c141 = arith.constant 141 : index
    %893 = vector.load %arg20[%c0_466, %c141] : memref<8x512xf32, #tpu.memory_space<vmem>>, vector<4x256xf32>
    %c-16_i32_467 = arith.constant -16 : i32
    %894 = vector.broadcast %c-16_i32_467 : i32 to vector<1x256xi32>
    %895 = arith.cmpi sge, %2, %894 : vector<1x256xi32>
    %c240_i32_468 = arith.constant 240 : i32
    %896 = vector.broadcast %c240_i32_468 : i32 to vector<1x256xi32>
    %897 = arith.cmpi slt, %2, %896 : vector<1x256xi32>
    %898 = arith.andi %895, %897 : vector<1x256xi1>
    %c3_i32_469 = arith.constant 3 : i32
    %899 = vector.broadcast %c3_i32_469 : i32 to vector<1x256xi32>
    %900 = arith.cmpi sge, %4, %899 : vector<1x256xi32>
    %901 = arith.andi %898, %900 : vector<1x256xi1>
    %c19_i32_470 = arith.constant 19 : i32
    %902 = vector.broadcast %c19_i32_470 : i32 to vector<1x256xi32>
    %903 = arith.cmpi slt, %4, %902 : vector<1x256xi32>
    %904 = arith.andi %901, %903 : vector<1x256xi1>
    %cst_471 = arith.constant 0.000000e+00 : f32
    %905 = vector.shape_cast %904 : vector<1x256xi1> to vector<1x256xi1>
    %906 = vector.broadcast %905 : vector<1x256xi1> to vector<4x256xi1>
    %907 = vector.broadcast %cst_471 : f32 to vector<4x256xf32>
    %908 = arith.select %906, %893, %907 : vector<4x256xi1>, vector<4x256xf32>
    %c112_472 = arith.constant 112 : index
    %c0_473 = arith.constant 0 : index
    %909 = vector.load %arg21[%c112_472, %c0_473] : memref<196x256xf32, #tpu.memory_space<vmem>>, vector<4x256xf32>
    tpu.vector_store %arg21[%c112_472, %c0_473], %908 {strides = array<i32>} : memref<196x256xf32, #tpu.memory_space<vmem>>, vector<4x256xf32>,
    %c0_474 = arith.constant 0 : index
    %c142_475 = arith.constant 142 : index
    %910 = vector.load %arg20[%c0_474, %c142_475] : memref<8x512xf32, #tpu.memory_space<vmem>>, vector<4x256xf32>
    %cst_476 = arith.constant 0.000000e+00 : f32
    %911 = vector.shape_cast %439 : vector<1x256xi1> to vector<1x256xi1>
    %912 = vector.broadcast %911 : vector<1x256xi1> to vector<4x256xi1>
    %913 = vector.broadcast %cst_476 : f32 to vector<4x256xf32>
    %914 = arith.select %912, %910, %913 : vector<4x256xi1>, vector<4x256xf32>
    %c116 = arith.constant 116 : index
    %c0_477 = arith.constant 0 : index
    %915 = vector.load %arg21[%c116, %c0_477] : memref<196x256xf32, #tpu.memory_space<vmem>>, vector<4x256xf32>
    tpu.vector_store %arg21[%c116, %c0_477], %914 {strides = array<i32>} : memref<196x256xf32, #tpu.memory_space<vmem>>, vector<4x256xf32>,
    %c0_478 = arith.constant 0 : index
    %c143_479 = arith.constant 143 : index
    %916 = vector.load %arg20[%c0_478, %c143_479] : memref<8x512xf32, #tpu.memory_space<vmem>>, vector<4x256xf32>
    %cst_480 = arith.constant 0.000000e+00 : f32
    %917 = vector.shape_cast %119 : vector<1x256xi1> to vector<1x256xi1>
    %918 = vector.broadcast %917 : vector<1x256xi1> to vector<4x256xi1>
    %919 = vector.broadcast %cst_480 : f32 to vector<4x256xf32>
    %920 = arith.select %918, %916, %919 : vector<4x256xi1>, vector<4x256xf32>
    %c120 = arith.constant 120 : index
    %c0_481 = arith.constant 0 : index
    %921 = vector.load %arg21[%c120, %c0_481] : memref<196x256xf32, #tpu.memory_space<vmem>>, vector<4x256xf32>
    tpu.vector_store %arg21[%c120, %c0_481], %920 {strides = array<i32>} : memref<196x256xf32, #tpu.memory_space<vmem>>, vector<4x256xf32>,
    %c0_482 = arith.constant 0 : index
    %c144_483 = arith.constant 144 : index
    %922 = vector.load %arg20[%c0_482, %c144_483] : memref<8x512xf32, #tpu.memory_space<vmem>>, vector<4x256xf32>
    %cst_484 = arith.constant 0.000000e+00 : f32
    %923 = vector.shape_cast %136 : vector<1x256xi1> to vector<1x256xi1>
    %924 = vector.broadcast %923 : vector<1x256xi1> to vector<4x256xi1>
    %925 = vector.broadcast %cst_484 : f32 to vector<4x256xf32>
    %926 = arith.select %924, %922, %925 : vector<4x256xi1>, vector<4x256xf32>
    %c124 = arith.constant 124 : index
    %c0_485 = arith.constant 0 : index
    %927 = vector.load %arg21[%c124, %c0_485] : memref<196x256xf32, #tpu.memory_space<vmem>>, vector<4x256xf32>
    tpu.vector_store %arg21[%c124, %c0_485], %926 {strides = array<i32>} : memref<196x256xf32, #tpu.memory_space<vmem>>, vector<4x256xf32>,
    %c0_486 = arith.constant 0 : index
    %c145_487 = arith.constant 145 : index
    %928 = vector.load %arg20[%c0_486, %c145_487] : memref<8x512xf32, #tpu.memory_space<vmem>>, vector<4x256xf32>
    %cst_488 = arith.constant 0.000000e+00 : f32
    %929 = vector.shape_cast %153 : vector<1x256xi1> to vector<1x256xi1>
    %930 = vector.broadcast %929 : vector<1x256xi1> to vector<4x256xi1>
    %931 = vector.broadcast %cst_488 : f32 to vector<4x256xf32>
    %932 = arith.select %930, %928, %931 : vector<4x256xi1>, vector<4x256xf32>
    %c128_489 = arith.constant 128 : index
    %c0_490 = arith.constant 0 : index
    %933 = vector.load %arg21[%c128_489, %c0_490] : memref<196x256xf32, #tpu.memory_space<vmem>>, vector<4x256xf32>
    tpu.vector_store %arg21[%c128_489, %c0_490], %932 {strides = array<i32>} : memref<196x256xf32, #tpu.memory_space<vmem>>, vector<4x256xf32>,
    %c0_491 = arith.constant 0 : index
    %c146_492 = arith.constant 146 : index
    %934 = vector.load %arg20[%c0_491, %c146_492] : memref<8x512xf32, #tpu.memory_space<vmem>>, vector<4x256xf32>
    %cst_493 = arith.constant 0.000000e+00 : f32
    %935 = vector.shape_cast %474 : vector<1x256xi1> to vector<1x256xi1>
    %936 = vector.broadcast %935 : vector<1x256xi1> to vector<4x256xi1>
    %937 = vector.broadcast %cst_493 : f32 to vector<4x256xf32>
    %938 = arith.select %936, %934, %937 : vector<4x256xi1>, vector<4x256xf32>
    %c132 = arith.constant 132 : index
    %c0_494 = arith.constant 0 : index
    %939 = vector.load %arg21[%c132, %c0_494] : memref<196x256xf32, #tpu.memory_space<vmem>>, vector<4x256xf32>
    tpu.vector_store %arg21[%c132, %c0_494], %938 {strides = array<i32>} : memref<196x256xf32, #tpu.memory_space<vmem>>, vector<4x256xf32>,
    %c0_495 = arith.constant 0 : index
    %c147 = arith.constant 147 : index
    %940 = vector.load %arg20[%c0_495, %c147] : memref<8x512xf32, #tpu.memory_space<vmem>>, vector<4x256xf32>
    %c-16_i32_496 = arith.constant -16 : i32
    %941 = vector.broadcast %c-16_i32_496 : i32 to vector<1x256xi32>
    %942 = arith.cmpi sge, %2, %941 : vector<1x256xi32>
    %c240_i32_497 = arith.constant 240 : i32
    %943 = vector.broadcast %c240_i32_497 : i32 to vector<1x256xi32>
    %944 = arith.cmpi slt, %2, %943 : vector<1x256xi32>
    %945 = arith.andi %942, %944 : vector<1x256xi1>
    %c-3_i32_498 = arith.constant -3 : i32
    %946 = vector.broadcast %c-3_i32_498 : i32 to vector<1x256xi32>
    %947 = arith.cmpi sge, %4, %946 : vector<1x256xi32>
    %948 = arith.andi %945, %947 : vector<1x256xi1>
    %c13_i32_499 = arith.constant 13 : i32
    %949 = vector.broadcast %c13_i32_499 : i32 to vector<1x256xi32>
    %950 = arith.cmpi slt, %4, %949 : vector<1x256xi32>
    %951 = arith.andi %948, %950 : vector<1x256xi1>
    %cst_500 = arith.constant 0.000000e+00 : f32
    %952 = vector.shape_cast %951 : vector<1x256xi1> to vector<1x256xi1>
    %953 = vector.broadcast %952 : vector<1x256xi1> to vector<4x256xi1>
    %954 = vector.broadcast %cst_500 : f32 to vector<4x256xf32>
    %955 = arith.select %953, %940, %954 : vector<4x256xi1>, vector<4x256xf32>
    %c136 = arith.constant 136 : index
    %c0_501 = arith.constant 0 : index
    %956 = vector.load %arg21[%c136, %c0_501] : memref<196x256xf32, #tpu.memory_space<vmem>>, vector<4x256xf32>
    tpu.vector_store %arg21[%c136, %c0_501], %955 {strides = array<i32>} : memref<196x256xf32, #tpu.memory_space<vmem>>, vector<4x256xf32>,
    %c0_502 = arith.constant 0 : index
    %c157 = arith.constant 157 : index
    %957 = vector.load %arg20[%c0_502, %c157] : memref<8x512xf32, #tpu.memory_space<vmem>>, vector<4x256xf32>
    %c-32_i32_503 = arith.constant -32 : i32
    %958 = vector.broadcast %c-32_i32_503 : i32 to vector<1x256xi32>
    %959 = arith.cmpi sge, %2, %958 : vector<1x256xi32>
    %c224_i32_504 = arith.constant 224 : i32
    %960 = vector.broadcast %c224_i32_504 : i32 to vector<1x256xi32>
    %961 = arith.cmpi slt, %2, %960 : vector<1x256xi32>
    %962 = arith.andi %959, %961 : vector<1x256xi1>
    %c3_i32_505 = arith.constant 3 : i32
    %963 = vector.broadcast %c3_i32_505 : i32 to vector<1x256xi32>
    %964 = arith.cmpi sge, %4, %963 : vector<1x256xi32>
    %965 = arith.andi %962, %964 : vector<1x256xi1>
    %c19_i32_506 = arith.constant 19 : i32
    %966 = vector.broadcast %c19_i32_506 : i32 to vector<1x256xi32>
    %967 = arith.cmpi slt, %4, %966 : vector<1x256xi32>
    %968 = arith.andi %965, %967 : vector<1x256xi1>
    %cst_507 = arith.constant 0.000000e+00 : f32
    %969 = vector.shape_cast %968 : vector<1x256xi1> to vector<1x256xi1>
    %970 = vector.broadcast %969 : vector<1x256xi1> to vector<4x256xi1>
    %971 = vector.broadcast %cst_507 : f32 to vector<4x256xf32>
    %972 = arith.select %970, %957, %971 : vector<4x256xi1>, vector<4x256xf32>
    %c140 = arith.constant 140 : index
    %c0_508 = arith.constant 0 : index
    %973 = vector.load %arg21[%c140, %c0_508] : memref<196x256xf32, #tpu.memory_space<vmem>>, vector<4x256xf32>
    tpu.vector_store %arg21[%c140, %c0_508], %972 {strides = array<i32>} : memref<196x256xf32, #tpu.memory_space<vmem>>, vector<4x256xf32>,
    %c0_509 = arith.constant 0 : index
    %c158_510 = arith.constant 158 : index
    %974 = vector.load %arg20[%c0_509, %c158_510] : memref<8x512xf32, #tpu.memory_space<vmem>>, vector<4x256xf32>
    %cst_511 = arith.constant 0.000000e+00 : f32
    %975 = vector.shape_cast %491 : vector<1x256xi1> to vector<1x256xi1>
    %976 = vector.broadcast %975 : vector<1x256xi1> to vector<4x256xi1>
    %977 = vector.broadcast %cst_511 : f32 to vector<4x256xf32>
    %978 = arith.select %976, %974, %977 : vector<4x256xi1>, vector<4x256xf32>
    %c144_512 = arith.constant 144 : index
    %c0_513 = arith.constant 0 : index
    %979 = vector.load %arg21[%c144_512, %c0_513] : memref<196x256xf32, #tpu.memory_space<vmem>>, vector<4x256xf32>
    tpu.vector_store %arg21[%c144_512, %c0_513], %978 {strides = array<i32>} : memref<196x256xf32, #tpu.memory_space<vmem>>, vector<4x256xf32>,
    %c0_514 = arith.constant 0 : index
    %c159_515 = arith.constant 159 : index
    %980 = vector.load %arg20[%c0_514, %c159_515] : memref<8x512xf32, #tpu.memory_space<vmem>>, vector<4x256xf32>
    %cst_516 = arith.constant 0.000000e+00 : f32
    %981 = vector.shape_cast %508 : vector<1x256xi1> to vector<1x256xi1>
    %982 = vector.broadcast %981 : vector<1x256xi1> to vector<4x256xi1>
    %983 = vector.broadcast %cst_516 : f32 to vector<4x256xf32>
    %984 = arith.select %982, %980, %983 : vector<4x256xi1>, vector<4x256xf32>
    %c148 = arith.constant 148 : index
    %c0_517 = arith.constant 0 : index
    %985 = vector.load %arg21[%c148, %c0_517] : memref<196x256xf32, #tpu.memory_space<vmem>>, vector<4x256xf32>
    tpu.vector_store %arg21[%c148, %c0_517], %984 {strides = array<i32>} : memref<196x256xf32, #tpu.memory_space<vmem>>, vector<4x256xf32>,
    %c0_518 = arith.constant 0 : index
    %c160_519 = arith.constant 160 : index
    %986 = vector.load %arg20[%c0_518, %c160_519] : memref<8x512xf32, #tpu.memory_space<vmem>>, vector<4x256xf32>
    %cst_520 = arith.constant 0.000000e+00 : f32
    %987 = vector.shape_cast %525 : vector<1x256xi1> to vector<1x256xi1>
    %988 = vector.broadcast %987 : vector<1x256xi1> to vector<4x256xi1>
    %989 = vector.broadcast %cst_520 : f32 to vector<4x256xf32>
    %990 = arith.select %988, %986, %989 : vector<4x256xi1>, vector<4x256xf32>
    %c152 = arith.constant 152 : index
    %c0_521 = arith.constant 0 : index
    %991 = vector.load %arg21[%c152, %c0_521] : memref<196x256xf32, #tpu.memory_space<vmem>>, vector<4x256xf32>
    tpu.vector_store %arg21[%c152, %c0_521], %990 {strides = array<i32>} : memref<196x256xf32, #tpu.memory_space<vmem>>, vector<4x256xf32>,
    %c0_522 = arith.constant 0 : index
    %c161_523 = arith.constant 161 : index
    %992 = vector.load %arg20[%c0_522, %c161_523] : memref<8x512xf32, #tpu.memory_space<vmem>>, vector<4x256xf32>
    %cst_524 = arith.constant 0.000000e+00 : f32
    %993 = vector.shape_cast %542 : vector<1x256xi1> to vector<1x256xi1>
    %994 = vector.broadcast %993 : vector<1x256xi1> to vector<4x256xi1>
    %995 = vector.broadcast %cst_524 : f32 to vector<4x256xf32>
    %996 = arith.select %994, %992, %995 : vector<4x256xi1>, vector<4x256xf32>
    %c156 = arith.constant 156 : index
    %c0_525 = arith.constant 0 : index
    %997 = vector.load %arg21[%c156, %c0_525] : memref<196x256xf32, #tpu.memory_space<vmem>>, vector<4x256xf32>
    tpu.vector_store %arg21[%c156, %c0_525], %996 {strides = array<i32>} : memref<196x256xf32, #tpu.memory_space<vmem>>, vector<4x256xf32>,
    %c0_526 = arith.constant 0 : index
    %c162_527 = arith.constant 162 : index
    %998 = vector.load %arg20[%c0_526, %c162_527] : memref<8x512xf32, #tpu.memory_space<vmem>>, vector<4x256xf32>
    %cst_528 = arith.constant 0.000000e+00 : f32
    %999 = vector.shape_cast %559 : vector<1x256xi1> to vector<1x256xi1>
    %1000 = vector.broadcast %999 : vector<1x256xi1> to vector<4x256xi1>
    %1001 = vector.broadcast %cst_528 : f32 to vector<4x256xf32>
    %1002 = arith.select %1000, %998, %1001 : vector<4x256xi1>, vector<4x256xf32>
    %c160_529 = arith.constant 160 : index
    %c0_530 = arith.constant 0 : index
    %1003 = vector.load %arg21[%c160_529, %c0_530] : memref<196x256xf32, #tpu.memory_space<vmem>>, vector<4x256xf32>
    tpu.vector_store %arg21[%c160_529, %c0_530], %1002 {strides = array<i32>} : memref<196x256xf32, #tpu.memory_space<vmem>>, vector<4x256xf32>,
    %c0_531 = arith.constant 0 : index
    %c163 = arith.constant 163 : index
    %1004 = vector.load %arg20[%c0_531, %c163] : memref<8x512xf32, #tpu.memory_space<vmem>>, vector<4x256xf32>
    %c-32_i32_532 = arith.constant -32 : i32
    %1005 = vector.broadcast %c-32_i32_532 : i32 to vector<1x256xi32>
    %1006 = arith.cmpi sge, %2, %1005 : vector<1x256xi32>
    %c224_i32_533 = arith.constant 224 : i32
    %1007 = vector.broadcast %c224_i32_533 : i32 to vector<1x256xi32>
    %1008 = arith.cmpi slt, %2, %1007 : vector<1x256xi32>
    %1009 = arith.andi %1006, %1008 : vector<1x256xi1>
    %c-3_i32_534 = arith.constant -3 : i32
    %1010 = vector.broadcast %c-3_i32_534 : i32 to vector<1x256xi32>
    %1011 = arith.cmpi sge, %4, %1010 : vector<1x256xi32>
    %1012 = arith.andi %1009, %1011 : vector<1x256xi1>
    %c13_i32_535 = arith.constant 13 : i32
    %1013 = vector.broadcast %c13_i32_535 : i32 to vector<1x256xi32>
    %1014 = arith.cmpi slt, %4, %1013 : vector<1x256xi32>
    %1015 = arith.andi %1012, %1014 : vector<1x256xi1>
    %cst_536 = arith.constant 0.000000e+00 : f32
    %1016 = vector.shape_cast %1015 : vector<1x256xi1> to vector<1x256xi1>
    %1017 = vector.broadcast %1016 : vector<1x256xi1> to vector<4x256xi1>
    %1018 = vector.broadcast %cst_536 : f32 to vector<4x256xf32>
    %1019 = arith.select %1017, %1004, %1018 : vector<4x256xi1>, vector<4x256xf32>
    %c164 = arith.constant 164 : index
    %c0_537 = arith.constant 0 : index
    %1020 = vector.load %arg21[%c164, %c0_537] : memref<196x256xf32, #tpu.memory_space<vmem>>, vector<4x256xf32>
    tpu.vector_store %arg21[%c164, %c0_537], %1019 {strides = array<i32>} : memref<196x256xf32, #tpu.memory_space<vmem>>, vector<4x256xf32>,
    %c0_538 = arith.constant 0 : index
    %c173 = arith.constant 173 : index
    %1021 = vector.load %arg20[%c0_538, %c173] : memref<8x512xf32, #tpu.memory_space<vmem>>, vector<4x256xf32>
    %c-48_i32 = arith.constant -48 : i32
    %1022 = vector.broadcast %c-48_i32 : i32 to vector<1x256xi32>
    %1023 = arith.cmpi sge, %2, %1022 : vector<1x256xi32>
    %c208_i32 = arith.constant 208 : i32
    %1024 = vector.broadcast %c208_i32 : i32 to vector<1x256xi32>
    %1025 = arith.cmpi slt, %2, %1024 : vector<1x256xi32>
    %1026 = arith.andi %1023, %1025 : vector<1x256xi1>
    %c3_i32_539 = arith.constant 3 : i32
    %1027 = vector.broadcast %c3_i32_539 : i32 to vector<1x256xi32>
    %1028 = arith.cmpi sge, %4, %1027 : vector<1x256xi32>
    %1029 = arith.andi %1026, %1028 : vector<1x256xi1>
    %c19_i32_540 = arith.constant 19 : i32
    %1030 = vector.broadcast %c19_i32_540 : i32 to vector<1x256xi32>
    %1031 = arith.cmpi slt, %4, %1030 : vector<1x256xi32>
    %1032 = arith.andi %1029, %1031 : vector<1x256xi1>
    %cst_541 = arith.constant 0.000000e+00 : f32
    %1033 = vector.shape_cast %1032 : vector<1x256xi1> to vector<1x256xi1>
    %1034 = vector.broadcast %1033 : vector<1x256xi1> to vector<4x256xi1>
    %1035 = vector.broadcast %cst_541 : f32 to vector<4x256xf32>
    %1036 = arith.select %1034, %1021, %1035 : vector<4x256xi1>, vector<4x256xf32>
    %c168 = arith.constant 168 : index
    %c0_542 = arith.constant 0 : index
    %1037 = vector.load %arg21[%c168, %c0_542] : memref<196x256xf32, #tpu.memory_space<vmem>>, vector<4x256xf32>
    tpu.vector_store %arg21[%c168, %c0_542], %1036 {strides = array<i32>} : memref<196x256xf32, #tpu.memory_space<vmem>>, vector<4x256xf32>,
    %c0_543 = arith.constant 0 : index
    %c174 = arith.constant 174 : index
    %1038 = vector.load %arg20[%c0_543, %c174] : memref<8x512xf32, #tpu.memory_space<vmem>>, vector<4x256xf32>
    %c-48_i32_544 = arith.constant -48 : i32
    %1039 = vector.broadcast %c-48_i32_544 : i32 to vector<1x256xi32>
    %1040 = arith.cmpi sge, %2, %1039 : vector<1x256xi32>
    %c208_i32_545 = arith.constant 208 : i32
    %1041 = vector.broadcast %c208_i32_545 : i32 to vector<1x256xi32>
    %1042 = arith.cmpi slt, %2, %1041 : vector<1x256xi32>
    %1043 = arith.andi %1040, %1042 : vector<1x256xi1>
    %c2_i32_546 = arith.constant 2 : i32
    %1044 = vector.broadcast %c2_i32_546 : i32 to vector<1x256xi32>
    %1045 = arith.cmpi sge, %4, %1044 : vector<1x256xi32>
    %1046 = arith.andi %1043, %1045 : vector<1x256xi1>
    %c18_i32_547 = arith.constant 18 : i32
    %1047 = vector.broadcast %c18_i32_547 : i32 to vector<1x256xi32>
    %1048 = arith.cmpi slt, %4, %1047 : vector<1x256xi32>
    %1049 = arith.andi %1046, %1048 : vector<1x256xi1>
    %cst_548 = arith.constant 0.000000e+00 : f32
    %1050 = vector.shape_cast %1049 : vector<1x256xi1> to vector<1x256xi1>
    %1051 = vector.broadcast %1050 : vector<1x256xi1> to vector<4x256xi1>
    %1052 = vector.broadcast %cst_548 : f32 to vector<4x256xf32>
    %1053 = arith.select %1051, %1038, %1052 : vector<4x256xi1>, vector<4x256xf32>
    %c172 = arith.constant 172 : index
    %c0_549 = arith.constant 0 : index
    %1054 = vector.load %arg21[%c172, %c0_549] : memref<196x256xf32, #tpu.memory_space<vmem>>, vector<4x256xf32>
    tpu.vector_store %arg21[%c172, %c0_549], %1053 {strides = array<i32>} : memref<196x256xf32, #tpu.memory_space<vmem>>, vector<4x256xf32>,
    %c0_550 = arith.constant 0 : index
    %c175 = arith.constant 175 : index
    %1055 = vector.load %arg20[%c0_550, %c175] : memref<8x512xf32, #tpu.memory_space<vmem>>, vector<4x256xf32>
    %c-48_i32_551 = arith.constant -48 : i32
    %1056 = vector.broadcast %c-48_i32_551 : i32 to vector<1x256xi32>
    %1057 = arith.cmpi sge, %2, %1056 : vector<1x256xi32>
    %c208_i32_552 = arith.constant 208 : i32
    %1058 = vector.broadcast %c208_i32_552 : i32 to vector<1x256xi32>
    %1059 = arith.cmpi slt, %2, %1058 : vector<1x256xi32>
    %1060 = arith.andi %1057, %1059 : vector<1x256xi1>
    %c1_i32_553 = arith.constant 1 : i32
    %1061 = vector.broadcast %c1_i32_553 : i32 to vector<1x256xi32>
    %1062 = arith.cmpi sge, %4, %1061 : vector<1x256xi32>
    %1063 = arith.andi %1060, %1062 : vector<1x256xi1>
    %c17_i32_554 = arith.constant 17 : i32
    %1064 = vector.broadcast %c17_i32_554 : i32 to vector<1x256xi32>
    %1065 = arith.cmpi slt, %4, %1064 : vector<1x256xi32>
    %1066 = arith.andi %1063, %1065 : vector<1x256xi1>
    %cst_555 = arith.constant 0.000000e+00 : f32
    %1067 = vector.shape_cast %1066 : vector<1x256xi1> to vector<1x256xi1>
    %1068 = vector.broadcast %1067 : vector<1x256xi1> to vector<4x256xi1>
    %1069 = vector.broadcast %cst_555 : f32 to vector<4x256xf32>
    %1070 = arith.select %1068, %1055, %1069 : vector<4x256xi1>, vector<4x256xf32>
    %c176 = arith.constant 176 : index
    %c0_556 = arith.constant 0 : index
    %1071 = vector.load %arg21[%c176, %c0_556] : memref<196x256xf32, #tpu.memory_space<vmem>>, vector<4x256xf32>
    tpu.vector_store %arg21[%c176, %c0_556], %1070 {strides = array<i32>} : memref<196x256xf32, #tpu.memory_space<vmem>>, vector<4x256xf32>,
    %c0_557 = arith.constant 0 : index
    %c176_558 = arith.constant 176 : index
    %1072 = vector.load %arg20[%c0_557, %c176_558] : memref<8x512xf32, #tpu.memory_space<vmem>>, vector<4x256xf32>
    %c-48_i32_559 = arith.constant -48 : i32
    %1073 = vector.broadcast %c-48_i32_559 : i32 to vector<1x256xi32>
    %1074 = arith.cmpi sge, %2, %1073 : vector<1x256xi32>
    %c208_i32_560 = arith.constant 208 : i32
    %1075 = vector.broadcast %c208_i32_560 : i32 to vector<1x256xi32>
    %1076 = arith.cmpi slt, %2, %1075 : vector<1x256xi32>
    %1077 = arith.andi %1074, %1076 : vector<1x256xi1>
    %c0_i32_561 = arith.constant 0 : i32
    %1078 = vector.broadcast %c0_i32_561 : i32 to vector<1x256xi32>
    %1079 = arith.cmpi sge, %4, %1078 : vector<1x256xi32>
    %1080 = arith.andi %1077, %1079 : vector<1x256xi1>
    %c16_i32_562 = arith.constant 16 : i32
    %1081 = vector.broadcast %c16_i32_562 : i32 to vector<1x256xi32>
    %1082 = arith.cmpi slt, %4, %1081 : vector<1x256xi32>
    %1083 = arith.andi %1080, %1082 : vector<1x256xi1>
    %cst_563 = arith.constant 0.000000e+00 : f32
    %1084 = vector.shape_cast %1083 : vector<1x256xi1> to vector<1x256xi1>
    %1085 = vector.broadcast %1084 : vector<1x256xi1> to vector<4x256xi1>
    %1086 = vector.broadcast %cst_563 : f32 to vector<4x256xf32>
    %1087 = arith.select %1085, %1072, %1086 : vector<4x256xi1>, vector<4x256xf32>
    %c180 = arith.constant 180 : index
    %c0_564 = arith.constant 0 : index
    %1088 = vector.load %arg21[%c180, %c0_564] : memref<196x256xf32, #tpu.memory_space<vmem>>, vector<4x256xf32>
    tpu.vector_store %arg21[%c180, %c0_564], %1087 {strides = array<i32>} : memref<196x256xf32, #tpu.memory_space<vmem>>, vector<4x256xf32>,
    %c0_565 = arith.constant 0 : index
    %c177 = arith.constant 177 : index
    %1089 = vector.load %arg20[%c0_565, %c177] : memref<8x512xf32, #tpu.memory_space<vmem>>, vector<4x256xf32>
    %c-48_i32_566 = arith.constant -48 : i32
    %1090 = vector.broadcast %c-48_i32_566 : i32 to vector<1x256xi32>
    %1091 = arith.cmpi sge, %2, %1090 : vector<1x256xi32>
    %c208_i32_567 = arith.constant 208 : i32
    %1092 = vector.broadcast %c208_i32_567 : i32 to vector<1x256xi32>
    %1093 = arith.cmpi slt, %2, %1092 : vector<1x256xi32>
    %1094 = arith.andi %1091, %1093 : vector<1x256xi1>
    %c-1_i32_568 = arith.constant -1 : i32
    %1095 = vector.broadcast %c-1_i32_568 : i32 to vector<1x256xi32>
    %1096 = arith.cmpi sge, %4, %1095 : vector<1x256xi32>
    %1097 = arith.andi %1094, %1096 : vector<1x256xi1>
    %c15_i32_569 = arith.constant 15 : i32
    %1098 = vector.broadcast %c15_i32_569 : i32 to vector<1x256xi32>
    %1099 = arith.cmpi slt, %4, %1098 : vector<1x256xi32>
    %1100 = arith.andi %1097, %1099 : vector<1x256xi1>
    %cst_570 = arith.constant 0.000000e+00 : f32
    %1101 = vector.shape_cast %1100 : vector<1x256xi1> to vector<1x256xi1>
    %1102 = vector.broadcast %1101 : vector<1x256xi1> to vector<4x256xi1>
    %1103 = vector.broadcast %cst_570 : f32 to vector<4x256xf32>
    %1104 = arith.select %1102, %1089, %1103 : vector<4x256xi1>, vector<4x256xf32>
    %c184 = arith.constant 184 : index
    %c0_571 = arith.constant 0 : index
    %1105 = vector.load %arg21[%c184, %c0_571] : memref<196x256xf32, #tpu.memory_space<vmem>>, vector<4x256xf32>
    tpu.vector_store %arg21[%c184, %c0_571], %1104 {strides = array<i32>} : memref<196x256xf32, #tpu.memory_space<vmem>>, vector<4x256xf32>,
    %c0_572 = arith.constant 0 : index
    %c178 = arith.constant 178 : index
    %1106 = vector.load %arg20[%c0_572, %c178] : memref<8x512xf32, #tpu.memory_space<vmem>>, vector<4x256xf32>
    %c-48_i32_573 = arith.constant -48 : i32
    %1107 = vector.broadcast %c-48_i32_573 : i32 to vector<1x256xi32>
    %1108 = arith.cmpi sge, %2, %1107 : vector<1x256xi32>
    %c208_i32_574 = arith.constant 208 : i32
    %1109 = vector.broadcast %c208_i32_574 : i32 to vector<1x256xi32>
    %1110 = arith.cmpi slt, %2, %1109 : vector<1x256xi32>
    %1111 = arith.andi %1108, %1110 : vector<1x256xi1>
    %c-2_i32_575 = arith.constant -2 : i32
    %1112 = vector.broadcast %c-2_i32_575 : i32 to vector<1x256xi32>
    %1113 = arith.cmpi sge, %4, %1112 : vector<1x256xi32>
    %1114 = arith.andi %1111, %1113 : vector<1x256xi1>
    %c14_i32_576 = arith.constant 14 : i32
    %1115 = vector.broadcast %c14_i32_576 : i32 to vector<1x256xi32>
    %1116 = arith.cmpi slt, %4, %1115 : vector<1x256xi32>
    %1117 = arith.andi %1114, %1116 : vector<1x256xi1>
    %cst_577 = arith.constant 0.000000e+00 : f32
    %1118 = vector.shape_cast %1117 : vector<1x256xi1> to vector<1x256xi1>
    %1119 = vector.broadcast %1118 : vector<1x256xi1> to vector<4x256xi1>
    %1120 = vector.broadcast %cst_577 : f32 to vector<4x256xf32>
    %1121 = arith.select %1119, %1106, %1120 : vector<4x256xi1>, vector<4x256xf32>
    %c188 = arith.constant 188 : index
    %c0_578 = arith.constant 0 : index
    %1122 = vector.load %arg21[%c188, %c0_578] : memref<196x256xf32, #tpu.memory_space<vmem>>, vector<4x256xf32>
    tpu.vector_store %arg21[%c188, %c0_578], %1121 {strides = array<i32>} : memref<196x256xf32, #tpu.memory_space<vmem>>, vector<4x256xf32>,
    %c0_579 = arith.constant 0 : index
    %c179 = arith.constant 179 : index
    %1123 = vector.load %arg20[%c0_579, %c179] : memref<8x512xf32, #tpu.memory_space<vmem>>, vector<4x256xf32>
    %c-48_i32_580 = arith.constant -48 : i32
    %1124 = vector.broadcast %c-48_i32_580 : i32 to vector<1x256xi32>
    %1125 = arith.cmpi sge, %2, %1124 : vector<1x256xi32>
    %c208_i32_581 = arith.constant 208 : i32
    %1126 = vector.broadcast %c208_i32_581 : i32 to vector<1x256xi32>
    %1127 = arith.cmpi slt, %2, %1126 : vector<1x256xi32>
    %1128 = arith.andi %1125, %1127 : vector<1x256xi1>
    %c-3_i32_582 = arith.constant -3 : i32
    %1129 = vector.broadcast %c-3_i32_582 : i32 to vector<1x256xi32>
    %1130 = arith.cmpi sge, %4, %1129 : vector<1x256xi32>
    %1131 = arith.andi %1128, %1130 : vector<1x256xi1>
    %c13_i32_583 = arith.constant 13 : i32
    %1132 = vector.broadcast %c13_i32_583 : i32 to vector<1x256xi32>
    %1133 = arith.cmpi slt, %4, %1132 : vector<1x256xi32>
    %1134 = arith.andi %1131, %1133 : vector<1x256xi1>
    %cst_584 = arith.constant 0.000000e+00 : f32
    %1135 = vector.shape_cast %1134 : vector<1x256xi1> to vector<1x256xi1>
    %1136 = vector.broadcast %1135 : vector<1x256xi1> to vector<4x256xi1>
    %1137 = vector.broadcast %cst_584 : f32 to vector<4x256xf32>
    %1138 = arith.select %1136, %1123, %1137 : vector<4x256xi1>, vector<4x256xf32>
    %c192 = arith.constant 192 : index
    %c0_585 = arith.constant 0 : index
    %1139 = vector.load %arg21[%c192, %c0_585] : memref<196x256xf32, #tpu.memory_space<vmem>>, vector<4x256xf32>
    tpu.vector_store %arg21[%c192, %c0_585], %1138 {strides = array<i32>} : memref<196x256xf32, #tpu.memory_space<vmem>>, vector<4x256xf32>,
    %c0_586 = arith.constant 0 : index
    %c0_587 = arith.constant 0 : index
    %1140 = vector.load %arg8[%c0_586, %c0_587] : memref<8x196xf32, #tpu.memory_space<vmem>>, vector<8x196xf32>
    %c0_588 = arith.constant 0 : index
    %c0_589 = arith.constant 0 : index
    %1141 = vector.load %arg21[%c0_588, %c0_589] : memref<196x256xf32, #tpu.memory_space<vmem>>, vector<196x256xf32>
    %cst_590 = arith.constant dense<0.000000e+00> : vector<8x256xf32>
    %1142 = tpu.matmul %1140, %1141, %cst_590 {dimension_numbers = #tpu.dot_dimension_numbers<[1], [0], [0], [1], [0, 0, 1, 1], [], []>} : vector<8x196xf32>, vector<196x256xf32>, vector<8x256xf32> -> vector<8x256xf32>
    %c0_591 = arith.constant 0 : index
    %c0_592 = arith.constant 0 : index
    %1143 = vector.load %arg9[%c0_591, %c0_592] : memref<8x1xf32, #tpu.memory_space<vmem>>, vector<8x1xf32>
    %1144 = vector.broadcast %1143 : vector<8x1xf32> to vector<8x256xf32>
    %1145 = arith.addf %1142, %1144 : vector<8x256xf32>
    %cst_593 = arith.constant 0.000000e+00 : f32
    %1146 = vector.broadcast %cst_593 : f32 to vector<8x256xf32>
    %1147 = arith.maximumf %1145, %1146 : vector<8x256xf32>
    %c0_594 = arith.constant 0 : index
    %c0_595 = arith.constant 0 : index
    %1148 = vector.load %arg12[%c0_594, %c0_595] : memref<4x8xf32, #tpu.memory_space<vmem>>, vector<4x8xf32>
    %cst_596 = arith.constant dense<0.000000e+00> : vector<4x256xf32>
    %1149 = tpu.matmul %1148, %1147, %cst_596 {dimension_numbers = #tpu.dot_dimension_numbers<[1], [0], [0], [1], [0, 0, 1, 1], [], []>} : vector<4x8xf32>, vector<8x256xf32>, vector<4x256xf32> -> vector<4x256xf32>
    %1150 = arith.addf %1, %1149 : vector<4x256xf32>
    %c0_597 = arith.constant 0 : index
    %c0_598 = arith.constant 0 : index
    %1151 = vector.load %arg13[%c0_597, %c0_598] : memref<4x1xf32, #tpu.memory_space<vmem>>, vector<4x1xf32>
    %1152 = vector.broadcast %1151 : vector<4x1xf32> to vector<4x256xf32>
    %1153 = arith.addf %1150, %1152 : vector<4x256xf32>
    %cst_599 = arith.constant 0.000000e+00 : f32
    %1154 = vector.broadcast %cst_599 : f32 to vector<4x256xf32>
    %1155 = arith.maximumf %1153, %1154 : vector<4x256xf32>
    %c0_600 = arith.constant 0 : index
    %c0_601 = arith.constant 0 : index
    %1156 = vector.load %arg10[%c0_600, %c0_601] : memref<4x4xf32, #tpu.memory_space<vmem>>, vector<4x4xf32>
    %cst_602 = arith.constant dense<0.000000e+00> : vector<4x256xf32>
    %1157 = tpu.matmul %1156, %1, %cst_602 {dimension_numbers = #tpu.dot_dimension_numbers<[1], [0], [0], [1], [0, 0, 1, 1], [], []>} : vector<4x4xf32>, vector<4x256xf32>, vector<4x256xf32> -> vector<4x256xf32>
    %c0_603 = arith.constant 0 : index
    %c0_604 = arith.constant 0 : index
    %1158 = vector.load %arg11[%c0_603, %c0_604] : memref<4x1xf32, #tpu.memory_space<vmem>>, vector<4x1xf32>
    %1159 = vector.broadcast %1158 : vector<4x1xf32> to vector<4x256xf32>
    %1160 = arith.addf %1157, %1159 : vector<4x256xf32>
    %c0_605 = arith.constant 0 : index
    %c0_606 = arith.constant 0 : index
    %1161 = vector.load %arg15[%c0_605, %c0_606] : memref<4x16xf32, #tpu.memory_space<vmem>>, vector<4x16xf32>
    %1162 = vector.extract_strided_slice %1161 {offsets = [0, 0], sizes = [4, 4], strides = [1, 1]} : vector<4x16xf32> to vector<4x4xf32>
    %cst_607 = arith.constant dense<0.000000e+00> : vector<4x256xf32>
    %1163 = tpu.matmul %1162, %237, %cst_607 {dimension_numbers = #tpu.dot_dimension_numbers<[1], [0], [0], [1], [0, 0, 1, 1], [], []>} : vector<4x4xf32>, vector<4x256xf32>, vector<4x256xf32> -> vector<4x256xf32>
    %1164 = vector.extract_strided_slice %1161 {offsets = [0, 4], sizes = [4, 4], strides = [1, 1]} : vector<4x16xf32> to vector<4x4xf32>
    %cst_608 = arith.constant dense<0.000000e+00> : vector<4x256xf32>
    %1165 = tpu.matmul %1164, %580, %cst_608 {dimension_numbers = #tpu.dot_dimension_numbers<[1], [0], [0], [1], [0, 0, 1, 1], [], []>} : vector<4x4xf32>, vector<4x256xf32>, vector<4x256xf32> -> vector<4x256xf32>
    %1166 = arith.addf %1163, %1165 : vector<4x256xf32>
    %1167 = vector.extract_strided_slice %1161 {offsets = [0, 8], sizes = [4, 4], strides = [1, 1]} : vector<4x16xf32> to vector<4x4xf32>
    %cst_609 = arith.constant dense<0.000000e+00> : vector<4x256xf32>
    %1168 = tpu.matmul %1167, %1155, %cst_609 {dimension_numbers = #tpu.dot_dimension_numbers<[1], [0], [0], [1], [0, 0, 1, 1], [], []>} : vector<4x4xf32>, vector<4x256xf32>, vector<4x256xf32> -> vector<4x256xf32>
    %1169 = arith.addf %1166, %1168 : vector<4x256xf32>
    %1170 = vector.extract_strided_slice %1161 {offsets = [0, 12], sizes = [4, 4], strides = [1, 1]} : vector<4x16xf32> to vector<4x4xf32>
    %cst_610 = arith.constant dense<0.000000e+00> : vector<4x256xf32>
    %1171 = tpu.matmul %1170, %1160, %cst_610 {dimension_numbers = #tpu.dot_dimension_numbers<[1], [0], [0], [1], [0, 0, 1, 1], [], []>} : vector<4x4xf32>, vector<4x256xf32>, vector<4x256xf32> -> vector<4x256xf32>
    %1172 = arith.addf %1169, %1171 : vector<4x256xf32>
    %1173 = arith.addf %1, %1172 : vector<4x256xf32>
    %c0_611 = arith.constant 0 : index
    %c0_612 = arith.constant 0 : index
    %1174 = vector.load %arg16[%c0_611, %c0_612] : memref<4x1xf32, #tpu.memory_space<vmem>>, vector<4x1xf32>
    %1175 = vector.broadcast %1174 : vector<4x1xf32> to vector<4x256xf32>
    %1176 = arith.addf %1173, %1175 : vector<4x256xf32>
    %cst_613 = arith.constant 0.000000e+00 : f32
    %1177 = vector.broadcast %cst_613 : f32 to vector<4x256xf32>
    %1178 = arith.maximumf %1176, %1177 : vector<4x256xf32>
    %c0_614 = arith.constant 0 : index
    %c0_615 = arith.constant 0 : index
    %1179 = vector.load %arg17[%c0_614, %c0_615] : memref<8x4xf32, #tpu.memory_space<vmem>>, vector<8x4xf32>
    %cst_616 = arith.constant dense<0.000000e+00> : vector<8x256xf32>
    %1180 = tpu.matmul %1179, %1178, %cst_616 {dimension_numbers = #tpu.dot_dimension_numbers<[1], [0], [0], [1], [0, 0, 1, 1], [], []>} : vector<8x4xf32>, vector<4x256xf32>, vector<8x256xf32> -> vector<8x256xf32>
    %c0_617 = arith.constant 0 : index
    %c0_618 = arith.constant 0 : index
    %1181 = vector.load %arg18[%c0_617, %c0_618] : memref<8x1xf32, #tpu.memory_space<vmem>>, vector<8x1xf32>
    %1182 = vector.broadcast %1181 : vector<8x1xf32> to vector<8x256xf32>
    %1183 = arith.addf %1180, %1182 : vector<8x256xf32>
    %c0_619 = arith.constant 0 : index
    %c0_620 = arith.constant 0 : index
    %c0_621 = arith.constant 0 : index
    %1184 = vector.load %arg19[%c0_619, %c0_620, %c0_621] : memref<1x8x256xf32, #tpu.memory_space<vmem>>, vector<1x8x256xf32>
    %1185 = vector.shape_cast %1184 : vector<1x8x256xf32> to vector<8x256xf32>
    %1186 = vector.shape_cast %1183 : vector<8x256xf32> to vector<1x8x256xf32>
    tpu.vector_store %arg19[%c0_619, %c0_620, %c0_621], %1186 {strides = array<i32>} : memref<1x8x256xf32, #tpu.memory_space<vmem>>, vector<1x8x256xf32>,
    return
  }
  func.func @transform_0(%arg0: i32) -> (i32, i32, i32) {
    %c0_i32 = arith.constant 0 : i32
    %c0_i32_0 = arith.constant 0 : i32
    %c0_i32_1 = arith.constant 0 : i32
    return %arg0, %c0_i32, %c0_i32_0 : i32, i32, i32
  }
  func.func @transform_1(%arg0: i32) -> (i32, i32) {
    %c0_i32 = arith.constant 0 : i32
    %c0_i32_0 = arith.constant 0 : i32
    %c0_i32_1 = arith.constant 0 : i32
    return %c0_i32, %c0_i32_0 : i32, i32
  }
  func.func @transform_2(%arg0: i32) -> (i32, i32) {
    %c0_i32 = arith.constant 0 : i32
    %c0_i32_0 = arith.constant 0 : i32
    %c0_i32_1 = arith.constant 0 : i32
    return %c0_i32, %c0_i32_0 : i32, i32
  }
  func.func @transform_3(%arg0: i32) -> (i32, i32) {
    %c0_i32 = arith.constant 0 : i32
    %c0_i32_0 = arith.constant 0 : i32
    %c0_i32_1 = arith.constant 0 : i32
    return %c0_i32, %c0_i32_0 : i32, i32
  }
  func.func @transform_4(%arg0: i32) -> (i32, i32) {
    %c0_i32 = arith.constant 0 : i32
    %c0_i32_0 = arith.constant 0 : i32
    %c0_i32_1 = arith.constant 0 : i32
    return %c0_i32, %c0_i32_0 : i32, i32
  }
  func.func @transform_5(%arg0: i32) -> (i32, i32) {
    %c0_i32 = arith.constant 0 : i32
    %c0_i32_0 = arith.constant 0 : i32
    %c0_i32_1 = arith.constant 0 : i32
    return %c0_i32, %c0_i32_0 : i32, i32
  }
  func.func @transform_6(%arg0: i32) -> (i32, i32) {
    %c0_i32 = arith.constant 0 : i32
    %c0_i32_0 = arith.constant 0 : i32
    %c0_i32_1 = arith.constant 0 : i32
    return %c0_i32, %c0_i32_0 : i32, i32
  }
  func.func @transform_7(%arg0: i32) -> (i32, i32) {
    %c0_i32 = arith.constant 0 : i32
    %c0_i32_0 = arith.constant 0 : i32
    %c0_i32_1 = arith.constant 0 : i32
    return %c0_i32, %c0_i32_0 : i32, i32
  }
  func.func @transform_8(%arg0: i32) -> (i32, i32) {
    %c0_i32 = arith.constant 0 : i32
    %c0_i32_0 = arith.constant 0 : i32
    %c0_i32_1 = arith.constant 0 : i32
    return %c0_i32, %c0_i32_0 : i32, i32
  }
  func.func @transform_9(%arg0: i32) -> (i32, i32) {
    %c0_i32 = arith.constant 0 : i32
    %c0_i32_0 = arith.constant 0 : i32
    %c0_i32_1 = arith.constant 0 : i32
    return %c0_i32, %c0_i32_0 : i32, i32
  }
  func.func @transform_10(%arg0: i32) -> (i32, i32) {
    %c0_i32 = arith.constant 0 : i32
    %c0_i32_0 = arith.constant 0 : i32
    %c0_i32_1 = arith.constant 0 : i32
    return %c0_i32, %c0_i32_0 : i32, i32
  }
  func.func @transform_11(%arg0: i32) -> (i32, i32) {
    %c0_i32 = arith.constant 0 : i32
    %c0_i32_0 = arith.constant 0 : i32
    %c0_i32_1 = arith.constant 0 : i32
    return %c0_i32, %c0_i32_0 : i32, i32
  }
  func.func @transform_12(%arg0: i32) -> (i32, i32) {
    %c0_i32 = arith.constant 0 : i32
    %c0_i32_0 = arith.constant 0 : i32
    %c0_i32_1 = arith.constant 0 : i32
    return %c0_i32, %c0_i32_0 : i32, i32
  }
  func.func @transform_13(%arg0: i32) -> (i32, i32) {
    %c0_i32 = arith.constant 0 : i32
    %c0_i32_0 = arith.constant 0 : i32
    %c0_i32_1 = arith.constant 0 : i32
    return %c0_i32, %c0_i32_0 : i32, i32
  }
  func.func @transform_14(%arg0: i32) -> (i32, i32) {
    %c0_i32 = arith.constant 0 : i32
    %c0_i32_0 = arith.constant 0 : i32
    %c0_i32_1 = arith.constant 0 : i32
    return %c0_i32, %c0_i32_0 : i32, i32
  }
  func.func @transform_15(%arg0: i32) -> (i32, i32) {
    %c0_i32 = arith.constant 0 : i32
    %c0_i32_0 = arith.constant 0 : i32
    %c0_i32_1 = arith.constant 0 : i32
    return %c0_i32, %c0_i32_0 : i32, i32
  }
  func.func @transform_16(%arg0: i32) -> (i32, i32) {
    %c0_i32 = arith.constant 0 : i32
    %c0_i32_0 = arith.constant 0 : i32
    %c0_i32_1 = arith.constant 0 : i32
    return %c0_i32, %c0_i32_0 : i32, i32
  }
  func.func @transform_17(%arg0: i32) -> (i32, i32) {
    %c0_i32 = arith.constant 0 : i32
    %c0_i32_0 = arith.constant 0 : i32
    %c0_i32_1 = arith.constant 0 : i32
    return %c0_i32, %c0_i32_0 : i32, i32
  }
  func.func @transform_18(%arg0: i32) -> (i32, i32, i32) {
    %c0_i32 = arith.constant 0 : i32
    %c0_i32_0 = arith.constant 0 : i32
    %c0_i32_1 = arith.constant 0 : i32
    return %arg0, %c0_i32, %c0_i32_0 : i32, i32, i32
  }
}

</mosaic_0001>

<llo_original>
// kernel: _lambda_.1
$region0: #{_lambda_.1}
  #allocation0 [shape = 'u32[]', space=smem, size = 0x4, offset = 0x4, fixed_abs, tag = 'smem constant byte address 0x4 - core index']
  #allocation1 [shape = 'u32[144,128]{1,0:T(1,128)}', space=vmem, size = 0x12000, scoped, tag = 'internal scratch']
  #allocation2 [shape = 'f32[8,512]{1,0:T(8,128)}', space=vmem, size = 0x4000, scoped, tag = 'scratch operand']
  #allocation3 [shape = 'f32[196,256]{1,0:T(8,128)}', space=vmem, size = 0x32000, scoped, tag = 'scratch operand']
  %s0 = inlined_call_operand.vmem [shape: f32[2,4,256], index: 0, kind: input, shape index: {}]
  %s1 = inlined_call_operand.vmem [shape: f32[8,36], index: 1, kind: input, shape index: {}]
  %s2 = inlined_call_operand.vmem [shape: f32[8,1], index: 2, kind: input, shape index: {}]
  %s3 = inlined_call_operand.vmem [shape: f32[8,72], index: 3, kind: input, shape index: {}]
  %s4 = inlined_call_operand.vmem [shape: f32[8,1], index: 4, kind: input, shape index: {}]
  %s5 = inlined_call_operand.vmem [shape: f32[8,100], index: 5, kind: input, shape index: {}]
  %s6 = inlined_call_operand.vmem [shape: f32[8,1], index: 6, kind: input, shape index: {}]
  %s7 = inlined_call_operand.vmem [shape: f32[8,196], index: 7, kind: input, shape index: {}]
  %s8 = inlined_call_operand.vmem [shape: f32[8,1], index: 8, kind: input, shape index: {}]
  %s9 = inlined_call_operand.vmem [shape: f32[4,4], index: 9, kind: input, shape index: {}]
  %s10 = inlined_call_operand.vmem [shape: f32[4,1], index: 10, kind: input, shape index: {}]
  %s11 = inlined_call_operand.vmem [shape: f32[4,8], index: 11, kind: input, shape index: {}]
  %s12 = inlined_call_operand.vmem [shape: f32[4,1], index: 12, kind: input, shape index: {}]
  %s13 = inlined_call_operand.vmem [shape: f32[4,8], index: 13, kind: input, shape index: {}]
  %s14 = inlined_call_operand.vmem [shape: f32[4,16], index: 14, kind: input, shape index: {}]
  %s15 = inlined_call_operand.vmem [shape: f32[4,1], index: 15, kind: input, shape index: {}]
  %s16 = inlined_call_operand.vmem [shape: f32[8,4], index: 16, kind: input, shape index: {}]
  %s17 = inlined_call_operand.vmem [shape: f32[8,1], index: 17, kind: input, shape index: {}]
  %s18 = inlined_call_operand.vmem [shape: f32[2,8,256], index: 18, kind: output, shape index: {}]
  %s19 = sld [smem:[#allocation0]]
  $region105: #{_lambda_.1} parent=0
    _
  %s21 = ssub.s32 1, %s19
  %s22 = scalar_select 0, %s21, %s19
  loop: start=0, step=1, limit=4
  $region2: #{_lambda_.1} parent=0 // loop_pre_header
    _
  $region3: #{_lambda_.1} parent=0 // loop_header
    %s24 = sphi 0, %s28
    %p25 = scmp.ge.s32.totalorder %s24, 4
    %s34 = sphi 0, %s36
    %s37 = sphi 0, %s34
    %s38 = sphi 0, %s37
    %s54 = sphi 0, %s38
    %s58 = sphi 0, %s58
    %s60 = sphi 0, %s58
    %s61 = sphi 0, %s60
    %s75 = sphi 0, %s61
    %s79 = sphi 0, %s79
    %s81 = sphi 0, %s79
    %s82 = sphi 0, %s81
    %s96 = sphi 0, %s82
    %s100 = sphi 0, %s100
    %s102 = sphi 0, %s100
    %s103 = sphi 0, %s102
    %s117 = sphi 0, %s103
    %s121 = sphi 0, %s121
    %s123 = sphi 0, %s121
    %s124 = sphi 0, %s123
    %s138 = sphi 0, %s124
    %s142 = sphi 0, %s142
    %s144 = sphi 0, %s142
    %s145 = sphi 0, %s144
    %s159 = sphi 0, %s145
    %s163 = sphi 0, %s163
    %s165 = sphi 0, %s163
    %s166 = sphi 0, %s165
    %s180 = sphi 0, %s166
    %s184 = sphi 0, %s184
    %s186 = sphi 0, %s184
    %s187 = sphi 0, %s186
    %s201 = sphi 0, %s187
    %s205 = sphi 0, %s205
    %s207 = sphi 0, %s205
    %s208 = sphi 0, %s207
    %s222 = sphi 0, %s208
    %s226 = sphi 0, %s226
    %s228 = sphi 0, %s226
    %s229 = sphi 0, %s228
    %s243 = sphi 0, %s229
    %s247 = sphi 0, %s247
    %s249 = sphi 0, %s247
    %s250 = sphi 0, %s249
    %s264 = sphi 0, %s250
    %s268 = sphi 0, %s268
    %s270 = sphi 0, %s268
    %s271 = sphi 0, %s270
    %s285 = sphi 0, %s271
    %s289 = sphi 0, %s289
    %s291 = sphi 0, %s289
    %s292 = sphi 0, %s291
    %s306 = sphi 0, %s292
    %s310 = sphi 0, %s310
    %s312 = sphi 0, %s310
    %s313 = sphi 0, %s312
    %s327 = sphi 0, %s313
    %s331 = sphi 0, %s331
    %s333 = sphi 0, %s331
    %s334 = sphi 0, %s333
    %s348 = sphi 0, %s334
    %s352 = sphi 0, %s352
    %s354 = sphi 0, %s352
    %s355 = sphi 0, %s354
    %s369 = sphi 0, %s355
    %s373 = sphi 0, %s373
    %s375 = sphi 0, %s373
    %s376 = sphi 0, %s375
    %s390 = sphi 0, %s376
    %s394 = sphi 0, %s394
    %s396 = sphi 0, %s394
    %s397 = sphi 0, %s396
    %s411 = sphi 0, %s397
    %s417 = sphi 0, %s419
    %s420 = sphi 0, %s417
    %s421 = sphi 0, %s420
    %s437 = sphi 0, %s421
  $region4: #{_lambda_.1} parent=0 // loop_header_branch
    %27 = sbr.rel (%p25) target = $region8
  $region5: #{_lambda_.1} parent=0 // loop_body
    %s29 = ssub.s32 %s24, 1
    %s30 = ssub.s32 %s24, 2
    %s31 = sadd.s32 %s24, 1
    %s32 = ssub.s32 %s24, %s31
    %p33 = scmp.eq.s32.totalorder %s32, 0
    %s35 = sadd.s32 %s34, 1
    %s36 = scalar_select %p33, %s34, %s35
    %p39 = pneg %p33
    %p40 = scmp.eq.s32.totalorder %s24, 1
    %p41 = por %p39, %p40
    %p42 = scmp.ne.s32.totalorder %s34, %s37
    %p43 = scmp.eq.s32.totalorder %s24, 0
    %p44 = por %p42, %p43
    %p45 = scmp.ne.s32.totalorder %s34, %s37
    %p46 = scmp.eq.s32.totalorder %s29, 1
    %p47 = por %p45, %p46
    %p48 = scmp.ne.s32.totalorder %s37, %s38
    %p49 = scmp.eq.s32.totalorder %s29, 0
    %p50 = por %p48, %p49
    %p51 = scmp.ne.s32.totalorder %s37, %s38
    %p52 = scmp.eq.s32.totalorder %s30, 1
    %p53 = por %p51, %p52
    %p55 = scmp.ne.s32.totalorder %s38, %s54
    %p56 = scmp.eq.s32.totalorder %s30, 0
    %p57 = por %p55, %p56
    %s59 = sadd.s32 %s58, 1
    %p62 = scmp.eq.s32.totalorder %s24, 1
    %p63 = scmp.ne.s32.totalorder %s58, %s60
    %p64 = scmp.eq.s32.totalorder %s24, 0
    %p65 = por %p63, %p64
    %p66 = scmp.ne.s32.totalorder %s58, %s60
    %p67 = scmp.eq.s32.totalorder %s29, 1
    %p68 = por %p66, %p67
    %p69 = scmp.ne.s32.totalorder %s60, %s61
    %p70 = scmp.eq.s32.totalorder %s29, 0
    %p71 = por %p69, %p70
    %p72 = scmp.ne.s32.totalorder %s60, %s61
    %p73 = scmp.eq.s32.totalorder %s30, 1
    %p74 = por %p72, %p73
    %p76 = scmp.ne.s32.totalorder %s61, %s75
    %p77 = scmp.eq.s32.totalorder %s30, 0
    %p78 = por %p76, %p77
    %s80 = sadd.s32 %s79, 1
    %p83 = scmp.eq.s32.totalorder %s24, 1
    %p84 = scmp.ne.s32.totalorder %s79, %s81
    %p85 = scmp.eq.s32.totalorder %s24, 0
    %p86 = por %p84, %p85
    %p87 = scmp.ne.s32.totalorder %s79, %s81
    %p88 = scmp.eq.s32.totalorder %s29, 1
    %p89 = por %p87, %p88
    %p90 = scmp.ne.s32.totalorder %s81, %s82
    %p91 = scmp.eq.s32.totalorder %s29, 0
    %p92 = por %p90, %p91
    %p93 = scmp.ne.s32.totalorder %s81, %s82
    %p94 = scmp.eq.s32.totalorder %s30, 1
    %p95 = por %p93, %p94
    %p97 = scmp.ne.s32.totalorder %s82, %s96
    %p98 = scmp.eq.s32.totalorder %s30, 0
    %p99 = por %p97, %p98
    %s101 = sadd.s32 %s100, 1
    %p104 = scmp.eq.s32.totalorder %s24, 1
    %p105 = scmp.ne.s32.totalorder %s100, %s102
    %p106 = scmp.eq.s32.totalorder %s24, 0
    %p107 = por %p105, %p106
    %p108 = scmp.ne.s32.totalorder %s100, %s102
    %p109 = scmp.eq.s32.totalorder %s29, 1
    %p110 = por %p108, %p109
    %p111 = scmp.ne.s32.totalorder %s102, %s103
    %p112 = scmp.eq.s32.totalorder %s29, 0
    %p113 = por %p111, %p112
    %p114 = scmp.ne.s32.totalorder %s102, %s103
    %p115 = scmp.eq.s32.totalorder %s30, 1
    %p116 = por %p114, %p115
    %p118 = scmp.ne.s32.totalorder %s103, %s117
    %p119 = scmp.eq.s32.totalorder %s30, 0
    %p120 = por %p118, %p119
    %s122 = sadd.s32 %s121, 1
    %p125 = scmp.eq.s32.totalorder %s24, 1
    %p126 = scmp.ne.s32.totalorder %s121, %s123
    %p127 = scmp.eq.s32.totalorder %s24, 0
    %p128 = por %p126, %p127
    %p129 = scmp.ne.s32.totalorder %s121, %s123
    %p130 = scmp.eq.s32.totalorder %s29, 1
    %p131 = por %p129, %p130
    %p132 = scmp.ne.s32.totalorder %s123, %s124
    %p133 = scmp.eq.s32.totalorder %s29, 0
    %p134 = por %p132, %p133
    %p135 = scmp.ne.s32.totalorder %s123, %s124
    %p136 = scmp.eq.s32.totalorder %s30, 1
    %p137 = por %p135, %p136
    %p139 = scmp.ne.s32.totalorder %s124, %s138
    %p140 = scmp.eq.s32.totalorder %s30, 0
    %p141 = por %p139, %p140
    %s143 = sadd.s32 %s142, 1
    %p146 = scmp.eq.s32.totalorder %s24, 1
    %p147 = scmp.ne.s32.totalorder %s142, %s144
    %p148 = scmp.eq.s32.totalorder %s24, 0
    %p149 = por %p147, %p148
    %p150 = scmp.ne.s32.totalorder %s142, %s144
    %p151 = scmp.eq.s32.totalorder %s29, 1
    %p152 = por %p150, %p151
    %p153 = scmp.ne.s32.totalorder %s144, %s145
    %p154 = scmp.eq.s32.totalorder %s29, 0
    %p155 = por %p153, %p154
    %p156 = scmp.ne.s32.totalorder %s144, %s145
    %p157 = scmp.eq.s32.totalorder %s30, 1
    %p158 = por %p156, %p157
    %p160 = scmp.ne.s32.totalorder %s145, %s159
    %p161 = scmp.eq.s32.totalorder %s30, 0
    %p162 = por %p160, %p161
    %s164 = sadd.s32 %s163, 1
    %p167 = scmp.eq.s32.totalorder %s24, 1
    %p168 = scmp.ne.s32.totalorder %s163, %s165
    %p169 = scmp.eq.s32.totalorder %s24, 0
    %p170 = por %p168, %p169
    %p171 = scmp.ne.s32.totalorder %s163, %s165
    %p172 = scmp.eq.s32.totalorder %s29, 1
    %p173 = por %p171, %p172
    %p174 = scmp.ne.s32.totalorder %s165, %s166
    %p175 = scmp.eq.s32.totalorder %s29, 0
    %p176 = por %p174, %p175
    %p177 = scmp.ne.s32.totalorder %s165, %s166
    %p178 = scmp.eq.s32.totalorder %s30, 1
    %p179 = por %p177, %p178
    %p181 = scmp.ne.s32.totalorder %s166, %s180
    %p182 = scmp.eq.s32.totalorder %s30, 0
    %p183 = por %p181, %p182
    %s185 = sadd.s32 %s184, 1
    %p188 = scmp.eq.s32.totalorder %s24, 1
    %p189 = scmp.ne.s32.totalorder %s184, %s186
    %p190 = scmp.eq.s32.totalorder %s24, 0
    %p191 = por %p189, %p190
    %p192 = scmp.ne.s32.totalorder %s184, %s186
    %p193 = scmp.eq.s32.totalorder %s29, 1
    %p194 = por %p192, %p193
    %p195 = scmp.ne.s32.totalorder %s186, %s187
    %p196 = scmp.eq.s32.totalorder %s29, 0
    %p197 = por %p195, %p196
    %p198 = scmp.ne.s32.totalorder %s186, %s187
    %p199 = scmp.eq.s32.totalorder %s30, 1
    %p200 = por %p198, %p199
    %p202 = scmp.ne.s32.totalorder %s187, %s201
    %p203 = scmp.eq.s32.totalorder %s30, 0
    %p204 = por %p202, %p203
    %s206 = sadd.s32 %s205, 1
    %p209 = scmp.eq.s32.totalorder %s24, 1
    %p210 = scmp.ne.s32.totalorder %s205, %s207
    %p211 = scmp.eq.s32.totalorder %s24, 0
    %p212 = por %p210, %p211
    %p213 = scmp.ne.s32.totalorder %s205, %s207
    %p214 = scmp.eq.s32.totalorder %s29, 1
    %p215 = por %p213, %p214
    %p216 = scmp.ne.s32.totalorder %s207, %s208
    %p217 = scmp.eq.s32.totalorder %s29, 0
    %p218 = por %p216, %p217
    %p219 = scmp.ne.s32.totalorder %s207, %s208
    %p220 = scmp.eq.s32.totalorder %s30, 1
    %p221 = por %p219, %p220
    %p223 = scmp.ne.s32.totalorder %s208, %s222
    %p224 = scmp.eq.s32.totalorder %s30, 0
    %p225 = por %p223, %p224
    %s227 = sadd.s32 %s226, 1
    %p230 = scmp.eq.s32.totalorder %s24, 1
    %p231 = scmp.ne.s32.totalorder %s226, %s228
    %p232 = scmp.eq.s32.totalorder %s24, 0
    %p233 = por %p231, %p232
    %p234 = scmp.ne.s32.totalorder %s226, %s228
    %p235 = scmp.eq.s32.totalorder %s29, 1
    %p236 = por %p234, %p235
    %p237 = scmp.ne.s32.totalorder %s228, %s229
    %p238 = scmp.eq.s32.totalorder %s29, 0
    %p239 = por %p237, %p238
    %p240 = scmp.ne.s32.totalorder %s228, %s229
    %p241 = scmp.eq.s32.totalorder %s30, 1
    %p242 = por %p240, %p241
    %p244 = scmp.ne.s32.totalorder %s229, %s243
    %p245 = scmp.eq.s32.totalorder %s30, 0
    %p246 = por %p244, %p245
    %s248 = sadd.s32 %s247, 1
    %p251 = scmp.eq.s32.totalorder %s24, 1
    %p252 = scmp.ne.s32.totalorder %s247, %s249
    %p253 = scmp.eq.s32.totalorder %s24, 0
    %p254 = por %p252, %p253
    %p255 = scmp.ne.s32.totalorder %s247, %s249
    %p256 = scmp.eq.s32.totalorder %s29, 1
    %p257 = por %p255, %p256
    %p258 = scmp.ne.s32.totalorder %s249, %s250
    %p259 = scmp.eq.s32.totalorder %s29, 0
    %p260 = por %p258, %p259
    %p261 = scmp.ne.s32.totalorder %s249, %s250
    %p262 = scmp.eq.s32.totalorder %s30, 1
    %p263 = por %p261, %p262
    %p265 = scmp.ne.s32.totalorder %s250, %s264
    %p266 = scmp.eq.s32.totalorder %s30, 0
    %p267 = por %p265, %p266
    %s269 = sadd.s32 %s268, 1
    %p272 = scmp.eq.s32.totalorder %s24, 1
    %p273 = scmp.ne.s32.totalorder %s268, %s270
    %p274 = scmp.eq.s32.totalorder %s24, 0
    %p275 = por %p273, %p274
    %p276 = scmp.ne.s32.totalorder %s268, %s270
    %p277 = scmp.eq.s32.totalorder %s29, 1
    %p278 = por %p276, %p277
    %p279 = scmp.ne.s32.totalorder %s270, %s271
    %p280 = scmp.eq.s32.totalorder %s29, 0
    %p281 = por %p279, %p280
    %p282 = scmp.ne.s32.totalorder %s270, %s271
    %p283 = scmp.eq.s32.totalorder %s30, 1
    %p284 = por %p282, %p283
    %p286 = scmp.ne.s32.totalorder %s271, %s285
    %p287 = scmp.eq.s32.totalorder %s30, 0
    %p288 = por %p286, %p287
    %s290 = sadd.s32 %s289, 1
    %p293 = scmp.eq.s32.totalorder %s24, 1
    %p294 = scmp.ne.s32.totalorder %s289, %s291
    %p295 = scmp.eq.s32.totalorder %s24, 0
    %p296 = por %p294, %p295
    %p297 = scmp.ne.s32.totalorder %s289, %s291
    %p298 = scmp.eq.s32.totalorder %s29, 1
    %p299 = por %p297, %p298
    %p300 = scmp.ne.s32.totalorder %s291, %s292
    %p301 = scmp.eq.s32.totalorder %s29, 0
    %p302 = por %p300, %p301
    %p303 = scmp.ne.s32.totalorder %s291, %s292
    %p304 = scmp.eq.s32.totalorder %s30, 1
    %p305 = por %p303, %p304
    %p307 = scmp.ne.s32.totalorder %s292, %s306
    %p308 = scmp.eq.s32.totalorder %s30, 0
    %p309 = por %p307, %p308
    %s311 = sadd.s32 %s310, 1
    %p314 = scmp.eq.s32.totalorder %s24, 1
    %p315 = scmp.ne.s32.totalorder %s310, %s312
    %p316 = scmp.eq.s32.totalorder %s24, 0
    %p317 = por %p315, %p316
    %p318 = scmp.ne.s32.totalorder %s310, %s312
    %p319 = scmp.eq.s32.totalorder %s29, 1
    %p320 = por %p318, %p319
    %p321 = scmp.ne.s32.totalorder %s312, %s313
    %p322 = scmp.eq.s32.totalorder %s29, 0
    %p323 = por %p321, %p322
    %p324 = scmp.ne.s32.totalorder %s312, %s313
    %p325 = scmp.eq.s32.totalorder %s30, 1
    %p326 = por %p324, %p325
    %p328 = scmp.ne.s32.totalorder %s313, %s327
    %p329 = scmp.eq.s32.totalorder %s30, 0
    %p330 = por %p328, %p329
    %s332 = sadd.s32 %s331, 1
    %p335 = scmp.eq.s32.totalorder %s24, 1
    %p336 = scmp.ne.s32.totalorder %s331, %s333
    %p337 = scmp.eq.s32.totalorder %s24, 0
    %p338 = por %p336, %p337
    %p339 = scmp.ne.s32.totalorder %s331, %s333
    %p340 = scmp.eq.s32.totalorder %s29, 1
    %p341 = por %p339, %p340
    %p342 = scmp.ne.s32.totalorder %s333, %s334
    %p343 = scmp.eq.s32.totalorder %s29, 0
    %p344 = por %p342, %p343
    %p345 = scmp.ne.s32.totalorder %s333, %s334
    %p346 = scmp.eq.s32.totalorder %s30, 1
    %p347 = por %p345, %p346
    %p349 = scmp.ne.s32.totalorder %s334, %s348
    %p350 = scmp.eq.s32.totalorder %s30, 0
    %p351 = por %p349, %p350
    %s353 = sadd.s32 %s352, 1
    %p356 = scmp.eq.s32.totalorder %s24, 1
    %p357 = scmp.ne.s32.totalorder %s352, %s354
    %p358 = scmp.eq.s32.totalorder %s24, 0
    %p359 = por %p357, %p358
    %p360 = scmp.ne.s32.totalorder %s352, %s354
    %p361 = scmp.eq.s32.totalorder %s29, 1
    %p362 = por %p360, %p361
    %p363 = scmp.ne.s32.totalorder %s354, %s355
    %p364 = scmp.eq.s32.totalorder %s29, 0
    %p365 = por %p363, %p364
    %p366 = scmp.ne.s32.totalorder %s354, %s355
    %p367 = scmp.eq.s32.totalorder %s30, 1
    %p368 = por %p366, %p367
    %p370 = scmp.ne.s32.totalorder %s355, %s369
    %p371 = scmp.eq.s32.totalorder %s30, 0
    %p372 = por %p370, %p371
    %s374 = sadd.s32 %s373, 1
    %p377 = scmp.eq.s32.totalorder %s24, 1
    %p378 = scmp.ne.s32.totalorder %s373, %s375
    %p379 = scmp.eq.s32.totalorder %s24, 0
    %p380 = por %p378, %p379
    %p381 = scmp.ne.s32.totalorder %s373, %s375
    %p382 = scmp.eq.s32.totalorder %s29, 1
    %p383 = por %p381, %p382
    %p384 = scmp.ne.s32.totalorder %s375, %s376
    %p385 = scmp.eq.s32.totalorder %s29, 0
    %p386 = por %p384, %p385
    %p387 = scmp.ne.s32.totalorder %s375, %s376
    %p388 = scmp.eq.s32.totalorder %s30, 1
    %p389 = por %p387, %p388
    %p391 = scmp.ne.s32.totalorder %s376, %s390
    %p392 = scmp.eq.s32.totalorder %s30, 0
    %p393 = por %p391, %p392
    %s395 = sadd.s32 %s394, 1
    %p398 = scmp.eq.s32.totalorder %s24, 1
    %p399 = scmp.ne.s32.totalorder %s394, %s396
    %p400 = scmp.eq.s32.totalorder %s24, 0
    %p401 = por %p399, %p400
    %p402 = scmp.ne.s32.totalorder %s394, %s396
    %p403 = scmp.eq.s32.totalorder %s29, 1
    %p404 = por %p402, %p403
    %p405 = scmp.ne.s32.totalorder %s396, %s397
    %p406 = scmp.eq.s32.totalorder %s29, 0
    %p407 = por %p405, %p406
    %p408 = scmp.ne.s32.totalorder %s396, %s397
    %p409 = scmp.eq.s32.totalorder %s30, 1
    %p410 = por %p408, %p409
    %p412 = scmp.ne.s32.totalorder %s397, %s411
    %p413 = scmp.eq.s32.totalorder %s30, 0
    %p414 = por %p412, %p413
    %s415 = ssub.s32 %s24, %s31
    %p416 = scmp.eq.s32.totalorder %s415, 0
    %s418 = sadd.s32 %s417, 1
    %s419 = scalar_select %p416, %s417, %s418
    %p422 = pneg %p416
    %p423 = scmp.eq.s32.totalorder %s24, 1
    %p424 = por %p422, %p423
    %p425 = scmp.ne.s32.totalorder %s417, %s420
    %p426 = scmp.eq.s32.totalorder %s24, 0
    %p427 = por %p425, %p426
    %p428 = scmp.ne.s32.totalorder %s417, %s420
    %p429 = scmp.eq.s32.totalorder %s29, 1
    %p430 = por %p428, %p429
    %p431 = scmp.ne.s32.totalorder %s420, %s421
    %p432 = scmp.eq.s32.totalorder %s29, 0
    %p433 = por %p431, %p432
    %p434 = scmp.ne.s32.totalorder %s420, %s421
    %p435 = scmp.eq.s32.totalorder %s30, 1
    %p436 = por %p434, %p435
    %p438 = scmp.ne.s32.totalorder %s421, %s437
    %p439 = scmp.eq.s32.totalorder %s30, 0
    %p440 = por %p438, %p439
    %p441 = scmp.le.s32.totalorder 1, %s24
    %p442 = scmp.lt.s32.totalorder %s24, 3
    %p443 = pnand %p441, %p442
    %p444 = pneg %p443
    // Predicated region
    $region9: #{_lambda_.1} parent=5 // pred_check
      _
    $region10: #{_lambda_.1} parent=5 // pred_check_branch
      %446 = sbr.rel (%p443) target = $region12
    $region11: #{_lambda_.1} parent=5 // pred_region
      %s447 = ssub.s32 %s24, 1
      // Predicated region
      $region13: #{_lambda_.1} parent=11 // pred_check
        %p448 = pneg %p71
      $region14: #{_lambda_.1} parent=11 // pred_check_branch
        %450 = sbr.rel (%p448) target = $region16
      $region15: #{_lambda_.1} parent=11 // pred_region
        _
      $region16: #{_lambda_.1} parent=11 // pred_fallthru
        _
      // Predicated region
      $region17: #{_lambda_.1} parent=11 // pred_check
        %p451 = pneg %p92
      $region18: #{_lambda_.1} parent=11 // pred_check_branch
        %453 = sbr.rel (%p451) target = $region20
      $region19: #{_lambda_.1} parent=11 // pred_region
        _
      $region20: #{_lambda_.1} parent=11 // pred_fallthru
        _
      // Predicated region
      $region21: #{_lambda_.1} parent=11 // pred_check
        %p454 = pneg %p113
      $region22: #{_lambda_.1} parent=11 // pred_check_branch
        %456 = sbr.rel (%p454) target = $region24
      $region23: #{_lambda_.1} parent=11 // pred_region
        _
      $region24: #{_lambda_.1} parent=11 // pred_fallthru
        _
      // Predicated region
      $region25: #{_lambda_.1} parent=11 // pred_check
        %p457 = pneg %p134
      $region26: #{_lambda_.1} parent=11 // pred_check_branch
        %459 = sbr.rel (%p457) target = $region28
      $region27: #{_lambda_.1} parent=11 // pred_region
        _
      $region28: #{_lambda_.1} parent=11 // pred_fallthru
        _
      // Predicated region
      $region29: #{_lambda_.1} parent=11 // pred_check
        %p460 = pneg %p155
      $region30: #{_lambda_.1} parent=11 // pred_check_branch
        %462 = sbr.rel (%p460) target = $region32
      $region31: #{_lambda_.1} parent=11 // pred_region
        _
      $region32: #{_lambda_.1} parent=11 // pred_fallthru
        _
      // Predicated region
      $region33: #{_lambda_.1} parent=11 // pred_check
        %p463 = pneg %p176
      $region34: #{_lambda_.1} parent=11 // pred_check_branch
        %465 = sbr.rel (%p463) target = $region36
      $region35: #{_lambda_.1} parent=11 // pred_region
        _
      $region36: #{_lambda_.1} parent=11 // pred_fallthru
        _
      // Predicated region
      $region37: #{_lambda_.1} parent=11 // pred_check
        %p466 = pneg %p197
      $region38: #{_lambda_.1} parent=11 // pred_check_branch
        %468 = sbr.rel (%p466) target = $region40
      $region39: #{_lambda_.1} parent=11 // pred_region
        _
      $region40: #{_lambda_.1} parent=11 // pred_fallthru
        _
      // Predicated region
      $region41: #{_lambda_.1} parent=11 // pred_check
        %p469 = pneg %p218
      $region42: #{_lambda_.1} parent=11 // pred_check_branch
        %471 = sbr.rel (%p469) target = $region44
      $region43: #{_lambda_.1} parent=11 // pred_region
        _
      $region44: #{_lambda_.1} parent=11 // pred_fallthru
        _
      // Predicated region
      $region45: #{_lambda_.1} parent=11 // pred_check
        %p472 = pneg %p239
      $region46: #{_lambda_.1} parent=11 // pred_check_branch
        %474 = sbr.rel (%p472) target = $region48
      $region47: #{_lambda_.1} parent=11 // pred_region
        _
      $region48: #{_lambda_.1} parent=11 // pred_fallthru
        _
      // Predicated region
      $region49: #{_lambda_.1} parent=11 // pred_check
        %p475 = pneg %p260
      $region50: #{_lambda_.1} parent=11 // pred_check_branch
        %477 = sbr.rel (%p475) target = $region52
      $region51: #{_lambda_.1} parent=11 // pred_region
        _
      $region52: #{_lambda_.1} parent=11 // pred_fallthru
        _
      // Predicated region
      $region53: #{_lambda_.1} parent=11 // pred_check
        %p478 = pneg %p281
      $region54: #{_lambda_.1} parent=11 // pred_check_branch
        %480 = sbr.rel (%p478) target = $region56
      $region55: #{_lambda_.1} parent=11 // pred_region
        _
      $region56: #{_lambda_.1} parent=11 // pred_fallthru
        _
      // Predicated region
      $region57: #{_lambda_.1} parent=11 // pred_check
        %p481 = pneg %p302
      $region58: #{_lambda_.1} parent=11 // pred_check_branch
        %483 = sbr.rel (%p481) target = $region60
      $region59: #{_lambda_.1} parent=11 // pred_region
        _
      $region60: #{_lambda_.1} parent=11 // pred_fallthru
        _
      // Predicated region
      $region61: #{_lambda_.1} parent=11 // pred_check
        %p484 = pneg %p323
      $region62: #{_lambda_.1} parent=11 // pred_check_branch
        %486 = sbr.rel (%p484) target = $region64
      $region63: #{_lambda_.1} parent=11 // pred_region
        _
      $region64: #{_lambda_.1} parent=11 // pred_fallthru
        _
      // Predicated region
      $region65: #{_lambda_.1} parent=11 // pred_check
        %p487 = pneg %p344
      $region66: #{_lambda_.1} parent=11 // pred_check_branch
        %489 = sbr.rel (%p487) target = $region68
      $region67: #{_lambda_.1} parent=11 // pred_region
        _
      $region68: #{_lambda_.1} parent=11 // pred_fallthru
        _
      // Predicated region
      $region69: #{_lambda_.1} parent=11 // pred_check
        %p490 = pneg %p365
      $region70: #{_lambda_.1} parent=11 // pred_check_branch
        %492 = sbr.rel (%p490) target = $region72
      $region71: #{_lambda_.1} parent=11 // pred_region
        _
      $region72: #{_lambda_.1} parent=11 // pred_fallthru
        _
      // Predicated region
      $region73: #{_lambda_.1} parent=11 // pred_check
        %p493 = pneg %p386
      $region74: #{_lambda_.1} parent=11 // pred_check_branch
        %495 = sbr.rel (%p493) target = $region76
      $region75: #{_lambda_.1} parent=11 // pred_region
        _
      $region76: #{_lambda_.1} parent=11 // pred_fallthru
        _
      // Predicated region
      $region77: #{_lambda_.1} parent=11 // pred_check
        %p496 = pneg %p407
      $region78: #{_lambda_.1} parent=11 // pred_check_branch
        %498 = sbr.rel (%p496) target = $region80
      $region79: #{_lambda_.1} parent=11 // pred_region
        _
      $region80: #{_lambda_.1} parent=11 // pred_fallthru
        _
    $region12: #{_lambda_.1} parent=5 // pred_fallthru
      _
    %p499 = scmp.lt.s32.totalorder %s24, 2
    // Predicated region
    $region81: #{_lambda_.1} parent=5 // pred_check
      %p500 = pneg %p499
    $region82: #{_lambda_.1} parent=5 // pred_check_branch
      %502 = sbr.rel (%p500) target = $region84
    $region83: #{_lambda_.1} parent=5 // pred_region
      // Predicated region
      $region85: #{_lambda_.1} parent=83 // pred_check
        %p503 = pneg %p44
      $region86: #{_lambda_.1} parent=83 // pred_check_branch
        %505 = sbr.rel (%p503) target = $region88
      $region87: #{_lambda_.1} parent=83 // pred_region
        %p506 = scmp.lt.s32.totalorder %s24, 1
        %s507 = scalar_select %p506, %s24, 1
        %s508 = smul.addr %s507, 2
        %s509 = smul.addr %s508, 4
        %s510 = scalar_lea.vmem %s0, %s509
      $region88: #{_lambda_.1} parent=83 // pred_fallthru
        _
    $region84: #{_lambda_.1} parent=5 // pred_fallthru
      _
    %p511 = scmp.le.s32.totalorder 1, %s24
    %p512 = scmp.lt.s32.totalorder %s24, 3
    %p513 = pnand %p511, %p512
    %p514 = pneg %p513
    // Predicated region
    $region89: #{_lambda_.1} parent=5 // pred_check
      _
    $region90: #{_lambda_.1} parent=5 // pred_check_branch
      %516 = sbr.rel (%p513) target = $region92
    $region91: #{_lambda_.1} parent=5 // pred_region
      %s517 = ssub.s32 %s24, 1
      %p518 = scmp.lt.s32.totalorder %s29, 1
      %s519 = scalar_select %p518, %s29, 1
      %s520 = smul.addr %s519, 2
      %s521 = smul.addr %s520, 4
      %s522 = scalar_lea.vmem %s0, %s521
      %p523 = pneg %p50
      %p524 = pneg %p47
      %p525 = pneg %p71
      %p526 = pneg %p68
      %p527 = pneg %p92
      %p528 = pneg %p89
      %p529 = pneg %p113
      %p530 = pneg %p110
      %p531 = pneg %p134
      %p532 = pneg %p131
      %p533 = pneg %p155
      %p534 = pneg %p152
      %p535 = pneg %p176
      %p536 = pneg %p173
      %p537 = pneg %p197
      %p538 = pneg %p194
      %p539 = pneg %p218
      %p540 = pneg %p215
      %p541 = pneg %p239
      %p542 = pneg %p236
      %p543 = pneg %p260
      %p544 = pneg %p257
      %p545 = pneg %p281
      %p546 = pneg %p278
      %p547 = pneg %p302
      %p548 = pneg %p299
      %p549 = pneg %p323
      %p550 = pneg %p320
      %p551 = pneg %p344
      %p552 = pneg %p341
      %p553 = pneg %p365
      %p554 = pneg %p362
      %p555 = pneg %p386
      %p556 = pneg %p383
      %p557 = pneg %p407
      %p558 = pneg %p404
      %p559 = pneg %p433
      %p560 = pneg %p430
      %p561 = scmp.lt.s32.totalorder %s29, 1
      %s562 = scalar_select %p561, %s29, 1
      %s563 = smul.addr %s562, 2
      %s564 = smul.addr %s563, 8
      %s565 = scalar_lea.vmem %s18, %s564
      %p566 = scmp.lt.s32.totalorder %s29, 1
      %s567 = scalar_select %p566, %s29, 1
      %s568 = smul.addr %s567, 2
      %s569 = smul.addr %s568, 4
      %s570 = scalar_lea.vmem %s0, %s569
      %p571 = scmp.lt.s32.totalorder %s29, 1
      %s572 = scalar_select %p571, %s29, 1
      %s573 = smul.addr %s572, 2
      %s574 = smul.addr %s573, 8
      %s575 = scalar_lea.vmem %s18, %s574
      %v576 = vld [vmem:[%s570] sm:$0xff]
      %v577 = vlaneseq
      %v578 = vand.u32 %v577, 127
      %v579 = vadd.s32 %v578, 128
      %v580 = vand.u32 %v578, 15
      %v581 = vand.u32 %v579, 15
      %v583 = vcombine.high %v576, %v576
      %585 = vst [vmem:[#allocation2 + $0x8] sm:$0xf] %v576
      %586 = vst [vmem:[#allocation2 + $0x10] sm:$0xf] %v583
      %v587 = vld [vmem:[#allocation2] sm:$0xf]
      %v588 = vld [vmem:[#allocation2 + $0x8] sm:$0xf]
      %v589 = vld [vmem:[#allocation2 + $0x10] sm:$0xf]
      %vm590 = vcmp.ge.s32.totalorder %v578, 16
      %vm591 = vcmp.ge.s32.totalorder %v579, 16
      %vm592 = vcmp.lt.s32.totalorder %v578, 272
      %vm593 = vcmp.lt.s32.totalorder %v579, 272
      %vm594 = vmand %vm590, %vm592
      %vm595 = vmand %vm591, %vm593
      %vm596 = vcmp.ge.s32.totalorder %v580, 1
      %vm597 = vcmp.ge.s32.totalorder %v581, 1
      %vm598 = vmand %vm594, %vm596
      %vm599 = vmand %vm595, %vm597
      %vm600 = vcmp.lt.s32.totalorder %v580, 17
      %vm601 = vcmp.lt.s32.totalorder %v581, 17
      %vm602 = vmand %vm598, %vm600
      %vm603 = vmand %vm599, %vm601
      %v604 = vsel %vm602, 1, 0
      %v605 = vsel %vm603, 1, 0
      %vm606 = vcmp.eq.s32.totalorder %v604, 1
      %vm607 = vcmp.eq.s32.totalorder %v605, 1
      %611 = vrot.lane.b32.xlu0 %v587, 17
      %v612 = vpop.permute.xlu0 %611
      %613 = vrot.lane.b32.xlu0 %v588, 17
      %v614 = vpop.permute.xlu0 %613
      %615 = vrot.lane.b32.xlu0 %v589, 17
      %v616 = vpop.permute.xlu0 %615
      %vm617 = vcmask 138240
      %v618 = vsel %vm617, %v612, %v614
      %v619 = vsel %vm617, %v614, %v616
      %v622 = vsel %vm606, %v618, 0.0
      %v623 = vsel %vm607, %v619, 0.0
      %624 = vst [vmem:[#allocation3] sm:$0xf] %v622
      %625 = vst [vmem:[#allocation3 + $0x8] sm:$0xf] %v623
      %v626 = vld [vmem:[#allocation2] sm:$0xf]
      %v627 = vld [vmem:[#allocation2 + $0x8] sm:$0xf]
      %v628 = vld [vmem:[#allocation2 + $0x10] sm:$0xf]
      %vm629 = vcmp.ge.s32.totalorder %v580, 0
      %vm630 = vcmp.ge.s32.totalorder %v581, 0
      %vm631 = vmand %vm594, %vm629
      %vm632 = vmand %vm595, %vm630
      %vm633 = vcmp.lt.s32.totalorder %v580, 16
      %vm634 = vcmp.lt.s32.totalorder %v581, 16
      %vm635 = vmand %vm631, %vm633
      %vm636 = vmand %vm632, %vm634
      %v637 = vsel %vm635, 1, 0
      %v638 = vsel %vm636, 1, 0
      %vm639 = vcmp.eq.s32.totalorder %v637, 1
      %vm640 = vcmp.eq.s32.totalorder %v638, 1
      %644 = vrot.lane.b32.xlu0 %v626, 16
      %v645 = vpop.permute.xlu0 %644
      %646 = vrot.lane.b32.xlu0 %v627, 16
      %v647 = vpop.permute.xlu0 %646
      %648 = vrot.lane.b32.xlu0 %v628, 16
      %v649 = vpop.permute.xlu0 %648
      %vm650 = vcmask 130048
      %v651 = vsel %vm650, %v645, %v647
      %v652 = vsel %vm650, %v647, %v649
      %v655 = vsel %vm639, %v651, 0.0
      %v656 = vsel %vm640, %v652, 0.0
      %v659 = vrot.slane %v655, 4
      %v660 = vrot.slane %v656, 4
      %663 = vst [vmem:[#allocation3] sm:$0xf0] %v659
      %664 = vst [vmem:[#allocation3 + $0x8] sm:$0xf0] %v660
      %v665 = vld [vmem:[#allocation2] sm:$0xf]
      %v666 = vld [vmem:[#allocation2 + $0x8] sm:$0xf]
      %v667 = vld [vmem:[#allocation2 + $0x10] sm:$0xf]
      %vm668 = vcmp.ge.s32.totalorder %v580, 4294967295
      %vm669 = vcmp.ge.s32.totalorder %v581, 4294967295
      %vm670 = vmand %vm594, %vm668
      %vm671 = vmand %vm595, %vm669
      %vm672 = vcmp.lt.s32.totalorder %v580, 15
      %vm673 = vcmp.lt.s32.totalorder %v581, 15
      %vm674 = vmand %vm670, %vm672
      %vm675 = vmand %vm671, %vm673
      %v676 = vsel %vm674, 1, 0
      %v677 = vsel %vm675, 1, 0
      %vm678 = vcmp.eq.s32.totalorder %v676, 1
      %vm679 = vcmp.eq.s32.totalorder %v677, 1
      %683 = vrot.lane.b32.xlu0 %v665, 15
      %v684 = vpop.permute.xlu0 %683
      %685 = vrot.lane.b32.xlu0 %v666, 15
      %v686 = vpop.permute.xlu0 %685
      %687 = vrot.lane.b32.xlu0 %v667, 15
      %v688 = vpop.permute.xlu0 %687
      %vm689 = vcmask 121856
      %v690 = vsel %vm689, %v684, %v686
      %v691 = vsel %vm689, %v686, %v688
      %v694 = vsel %vm678, %v690, 0.0
      %v695 = vsel %vm679, %v691, 0.0
      %696 = vst [vmem:[#allocation3 + $0x10] sm:$0xf] %v694
      %697 = vst [vmem:[#allocation3 + $0x18] sm:$0xf] %v695
      %v698 = vld [vmem:[#allocation2] sm:$0xf]
      %v699 = vld [vmem:[#allocation2 + $0x8] sm:$0xf]
      %v700 = vld [vmem:[#allocation2 + $0x10] sm:$0xf]
      %vm701 = vcmp.ge.s32.totalorder %v578, 0
      %vm702 = vcmp.ge.s32.totalorder %v579, 0
      %vm703 = vcmp.lt.s32.totalorder %v578, 256
      %vm704 = vcmp.lt.s32.totalorder %v579, 256
      %vm705 = vmand %vm701, %vm703
      %vm706 = vmand %vm702, %vm704
      %vm707 = vmand %vm705, %vm596
      %vm708 = vmand %vm706, %vm597
      %vm709 = vmand %vm707, %vm600
      %vm710 = vmand %vm708, %vm601
      %v711 = vsel %vm709, 1, 0
      %v712 = vsel %vm710, 1, 0
      %vm713 = vcmp.eq.s32.totalorder %v711, 1
      %vm714 = vcmp.eq.s32.totalorder %v712, 1
      %718 = vrot.lane.b32.xlu0 %v698, 1
      %v719 = vpop.permute.xlu0 %718
      %720 = vrot.lane.b32.xlu0 %v699, 1
      %v721 = vpop.permute.xlu0 %720
      %722 = vrot.lane.b32.xlu0 %v700, 1
      %v723 = vpop.permute.xlu0 %722
      %vm724 = vcmask 7168
      %v725 = vsel %vm724, %v719, %v721
      %v726 = vsel %vm724, %v721, %v723
      %v729 = vsel %vm713, %v725, 0.0
      %v730 = vsel %vm714, %v726, 0.0
      %v733 = vrot.slane %v729, 4
      %v734 = vrot.slane %v730, 4
      %737 = vst [vmem:[#allocation3 + $0x10] sm:$0xf0] %v733
      %738 = vst [vmem:[#allocation3 + $0x18] sm:$0xf0] %v734
      %v739 = vld [vmem:[#allocation2 + $0x8] sm:$0xf]
      %v740 = vld [vmem:[#allocation2 + $0x10] sm:$0xf]
      %vm741 = vmand %vm705, %vm629
      %vm742 = vmand %vm706, %vm630
      %vm743 = vmand %vm741, %vm633
      %vm744 = vmand %vm742, %vm634
      %v745 = vsel %vm743, 1, 0
      %v746 = vsel %vm744, 1, 0
      %vm747 = vcmp.eq.s32.totalorder %v745, 1
      %vm748 = vcmp.eq.s32.totalorder %v746, 1
      %v749 = vsel %vm747, %v739, 0.0
      %v750 = vsel %vm748, %v740, 0.0
      %751 = vst [vmem:[#allocation3 + $0x20] sm:$0xf] %v749
      %752 = vst [vmem:[#allocation3 + $0x28] sm:$0xf] %v750
      %v753 = vld [vmem:[#allocation2 + $0x8] sm:$0xf]
      %v754 = vld [vmem:[#allocation2 + $0x10] sm:$0xf]
      %v755 = vld [vmem:[#allocation2 + $0x18] sm:$0xf]
      %vm756 = vmand %vm705, %vm668
      %vm757 = vmand %vm706, %vm669
      %vm758 = vmand %vm756, %vm672
      %vm759 = vmand %vm757, %vm673
      %v760 = vsel %vm758, 1, 0
      %v761 = vsel %vm759, 1, 0
      %vm762 = vcmp.eq.s32.totalorder %v760, 1
      %vm763 = vcmp.eq.s32.totalorder %v761, 1
      %767 = vrot.lane.b32.xlu0 %v753, 127
      %v768 = vpop.permute.xlu0 %767
      %769 = vrot.lane.b32.xlu0 %v754, 127
      %v770 = vpop.permute.xlu0 %769
      %771 = vrot.lane.b32.xlu0 %v755, 127
      %v772 = vpop.permute.xlu0 %771
      %vm773 = vcmask 1039360
      %v774 = vsel %vm773, %v768, %v770
      %v775 = vsel %vm773, %v770, %v772
      %v778 = vsel %vm762, %v774, 0.0
      %v779 = vsel %vm763, %v775, 0.0
      %v782 = vrot.slane %v778, 4
      %v783 = vrot.slane %v779, 4
      %786 = vst [vmem:[#allocation3 + $0x20] sm:$0xf0] %v782
      %787 = vst [vmem:[#allocation3 + $0x28] sm:$0xf0] %v783
      %v788 = vld [vmem:[#allocation2 + $0x8] sm:$0xf]
      %v789 = vld [vmem:[#allocation2 + $0x10] sm:$0xf]
      %v790 = vld [vmem:[#allocation2 + $0x18] sm:$0xf]
      %vm791 = vcmp.ge.s32.totalorder %v578, 4294967280
      %vm792 = vcmp.ge.s32.totalorder %v579, 4294967280
      %vm793 = vcmp.lt.s32.totalorder %v578, 240
      %vm794 = vcmp.lt.s32.totalorder %v579, 240
      %vm795 = vmand %vm791, %vm793
      %vm796 = vmand %vm792, %vm794
      %vm797 = vmand %vm795, %vm596
      %vm798 = vmand %vm796, %vm597
      %vm799 = vmand %vm797, %vm600
      %vm800 = vmand %vm798, %vm601
      %v801 = vsel %vm799, 1, 0
      %v802 = vsel %vm800, 1, 0
      %vm803 = vcmp.eq.s32.totalorder %v801, 1
      %vm804 = vcmp.eq.s32.totalorder %v802, 1
      %808 = vrot.lane.b32.xlu0 %v788, 113
      %v809 = vpop.permute.xlu0 %808
      %810 = vrot.lane.b32.xlu0 %v789, 113
      %v811 = vpop.permute.xlu0 %810
      %812 = vrot.lane.b32.xlu0 %v790, 113
      %v813 = vpop.permute.xlu0 %812
      %vm814 = vcmask 924672
      %v815 = vsel %vm814, %v809, %v811
      %v816 = vsel %vm814, %v811, %v813
      %v819 = vsel %vm803, %v815, 0.0
      %v820 = vsel %vm804, %v816, 0.0
      %821 = vst [vmem:[#allocation3 + $0x30] sm:$0xf] %v819
      %822 = vst [vmem:[#allocation3 + $0x38] sm:$0xf] %v820
      %v823 = vld [vmem:[#allocation2 + $0x8] sm:$0xf]
      %v824 = vld [vmem:[#allocation2 + $0x10] sm:$0xf]
      %v825 = vld [vmem:[#allocation2 + $0x18] sm:$0xf]
      %vm826 = vmand %vm795, %vm629
      %vm827 = vmand %vm796, %vm630
      %vm828 = vmand %vm826, %vm633
      %vm829 = vmand %vm827, %vm634
      %v830 = vsel %vm828, 1, 0
      %v831 = vsel %vm829, 1, 0
      %vm832 = vcmp.eq.s32.totalorder %v830, 1
      %vm833 = vcmp.eq.s32.totalorder %v831, 1
      %837 = vrot.lane.b32.xlu0 %v823, 112
      %v838 = vpop.permute.xlu0 %837
      %839 = vrot.lane.b32.xlu0 %v824, 112
      %v840 = vpop.permute.xlu0 %839
      %841 = vrot.lane.b32.xlu0 %v825, 112
      %v842 = vpop.permute.xlu0 %841
      %vm843 = vcmask 916480
      %v844 = vsel %vm843, %v838, %v840
      %v845 = vsel %vm843, %v840, %v842
      %v848 = vsel %vm832, %v844, 0.0
      %v849 = vsel %vm833, %v845, 0.0
      %v852 = vrot.slane %v848, 4
      %v853 = vrot.slane %v849, 4
      %856 = vst [vmem:[#allocation3 + $0x30] sm:$0xf0] %v852
      %857 = vst [vmem:[#allocation3 + $0x38] sm:$0xf0] %v853
      %v858 = vld [vmem:[#allocation2 + $0x8] sm:$0xf]
      %v859 = vld [vmem:[#allocation2 + $0x10] sm:$0xf]
      %v860 = vld [vmem:[#allocation2 + $0x18] sm:$0xf]
      %vm861 = vmand %vm795, %vm668
      %vm862 = vmand %vm796, %vm669
      %vm863 = vmand %vm861, %vm672
      %vm864 = vmand %vm862, %vm673
      %v865 = vsel %vm863, 1, 0
      %v866 = vsel %vm864, 1, 0
      %vm867 = vcmp.eq.s32.totalorder %v865, 1
      %vm868 = vcmp.eq.s32.totalorder %v866, 1
      %872 = vrot.lane.b32.xlu0 %v858, 111
      %v873 = vpop.permute.xlu0 %872
      %874 = vrot.lane.b32.xlu0 %v859, 111
      %v875 = vpop.permute.xlu0 %874
      %876 = vrot.lane.b32.xlu0 %v860, 111
      %v877 = vpop.permute.xlu0 %876
      %vm878 = vcmask 908288
      %v879 = vsel %vm878, %v873, %v875
      %v880 = vsel %vm878, %v875, %v877
      %v883 = vsel %vm867, %v879, 0.0
      %v884 = vsel %vm868, %v880, 0.0
      %885 = vst [vmem:[#allocation3 + $0x40] sm:$0xf] %v883
      %886 = vst [vmem:[#allocation3 + $0x48] sm:$0xf] %v884
      %v887 = vld [vmem:[%s1] sm:$0xff]
      %v888 = vld [vmem:[#allocation3] sm:$0xff]
      %v889 = vld [vmem:[#allocation3 + $0x8] sm:$0xff]
      %v890 = vld [vmem:[#allocation3 + $0x10] sm:$0xff]
      %v891 = vld [vmem:[#allocation3 + $0x18] sm:$0xff]
      %v892 = vld [vmem:[#allocation3 + $0x20] sm:$0xff]
      %v893 = vld [vmem:[#allocation3 + $0x28] sm:$0xff]
      %v894 = vld [vmem:[#allocation3 + $0x30] sm:$0xff]
      %v895 = vld [vmem:[#allocation3 + $0x38] sm:$0xff]
      %v896 = vld [vmem:[#allocation3 + $0x40] sm:$0xf]
      %v897 = vld [vmem:[#allocation3 + $0x48] sm:$0xf]
      %v898 = vld [vmem:[%s2] sm:$0xff]
      %900 = vset.pattern.permute.xlu0 0
      %901 = vperm.xlu0 %900, %v898
      %v902 = vpop.permute.xlu0 %901
      %vm904 = vcmask 293888
      %v906 = vsel %vm904, %v887, 0
      %vm908 = vcmask 1043456
      %v910 = vsel %vm908, %v896, 0
      %v913 = vsel %vm908, %v897, 0
      %915 = vmatprep.subr.mxu0 %v889
      %916 = vmatpush1.msra.mxu0 %v888
      %917 = vmatprep.subr.mxu0 %v891
      %918 = vmatpush1.msra.mxu0 %v890
      %919 = vmatprep.subr.mxu0 %v893
      %920 = vmatpush1.msra.mxu0 %v892
      %921 = vmatprep.subr.mxu0 %v895
      %922 = vmatpush1.msra.mxu0 %v894
      %923 = vmatprep.subr.mxu0 %v913
      %924 = vmatpush1.msra.mxu0 %v910
      %925 = vmatprep.subr.mxu0 0.0
      %926 = vmatpush1.msra.mxu0 0.0
      %927 = vmatprep.subr.mxu0 0.0
      %928 = vmatpush1.msra.mxu0 0.0
      %929 = vmatprep.subr.mxu0 0.0
      %930 = vmatpush1.msra.mxu0 0.0
      %931 = vmatprep.subr.mxu0 0.0
      %932 = vmatpush1.msra.mxu0 0.0
      %933 = vmatprep.subr.mxu0 0.0
      %934 = vmatpush1.msra.mxu0 0.0
      %935 = vmatprep.subr.mxu0 0.0
      %936 = vmatpush1.msra.mxu0 0.0
      %937 = vmatprep.subr.mxu0 0.0
      %938 = vmatpush1.msra.mxu0 0.0
      %939 = vmatprep.subr.mxu0 0.0
      %940 = vmatpush1.msra.mxu0 0.0
      %941 = vmatprep.subr.mxu0 0.0
      %942 = vmatpush1.msra.mxu0 0.0
      %943 = vmatprep.subr.mxu0 0.0
      %944 = vmatpush1.msra.mxu0 0.0
      %945 = vmatprep.subr.mxu0 0.0
      %946 = vmatpush1.msra.mxu0 0.0
      %947 = vmatprep.subr.mxu0 0.0
      %948 = vmatpush1.msra.mxu0 0.0
      %949 = vmatprep.subr.mxu0 0.0
      %950 = vmatpush1.msra.mxu0 0.0
      %951 = vmatprep.subr.mxu0 0.0
      %952 = vmatpush1.msra.mxu0 0.0
      %953 = vmatprep.subr.mxu0 0.0
      %954 = vmatpush1.msra.mxu0 0.0
      %955 = vmatprep.subr.mxu0 0.0
      %956 = vmatpush1.msra.mxu0 0.0
      %957 = vmatprep.subr.mxu0 0.0
      %958 = vmatpush1.msra.mxu0 0.0
      %959 = vmatprep.subr.mxu0 0.0
      %960 = vmatpush1.msra.mxu0 0.0
      %961 = vmatprep.subr.mxu0 0.0
      %962 = vmatpush1.msra.mxu0 0.0
      %963 = vmatprep.subr.mxu0 0.0
      %964 = vmatpush1.msra.mxu0 0.0
      %965 = vmatprep.subr.mxu0 0.0
      %966 = vmatpush1.msra.mxu0 0.0
      %967 = vmatprep.subr.mxu0 0.0
      %968 = vmatpush1.msra.mxu0 0.0
      %969 = vmatprep.subr.mxu0 0.0
      %970 = vmatpush1.msra.mxu0 0.0
      %971 = vmatprep.subr.mxu0 0.0
      %972 = vmatpush1.msra.mxu0 0.0
      %973 = vmatprep.subr.mxu0 0.0
      %974 = vmatpush1.msra.mxu0 0.0
      %975 = vmatprep.subr.mxu0 0.0
      %976 = vmatpush1.msra.mxu0 0.0
      %977 = vmatprep.subr.mxu0 0.0
      %978 = vmatpush1.msra.mxu0 0.0
      %979 = vmatprep.mubr.f32.mxu0 0.0
      %980 = vmatmul.mubr.f32.gmra.mrb[0].mxu0 %v906
      %v981 = vpop.f32.mrb[0].mxu0
      %v982 = vadd.f32 %v902, %v981
      %v983 = vpop.f32.mrb[0].mxu0
      %v984 = vadd.f32 %v902, %v983
      %985 = vdwg.mxu0
      %v986 = vmax.f32 %v982, 0.0
      %v987 = vmax.f32 %v984, 0.0
      %988 = vst [vmem:[#allocation2 + $0x8] sm:$0xff] %v986
      %989 = vst [vmem:[#allocation2 + $0x10] sm:$0xff] %v987
      %v990 = vld [vmem:[#allocation2] sm:$0xff]
      %v991 = vld [vmem:[#allocation2 + $0x8] sm:$0xff]
      %v992 = vld [vmem:[#allocation2 + $0x10] sm:$0xff]
      %996 = vrot.lane.b32.xlu0 %v990, 17
      %v997 = vpop.permute.xlu0 %996
      %998 = vrot.lane.b32.xlu0 %v991, 17
      %v999 = vpop.permute.xlu0 %998
      %1000 = vrot.lane.b32.xlu0 %v992, 17
      %v1001 = vpop.permute.xlu0 %1000
      %v1002 = vsel %vm617, %v997, %v999
      %v1003 = vsel %vm617, %v999, %v1001
      %v1006 = vsel %vm606, %v1002, 0.0
      %v1007 = vsel %vm607, %v1003, 0.0
      %1008 = vst [vmem:[#allocation3] sm:$0xff] %v1006
      %1009 = vst [vmem:[#allocation3 + $0x8] sm:$0xff] %v1007
      %v1010 = vld [vmem:[#allocation2] sm:$0xff]
      %v1011 = vld [vmem:[#allocation2 + $0x8] sm:$0xff]
      %v1012 = vld [vmem:[#allocation2 + $0x10] sm:$0xff]
      %1016 = vrot.lane.b32.xlu0 %v1010, 16
      %v1017 = vpop.permute.xlu0 %1016
      %1018 = vrot.lane.b32.xlu0 %v1011, 16
      %v1019 = vpop.permute.xlu0 %1018
      %1020 = vrot.lane.b32.xlu0 %v1012, 16
      %v1021 = vpop.permute.xlu0 %1020
      %v1022 = vsel %vm650, %v1017, %v1019
      %v1023 = vsel %vm650, %v1019, %v1021
      %v1026 = vsel %vm639, %v1022, 0.0
      %v1027 = vsel %vm640, %v1023, 0.0
      %1028 = vst [vmem:[#allocation3 + $0x10] sm:$0xff] %v1026
      %1029 = vst [vmem:[#allocation3 + $0x18] sm:$0xff] %v1027
      %v1030 = vld [vmem:[#allocation2] sm:$0xff]
      %v1031 = vld [vmem:[#allocation2 + $0x8] sm:$0xff]
      %v1032 = vld [vmem:[#allocation2 + $0x10] sm:$0xff]
      %1036 = vrot.lane.b32.xlu0 %v1030, 15
      %v1037 = vpop.permute.xlu0 %1036
      %1038 = vrot.lane.b32.xlu0 %v1031, 15
      %v1039 = vpop.permute.xlu0 %1038
      %1040 = vrot.lane.b32.xlu0 %v1032, 15
      %v1041 = vpop.permute.xlu0 %1040
      %v1042 = vsel %vm689, %v1037, %v1039
      %v1043 = vsel %vm689, %v1039, %v1041
      %v1046 = vsel %vm678, %v1042, 0.0
      %v1047 = vsel %vm679, %v1043, 0.0
      %1048 = vst [vmem:[#allocation3 + $0x20] sm:$0xff] %v1046
      %1049 = vst [vmem:[#allocation3 + $0x28] sm:$0xff] %v1047
      %v1050 = vld [vmem:[#allocation2] sm:$0xff]
      %v1051 = vld [vmem:[#allocation2 + $0x8] sm:$0xff]
      %v1052 = vld [vmem:[#allocation2 + $0x10] sm:$0xff]
      %1056 = vrot.lane.b32.xlu0 %v1050, 1
      %v1057 = vpop.permute.xlu0 %1056
      %1058 = vrot.lane.b32.xlu0 %v1051, 1
      %v1059 = vpop.permute.xlu0 %1058
      %1060 = vrot.lane.b32.xlu0 %v1052, 1
      %v1061 = vpop.permute.xlu0 %1060
      %v1062 = vsel %vm724, %v1057, %v1059
      %v1063 = vsel %vm724, %v1059, %v1061
      %v1066 = vsel %vm713, %v1062, 0.0
      %v1067 = vsel %vm714, %v1063, 0.0
      %1068 = vst [vmem:[#allocation3 + $0x30] sm:$0xff] %v1066
      %1069 = vst [vmem:[#allocation3 + $0x38] sm:$0xff] %v1067
      %v1070 = vld [vmem:[#allocation2 + $0x8] sm:$0xff]
      %v1071 = vld [vmem:[#allocation2 + $0x10] sm:$0xff]
      %v1072 = vsel %vm747, %v1070, 0.0
      %v1073 = vsel %vm748, %v1071, 0.0
      %1074 = vst [vmem:[#allocation3 + $0x40] sm:$0xff] %v1072
      %1075 = vst [vmem:[#allocation3 + $0x48] sm:$0xff] %v1073
      %v1076 = vld [vmem:[#allocation2 + $0x8] sm:$0xff]
      %v1077 = vld [vmem:[#allocation2 + $0x10] sm:$0xff]
      %v1078 = vld [vmem:[#allocation2 + $0x18] sm:$0xff]
      %1082 = vrot.lane.b32.xlu0 %v1076, 127
      %v1083 = vpop.permute.xlu0 %1082
      %1084 = vrot.lane.b32.xlu0 %v1077, 127
      %v1085 = vpop.permute.xlu0 %1084
      %1086 = vrot.lane.b32.xlu0 %v1078, 127
      %v1087 = vpop.permute.xlu0 %1086
      %v1088 = vsel %vm773, %v1083, %v1085
      %v1089 = vsel %vm773, %v1085, %v1087
      %v1092 = vsel %vm762, %v1088, 0.0
      %v1093 = vsel %vm763, %v1089, 0.0
      %1094 = vst [vmem:[#allocation3 + $0x50] sm:$0xff] %v1092
      %1095 = vst [vmem:[#allocation3 + $0x58] sm:$0xff] %v1093
      %v1096 = vld [vmem:[#allocation2 + $0x8] sm:$0xff]
      %v1097 = vld [vmem:[#allocation2 + $0x10] sm:$0xff]
      %v1098 = vld [vmem:[#allocation2 + $0x18] sm:$0xff]
      %1102 = vrot.lane.b32.xlu0 %v1096, 113
      %v1103 = vpop.permute.xlu0 %1102
      %1104 = vrot.lane.b32.xlu0 %v1097, 113
      %v1105 = vpop.permute.xlu0 %1104
      %1106 = vrot.lane.b32.xlu0 %v1098, 113
      %v1107 = vpop.permute.xlu0 %1106
      %v1108 = vsel %vm814, %v1103, %v1105
      %v1109 = vsel %vm814, %v1105, %v1107
      %v1112 = vsel %vm803, %v1108, 0.0
      %v1113 = vsel %vm804, %v1109, 0.0
      %1114 = vst [vmem:[#allocation3 + $0x60] sm:$0xff] %v1112
      %1115 = vst [vmem:[#allocation3 + $0x68] sm:$0xff] %v1113
      %v1116 = vld [vmem:[#allocation2 + $0x8] sm:$0xff]
      %v1117 = vld [vmem:[#allocation2 + $0x10] sm:$0xff]
      %v1118 = vld [vmem:[#allocation2 + $0x18] sm:$0xff]
      %1122 = vrot.lane.b32.xlu0 %v1116, 112
      %v1123 = vpop.permute.xlu0 %1122
      %1124 = vrot.lane.b32.xlu0 %v1117, 112
      %v1125 = vpop.permute.xlu0 %1124
      %1126 = vrot.lane.b32.xlu0 %v1118, 112
      %v1127 = vpop.permute.xlu0 %1126
      %v1128 = vsel %vm843, %v1123, %v1125
      %v1129 = vsel %vm843, %v1125, %v1127
      %v1132 = vsel %vm832, %v1128, 0.0
      %v1133 = vsel %vm833, %v1129, 0.0
      %1134 = vst [vmem:[#allocation3 + $0x70] sm:$0xff] %v1132
      %1135 = vst [vmem:[#allocation3 + $0x78] sm:$0xff] %v1133
      %v1136 = vld [vmem:[#allocation2 + $0x8] sm:$0xff]
      %v1137 = vld [vmem:[#allocation2 + $0x10] sm:$0xff]
      %v1138 = vld [vmem:[#allocation2 + $0x18] sm:$0xff]
      %1142 = vrot.lane.b32.xlu0 %v1136, 111
      %v1143 = vpop.permute.xlu0 %1142
      %1144 = vrot.lane.b32.xlu0 %v1137, 111
      %v1145 = vpop.permute.xlu0 %1144
      %1146 = vrot.lane.b32.xlu0 %v1138, 111
      %v1147 = vpop.permute.xlu0 %1146
      %v1148 = vsel %vm878, %v1143, %v1145
      %v1149 = vsel %vm878, %v1145, %v1147
      %v1152 = vsel %vm867, %v1148, 0.0
      %v1153 = vsel %vm868, %v1149, 0.0
      %1154 = vst [vmem:[#allocation3 + $0x80] sm:$0xff] %v1152
      %1155 = vst [vmem:[#allocation3 + $0x88] sm:$0xff] %v1153
      %v1156 = vld [vmem:[%s3] sm:$0xff]
      %v1157 = vld [vmem:[#allocation3] sm:$0xff]
      %v1158 = vld [vmem:[#allocation3 + $0x8] sm:$0xff]
      %v1159 = vld [vmem:[#allocation3 + $0x10] sm:$0xff]
      %v1160 = vld [vmem:[#allocation3 + $0x18] sm:$0xff]
      %v1161 = vld [vmem:[#allocation3 + $0x20] sm:$0xff]
      %v1162 = vld [vmem:[#allocation3 + $0x28] sm:$0xff]
      %v1163 = vld [vmem:[#allocation3 + $0x30] sm:$0xff]
      %v1164 = vld [vmem:[#allocation3 + $0x38] sm:$0xff]
      %v1165 = vld [vmem:[#allocation3 + $0x40] sm:$0xff]
      %v1166 = vld [vmem:[#allocation3 + $0x48] sm:$0xff]
      %v1167 = vld [vmem:[#allocation3 + $0x50] sm:$0xff]
      %v1168 = vld [vmem:[#allocation3 + $0x58] sm:$0xff]
      %v1169 = vld [vmem:[#allocation3 + $0x60] sm:$0xff]
      %v1170 = vld [vmem:[#allocation3 + $0x68] sm:$0xff]
      %v1171 = vld [vmem:[#allocation3 + $0x70] sm:$0xff]
      %v1172 = vld [vmem:[#allocation3 + $0x78] sm:$0xff]
      %v1173 = vld [vmem:[#allocation3 + $0x80] sm:$0xff]
      %v1174 = vld [vmem:[#allocation3 + $0x88] sm:$0xff]
      %v1175 = vld [vmem:[%s4] sm:$0xff]
      %1177 = vset.pattern.permute.xlu0 0
      %1178 = vperm.xlu0 %1177, %v1175
      %v1179 = vpop.permute.xlu0 %1178
      %vm1181 = vcmask 588800
      %v1183 = vsel %vm1181, %v1156, 0
      %1185 = vmatprep.subr.mxu0 %v1158
      %1186 = vmatpush1.msra.mxu0 %v1157
      %1187 = vmatprep.subr.mxu0 %v1160
      %1188 = vmatpush1.msra.mxu0 %v1159
      %1189 = vmatprep.subr.mxu0 %v1162
      %1190 = vmatpush1.msra.mxu0 %v1161
      %1191 = vmatprep.subr.mxu0 %v1164
      %1192 = vmatpush1.msra.mxu0 %v1163
      %1193 = vmatprep.subr.mxu0 %v1166
      %1194 = vmatpush1.msra.mxu0 %v1165
      %1195 = vmatprep.subr.mxu0 %v1168
      %1196 = vmatpush1.msra.mxu0 %v1167
      %1197 = vmatprep.subr.mxu0 %v1170
      %1198 = vmatpush1.msra.mxu0 %v1169
      %1199 = vmatprep.subr.mxu0 %v1172
      %1200 = vmatpush1.msra.mxu0 %v1171
      %1201 = vmatprep.subr.mxu0 %v1174
      %1202 = vmatpush1.msra.mxu0 %v1173
      %1203 = vmatprep.subr.mxu0 0.0
      %1204 = vmatpush1.msra.mxu0 0.0
      %1205 = vmatprep.subr.mxu0 0.0
      %1206 = vmatpush1.msra.mxu0 0.0
      %1207 = vmatprep.subr.mxu0 0.0
      %1208 = vmatpush1.msra.mxu0 0.0
      %1209 = vmatprep.subr.mxu0 0.0
      %1210 = vmatpush1.msra.mxu0 0.0
      %1211 = vmatprep.subr.mxu0 0.0
      %1212 = vmatpush1.msra.mxu0 0.0
      %1213 = vmatprep.subr.mxu0 0.0
      %1214 = vmatpush1.msra.mxu0 0.0
      %1215 = vmatprep.subr.mxu0 0.0
      %1216 = vmatpush1.msra.mxu0 0.0
      %1217 = vmatprep.subr.mxu0 0.0
      %1218 = vmatpush1.msra.mxu0 0.0
      %1219 = vmatprep.subr.mxu0 0.0
      %1220 = vmatpush1.msra.mxu0 0.0
      %1221 = vmatprep.subr.mxu0 0.0
      %1222 = vmatpush1.msra.mxu0 0.0
      %1223 = vmatprep.subr.mxu0 0.0
      %1224 = vmatpush1.msra.mxu0 0.0
      %1225 = vmatprep.subr.mxu0 0.0
      %1226 = vmatpush1.msra.mxu0 0.0
      %1227 = vmatprep.subr.mxu0 0.0
      %1228 = vmatpush1.msra.mxu0 0.0
      %1229 = vmatprep.subr.mxu0 0.0
      %1230 = vmatpush1.msra.mxu0 0.0
      %1231 = vmatprep.subr.mxu0 0.0
      %1232 = vmatpush1.msra.mxu0 0.0
      %1233 = vmatprep.subr.mxu0 0.0
      %1234 = vmatpush1.msra.mxu0 0.0
      %1235 = vmatprep.subr.mxu0 0.0
      %1236 = vmatpush1.msra.mxu0 0.0
      %1237 = vmatprep.subr.mxu0 0.0
      %1238 = vmatpush1.msra.mxu0 0.0
      %1239 = vmatprep.subr.mxu0 0.0
      %1240 = vmatpush1.msra.mxu0 0.0
      %1241 = vmatprep.subr.mxu0 0.0
      %1242 = vmatpush1.msra.mxu0 0.0
      %1243 = vmatprep.subr.mxu0 0.0
      %1244 = vmatpush1.msra.mxu0 0.0
      %1245 = vmatprep.subr.mxu0 0.0
      %1246 = vmatpush1.msra.mxu0 0.0
      %1247 = vmatprep.subr.mxu0 0.0
      %1248 = vmatpush1.msra.mxu0 0.0
      %1249 = vmatprep.mubr.f32.mxu0 0.0
      %1250 = vmatmul.mubr.f32.gmra.mrb[0].mxu0 %v1183
      %v1251 = vpop.f32.mrb[0].mxu0
      %v1252 = vadd.f32 %v1179, %v1251
      %v1253 = vpop.f32.mrb[0].mxu0
      %v1254 = vadd.f32 %v1179, %v1253
      %1255 = vdwg.mxu0
      %v1256 = vmax.f32 %v1252, 0.0
      %v1257 = vmax.f32 %v1254, 0.0
      %v1258 = vld [vmem:[%s11] sm:$0xf]
      %vm1259 = vcmask 64512
      %v1261 = vsel %vm1259, %v1258, 0
      %1263 = vmatprep.subr.mxu0 %v1257
      %1264 = vmatpush1.msra.mxu0 %v1256
      %1265 = vmatprep.subr.mxu0 0.0
      %1266 = vmatpush1.msra.mxu0 0.0
      %1267 = vmatprep.subr.mxu0 0.0
      %1268 = vmatpush1.msra.mxu0 0.0
      %1269 = vmatprep.subr.mxu0 0.0
      %1270 = vmatpush1.msra.mxu0 0.0
      %1271 = vmatprep.subr.mxu0 0.0
      %1272 = vmatpush1.msra.mxu0 0.0
      %1273 = vmatprep.subr.mxu0 0.0
      %1274 = vmatpush1.msra.mxu0 0.0
      %1275 = vmatprep.subr.mxu0 0.0
      %1276 = vmatpush1.msra.mxu0 0.0
      %1277 = vmatprep.subr.mxu0 0.0
      %1278 = vmatpush1.msra.mxu0 0.0
      %1279 = vmatprep.subr.mxu0 0.0
      %1280 = vmatpush1.msra.mxu0 0.0
      %1281 = vmatprep.subr.mxu0 0.0
      %1282 = vmatpush1.msra.mxu0 0.0
      %1283 = vmatprep.subr.mxu0 0.0
      %1284 = vmatpush1.msra.mxu0 0.0
      %1285 = vmatprep.subr.mxu0 0.0
      %1286 = vmatpush1.msra.mxu0 0.0
      %1287 = vmatprep.subr.mxu0 0.0
      %1288 = vmatpush1.msra.mxu0 0.0
      %1289 = vmatprep.subr.mxu0 0.0
      %1290 = vmatpush1.msra.mxu0 0.0
      %1291 = vmatprep.subr.mxu0 0.0
      %1292 = vmatpush1.msra.mxu0 0.0
      %1293 = vmatprep.subr.mxu0 0.0
      %1294 = vmatpush1.msra.mxu0 0.0
      %1295 = vmatprep.subr.mxu0 0.0
      %1296 = vmatpush1.msra.mxu0 0.0
      %1297 = vmatprep.subr.mxu0 0.0
      %1298 = vmatpush1.msra.mxu0 0.0
      %1299 = vmatprep.subr.mxu0 0.0
      %1300 = vmatpush1.msra.mxu0 0.0
      %1301 = vmatprep.subr.mxu0 0.0
      %1302 = vmatpush1.msra.mxu0 0.0
      %1303 = vmatprep.subr.mxu0 0.0
      %1304 = vmatpush1.msra.mxu0 0.0
      %1305 = vmatprep.subr.mxu0 0.0
      %1306 = vmatpush1.msra.mxu0 0.0
      %1307 = vmatprep.subr.mxu0 0.0
      %1308 = vmatpush1.msra.mxu0 0.0
      %1309 = vmatprep.subr.mxu0 0.0
      %1310 = vmatpush1.msra.mxu0 0.0
      %1311 = vmatprep.subr.mxu0 0.0
      %1312 = vmatpush1.msra.mxu0 0.0
      %1313 = vmatprep.subr.mxu0 0.0
      %1314 = vmatpush1.msra.mxu0 0.0
      %1315 = vmatprep.subr.mxu0 0.0
      %1316 = vmatpush1.msra.mxu0 0.0
      %1317 = vmatprep.subr.mxu0 0.0
      %1318 = vmatpush1.msra.mxu0 0.0
      %1319 = vmatprep.subr.mxu0 0.0
      %1320 = vmatpush1.msra.mxu0 0.0
      %1321 = vmatprep.subr.mxu0 0.0
      %1322 = vmatpush1.msra.mxu0 0.0
      %1323 = vmatprep.subr.mxu0 0.0
      %1324 = vmatpush1.msra.mxu0 0.0
      %1325 = vmatprep.subr.mxu0 0.0
      %1326 = vmatpush1.msra.mxu0 0.0
      %1327 = vmatprep.mubr.f32.mxu0 0.0
      %1328 = vmatmul.mubr.f32.gmra.mrb[0].mxu0 %v1261
      %v1329 = vpop.f32.mrb[0].mxu0
      %v1330 = vadd.f32 0.0, %v1329
      %v1331 = vpop.f32.mrb[0].mxu0
      %v1332 = vadd.f32 0.0, %v1331
      %1333 = vdwg.mxu0
      %v1336 = vcombine.low %v1330, %v1332
      %v1338 = vadd.f32 %v576, %v1336
      %v1339 = vld [vmem:[%s12] sm:$0xf]
      %1341 = vset.pattern.permute.xlu0 0
      %1342 = vperm.xlu0 %1341, %v1339
      %v1343 = vpop.permute.xlu0 %1342
      %v1345 = vunpack.c.l.s4 839922192
      %v1346 = vunpack.c.0.s8 %v1345
      %v1347 = vlaneseq
      %v1348 = vshrl.u32 %v1347, 7
      %v1349 = vsub.s32 %v1346, %v1348
      %v1350 = vrot.slane %v1343, %v1349
      %v1352 = vadd.f32 %v1338, %v1350
      %v1353 = vmax.f32 %v1352, 0.0
      %1354 = vst [vmem:[#allocation2 + $0x8] sm:$0xf] %v576
      %1355 = vst [vmem:[#allocation2 + $0x10] sm:$0xf] %v583
      %v1356 = vld [vmem:[#allocation2] sm:$0xf]
      %v1357 = vld [vmem:[#allocation2 + $0x8] sm:$0xf]
      %v1358 = vld [vmem:[#allocation2 + $0x10] sm:$0xf]
      %vm1359 = vcmp.ge.s32.totalorder %v578, 32
      %vm1360 = vcmp.ge.s32.totalorder %v579, 32
      %vm1361 = vcmp.lt.s32.totalorder %v578, 288
      %vm1362 = vcmp.lt.s32.totalorder %v579, 288
      %vm1363 = vmand %vm1359, %vm1361
      %vm1364 = vmand %vm1360, %vm1362
      %vm1365 = vcmp.ge.s32.totalorder %v580, 2
      %vm1366 = vcmp.ge.s32.totalorder %v581, 2
      %vm1367 = vmand %vm1363, %vm1365
      %vm1368 = vmand %vm1364, %vm1366
      %vm1369 = vcmp.lt.s32.totalorder %v580, 18
      %vm1370 = vcmp.lt.s32.totalorder %v581, 18
      %vm1371 = vmand %vm1367, %vm1369
      %vm1372 = vmand %vm1368, %vm1370
      %v1373 = vsel %vm1371, 1, 0
      %v1374 = vsel %vm1372, 1, 0
      %vm1375 = vcmp.eq.s32.totalorder %v1373, 1
      %vm1376 = vcmp.eq.s32.totalorder %v1374, 1
      %1380 = vrot.lane.b32.xlu0 %v1356, 34
      %v1381 = vpop.permute.xlu0 %1380
      %1382 = vrot.lane.b32.xlu0 %v1357, 34
      %v1383 = vpop.permute.xlu0 %1382
      %1384 = vrot.lane.b32.xlu0 %v1358, 34
      %v1385 = vpop.permute.xlu0 %1384
      %vm1386 = vcmask 277504
      %v1387 = vsel %vm1386, %v1381, %v1383
      %v1388 = vsel %vm1386, %v1383, %v1385
      %v1391 = vsel %vm1375, %v1387, 0.0
      %v1392 = vsel %vm1376, %v1388, 0.0
      %1393 = vst [vmem:[#allocation3] sm:$0xf] %v1391
      %1394 = vst [vmem:[#allocation3 + $0x8] sm:$0xf] %v1392
      %v1395 = vld [vmem:[#allocation2] sm:$0xf]
      %v1396 = vld [vmem:[#allocation2 + $0x8] sm:$0xf]
      %v1397 = vld [vmem:[#allocation2 + $0x10] sm:$0xf]
      %vm1398 = vmand %vm1363, %vm596
      %vm1399 = vmand %vm1364, %vm597
      %vm1400 = vmand %vm1398, %vm600
      %vm1401 = vmand %vm1399, %vm601
      %v1402 = vsel %vm1400, 1, 0
      %v1403 = vsel %vm1401, 1, 0
      %vm1404 = vcmp.eq.s32.totalorder %v1402, 1
      %vm1405 = vcmp.eq.s32.totalorder %v1403, 1
      %1409 = vrot.lane.b32.xlu0 %v1395, 33
      %v1410 = vpop.permute.xlu0 %1409
      %1411 = vrot.lane.b32.xlu0 %v1396, 33
      %v1412 = vpop.permute.xlu0 %1411
      %1413 = vrot.lane.b32.xlu0 %v1397, 33
      %v1414 = vpop.permute.xlu0 %1413
      %vm1415 = vcmask 269312
      %v1416 = vsel %vm1415, %v1410, %v1412
      %v1417 = vsel %vm1415, %v1412, %v1414
      %v1420 = vsel %vm1404, %v1416, 0.0
      %v1421 = vsel %vm1405, %v1417, 0.0
      %v1424 = vrot.slane %v1420, 4
      %v1425 = vrot.slane %v1421, 4
      %1428 = vst [vmem:[#allocation3] sm:$0xf0] %v1424
      %1429 = vst [vmem:[#allocation3 + $0x8] sm:$0xf0] %v1425
      %v1430 = vld [vmem:[#allocation2] sm:$0xf]
      %v1431 = vld [vmem:[#allocation2 + $0x8] sm:$0xf]
      %v1432 = vld [vmem:[#allocation2 + $0x10] sm:$0xf]
      %vm1433 = vmand %vm1363, %vm629
      %vm1434 = vmand %vm1364, %vm630
      %vm1435 = vmand %vm1433, %vm633
      %vm1436 = vmand %vm1434, %vm634
      %v1437 = vsel %vm1435, 1, 0
      %v1438 = vsel %vm1436, 1, 0
      %vm1439 = vcmp.eq.s32.totalorder %v1437, 1
      %vm1440 = vcmp.eq.s32.totalorder %v1438, 1
      %1444 = vrot.lane.b32.xlu0 %v1430, 32
      %v1445 = vpop.permute.xlu0 %1444
      %1446 = vrot.lane.b32.xlu0 %v1431, 32
      %v1447 = vpop.permute.xlu0 %1446
      %1448 = vrot.lane.b32.xlu0 %v1432, 32
      %v1449 = vpop.permute.xlu0 %1448
      %vm1450 = vcmask 261120
      %v1451 = vsel %vm1450, %v1445, %v1447
      %v1452 = vsel %vm1450, %v1447, %v1449
      %v1455 = vsel %vm1439, %v1451, 0.0
      %v1456 = vsel %vm1440, %v1452, 0.0
      %1457 = vst [vmem:[#allocation3 + $0x10] sm:$0xf] %v1455
      %1458 = vst [vmem:[#allocation3 + $0x18] sm:$0xf] %v1456
      %v1459 = vld [vmem:[#allocation2] sm:$0xf]
      %v1460 = vld [vmem:[#allocation2 + $0x8] sm:$0xf]
      %v1461 = vld [vmem:[#allocation2 + $0x10] sm:$0xf]
      %vm1462 = vmand %vm1363, %vm668
      %vm1463 = vmand %vm1364, %vm669
      %vm1464 = vmand %vm1462, %vm672
      %vm1465 = vmand %vm1463, %vm673
      %v1466 = vsel %vm1464, 1, 0
      %v1467 = vsel %vm1465, 1, 0
      %vm1468 = vcmp.eq.s32.totalorder %v1466, 1
      %vm1469 = vcmp.eq.s32.totalorder %v1467, 1
      %1473 = vrot.lane.b32.xlu0 %v1459, 31
      %v1474 = vpop.permute.xlu0 %1473
      %1475 = vrot.lane.b32.xlu0 %v1460, 31
      %v1476 = vpop.permute.xlu0 %1475
      %1477 = vrot.lane.b32.xlu0 %v1461, 31
      %v1478 = vpop.permute.xlu0 %1477
      %vm1479 = vcmask 252928
      %v1480 = vsel %vm1479, %v1474, %v1476
      %v1481 = vsel %vm1479, %v1476, %v1478
      %v1484 = vsel %vm1468, %v1480, 0.0
      %v1485 = vsel %vm1469, %v1481, 0.0
      %v1488 = vrot.slane %v1484, 4
      %v1489 = vrot.slane %v1485, 4
      %1492 = vst [vmem:[#allocation3 + $0x10] sm:$0xf0] %v1488
      %1493 = vst [vmem:[#allocation3 + $0x18] sm:$0xf0] %v1489
      %v1494 = vld [vmem:[#allocation2] sm:$0xf]
      %v1495 = vld [vmem:[#allocation2 + $0x8] sm:$0xf]
      %v1496 = vld [vmem:[#allocation2 + $0x10] sm:$0xf]
      %vm1497 = vcmp.ge.s32.totalorder %v580, 4294967294
      %vm1498 = vcmp.ge.s32.totalorder %v581, 4294967294
      %vm1499 = vmand %vm1363, %vm1497
      %vm1500 = vmand %vm1364, %vm1498
      %vm1501 = vcmp.lt.s32.totalorder %v580, 14
      %vm1502 = vcmp.lt.s32.totalorder %v581, 14
      %vm1503 = vmand %vm1499, %vm1501
      %vm1504 = vmand %vm1500, %vm1502
      %v1505 = vsel %vm1503, 1, 0
      %v1506 = vsel %vm1504, 1, 0
      %vm1507 = vcmp.eq.s32.totalorder %v1505, 1
      %vm1508 = vcmp.eq.s32.totalorder %v1506, 1
      %1512 = vrot.lane.b32.xlu0 %v1494, 30
      %v1513 = vpop.permute.xlu0 %1512
      %1514 = vrot.lane.b32.xlu0 %v1495, 30
      %v1515 = vpop.permute.xlu0 %1514
      %1516 = vrot.lane.b32.xlu0 %v1496, 30
      %v1517 = vpop.permute.xlu0 %1516
      %vm1518 = vcmask 244736
      %v1519 = vsel %vm1518, %v1513, %v1515
      %v1520 = vsel %vm1518, %v1515, %v1517
      %v1523 = vsel %vm1507, %v1519, 0.0
      %v1524 = vsel %vm1508, %v1520, 0.0
      %1525 = vst [vmem:[#allocation3 + $0x20] sm:$0xf] %v1523
      %1526 = vst [vmem:[#allocation3 + $0x28] sm:$0xf] %v1524
      %v1527 = vld [vmem:[#allocation2] sm:$0xf]
      %v1528 = vld [vmem:[#allocation2 + $0x8] sm:$0xf]
      %v1529 = vld [vmem:[#allocation2 + $0x10] sm:$0xf]
      %vm1530 = vmand %vm594, %vm1365
      %vm1531 = vmand %vm595, %vm1366
      %vm1532 = vmand %vm1530, %vm1369
      %vm1533 = vmand %vm1531, %vm1370
      %v1534 = vsel %vm1532, 1, 0
      %v1535 = vsel %vm1533, 1, 0
      %vm1536 = vcmp.eq.s32.totalorder %v1534, 1
      %vm1537 = vcmp.eq.s32.totalorder %v1535, 1
      %1541 = vrot.lane.b32.xlu0 %v1527, 18
      %v1542 = vpop.permute.xlu0 %1541
      %1543 = vrot.lane.b32.xlu0 %v1528, 18
      %v1544 = vpop.permute.xlu0 %1543
      %1545 = vrot.lane.b32.xlu0 %v1529, 18
      %v1546 = vpop.permute.xlu0 %1545
      %vm1547 = vcmask 146432
      %v1548 = vsel %vm1547, %v1542, %v1544
      %v1549 = vsel %vm1547, %v1544, %v1546
      %v1552 = vsel %vm1536, %v1548, 0.0
      %v1553 = vsel %vm1537, %v1549, 0.0
      %v1556 = vrot.slane %v1552, 4
      %v1557 = vrot.slane %v1553, 4
      %1560 = vst [vmem:[#allocation3 + $0x20] sm:$0xf0] %v1556
      %1561 = vst [vmem:[#allocation3 + $0x28] sm:$0xf0] %v1557
      %v1562 = vld [vmem:[#allocation2] sm:$0xf]
      %v1563 = vld [vmem:[#allocation2 + $0x8] sm:$0xf]
      %v1564 = vld [vmem:[#allocation2 + $0x10] sm:$0xf]
      %1568 = vrot.lane.b32.xlu0 %v1562, 17
      %v1569 = vpop.permute.xlu0 %1568
      %1570 = vrot.lane.b32.xlu0 %v1563, 17
      %v1571 = vpop.permute.xlu0 %1570
      %1572 = vrot.lane.b32.xlu0 %v1564, 17
      %v1573 = vpop.permute.xlu0 %1572
      %v1574 = vsel %vm617, %v1569, %v1571
      %v1575 = vsel %vm617, %v1571, %v1573
      %v1578 = vsel %vm606, %v1574, 0.0
      %v1579 = vsel %vm607, %v1575, 0.0
      %1580 = vst [vmem:[#allocation3 + $0x30] sm:$0xf] %v1578
      %1581 = vst [vmem:[#allocation3 + $0x38] sm:$0xf] %v1579
      %v1582 = vld [vmem:[#allocation2] sm:$0xf]
      %v1583 = vld [vmem:[#allocation2 + $0x8] sm:$0xf]
      %v1584 = vld [vmem:[#allocation2 + $0x10] sm:$0xf]
      %1588 = vrot.lane.b32.xlu0 %v1582, 16
      %v1589 = vpop.permute.xlu0 %1588
      %1590 = vrot.lane.b32.xlu0 %v1583, 16
      %v1591 = vpop.permute.xlu0 %1590
      %1592 = vrot.lane.b32.xlu0 %v1584, 16
      %v1593 = vpop.permute.xlu0 %1592
      %v1594 = vsel %vm650, %v1589, %v1591
      %v1595 = vsel %vm650, %v1591, %v1593
      %v1598 = vsel %vm639, %v1594, 0.0
      %v1599 = vsel %vm640, %v1595, 0.0
      %v1602 = vrot.slane %v1598, 4
      %v1603 = vrot.slane %v1599, 4
      %1606 = vst [vmem:[#allocation3 + $0x30] sm:$0xf0] %v1602
      %1607 = vst [vmem:[#allocation3 + $0x38] sm:$0xf0] %v1603
      %v1608 = vld [vmem:[#allocation2] sm:$0xf]
      %v1609 = vld [vmem:[#allocation2 + $0x8] sm:$0xf]
      %v1610 = vld [vmem:[#allocation2 + $0x10] sm:$0xf]
      %1614 = vrot.lane.b32.xlu0 %v1608, 15
      %v1615 = vpop.permute.xlu0 %1614
      %1616 = vrot.lane.b32.xlu0 %v1609, 15
      %v1617 = vpop.permute.xlu0 %1616
      %1618 = vrot.lane.b32.xlu0 %v1610, 15
      %v1619 = vpop.permute.xlu0 %1618
      %v1620 = vsel %vm689, %v1615, %v1617
      %v1621 = vsel %vm689, %v1617, %v1619
      %v1624 = vsel %vm678, %v1620, 0.0
      %v1625 = vsel %vm679, %v1621, 0.0
      %1626 = vst [vmem:[#allocation3 + $0x40] sm:$0xf] %v1624
      %1627 = vst [vmem:[#allocation3 + $0x48] sm:$0xf] %v1625
      %v1628 = vld [vmem:[#allocation2] sm:$0xf]
      %v1629 = vld [vmem:[#allocation2 + $0x8] sm:$0xf]
      %v1630 = vld [vmem:[#allocation2 + $0x10] sm:$0xf]
      %vm1631 = vmand %vm594, %vm1497
      %vm1632 = vmand %vm595, %vm1498
      %vm1633 = vmand %vm1631, %vm1501
      %vm1634 = vmand %vm1632, %vm1502
      %v1635 = vsel %vm1633, 1, 0
      %v1636 = vsel %vm1634, 1, 0
      %vm1637 = vcmp.eq.s32.totalorder %v1635, 1
      %vm1638 = vcmp.eq.s32.totalorder %v1636, 1
      %1642 = vrot.lane.b32.xlu0 %v1628, 14
      %v1643 = vpop.permute.xlu0 %1642
      %1644 = vrot.lane.b32.xlu0 %v1629, 14
      %v1645 = vpop.permute.xlu0 %1644
      %1646 = vrot.lane.b32.xlu0 %v1630, 14
      %v1647 = vpop.permute.xlu0 %1646
      %vm1648 = vcmask 113664
      %v1649 = vsel %vm1648, %v1643, %v1645
      %v1650 = vsel %vm1648, %v1645, %v1647
      %v1653 = vsel %vm1637, %v1649, 0.0
      %v1654 = vsel %vm1638, %v1650, 0.0
      %v1657 = vrot.slane %v1653, 4
      %v1658 = vrot.slane %v1654, 4
      %1661 = vst [vmem:[#allocation3 + $0x40] sm:$0xf0] %v1657
      %1662 = vst [vmem:[#allocation3 + $0x48] sm:$0xf0] %v1658
      %v1663 = vld [vmem:[#allocation2] sm:$0xf]
      %v1664 = vld [vmem:[#allocation2 + $0x8] sm:$0xf]
      %v1665 = vld [vmem:[#allocation2 + $0x10] sm:$0xf]
      %vm1666 = vmand %vm705, %vm1365
      %vm1667 = vmand %vm706, %vm1366
      %vm1668 = vmand %vm1666, %vm1369
      %vm1669 = vmand %vm1667, %vm1370
      %v1670 = vsel %vm1668, 1, 0
      %v1671 = vsel %vm1669, 1, 0
      %vm1672 = vcmp.eq.s32.totalorder %v1670, 1
      %vm1673 = vcmp.eq.s32.totalorder %v1671, 1
      %1677 = vrot.lane.b32.xlu0 %v1663, 2
      %v1678 = vpop.permute.xlu0 %1677
      %1679 = vrot.lane.b32.xlu0 %v1664, 2
      %v1680 = vpop.permute.xlu0 %1679
      %1681 = vrot.lane.b32.xlu0 %v1665, 2
      %v1682 = vpop.permute.xlu0 %1681
      %vm1683 = vcmask 15360
      %v1684 = vsel %vm1683, %v1678, %v1680
      %v1685 = vsel %vm1683, %v1680, %v1682
      %v1688 = vsel %vm1672, %v1684, 0.0
      %v1689 = vsel %vm1673, %v1685, 0.0
      %1690 = vst [vmem:[#allocation3 + $0x50] sm:$0xf] %v1688
      %1691 = vst [vmem:[#allocation3 + $0x58] sm:$0xf] %v1689
      %v1692 = vld [vmem:[#allocation2] sm:$0xf]
      %v1693 = vld [vmem:[#allocation2 + $0x8] sm:$0xf]
      %v1694 = vld [vmem:[#allocation2 + $0x10] sm:$0xf]
      %1698 = vrot.lane.b32.xlu0 %v1692, 1
      %v1699 = vpop.permute.xlu0 %1698
      %1700 = vrot.lane.b32.xlu0 %v1693, 1
      %v1701 = vpop.permute.xlu0 %1700
      %1702 = vrot.lane.b32.xlu0 %v1694, 1
      %v1703 = vpop.permute.xlu0 %1702
      %v1704 = vsel %vm724, %v1699, %v1701
      %v1705 = vsel %vm724, %v1701, %v1703
      %v1708 = vsel %vm713, %v1704, 0.0
      %v1709 = vsel %vm714, %v1705, 0.0
      %v1712 = vrot.slane %v1708, 4
      %v1713 = vrot.slane %v1709, 4
      %1716 = vst [vmem:[#allocation3 + $0x50] sm:$0xf0] %v1712
      %1717 = vst [vmem:[#allocation3 + $0x58] sm:$0xf0] %v1713
      %v1718 = vld [vmem:[#allocation2 + $0x8] sm:$0xf]
      %v1719 = vld [vmem:[#allocation2 + $0x10] sm:$0xf]
      %v1720 = vsel %vm747, %v1718, 0.0
      %v1721 = vsel %vm748, %v1719, 0.0
      %1722 = vst [vmem:[#allocation3 + $0x60] sm:$0xf] %v1720
      %1723 = vst [vmem:[#allocation3 + $0x68] sm:$0xf] %v1721
      %v1724 = vld [vmem:[#allocation2 + $0x8] sm:$0xf]
      %v1725 = vld [vmem:[#allocation2 + $0x10] sm:$0xf]
      %v1726 = vld [vmem:[#allocation2 + $0x18] sm:$0xf]
      %1730 = vrot.lane.b32.xlu0 %v1724, 127
      %v1731 = vpop.permute.xlu0 %1730
      %1732 = vrot.lane.b32.xlu0 %v1725, 127
      %v1733 = vpop.permute.xlu0 %1732
      %1734 = vrot.lane.b32.xlu0 %v1726, 127
      %v1735 = vpop.permute.xlu0 %1734
      %v1736 = vsel %vm773, %v1731, %v1733
      %v1737 = vsel %vm773, %v1733, %v1735
      %v1740 = vsel %vm762, %v1736, 0.0
      %v1741 = vsel %vm763, %v1737, 0.0
      %v1744 = vrot.slane %v1740, 4
      %v1745 = vrot.slane %v1741, 4
      %1748 = vst [vmem:[#allocation3 + $0x60] sm:$0xf0] %v1744
      %1749 = vst [vmem:[#allocation3 + $0x68] sm:$0xf0] %v1745
      %v1750 = vld [vmem:[#allocation2 + $0x8] sm:$0xf]
      %v1751 = vld [vmem:[#allocation2 + $0x10] sm:$0xf]
      %v1752 = vld [vmem:[#allocation2 + $0x18] sm:$0xf]
      %vm1753 = vmand %vm705, %vm1497
      %vm1754 = vmand %vm706, %vm1498
      %vm1755 = vmand %vm1753, %vm1501
      %vm1756 = vmand %vm1754, %vm1502
      %v1757 = vsel %vm1755, 1, 0
      %v1758 = vsel %vm1756, 1, 0
      %vm1759 = vcmp.eq.s32.totalorder %v1757, 1
      %vm1760 = vcmp.eq.s32.totalorder %v1758, 1
      %1764 = vrot.lane.b32.xlu0 %v1750, 126
      %v1765 = vpop.permute.xlu0 %1764
      %1766 = vrot.lane.b32.xlu0 %v1751, 126
      %v1767 = vpop.permute.xlu0 %1766
      %1768 = vrot.lane.b32.xlu0 %v1752, 126
      %v1769 = vpop.permute.xlu0 %1768
      %vm1770 = vcmask 1031168
      %v1771 = vsel %vm1770, %v1765, %v1767
      %v1772 = vsel %vm1770, %v1767, %v1769
      %v1775 = vsel %vm1759, %v1771, 0.0
      %v1776 = vsel %vm1760, %v1772, 0.0
      %1777 = vst [vmem:[#allocation3 + $0x70] sm:$0xf] %v1775
      %1778 = vst [vmem:[#allocation3 + $0x78] sm:$0xf] %v1776
      %v1779 = vld [vmem:[#allocation2 + $0x8] sm:$0xf]
      %v1780 = vld [vmem:[#allocation2 + $0x10] sm:$0xf]
      %v1781 = vld [vmem:[#allocation2 + $0x18] sm:$0xf]
      %vm1782 = vmand %vm795, %vm1365
      %vm1783 = vmand %vm796, %vm1366
      %vm1784 = vmand %vm1782, %vm1369
      %vm1785 = vmand %vm1783, %vm1370
      %v1786 = vsel %vm1784, 1, 0
      %v1787 = vsel %vm1785, 1, 0
      %vm1788 = vcmp.eq.s32.totalorder %v1786, 1
      %vm1789 = vcmp.eq.s32.totalorder %v1787, 1
      %1793 = vrot.lane.b32.xlu0 %v1779, 114
      %v1794 = vpop.permute.xlu0 %1793
      %1795 = vrot.lane.b32.xlu0 %v1780, 114
      %v1796 = vpop.permute.xlu0 %1795
      %1797 = vrot.lane.b32.xlu0 %v1781, 114
      %v1798 = vpop.permute.xlu0 %1797
      %vm1799 = vcmask 932864
      %v1800 = vsel %vm1799, %v1794, %v1796
      %v1801 = vsel %vm1799, %v1796, %v1798
      %v1804 = vsel %vm1788, %v1800, 0.0
      %v1805 = vsel %vm1789, %v1801, 0.0
      %v1808 = vrot.slane %v1804, 4
      %v1809 = vrot.slane %v1805, 4
      %1812 = vst [vmem:[#allocation3 + $0x70] sm:$0xf0] %v1808
      %1813 = vst [vmem:[#allocation3 + $0x78] sm:$0xf0] %v1809
      %v1814 = vld [vmem:[#allocation2 + $0x8] sm:$0xf]
      %v1815 = vld [vmem:[#allocation2 + $0x10] sm:$0xf]
      %v1816 = vld [vmem:[#allocation2 + $0x18] sm:$0xf]
      %1820 = vrot.lane.b32.xlu0 %v1814, 113
      %v1821 = vpop.permute.xlu0 %1820
      %1822 = vrot.lane.b32.xlu0 %v1815, 113
      %v1823 = vpop.permute.xlu0 %1822
      %1824 = vrot.lane.b32.xlu0 %v1816, 113
      %v1825 = vpop.permute.xlu0 %1824
      %v1826 = vsel %vm814, %v1821, %v1823
      %v1827 = vsel %vm814, %v1823, %v1825
      %v1830 = vsel %vm803, %v1826, 0.0
      %v1831 = vsel %vm804, %v1827, 0.0
      %1832 = vst [vmem:[#allocation3 + $0x80] sm:$0xf] %v1830
      %1833 = vst [vmem:[#allocation3 + $0x88] sm:$0xf] %v1831
      %v1834 = vld [vmem:[#allocation2 + $0x8] sm:$0xf]
      %v1835 = vld [vmem:[#allocation2 + $0x10] sm:$0xf]
      %v1836 = vld [vmem:[#allocation2 + $0x18] sm:$0xf]
      %1840 = vrot.lane.b32.xlu0 %v1834, 112
      %v1841 = vpop.permute.xlu0 %1840
      %1842 = vrot.lane.b32.xlu0 %v1835, 112
      %v1843 = vpop.permute.xlu0 %1842
      %1844 = vrot.lane.b32.xlu0 %v1836, 112
      %v1845 = vpop.permute.xlu0 %1844
      %v1846 = vsel %vm843, %v1841, %v1843
      %v1847 = vsel %vm843, %v1843, %v1845
      %v1850 = vsel %vm832, %v1846, 0.0
      %v1851 = vsel %vm833, %v1847, 0.0
      %v1854 = vrot.slane %v1850, 4
      %v1855 = vrot.slane %v1851, 4
      %1858 = vst [vmem:[#allocation3 + $0x80] sm:$0xf0] %v1854
      %1859 = vst [vmem:[#allocation3 + $0x88] sm:$0xf0] %v1855
      %v1860 = vld [vmem:[#allocation2 + $0x8] sm:$0xf]
      %v1861 = vld [vmem:[#allocation2 + $0x10] sm:$0xf]
      %v1862 = vld [vmem:[#allocation2 + $0x18] sm:$0xf]
      %1866 = vrot.lane.b32.xlu0 %v1860, 111
      %v1867 = vpop.permute.xlu0 %1866
      %1868 = vrot.lane.b32.xlu0 %v1861, 111
      %v1869 = vpop.permute.xlu0 %1868
      %1870 = vrot.lane.b32.xlu0 %v1862, 111
      %v1871 = vpop.permute.xlu0 %1870
      %v1872 = vsel %vm878, %v1867, %v1869
      %v1873 = vsel %vm878, %v1869, %v1871
      %v1876 = vsel %vm867, %v1872, 0.0
      %v1877 = vsel %vm868, %v1873, 0.0
      %1878 = vst [vmem:[#allocation3 + $0x90] sm:$0xf] %v1876
      %1879 = vst [vmem:[#allocation3 + $0x98] sm:$0xf] %v1877
      %v1880 = vld [vmem:[#allocation2 + $0x8] sm:$0xf]
      %v1881 = vld [vmem:[#allocation2 + $0x10] sm:$0xf]
      %v1882 = vld [vmem:[#allocation2 + $0x18] sm:$0xf]
      %vm1883 = vmand %vm795, %vm1497
      %vm1884 = vmand %vm796, %vm1498
      %vm1885 = vmand %vm1883, %vm1501
      %vm1886 = vmand %vm1884, %vm1502
      %v1887 = vsel %vm1885, 1, 0
      %v1888 = vsel %vm1886, 1, 0
      %vm1889 = vcmp.eq.s32.totalorder %v1887, 1
      %vm1890 = vcmp.eq.s32.totalorder %v1888, 1
      %1894 = vrot.lane.b32.xlu0 %v1880, 110
      %v1895 = vpop.permute.xlu0 %1894
      %1896 = vrot.lane.b32.xlu0 %v1881, 110
      %v1897 = vpop.permute.xlu0 %1896
      %1898 = vrot.lane.b32.xlu0 %v1882, 110
      %v1899 = vpop.permute.xlu0 %1898
      %vm1900 = vcmask 900096
      %v1901 = vsel %vm1900, %v1895, %v1897
      %v1902 = vsel %vm1900, %v1897, %v1899
      %v1905 = vsel %vm1889, %v1901, 0.0
      %v1906 = vsel %vm1890, %v1902, 0.0
      %v1909 = vrot.slane %v1905, 4
      %v1910 = vrot.slane %v1906, 4
      %1913 = vst [vmem:[#allocation3 + $0x90] sm:$0xf0] %v1909
      %1914 = vst [vmem:[#allocation3 + $0x98] sm:$0xf0] %v1910
      %v1915 = vld [vmem:[#allocation2 + $0x8] sm:$0xf]
      %v1916 = vld [vmem:[#allocation2 + $0x10] sm:$0xf]
      %v1917 = vld [vmem:[#allocation2 + $0x18] sm:$0xf]
      %vm1918 = vcmp.ge.s32.totalorder %v578, 4294967264
      %vm1919 = vcmp.ge.s32.totalorder %v579, 4294967264
      %vm1920 = vcmp.lt.s32.totalorder %v578, 224
      %vm1921 = vcmp.lt.s32.totalorder %v579, 224
      %vm1922 = vmand %vm1918, %vm1920
      %vm1923 = vmand %vm1919, %vm1921
      %vm1924 = vmand %vm1922, %vm1365
      %vm1925 = vmand %vm1923, %vm1366
      %vm1926 = vmand %vm1924, %vm1369
      %vm1927 = vmand %vm1925, %vm1370
      %v1928 = vsel %vm1926, 1, 0
      %v1929 = vsel %vm1927, 1, 0
      %vm1930 = vcmp.eq.s32.totalorder %v1928, 1
      %vm1931 = vcmp.eq.s32.totalorder %v1929, 1
      %1935 = vrot.lane.b32.xlu0 %v1915, 98
      %v1936 = vpop.permute.xlu0 %1935
      %1937 = vrot.lane.b32.xlu0 %v1916, 98
      %v1938 = vpop.permute.xlu0 %1937
      %1939 = vrot.lane.b32.xlu0 %v1917, 98
      %v1940 = vpop.permute.xlu0 %1939
      %vm1941 = vcmask 801792
      %v1942 = vsel %vm1941, %v1936, %v1938
      %v1943 = vsel %vm1941, %v1938, %v1940
      %v1946 = vsel %vm1930, %v1942, 0.0
      %v1947 = vsel %vm1931, %v1943, 0.0
      %1948 = vst [vmem:[#allocation3 + $0xa0] sm:$0xf] %v1946
      %1949 = vst [vmem:[#allocation3 + $0xa8] sm:$0xf] %v1947
      %v1950 = vld [vmem:[#allocation2 + $0x8] sm:$0xf]
      %v1951 = vld [vmem:[#allocation2 + $0x10] sm:$0xf]
      %v1952 = vld [vmem:[#allocation2 + $0x18] sm:$0xf]
      %vm1953 = vmand %vm1922, %vm596
      %vm1954 = vmand %vm1923, %vm597
      %vm1955 = vmand %vm1953, %vm600
      %vm1956 = vmand %vm1954, %vm601
      %v1957 = vsel %vm1955, 1, 0
      %v1958 = vsel %vm1956, 1, 0
      %vm1959 = vcmp.eq.s32.totalorder %v1957, 1
      %vm1960 = vcmp.eq.s32.totalorder %v1958, 1
      %1964 = vrot.lane.b32.xlu0 %v1950, 97
      %v1965 = vpop.permute.xlu0 %1964
      %1966 = vrot.lane.b32.xlu0 %v1951, 97
      %v1967 = vpop.permute.xlu0 %1966
      %1968 = vrot.lane.b32.xlu0 %v1952, 97
      %v1969 = vpop.permute.xlu0 %1968
      %vm1970 = vcmask 793600
      %v1971 = vsel %vm1970, %v1965, %v1967
      %v1972 = vsel %vm1970, %v1967, %v1969
      %v1975 = vsel %vm1959, %v1971, 0.0
      %v1976 = vsel %vm1960, %v1972, 0.0
      %v1979 = vrot.slane %v1975, 4
      %v1980 = vrot.slane %v1976, 4
      %1983 = vst [vmem:[#allocation3 + $0xa0] sm:$0xf0] %v1979
      %1984 = vst [vmem:[#allocation3 + $0xa8] sm:$0xf0] %v1980
      %v1985 = vld [vmem:[#allocation2 + $0x8] sm:$0xf]
      %v1986 = vld [vmem:[#allocation2 + $0x10] sm:$0xf]
      %v1987 = vld [vmem:[#allocation2 + $0x18] sm:$0xf]
      %vm1988 = vmand %vm1922, %vm629
      %vm1989 = vmand %vm1923, %vm630
      %vm1990 = vmand %vm1988, %vm633
      %vm1991 = vmand %vm1989, %vm634
      %v1992 = vsel %vm1990, 1, 0
      %v1993 = vsel %vm1991, 1, 0
      %vm1994 = vcmp.eq.s32.totalorder %v1992, 1
      %vm1995 = vcmp.eq.s32.totalorder %v1993, 1
      %1999 = vrot.lane.b32.xlu0 %v1985, 96
      %v2000 = vpop.permute.xlu0 %1999
      %2001 = vrot.lane.b32.xlu0 %v1986, 96
      %v2002 = vpop.permute.xlu0 %2001
      %2003 = vrot.lane.b32.xlu0 %v1987, 96
      %v2004 = vpop.permute.xlu0 %2003
      %vm2005 = vcmask 785408
      %v2006 = vsel %vm2005, %v2000, %v2002
      %v2007 = vsel %vm2005, %v2002, %v2004
      %v2010 = vsel %vm1994, %v2006, 0.0
      %v2011 = vsel %vm1995, %v2007, 0.0
      %2012 = vst [vmem:[#allocation3 + $0xb0] sm:$0xf] %v2010
      %2013 = vst [vmem:[#allocation3 + $0xb8] sm:$0xf] %v2011
      %v2014 = vld [vmem:[#allocation2 + $0x8] sm:$0xf]
      %v2015 = vld [vmem:[#allocation2 + $0x10] sm:$0xf]
      %v2016 = vld [vmem:[#allocation2 + $0x18] sm:$0xf]
      %vm2017 = vmand %vm1922, %vm668
      %vm2018 = vmand %vm1923, %vm669
      %vm2019 = vmand %vm2017, %vm672
      %vm2020 = vmand %vm2018, %vm673
      %v2021 = vsel %vm2019, 1, 0
      %v2022 = vsel %vm2020, 1, 0
      %vm2023 = vcmp.eq.s32.totalorder %v2021, 1
      %vm2024 = vcmp.eq.s32.totalorder %v2022, 1
      %2028 = vrot.lane.b32.xlu0 %v2014, 95
      %v2029 = vpop.permute.xlu0 %2028
      %2030 = vrot.lane.b32.xlu0 %v2015, 95
      %v2031 = vpop.permute.xlu0 %2030
      %2032 = vrot.lane.b32.xlu0 %v2016, 95
      %v2033 = vpop.permute.xlu0 %2032
      %vm2034 = vcmask 777216
      %v2035 = vsel %vm2034, %v2029, %v2031
      %v2036 = vsel %vm2034, %v2031, %v2033
      %v2039 = vsel %vm2023, %v2035, 0.0
      %v2040 = vsel %vm2024, %v2036, 0.0
      %v2043 = vrot.slane %v2039, 4
      %v2044 = vrot.slane %v2040, 4
      %2047 = vst [vmem:[#allocation3 + $0xb0] sm:$0xf0] %v2043
      %2048 = vst [vmem:[#allocation3 + $0xb8] sm:$0xf0] %v2044
      %v2049 = vld [vmem:[#allocation2 + $0x8] sm:$0xf]
      %v2050 = vld [vmem:[#allocation2 + $0x10] sm:$0xf]
      %v2051 = vld [vmem:[#allocation2 + $0x18] sm:$0xf]
      %vm2052 = vmand %vm1922, %vm1497
      %vm2053 = vmand %vm1923, %vm1498
      %vm2054 = vmand %vm2052, %vm1501
      %vm2055 = vmand %vm2053, %vm1502
      %v2056 = vsel %vm2054, 1, 0
      %v2057 = vsel %vm2055, 1, 0
      %vm2058 = vcmp.eq.s32.totalorder %v2056, 1
      %vm2059 = vcmp.eq.s32.totalorder %v2057, 1
      %2063 = vrot.lane.b32.xlu0 %v2049, 94
      %v2064 = vpop.permute.xlu0 %2063
      %2065 = vrot.lane.b32.xlu0 %v2050, 94
      %v2066 = vpop.permute.xlu0 %2065
      %2067 = vrot.lane.b32.xlu0 %v2051, 94
      %v2068 = vpop.permute.xlu0 %2067
      %vm2069 = vcmask 769024
      %v2070 = vsel %vm2069, %v2064, %v2066
      %v2071 = vsel %vm2069, %v2066, %v2068
      %v2074 = vsel %vm2058, %v2070, 0.0
      %v2075 = vsel %vm2059, %v2071, 0.0
      %2076 = vst [vmem:[#allocation3 + $0xc0] sm:$0xf] %v2074
      %2077 = vst [vmem:[#allocation3 + $0xc8] sm:$0xf] %v2075
      %v2078 = vld [vmem:[%s5] sm:$0xff]
      %v2079 = vld [vmem:[#allocation3] sm:$0xff]
      %v2080 = vld [vmem:[#allocation3 + $0x8] sm:$0xff]
      %v2081 = vld [vmem:[#allocation3 + $0x10] sm:$0xff]
      %v2082 = vld [vmem:[#allocation3 + $0x18] sm:$0xff]
      %v2083 = vld [vmem:[#allocation3 + $0x20] sm:$0xff]
      %v2084 = vld [vmem:[#allocation3 + $0x28] sm:$0xff]
      %v2085 = vld [vmem:[#allocation3 + $0x30] sm:$0xff]
      %v2086 = vld [vmem:[#allocation3 + $0x38] sm:$0xff]
      %v2087 = vld [vmem:[#allocation3 + $0x40] sm:$0xff]
      %v2088 = vld [vmem:[#allocation3 + $0x48] sm:$0xff]
      %v2089 = vld [vmem:[#allocation3 + $0x50] sm:$0xff]
      %v2090 = vld [vmem:[#allocation3 + $0x58] sm:$0xff]
      %v2091 = vld [vmem:[#allocation3 + $0x60] sm:$0xff]
      %v2092 = vld [vmem:[#allocation3 + $0x68] sm:$0xff]
      %v2093 = vld [vmem:[#allocation3 + $0x70] sm:$0xff]
      %v2094 = vld [vmem:[#allocation3 + $0x78] sm:$0xff]
      %v2095 = vld [vmem:[#allocation3 + $0x80] sm:$0xff]
      %v2096 = vld [vmem:[#allocation3 + $0x88] sm:$0xff]
      %v2097 = vld [vmem:[#allocation3 + $0x90] sm:$0xff]
      %v2098 = vld [vmem:[#allocation3 + $0x98] sm:$0xff]
      %v2099 = vld [vmem:[#allocation3 + $0xa0] sm:$0xff]
      %v2100 = vld [vmem:[#allocation3 + $0xa8] sm:$0xff]
      %v2101 = vld [vmem:[#allocation3 + $0xb0] sm:$0xff]
      %v2102 = vld [vmem:[#allocation3 + $0xb8] sm:$0xff]
      %v2103 = vld [vmem:[#allocation3 + $0xc0] sm:$0xf]
      %v2104 = vld [vmem:[#allocation3 + $0xc8] sm:$0xf]
      %v2105 = vld [vmem:[%s6] sm:$0xff]
      %2107 = vset.pattern.permute.xlu0 0
      %2108 = vperm.xlu0 %2107, %v2105
      %v2109 = vpop.permute.xlu0 %2108
      %vm2111 = vcmask 818176
      %v2113 = vsel %vm2111, %v2078, 0
      %v2116 = vsel %vm908, %v2103, 0
      %v2119 = vsel %vm908, %v2104, 0
      %2121 = vmatprep.subr.mxu0 %v2080
      %2122 = vmatpush1.msra.mxu0 %v2079
      %2123 = vmatprep.subr.mxu0 %v2082
      %2124 = vmatpush1.msra.mxu0 %v2081
      %2125 = vmatprep.subr.mxu0 %v2084
      %2126 = vmatpush1.msra.mxu0 %v2083
      %2127 = vmatprep.subr.mxu0 %v2086
      %2128 = vmatpush1.msra.mxu0 %v2085
      %2129 = vmatprep.subr.mxu0 %v2088
      %2130 = vmatpush1.msra.mxu0 %v2087
      %2131 = vmatprep.subr.mxu0 %v2090
      %2132 = vmatpush1.msra.mxu0 %v2089
      %2133 = vmatprep.subr.mxu0 %v2092
      %2134 = vmatpush1.msra.mxu0 %v2091
      %2135 = vmatprep.subr.mxu0 %v2094
      %2136 = vmatpush1.msra.mxu0 %v2093
      %2137 = vmatprep.subr.mxu0 %v2096
      %2138 = vmatpush1.msra.mxu0 %v2095
      %2139 = vmatprep.subr.mxu0 %v2098
      %2140 = vmatpush1.msra.mxu0 %v2097
      %2141 = vmatprep.subr.mxu0 %v2100
      %2142 = vmatpush1.msra.mxu0 %v2099
      %2143 = vmatprep.subr.mxu0 %v2102
      %2144 = vmatpush1.msra.mxu0 %v2101
      %2145 = vmatprep.subr.mxu0 %v2119
      %2146 = vmatpush1.msra.mxu0 %v2116
      %2147 = vmatprep.subr.mxu0 0.0
      %2148 = vmatpush1.msra.mxu0 0.0
      %2149 = vmatprep.subr.mxu0 0.0
      %2150 = vmatpush1.msra.mxu0 0.0
      %2151 = vmatprep.subr.mxu0 0.0
      %2152 = vmatpush1.msra.mxu0 0.0
      %2153 = vmatprep.subr.mxu0 0.0
      %2154 = vmatpush1.msra.mxu0 0.0
      %2155 = vmatprep.subr.mxu0 0.0
      %2156 = vmatpush1.msra.mxu0 0.0
      %2157 = vmatprep.subr.mxu0 0.0
      %2158 = vmatpush1.msra.mxu0 0.0
      %2159 = vmatprep.subr.mxu0 0.0
      %2160 = vmatpush1.msra.mxu0 0.0
      %2161 = vmatprep.subr.mxu0 0.0
      %2162 = vmatpush1.msra.mxu0 0.0
      %2163 = vmatprep.subr.mxu0 0.0
      %2164 = vmatpush1.msra.mxu0 0.0
      %2165 = vmatprep.subr.mxu0 0.0
      %2166 = vmatpush1.msra.mxu0 0.0
      %2167 = vmatprep.subr.mxu0 0.0
      %2168 = vmatpush1.msra.mxu0 0.0
      %2169 = vmatprep.subr.mxu0 0.0
      %2170 = vmatpush1.msra.mxu0 0.0
      %2171 = vmatprep.subr.mxu0 0.0
      %2172 = vmatpush1.msra.mxu0 0.0
      %2173 = vmatprep.subr.mxu0 0.0
      %2174 = vmatpush1.msra.mxu0 0.0
      %2175 = vmatprep.subr.mxu0 0.0
      %2176 = vmatpush1.msra.mxu0 0.0
      %2177 = vmatprep.subr.mxu0 0.0
      %2178 = vmatpush1.msra.mxu0 0.0
      %2179 = vmatprep.subr.mxu0 0.0
      %2180 = vmatpush1.msra.mxu0 0.0
      %2181 = vmatprep.subr.mxu0 0.0
      %2182 = vmatpush1.msra.mxu0 0.0
      %2183 = vmatprep.subr.mxu0 0.0
      %2184 = vmatpush1.msra.mxu0 0.0
      %2185 = vmatprep.mubr.f32.mxu0 0.0
      %2186 = vmatmul.mubr.f32.gmra.mrb[0].mxu0 %v2113
      %v2187 = vpop.f32.mrb[0].mxu0
      %v2188 = vadd.f32 %v2109, %v2187
      %v2189 = vpop.f32.mrb[0].mxu0
      %v2190 = vadd.f32 %v2109, %v2189
      %2191 = vdwg.mxu0
      %v2192 = vmax.f32 %v2188, 0.0
      %v2193 = vmax.f32 %v2190, 0.0
      %v2194 = vld [vmem:[%s13] sm:$0xf]
      %v2196 = vsel %vm1259, %v2194, 0
      %2198 = vmatprep.subr.mxu0 %v2193
      %2199 = vmatpush1.msra.mxu0 %v2192
      %2200 = vmatprep.subr.mxu0 0.0
      %2201 = vmatpush1.msra.mxu0 0.0
      %2202 = vmatprep.subr.mxu0 0.0
      %2203 = vmatpush1.msra.mxu0 0.0
      %2204 = vmatprep.subr.mxu0 0.0
      %2205 = vmatpush1.msra.mxu0 0.0
      %2206 = vmatprep.subr.mxu0 0.0
      %2207 = vmatpush1.msra.mxu0 0.0
      %2208 = vmatprep.subr.mxu0 0.0
      %2209 = vmatpush1.msra.mxu0 0.0
      %2210 = vmatprep.subr.mxu0 0.0
      %2211 = vmatpush1.msra.mxu0 0.0
      %2212 = vmatprep.subr.mxu0 0.0
      %2213 = vmatpush1.msra.mxu0 0.0
      %2214 = vmatprep.subr.mxu0 0.0
      %2215 = vmatpush1.msra.mxu0 0.0
      %2216 = vmatprep.subr.mxu0 0.0
      %2217 = vmatpush1.msra.mxu0 0.0
      %2218 = vmatprep.subr.mxu0 0.0
      %2219 = vmatpush1.msra.mxu0 0.0
      %2220 = vmatprep.subr.mxu0 0.0
      %2221 = vmatpush1.msra.mxu0 0.0
      %2222 = vmatprep.subr.mxu0 0.0
      %2223 = vmatpush1.msra.mxu0 0.0
      %2224 = vmatprep.subr.mxu0 0.0
      %2225 = vmatpush1.msra.mxu0 0.0
      %2226 = vmatprep.subr.mxu0 0.0
      %2227 = vmatpush1.msra.mxu0 0.0
      %2228 = vmatprep.subr.mxu0 0.0
      %2229 = vmatpush1.msra.mxu0 0.0
      %2230 = vmatprep.subr.mxu0 0.0
      %2231 = vmatpush1.msra.mxu0 0.0
      %2232 = vmatprep.subr.mxu0 0.0
      %2233 = vmatpush1.msra.mxu0 0.0
      %2234 = vmatprep.subr.mxu0 0.0
      %2235 = vmatpush1.msra.mxu0 0.0
      %2236 = vmatprep.subr.mxu0 0.0
      %2237 = vmatpush1.msra.mxu0 0.0
      %2238 = vmatprep.subr.mxu0 0.0
      %2239 = vmatpush1.msra.mxu0 0.0
      %2240 = vmatprep.subr.mxu0 0.0
      %2241 = vmatpush1.msra.mxu0 0.0
      %2242 = vmatprep.subr.mxu0 0.0
      %2243 = vmatpush1.msra.mxu0 0.0
      %2244 = vmatprep.subr.mxu0 0.0
      %2245 = vmatpush1.msra.mxu0 0.0
      %2246 = vmatprep.subr.mxu0 0.0
      %2247 = vmatpush1.msra.mxu0 0.0
      %2248 = vmatprep.subr.mxu0 0.0
      %2249 = vmatpush1.msra.mxu0 0.0
      %2250 = vmatprep.subr.mxu0 0.0
      %2251 = vmatpush1.msra.mxu0 0.0
      %2252 = vmatprep.subr.mxu0 0.0
      %2253 = vmatpush1.msra.mxu0 0.0
      %2254 = vmatprep.subr.mxu0 0.0
      %2255 = vmatpush1.msra.mxu0 0.0
      %2256 = vmatprep.subr.mxu0 0.0
      %2257 = vmatpush1.msra.mxu0 0.0
      %2258 = vmatprep.subr.mxu0 0.0
      %2259 = vmatpush1.msra.mxu0 0.0
      %2260 = vmatprep.subr.mxu0 0.0
      %2261 = vmatpush1.msra.mxu0 0.0
      %2262 = vmatprep.mubr.f32.mxu0 0.0
      %2263 = vmatmul.mubr.f32.gmra.mrb[0].mxu0 %v2196
      %v2264 = vpop.f32.mrb[0].mxu0
      %v2265 = vadd.f32 0.0, %v2264
      %v2266 = vpop.f32.mrb[0].mxu0
      %v2267 = vadd.f32 0.0, %v2266
      %2268 = vdwg.mxu0
      %v2271 = vcombine.low %v2265, %v2267
      %v2273 = vadd.f32 %v576, %v2271
      %v2274 = vld [vmem:[%s15] sm:$0xf]
      %2276 = vset.pattern.permute.xlu0 0
      %2277 = vperm.xlu0 %2276, %v2274
      %v2278 = vpop.permute.xlu0 %2277
      %v2280 = vunpack.c.l.s4 839922192
      %v2281 = vunpack.c.0.s8 %v2280
      %v2282 = vlaneseq
      %v2283 = vshrl.u32 %v2282, 7
      %v2284 = vsub.s32 %v2281, %v2283
      %v2285 = vrot.slane %v2278, %v2284
      %v2287 = vadd.f32 %v2273, %v2285
      %v2288 = vmax.f32 %v2287, 0.0
      %2289 = vst [vmem:[#allocation2 + $0x8] sm:$0xf] %v576
      %2290 = vst [vmem:[#allocation2 + $0x10] sm:$0xf] %v583
      %v2291 = vld [vmem:[#allocation2] sm:$0xf]
      %v2292 = vld [vmem:[#allocation2 + $0x8] sm:$0xf]
      %v2293 = vld [vmem:[#allocation2 + $0x10] sm:$0xf]
      %vm2294 = vcmp.ge.s32.totalorder %v578, 48
      %vm2295 = vcmp.ge.s32.totalorder %v579, 48
      %vm2296 = vcmp.lt.s32.totalorder %v578, 304
      %vm2297 = vcmp.lt.s32.totalorder %v579, 304
      %vm2298 = vmand %vm2294, %vm2296
      %vm2299 = vmand %vm2295, %vm2297
      %vm2300 = vcmp.ge.s32.totalorder %v580, 3
      %vm2301 = vcmp.ge.s32.totalorder %v581, 3
      %vm2302 = vmand %vm2298, %vm2300
      %vm2303 = vmand %vm2299, %vm2301
      %vm2304 = vcmp.lt.s32.totalorder %v580, 19
      %vm2305 = vcmp.lt.s32.totalorder %v581, 19
      %vm2306 = vmand %vm2302, %vm2304
      %vm2307 = vmand %vm2303, %vm2305
      %v2308 = vsel %vm2306, 1, 0
      %v2309 = vsel %vm2307, 1, 0
      %vm2310 = vcmp.eq.s32.totalorder %v2308, 1
      %vm2311 = vcmp.eq.s32.totalorder %v2309, 1
      %2315 = vrot.lane.b32.xlu0 %v2291, 51
      %v2316 = vpop.permute.xlu0 %2315
      %2317 = vrot.lane.b32.xlu0 %v2292, 51
      %v2318 = vpop.permute.xlu0 %2317
      %2319 = vrot.lane.b32.xlu0 %v2293, 51
      %v2320 = vpop.permute.xlu0 %2319
      %vm2321 = vcmask 416768
      %v2322 = vsel %vm2321, %v2316, %v2318
      %v2323 = vsel %vm2321, %v2318, %v2320
      %v2326 = vsel %vm2310, %v2322, 0.0
      %v2327 = vsel %vm2311, %v2323, 0.0
      %2328 = vst [vmem:[#allocation3] sm:$0xf] %v2326
      %2329 = vst [vmem:[#allocation3 + $0x8] sm:$0xf] %v2327
      %v2330 = vld [vmem:[#allocation2] sm:$0xf]
      %v2331 = vld [vmem:[#allocation2 + $0x8] sm:$0xf]
      %v2332 = vld [vmem:[#allocation2 + $0x10] sm:$0xf]
      %vm2333 = vmand %vm2298, %vm1365
      %vm2334 = vmand %vm2299, %vm1366
      %vm2335 = vmand %vm2333, %vm1369
      %vm2336 = vmand %vm2334, %vm1370
      %v2337 = vsel %vm2335, 1, 0
      %v2338 = vsel %vm2336, 1, 0
      %vm2339 = vcmp.eq.s32.totalorder %v2337, 1
      %vm2340 = vcmp.eq.s32.totalorder %v2338, 1
      %2344 = vrot.lane.b32.xlu0 %v2330, 50
      %v2345 = vpop.permute.xlu0 %2344
      %2346 = vrot.lane.b32.xlu0 %v2331, 50
      %v2347 = vpop.permute.xlu0 %2346
      %2348 = vrot.lane.b32.xlu0 %v2332, 50
      %v2349 = vpop.permute.xlu0 %2348
      %vm2350 = vcmask 408576
      %v2351 = vsel %vm2350, %v2345, %v2347
      %v2352 = vsel %vm2350, %v2347, %v2349
      %v2355 = vsel %vm2339, %v2351, 0.0
      %v2356 = vsel %vm2340, %v2352, 0.0
      %v2359 = vrot.slane %v2355, 4
      %v2360 = vrot.slane %v2356, 4
      %2363 = vst [vmem:[#allocation3] sm:$0xf0] %v2359
      %2364 = vst [vmem:[#allocation3 + $0x8] sm:$0xf0] %v2360
      %v2365 = vld [vmem:[#allocation2] sm:$0xf]
      %v2366 = vld [vmem:[#allocation2 + $0x8] sm:$0xf]
      %v2367 = vld [vmem:[#allocation2 + $0x10] sm:$0xf]
      %vm2368 = vmand %vm2298, %vm596
      %vm2369 = vmand %vm2299, %vm597
      %vm2370 = vmand %vm2368, %vm600
      %vm2371 = vmand %vm2369, %vm601
      %v2372 = vsel %vm2370, 1, 0
      %v2373 = vsel %vm2371, 1, 0
      %vm2374 = vcmp.eq.s32.totalorder %v2372, 1
      %vm2375 = vcmp.eq.s32.totalorder %v2373, 1
      %2379 = vrot.lane.b32.xlu0 %v2365, 49
      %v2380 = vpop.permute.xlu0 %2379
      %2381 = vrot.lane.b32.xlu0 %v2366, 49
      %v2382 = vpop.permute.xlu0 %2381
      %2383 = vrot.lane.b32.xlu0 %v2367, 49
      %v2384 = vpop.permute.xlu0 %2383
      %vm2385 = vcmask 400384
      %v2386 = vsel %vm2385, %v2380, %v2382
      %v2387 = vsel %vm2385, %v2382, %v2384
      %v2390 = vsel %vm2374, %v2386, 0.0
      %v2391 = vsel %vm2375, %v2387, 0.0
      %2392 = vst [vmem:[#allocation3 + $0x10] sm:$0xf] %v2390
      %2393 = vst [vmem:[#allocation3 + $0x18] sm:$0xf] %v2391
      %v2394 = vld [vmem:[#allocation2] sm:$0xf]
      %v2395 = vld [vmem:[#allocation2 + $0x8] sm:$0xf]
      %v2396 = vld [vmem:[#allocation2 + $0x10] sm:$0xf]
      %vm2397 = vmand %vm2298, %vm629
      %vm2398 = vmand %vm2299, %vm630
      %vm2399 = vmand %vm2397, %vm633
      %vm2400 = vmand %vm2398, %vm634
      %v2401 = vsel %vm2399, 1, 0
      %v2402 = vsel %vm2400, 1, 0
      %vm2403 = vcmp.eq.s32.totalorder %v2401, 1
      %vm2404 = vcmp.eq.s32.totalorder %v2402, 1
      %2408 = vrot.lane.b32.xlu0 %v2394, 48
      %v2409 = vpop.permute.xlu0 %2408
      %2410 = vrot.lane.b32.xlu0 %v2395, 48
      %v2411 = vpop.permute.xlu0 %2410
      %2412 = vrot.lane.b32.xlu0 %v2396, 48
      %v2413 = vpop.permute.xlu0 %2412
      %vm2414 = vcmask 392192
      %v2415 = vsel %vm2414, %v2409, %v2411
      %v2416 = vsel %vm2414, %v2411, %v2413
      %v2419 = vsel %vm2403, %v2415, 0.0
      %v2420 = vsel %vm2404, %v2416, 0.0
      %v2423 = vrot.slane %v2419, 4
      %v2424 = vrot.slane %v2420, 4
      %2427 = vst [vmem:[#allocation3 + $0x10] sm:$0xf0] %v2423
      %2428 = vst [vmem:[#allocation3 + $0x18] sm:$0xf0] %v2424
      %v2429 = vld [vmem:[#allocation2] sm:$0xf]
      %v2430 = vld [vmem:[#allocation2 + $0x8] sm:$0xf]
      %v2431 = vld [vmem:[#allocation2 + $0x10] sm:$0xf]
      %vm2432 = vmand %vm2298, %vm668
      %vm2433 = vmand %vm2299, %vm669
      %vm2434 = vmand %vm2432, %vm672
      %vm2435 = vmand %vm2433, %vm673
      %v2436 = vsel %vm2434, 1, 0
      %v2437 = vsel %vm2435, 1, 0
      %vm2438 = vcmp.eq.s32.totalorder %v2436, 1
      %vm2439 = vcmp.eq.s32.totalorder %v2437, 1
      %2443 = vrot.lane.b32.xlu0 %v2429, 47
      %v2444 = vpop.permute.xlu0 %2443
      %2445 = vrot.lane.b32.xlu0 %v2430, 47
      %v2446 = vpop.permute.xlu0 %2445
      %2447 = vrot.lane.b32.xlu0 %v2431, 47
      %v2448 = vpop.permute.xlu0 %2447
      %vm2449 = vcmask 384000
      %v2450 = vsel %vm2449, %v2444, %v2446
      %v2451 = vsel %vm2449, %v2446, %v2448
      %v2454 = vsel %vm2438, %v2450, 0.0
      %v2455 = vsel %vm2439, %v2451, 0.0
      %2456 = vst [vmem:[#allocation3 + $0x20] sm:$0xf] %v2454
      %2457 = vst [vmem:[#allocation3 + $0x28] sm:$0xf] %v2455
      %v2458 = vld [vmem:[#allocation2] sm:$0xf]
      %v2459 = vld [vmem:[#allocation2 + $0x8] sm:$0xf]
      %v2460 = vld [vmem:[#allocation2 + $0x10] sm:$0xf]
      %vm2461 = vmand %vm2298, %vm1497
      %vm2462 = vmand %vm2299, %vm1498
      %vm2463 = vmand %vm2461, %vm1501
      %vm2464 = vmand %vm2462, %vm1502
      %v2465 = vsel %vm2463, 1, 0
      %v2466 = vsel %vm2464, 1, 0
      %vm2467 = vcmp.eq.s32.totalorder %v2465, 1
      %vm2468 = vcmp.eq.s32.totalorder %v2466, 1
      %2472 = vrot.lane.b32.xlu0 %v2458, 46
      %v2473 = vpop.permute.xlu0 %2472
      %2474 = vrot.lane.b32.xlu0 %v2459, 46
      %v2475 = vpop.permute.xlu0 %2474
      %2476 = vrot.lane.b32.xlu0 %v2460, 46
      %v2477 = vpop.permute.xlu0 %2476
      %vm2478 = vcmask 375808
      %v2479 = vsel %vm2478, %v2473, %v2475
      %v2480 = vsel %vm2478, %v2475, %v2477
      %v2483 = vsel %vm2467, %v2479, 0.0
      %v2484 = vsel %vm2468, %v2480, 0.0
      %v2487 = vrot.slane %v2483, 4
      %v2488 = vrot.slane %v2484, 4
      %2491 = vst [vmem:[#allocation3 + $0x20] sm:$0xf0] %v2487
      %2492 = vst [vmem:[#allocation3 + $0x28] sm:$0xf0] %v2488
      %v2493 = vld [vmem:[#allocation2] sm:$0xf]
      %v2494 = vld [vmem:[#allocation2 + $0x8] sm:$0xf]
      %v2495 = vld [vmem:[#allocation2 + $0x10] sm:$0xf]
      %vm2496 = vcmp.ge.s32.totalorder %v580, 4294967293
      %vm2497 = vcmp.ge.s32.totalorder %v581, 4294967293
      %vm2498 = vmand %vm2298, %vm2496
      %vm2499 = vmand %vm2299, %vm2497
      %vm2500 = vcmp.lt.s32.totalorder %v580, 13
      %vm2501 = vcmp.lt.s32.totalorder %v581, 13
      %vm2502 = vmand %vm2498, %vm2500
      %vm2503 = vmand %vm2499, %vm2501
      %v2504 = vsel %vm2502, 1, 0
      %v2505 = vsel %vm2503, 1, 0
      %vm2506 = vcmp.eq.s32.totalorder %v2504, 1
      %vm2507 = vcmp.eq.s32.totalorder %v2505, 1
      %2511 = vrot.lane.b32.xlu0 %v2493, 45
      %v2512 = vpop.permute.xlu0 %2511
      %2513 = vrot.lane.b32.xlu0 %v2494, 45
      %v2514 = vpop.permute.xlu0 %2513
      %2515 = vrot.lane.b32.xlu0 %v2495, 45
      %v2516 = vpop.permute.xlu0 %2515
      %vm2517 = vcmask 367616
      %v2518 = vsel %vm2517, %v2512, %v2514
      %v2519 = vsel %vm2517, %v2514, %v2516
      %v2522 = vsel %vm2506, %v2518, 0.0
      %v2523 = vsel %vm2507, %v2519, 0.0
      %2524 = vst [vmem:[#allocation3 + $0x30] sm:$0xf] %v2522
      %2525 = vst [vmem:[#allocation3 + $0x38] sm:$0xf] %v2523
      %v2526 = vld [vmem:[#allocation2] sm:$0xf]
      %v2527 = vld [vmem:[#allocation2 + $0x8] sm:$0xf]
      %v2528 = vld [vmem:[#allocation2 + $0x10] sm:$0xf]
      %vm2529 = vmand %vm1363, %vm2300
      %vm2530 = vmand %vm1364, %vm2301
      %vm2531 = vmand %vm2529, %vm2304
      %vm2532 = vmand %vm2530, %vm2305
      %v2533 = vsel %vm2531, 1, 0
      %v2534 = vsel %vm2532, 1, 0
      %vm2535 = vcmp.eq.s32.totalorder %v2533, 1
      %vm2536 = vcmp.eq.s32.totalorder %v2534, 1
      %2540 = vrot.lane.b32.xlu0 %v2526, 35
      %v2541 = vpop.permute.xlu0 %2540
      %2542 = vrot.lane.b32.xlu0 %v2527, 35
      %v2543 = vpop.permute.xlu0 %2542
      %2544 = vrot.lane.b32.xlu0 %v2528, 35
      %v2545 = vpop.permute.xlu0 %2544
      %vm2546 = vcmask 285696
      %v2547 = vsel %vm2546, %v2541, %v2543
      %v2548 = vsel %vm2546, %v2543, %v2545
      %v2551 = vsel %vm2535, %v2547, 0.0
      %v2552 = vsel %vm2536, %v2548, 0.0
      %v2555 = vrot.slane %v2551, 4
      %v2556 = vrot.slane %v2552, 4
      %2559 = vst [vmem:[#allocation3 + $0x30] sm:$0xf0] %v2555
      %2560 = vst [vmem:[#allocation3 + $0x38] sm:$0xf0] %v2556
      %v2561 = vld [vmem:[#allocation2] sm:$0xf]
      %v2562 = vld [vmem:[#allocation2 + $0x8] sm:$0xf]
      %v2563 = vld [vmem:[#allocation2 + $0x10] sm:$0xf]
      %2567 = vrot.lane.b32.xlu0 %v2561, 34
      %v2568 = vpop.permute.xlu0 %2567
      %2569 = vrot.lane.b32.xlu0 %v2562, 34
      %v2570 = vpop.permute.xlu0 %2569
      %2571 = vrot.lane.b32.xlu0 %v2563, 34
      %v2572 = vpop.permute.xlu0 %2571
      %v2573 = vsel %vm1386, %v2568, %v2570
      %v2574 = vsel %vm1386, %v2570, %v2572
      %v2577 = vsel %vm1375, %v2573, 0.0
      %v2578 = vsel %vm1376, %v2574, 0.0
      %2579 = vst [vmem:[#allocation3 + $0x40] sm:$0xf] %v2577
      %2580 = vst [vmem:[#allocation3 + $0x48] sm:$0xf] %v2578
      %v2581 = vld [vmem:[#allocation2] sm:$0xf]
      %v2582 = vld [vmem:[#allocation2 + $0x8] sm:$0xf]
      %v2583 = vld [vmem:[#allocation2 + $0x10] sm:$0xf]
      %2587 = vrot.lane.b32.xlu0 %v2581, 33
      %v2588 = vpop.permute.xlu0 %2587
      %2589 = vrot.lane.b32.xlu0 %v2582, 33
      %v2590 = vpop.permute.xlu0 %2589
      %2591 = vrot.lane.b32.xlu0 %v2583, 33
      %v2592 = vpop.permute.xlu0 %2591
      %v2593 = vsel %vm1415, %v2588, %v2590
      %v2594 = vsel %vm1415, %v2590, %v2592
      %v2597 = vsel %vm1404, %v2593, 0.0
      %v2598 = vsel %vm1405, %v2594, 0.0
      %v2601 = vrot.slane %v2597, 4
      %v2602 = vrot.slane %v2598, 4
      %2605 = vst [vmem:[#allocation3 + $0x40] sm:$0xf0] %v2601
      %2606 = vst [vmem:[#allocation3 + $0x48] sm:$0xf0] %v2602
      %v2607 = vld [vmem:[#allocation2] sm:$0xf]
      %v2608 = vld [vmem:[#allocation2 + $0x8] sm:$0xf]
      %v2609 = vld [vmem:[#allocation2 + $0x10] sm:$0xf]
      %2613 = vrot.lane.b32.xlu0 %v2607, 32
      %v2614 = vpop.permute.xlu0 %2613
      %2615 = vrot.lane.b32.xlu0 %v2608, 32
      %v2616 = vpop.permute.xlu0 %2615
      %2617 = vrot.lane.b32.xlu0 %v2609, 32
      %v2618 = vpop.permute.xlu0 %2617
      %v2619 = vsel %vm1450, %v2614, %v2616
      %v2620 = vsel %vm1450, %v2616, %v2618
      %v2623 = vsel %vm1439, %v2619, 0.0
      %v2624 = vsel %vm1440, %v2620, 0.0
      %2625 = vst [vmem:[#allocation3 + $0x50] sm:$0xf] %v2623
      %2626 = vst [vmem:[#allocation3 + $0x58] sm:$0xf] %v2624
      %v2627 = vld [vmem:[#allocation2] sm:$0xf]
      %v2628 = vld [vmem:[#allocation2 + $0x8] sm:$0xf]
      %v2629 = vld [vmem:[#allocation2 + $0x10] sm:$0xf]
      %2633 = vrot.lane.b32.xlu0 %v2627, 31
      %v2634 = vpop.permute.xlu0 %2633
      %2635 = vrot.lane.b32.xlu0 %v2628, 31
      %v2636 = vpop.permute.xlu0 %2635
      %2637 = vrot.lane.b32.xlu0 %v2629, 31
      %v2638 = vpop.permute.xlu0 %2637
      %v2639 = vsel %vm1479, %v2634, %v2636
      %v2640 = vsel %vm1479, %v2636, %v2638
      %v2643 = vsel %vm1468, %v2639, 0.0
      %v2644 = vsel %vm1469, %v2640, 0.0
      %v2647 = vrot.slane %v2643, 4
      %v2648 = vrot.slane %v2644, 4
      %2651 = vst [vmem:[#allocation3 + $0x50] sm:$0xf0] %v2647
      %2652 = vst [vmem:[#allocation3 + $0x58] sm:$0xf0] %v2648
      %v2653 = vld [vmem:[#allocation2] sm:$0xf]
      %v2654 = vld [vmem:[#allocation2 + $0x8] sm:$0xf]
      %v2655 = vld [vmem:[#allocation2 + $0x10] sm:$0xf]
      %2659 = vrot.lane.b32.xlu0 %v2653, 30
      %v2660 = vpop.permute.xlu0 %2659
      %2661 = vrot.lane.b32.xlu0 %v2654, 30
      %v2662 = vpop.permute.xlu0 %2661
      %2663 = vrot.lane.b32.xlu0 %v2655, 30
      %v2664 = vpop.permute.xlu0 %2663
      %v2665 = vsel %vm1518, %v2660, %v2662
      %v2666 = vsel %vm1518, %v2662, %v2664
      %v2669 = vsel %vm1507, %v2665, 0.0
      %v2670 = vsel %vm1508, %v2666, 0.0
      %2671 = vst [vmem:[#allocation3 + $0x60] sm:$0xf] %v2669
      %2672 = vst [vmem:[#allocation3 + $0x68] sm:$0xf] %v2670
      %v2673 = vld [vmem:[#allocation2] sm:$0xf]
      %v2674 = vld [vmem:[#allocation2 + $0x8] sm:$0xf]
      %v2675 = vld [vmem:[#allocation2 + $0x10] sm:$0xf]
      %vm2676 = vmand %vm1363, %vm2496
      %vm2677 = vmand %vm1364, %vm2497
      %vm2678 = vmand %vm2676, %vm2500
      %vm2679 = vmand %vm2677, %vm2501
      %v2680 = vsel %vm2678, 1, 0
      %v2681 = vsel %vm2679, 1, 0
      %vm2682 = vcmp.eq.s32.totalorder %v2680, 1
      %vm2683 = vcmp.eq.s32.totalorder %v2681, 1
      %2687 = vrot.lane.b32.xlu0 %v2673, 29
      %v2688 = vpop.permute.xlu0 %2687
      %2689 = vrot.lane.b32.xlu0 %v2674, 29
      %v2690 = vpop.permute.xlu0 %2689
      %2691 = vrot.lane.b32.xlu0 %v2675, 29
      %v2692 = vpop.permute.xlu0 %2691
      %vm2693 = vcmask 236544
      %v2694 = vsel %vm2693, %v2688, %v2690
      %v2695 = vsel %vm2693, %v2690, %v2692
      %v2698 = vsel %vm2682, %v2694, 0.0
      %v2699 = vsel %vm2683, %v2695, 0.0
      %v2702 = vrot.slane %v2698, 4
      %v2703 = vrot.slane %v2699, 4
      %2706 = vst [vmem:[#allocation3 + $0x60] sm:$0xf0] %v2702
      %2707 = vst [vmem:[#allocation3 + $0x68] sm:$0xf0] %v2703
      %v2708 = vld [vmem:[#allocation2] sm:$0xf]
      %v2709 = vld [vmem:[#allocation2 + $0x8] sm:$0xf]
      %v2710 = vld [vmem:[#allocation2 + $0x10] sm:$0xf]
      %vm2711 = vmand %vm594, %vm2300
      %vm2712 = vmand %vm595, %vm2301
      %vm2713 = vmand %vm2711, %vm2304
      %vm2714 = vmand %vm2712, %vm2305
      %v2715 = vsel %vm2713, 1, 0
      %v2716 = vsel %vm2714, 1, 0
      %vm2717 = vcmp.eq.s32.totalorder %v2715, 1
      %vm2718 = vcmp.eq.s32.totalorder %v2716, 1
      %2722 = vrot.lane.b32.xlu0 %v2708, 19
      %v2723 = vpop.permute.xlu0 %2722
      %2724 = vrot.lane.b32.xlu0 %v2709, 19
      %v2725 = vpop.permute.xlu0 %2724
      %2726 = vrot.lane.b32.xlu0 %v2710, 19
      %v2727 = vpop.permute.xlu0 %2726
      %vm2728 = vcmask 154624
      %v2729 = vsel %vm2728, %v2723, %v2725
      %v2730 = vsel %vm2728, %v2725, %v2727
      %v2733 = vsel %vm2717, %v2729, 0.0
      %v2734 = vsel %vm2718, %v2730, 0.0
      %2735 = vst [vmem:[#allocation3 + $0x70] sm:$0xf] %v2733
      %2736 = vst [vmem:[#allocation3 + $0x78] sm:$0xf] %v2734
      %v2737 = vld [vmem:[#allocation2] sm:$0xf]
      %v2738 = vld [vmem:[#allocation2 + $0x8] sm:$0xf]
      %v2739 = vld [vmem:[#allocation2 + $0x10] sm:$0xf]
      %2743 = vrot.lane.b32.xlu0 %v2737, 18
      %v2744 = vpop.permute.xlu0 %2743
      %2745 = vrot.lane.b32.xlu0 %v2738, 18
      %v2746 = vpop.permute.xlu0 %2745
      %2747 = vrot.lane.b32.xlu0 %v2739, 18
      %v2748 = vpop.permute.xlu0 %2747
      %v2749 = vsel %vm1547, %v2744, %v2746
      %v2750 = vsel %vm1547, %v2746, %v2748
      %v2753 = vsel %vm1536, %v2749, 0.0
      %v2754 = vsel %vm1537, %v2750, 0.0
      %v2757 = vrot.slane %v2753, 4
      %v2758 = vrot.slane %v2754, 4
      %2761 = vst [vmem:[#allocation3 + $0x70] sm:$0xf0] %v2757
      %2762 = vst [vmem:[#allocation3 + $0x78] sm:$0xf0] %v2758
      %v2763 = vld [vmem:[#allocation2] sm:$0xf]
      %v2764 = vld [vmem:[#allocation2 + $0x8] sm:$0xf]
      %v2765 = vld [vmem:[#allocation2 + $0x10] sm:$0xf]
      %2769 = vrot.lane.b32.xlu0 %v2763, 17
      %v2770 = vpop.permute.xlu0 %2769
      %2771 = vrot.lane.b32.xlu0 %v2764, 17
      %v2772 = vpop.permute.xlu0 %2771
      %2773 = vrot.lane.b32.xlu0 %v2765, 17
      %v2774 = vpop.permute.xlu0 %2773
      %v2775 = vsel %vm617, %v2770, %v2772
      %v2776 = vsel %vm617, %v2772, %v2774
      %v2779 = vsel %vm606, %v2775, 0.0
      %v2780 = vsel %vm607, %v2776, 0.0
      %2781 = vst [vmem:[#allocation3 + $0x80] sm:$0xf] %v2779
      %2782 = vst [vmem:[#allocation3 + $0x88] sm:$0xf] %v2780
      %v2783 = vld [vmem:[#allocation2] sm:$0xf]
      %v2784 = vld [vmem:[#allocation2 + $0x8] sm:$0xf]
      %v2785 = vld [vmem:[#allocation2 + $0x10] sm:$0xf]
      %2789 = vrot.lane.b32.xlu0 %v2783, 16
      %v2790 = vpop.permute.xlu0 %2789
      %2791 = vrot.lane.b32.xlu0 %v2784, 16
      %v2792 = vpop.permute.xlu0 %2791
      %2793 = vrot.lane.b32.xlu0 %v2785, 16
      %v2794 = vpop.permute.xlu0 %2793
      %v2795 = vsel %vm650, %v2790, %v2792
      %v2796 = vsel %vm650, %v2792, %v2794
      %v2799 = vsel %vm639, %v2795, 0.0
      %v2800 = vsel %vm640, %v2796, 0.0
      %v2803 = vrot.slane %v2799, 4
      %v2804 = vrot.slane %v2800, 4
      %2807 = vst [vmem:[#allocation3 + $0x80] sm:$0xf0] %v2803
      %2808 = vst [vmem:[#allocation3 + $0x88] sm:$0xf0] %v2804
      %v2809 = vld [vmem:[#allocation2] sm:$0xf]
      %v2810 = vld [vmem:[#allocation2 + $0x8] sm:$0xf]
      %v2811 = vld [vmem:[#allocation2 + $0x10] sm:$0xf]
      %2815 = vrot.lane.b32.xlu0 %v2809, 15
      %v2816 = vpop.permute.xlu0 %2815
      %2817 = vrot.lane.b32.xlu0 %v2810, 15
      %v2818 = vpop.permute.xlu0 %2817
      %2819 = vrot.lane.b32.xlu0 %v2811, 15
      %v2820 = vpop.permute.xlu0 %2819
      %v2821 = vsel %vm689, %v2816, %v2818
      %v2822 = vsel %vm689, %v2818, %v2820
      %v2825 = vsel %vm678, %v2821, 0.0
      %v2826 = vsel %vm679, %v2822, 0.0
      %2827 = vst [vmem:[#allocation3 + $0x90] sm:$0xf] %v2825
      %2828 = vst [vmem:[#allocation3 + $0x98] sm:$0xf] %v2826
      %v2829 = vld [vmem:[#allocation2] sm:$0xf]
      %v2830 = vld [vmem:[#allocation2 + $0x8] sm:$0xf]
      %v2831 = vld [vmem:[#allocation2 + $0x10] sm:$0xf]
      %2835 = vrot.lane.b32.xlu0 %v2829, 14
      %v2836 = vpop.permute.xlu0 %2835
      %2837 = vrot.lane.b32.xlu0 %v2830, 14
      %v2838 = vpop.permute.xlu0 %2837
      %2839 = vrot.lane.b32.xlu0 %v2831, 14
      %v2840 = vpop.permute.xlu0 %2839
      %v2841 = vsel %vm1648, %v2836, %v2838
      %v2842 = vsel %vm1648, %v2838, %v2840
      %v2845 = vsel %vm1637, %v2841, 0.0
      %v2846 = vsel %vm1638, %v2842, 0.0
      %v2849 = vrot.slane %v2845, 4
      %v2850 = vrot.slane %v2846, 4
      %2853 = vst [vmem:[#allocation3 + $0x90] sm:$0xf0] %v2849
      %2854 = vst [vmem:[#allocation3 + $0x98] sm:$0xf0] %v2850
      %v2855 = vld [vmem:[#allocation2] sm:$0xf]
      %v2856 = vld [vmem:[#allocation2 + $0x8] sm:$0xf]
      %v2857 = vld [vmem:[#allocation2 + $0x10] sm:$0xf]
      %vm2858 = vmand %vm594, %vm2496
      %vm2859 = vmand %vm595, %vm2497
      %vm2860 = vmand %vm2858, %vm2500
      %vm2861 = vmand %vm2859, %vm2501
      %v2862 = vsel %vm2860, 1, 0
      %v2863 = vsel %vm2861, 1, 0
      %vm2864 = vcmp.eq.s32.totalorder %v2862, 1
      %vm2865 = vcmp.eq.s32.totalorder %v2863, 1
      %2869 = vrot.lane.b32.xlu0 %v2855, 13
      %v2870 = vpop.permute.xlu0 %2869
      %2871 = vrot.lane.b32.xlu0 %v2856, 13
      %v2872 = vpop.permute.xlu0 %2871
      %2873 = vrot.lane.b32.xlu0 %v2857, 13
      %v2874 = vpop.permute.xlu0 %2873
      %vm2875 = vcmask 105472
      %v2876 = vsel %vm2875, %v2870, %v2872
      %v2877 = vsel %vm2875, %v2872, %v2874
      %v2880 = vsel %vm2864, %v2876, 0.0
      %v2881 = vsel %vm2865, %v2877, 0.0
      %2882 = vst [vmem:[#allocation3 + $0xa0] sm:$0xf] %v2880
      %2883 = vst [vmem:[#allocation3 + $0xa8] sm:$0xf] %v2881
      %v2884 = vld [vmem:[#allocation2] sm:$0xf]
      %v2885 = vld [vmem:[#allocation2 + $0x8] sm:$0xf]
      %v2886 = vld [vmem:[#allocation2 + $0x10] sm:$0xf]
      %vm2887 = vmand %vm705, %vm2300
      %vm2888 = vmand %vm706, %vm2301
      %vm2889 = vmand %vm2887, %vm2304
      %vm2890 = vmand %vm2888, %vm2305
      %v2891 = vsel %vm2889, 1, 0
      %v2892 = vsel %vm2890, 1, 0
      %vm2893 = vcmp.eq.s32.totalorder %v2891, 1
      %vm2894 = vcmp.eq.s32.totalorder %v2892, 1
      %2898 = vrot.lane.b32.xlu0 %v2884, 3
      %v2899 = vpop.permute.xlu0 %2898
      %2900 = vrot.lane.b32.xlu0 %v2885, 3
      %v2901 = vpop.permute.xlu0 %2900
      %2902 = vrot.lane.b32.xlu0 %v2886, 3
      %v2903 = vpop.permute.xlu0 %2902
      %vm2904 = vcmask 23552
      %v2905 = vsel %vm2904, %v2899, %v2901
      %v2906 = vsel %vm2904, %v2901, %v2903
      %v2909 = vsel %vm2893, %v2905, 0.0
      %v2910 = vsel %vm2894, %v2906, 0.0
      %v2913 = vrot.slane %v2909, 4
      %v2914 = vrot.slane %v2910, 4
      %2917 = vst [vmem:[#allocation3 + $0xa0] sm:$0xf0] %v2913
      %2918 = vst [vmem:[#allocation3 + $0xa8] sm:$0xf0] %v2914
      %v2919 = vld [vmem:[#allocation2] sm:$0xf]
      %v2920 = vld [vmem:[#allocation2 + $0x8] sm:$0xf]
      %v2921 = vld [vmem:[#allocation2 + $0x10] sm:$0xf]
      %2925 = vrot.lane.b32.xlu0 %v2919, 2
      %v2926 = vpop.permute.xlu0 %2925
      %2927 = vrot.lane.b32.xlu0 %v2920, 2
      %v2928 = vpop.permute.xlu0 %2927
      %2929 = vrot.lane.b32.xlu0 %v2921, 2
      %v2930 = vpop.permute.xlu0 %2929
      %v2931 = vsel %vm1683, %v2926, %v2928
      %v2932 = vsel %vm1683, %v2928, %v2930
      %v2935 = vsel %vm1672, %v2931, 0.0
      %v2936 = vsel %vm1673, %v2932, 0.0
      %2937 = vst [vmem:[#allocation3 + $0xb0] sm:$0xf] %v2935
      %2938 = vst [vmem:[#allocation3 + $0xb8] sm:$0xf] %v2936
      %v2939 = vld [vmem:[#allocation2] sm:$0xf]
      %v2940 = vld [vmem:[#allocation2 + $0x8] sm:$0xf]
      %v2941 = vld [vmem:[#allocation2 + $0x10] sm:$0xf]
      %2945 = vrot.lane.b32.xlu0 %v2939, 1
      %v2946 = vpop.permute.xlu0 %2945
      %2947 = vrot.lane.b32.xlu0 %v2940, 1
      %v2948 = vpop.permute.xlu0 %2947
      %2949 = vrot.lane.b32.xlu0 %v2941, 1
      %v2950 = vpop.permute.xlu0 %2949
      %v2951 = vsel %vm724, %v2946, %v2948
      %v2952 = vsel %vm724, %v2948, %v2950
      %v2955 = vsel %vm713, %v2951, 0.0
      %v2956 = vsel %vm714, %v2952, 0.0
      %v2959 = vrot.slane %v2955, 4
      %v2960 = vrot.slane %v2956, 4
      %2963 = vst [vmem:[#allocation3 + $0xb0] sm:$0xf0] %v2959
      %2964 = vst [vmem:[#allocation3 + $0xb8] sm:$0xf0] %v2960
      %v2965 = vld [vmem:[#allocation2 + $0x8] sm:$0xf]
      %v2966 = vld [vmem:[#allocation2 + $0x10] sm:$0xf]
      %v2967 = vsel %vm747, %v2965, 0.0
      %v2968 = vsel %vm748, %v2966, 0.0
      %2969 = vst [vmem:[#allocation3 + $0xc0] sm:$0xf] %v2967
      %2970 = vst [vmem:[#allocation3 + $0xc8] sm:$0xf] %v2968
      %v2971 = vld [vmem:[#allocation2 + $0x8] sm:$0xf]
      %v2972 = vld [vmem:[#allocation2 + $0x10] sm:$0xf]
      %v2973 = vld [vmem:[#allocation2 + $0x18] sm:$0xf]
      %2977 = vrot.lane.b32.xlu0 %v2971, 127
      %v2978 = vpop.permute.xlu0 %2977
      %2979 = vrot.lane.b32.xlu0 %v2972, 127
      %v2980 = vpop.permute.xlu0 %2979
      %2981 = vrot.lane.b32.xlu0 %v2973, 127
      %v2982 = vpop.permute.xlu0 %2981
      %v2983 = vsel %vm773, %v2978, %v2980
      %v2984 = vsel %vm773, %v2980, %v2982
      %v2987 = vsel %vm762, %v2983, 0.0
      %v2988 = vsel %vm763, %v2984, 0.0
      %v2991 = vrot.slane %v2987, 4
      %v2992 = vrot.slane %v2988, 4
      %2995 = vst [vmem:[#allocation3 + $0xc0] sm:$0xf0] %v2991
      %2996 = vst [vmem:[#allocation3 + $0xc8] sm:$0xf0] %v2992
      %v2997 = vld [vmem:[#allocation2 + $0x8] sm:$0xf]
      %v2998 = vld [vmem:[#allocation2 + $0x10] sm:$0xf]
      %v2999 = vld [vmem:[#allocation2 + $0x18] sm:$0xf]
      %3003 = vrot.lane.b32.xlu0 %v2997, 126
      %v3004 = vpop.permute.xlu0 %3003
      %3005 = vrot.lane.b32.xlu0 %v2998, 126
      %v3006 = vpop.permute.xlu0 %3005
      %3007 = vrot.lane.b32.xlu0 %v2999, 126
      %v3008 = vpop.permute.xlu0 %3007
      %v3009 = vsel %vm1770, %v3004, %v3006
      %v3010 = vsel %vm1770, %v3006, %v3008
      %v3013 = vsel %vm1759, %v3009, 0.0
      %v3014 = vsel %vm1760, %v3010, 0.0
      %3015 = vst [vmem:[#allocation3 + $0xd0] sm:$0xf] %v3013
      %3016 = vst [vmem:[#allocation3 + $0xd8] sm:$0xf] %v3014
      %v3017 = vld [vmem:[#allocation2 + $0x8] sm:$0xf]
      %v3018 = vld [vmem:[#allocation2 + $0x10] sm:$0xf]
      %v3019 = vld [vmem:[#allocation2 + $0x18] sm:$0xf]
      %vm3020 = vmand %vm705, %vm2496
      %vm3021 = vmand %vm706, %vm2497
      %vm3022 = vmand %vm3020, %vm2500
      %vm3023 = vmand %vm3021, %vm2501
      %v3024 = vsel %vm3022, 1, 0
      %v3025 = vsel %vm3023, 1, 0
      %vm3026 = vcmp.eq.s32.totalorder %v3024, 1
      %vm3027 = vcmp.eq.s32.totalorder %v3025, 1
      %3031 = vrot.lane.b32.xlu0 %v3017, 125
      %v3032 = vpop.permute.xlu0 %3031
      %3033 = vrot.lane.b32.xlu0 %v3018, 125
      %v3034 = vpop.permute.xlu0 %3033
      %3035 = vrot.lane.b32.xlu0 %v3019, 125
      %v3036 = vpop.permute.xlu0 %3035
      %vm3037 = vcmask 1022976
      %v3038 = vsel %vm3037, %v3032, %v3034
      %v3039 = vsel %vm3037, %v3034, %v3036
      %v3042 = vsel %vm3026, %v3038, 0.0
      %v3043 = vsel %vm3027, %v3039, 0.0
      %v3046 = vrot.slane %v3042, 4
      %v3047 = vrot.slane %v3043, 4
      %3050 = vst [vmem:[#allocation3 + $0xd0] sm:$0xf0] %v3046
      %3051 = vst [vmem:[#allocation3 + $0xd8] sm:$0xf0] %v3047
      %v3052 = vld [vmem:[#allocation2 + $0x8] sm:$0xf]
      %v3053 = vld [vmem:[#allocation2 + $0x10] sm:$0xf]
      %v3054 = vld [vmem:[#allocation2 + $0x18] sm:$0xf]
      %vm3055 = vmand %vm795, %vm2300
      %vm3056 = vmand %vm796, %vm2301
      %vm3057 = vmand %vm3055, %vm2304
      %vm3058 = vmand %vm3056, %vm2305
      %v3059 = vsel %vm3057, 1, 0
      %v3060 = vsel %vm3058, 1, 0
      %vm3061 = vcmp.eq.s32.totalorder %v3059, 1
      %vm3062 = vcmp.eq.s32.totalorder %v3060, 1
      %3066 = vrot.lane.b32.xlu0 %v3052, 115
      %v3067 = vpop.permute.xlu0 %3066
      %3068 = vrot.lane.b32.xlu0 %v3053, 115
      %v3069 = vpop.permute.xlu0 %3068
      %3070 = vrot.lane.b32.xlu0 %v3054, 115
      %v3071 = vpop.permute.xlu0 %3070
      %vm3072 = vcmask 941056
      %v3073 = vsel %vm3072, %v3067, %v3069
      %v3074 = vsel %vm3072, %v3069, %v3071
      %v3077 = vsel %vm3061, %v3073, 0.0
      %v3078 = vsel %vm3062, %v3074, 0.0
      %3079 = vst [vmem:[#allocation3 + $0xe0] sm:$0xf] %v3077
      %3080 = vst [vmem:[#allocation3 + $0xe8] sm:$0xf] %v3078
      %v3081 = vld [vmem:[#allocation2 + $0x8] sm:$0xf]
      %v3082 = vld [vmem:[#allocation2 + $0x10] sm:$0xf]
      %v3083 = vld [vmem:[#allocation2 + $0x18] sm:$0xf]
      %3087 = vrot.lane.b32.xlu0 %v3081, 114
      %v3088 = vpop.permute.xlu0 %3087
      %3089 = vrot.lane.b32.xlu0 %v3082, 114
      %v3090 = vpop.permute.xlu0 %3089
      %3091 = vrot.lane.b32.xlu0 %v3083, 114
      %v3092 = vpop.permute.xlu0 %3091
      %v3093 = vsel %vm1799, %v3088, %v3090
      %v3094 = vsel %vm1799, %v3090, %v3092
      %v3097 = vsel %vm1788, %v3093, 0.0
      %v3098 = vsel %vm1789, %v3094, 0.0
      %v3101 = vrot.slane %v3097, 4
      %v3102 = vrot.slane %v3098, 4
      %3105 = vst [vmem:[#allocation3 + $0xe0] sm:$0xf0] %v3101
      %3106 = vst [vmem:[#allocation3 + $0xe8] sm:$0xf0] %v3102
      %v3107 = vld [vmem:[#allocation2 + $0x8] sm:$0xf]
      %v3108 = vld [vmem:[#allocation2 + $0x10] sm:$0xf]
      %v3109 = vld [vmem:[#allocation2 + $0x18] sm:$0xf]
      %3113 = vrot.lane.b32.xlu0 %v3107, 113
      %v3114 = vpop.permute.xlu0 %3113
      %3115 = vrot.lane.b32.xlu0 %v3108, 113
      %v3116 = vpop.permute.xlu0 %3115
      %3117 = vrot.lane.b32.xlu0 %v3109, 113
      %v3118 = vpop.permute.xlu0 %3117
      %v3119 = vsel %vm814, %v3114, %v3116
      %v3120 = vsel %vm814, %v3116, %v3118
      %v3123 = vsel %vm803, %v3119, 0.0
      %v3124 = vsel %vm804, %v3120, 0.0
      %3125 = vst [vmem:[#allocation3 + $0xf0] sm:$0xf] %v3123
      %3126 = vst [vmem:[#allocation3 + $0xf8] sm:$0xf] %v3124
      %v3127 = vld [vmem:[#allocation2 + $0x8] sm:$0xf]
      %v3128 = vld [vmem:[#allocation2 + $0x10] sm:$0xf]
      %v3129 = vld [vmem:[#allocation2 + $0x18] sm:$0xf]
      %3133 = vrot.lane.b32.xlu0 %v3127, 112
      %v3134 = vpop.permute.xlu0 %3133
      %3135 = vrot.lane.b32.xlu0 %v3128, 112
      %v3136 = vpop.permute.xlu0 %3135
      %3137 = vrot.lane.b32.xlu0 %v3129, 112
      %v3138 = vpop.permute.xlu0 %3137
      %v3139 = vsel %vm843, %v3134, %v3136
      %v3140 = vsel %vm843, %v3136, %v3138
      %v3143 = vsel %vm832, %v3139, 0.0
      %v3144 = vsel %vm833, %v3140, 0.0
      %v3147 = vrot.slane %v3143, 4
      %v3148 = vrot.slane %v3144, 4
      %3151 = vst [vmem:[#allocation3 + $0xf0] sm:$0xf0] %v3147
      %3152 = vst [vmem:[#allocation3 + $0xf8] sm:$0xf0] %v3148
      %v3153 = vld [vmem:[#allocation2 + $0x8] sm:$0xf]
      %v3154 = vld [vmem:[#allocation2 + $0x10] sm:$0xf]
      %v3155 = vld [vmem:[#allocation2 + $0x18] sm:$0xf]
      %3159 = vrot.lane.b32.xlu0 %v3153, 111
      %v3160 = vpop.permute.xlu0 %3159
      %3161 = vrot.lane.b32.xlu0 %v3154, 111
      %v3162 = vpop.permute.xlu0 %3161
      %3163 = vrot.lane.b32.xlu0 %v3155, 111
      %v3164 = vpop.permute.xlu0 %3163
      %v3165 = vsel %vm878, %v3160, %v3162
      %v3166 = vsel %vm878, %v3162, %v3164
      %v3169 = vsel %vm867, %v3165, 0.0
      %v3170 = vsel %vm868, %v3166, 0.0
      %3171 = vst [vmem:[#allocation3 + $0x100] sm:$0xf] %v3169
      %3172 = vst [vmem:[#allocation3 + $0x108] sm:$0xf] %v3170
      %v3173 = vld [vmem:[#allocation2 + $0x8] sm:$0xf]
      %v3174 = vld [vmem:[#allocation2 + $0x10] sm:$0xf]
      %v3175 = vld [vmem:[#allocation2 + $0x18] sm:$0xf]
      %3179 = vrot.lane.b32.xlu0 %v3173, 110
      %v3180 = vpop.permute.xlu0 %3179
      %3181 = vrot.lane.b32.xlu0 %v3174, 110
      %v3182 = vpop.permute.xlu0 %3181
      %3183 = vrot.lane.b32.xlu0 %v3175, 110
      %v3184 = vpop.permute.xlu0 %3183
      %v3185 = vsel %vm1900, %v3180, %v3182
      %v3186 = vsel %vm1900, %v3182, %v3184
      %v3189 = vsel %vm1889, %v3185, 0.0
      %v3190 = vsel %vm1890, %v3186, 0.0
      %v3193 = vrot.slane %v3189, 4
      %v3194 = vrot.slane %v3190, 4
      %3197 = vst [vmem:[#allocation3 + $0x100] sm:$0xf0] %v3193
      %3198 = vst [vmem:[#allocation3 + $0x108] sm:$0xf0] %v3194
      %v3199 = vld [vmem:[#allocation2 + $0x8] sm:$0xf]
      %v3200 = vld [vmem:[#allocation2 + $0x10] sm:$0xf]
      %v3201 = vld [vmem:[#allocation2 + $0x18] sm:$0xf]
      %vm3202 = vmand %vm795, %vm2496
      %vm3203 = vmand %vm796, %vm2497
      %vm3204 = vmand %vm3202, %vm2500
      %vm3205 = vmand %vm3203, %vm2501
      %v3206 = vsel %vm3204, 1, 0
      %v3207 = vsel %vm3205, 1, 0
      %vm3208 = vcmp.eq.s32.totalorder %v3206, 1
      %vm3209 = vcmp.eq.s32.totalorder %v3207, 1
      %3213 = vrot.lane.b32.xlu0 %v3199, 109
      %v3214 = vpop.permute.xlu0 %3213
      %3215 = vrot.lane.b32.xlu0 %v3200, 109
      %v3216 = vpop.permute.xlu0 %3215
      %3217 = vrot.lane.b32.xlu0 %v3201, 109
      %v3218 = vpop.permute.xlu0 %3217
      %vm3219 = vcmask 891904
      %v3220 = vsel %vm3219, %v3214, %v3216
      %v3221 = vsel %vm3219, %v3216, %v3218
      %v3224 = vsel %vm3208, %v3220, 0.0
      %v3225 = vsel %vm3209, %v3221, 0.0
      %3226 = vst [vmem:[#allocation3 + $0x110] sm:$0xf] %v3224
      %3227 = vst [vmem:[#allocation3 + $0x118] sm:$0xf] %v3225
      %v3228 = vld [vmem:[#allocation2 + $0x8] sm:$0xf]
      %v3229 = vld [vmem:[#allocation2 + $0x10] sm:$0xf]
      %v3230 = vld [vmem:[#allocation2 + $0x18] sm:$0xf]
      %vm3231 = vmand %vm1922, %vm2300
      %vm3232 = vmand %vm1923, %vm2301
      %vm3233 = vmand %vm3231, %vm2304
      %vm3234 = vmand %vm3232, %vm2305
      %v3235 = vsel %vm3233, 1, 0
      %v3236 = vsel %vm3234, 1, 0
      %vm3237 = vcmp.eq.s32.totalorder %v3235, 1
      %vm3238 = vcmp.eq.s32.totalorder %v3236, 1
      %3242 = vrot.lane.b32.xlu0 %v3228, 99
      %v3243 = vpop.permute.xlu0 %3242
      %3244 = vrot.lane.b32.xlu0 %v3229, 99
      %v3245 = vpop.permute.xlu0 %3244
      %3246 = vrot.lane.b32.xlu0 %v3230, 99
      %v3247 = vpop.permute.xlu0 %3246
      %vm3248 = vcmask 809984
      %v3249 = vsel %vm3248, %v3243, %v3245
      %v3250 = vsel %vm3248, %v3245, %v3247
      %v3253 = vsel %vm3237, %v3249, 0.0
      %v3254 = vsel %vm3238, %v3250, 0.0
      %v3257 = vrot.slane %v3253, 4
      %v3258 = vrot.slane %v3254, 4
      %3261 = vst [vmem:[#allocation3 + $0x110] sm:$0xf0] %v3257
      %3262 = vst [vmem:[#allocation3 + $0x118] sm:$0xf0] %v3258
      %v3263 = vld [vmem:[#allocation2 + $0x8] sm:$0xf]
      %v3264 = vld [vmem:[#allocation2 + $0x10] sm:$0xf]
      %v3265 = vld [vmem:[#allocation2 + $0x18] sm:$0xf]
      %3269 = vrot.lane.b32.xlu0 %v3263, 98
      %v3270 = vpop.permute.xlu0 %3269
      %3271 = vrot.lane.b32.xlu0 %v3264, 98
      %v3272 = vpop.permute.xlu0 %3271
      %3273 = vrot.lane.b32.xlu0 %v3265, 98
      %v3274 = vpop.permute.xlu0 %3273
      %v3275 = vsel %vm1941, %v3270, %v3272
      %v3276 = vsel %vm1941, %v3272, %v3274
      %v3279 = vsel %vm1930, %v3275, 0.0
      %v3280 = vsel %vm1931, %v3276, 0.0
      %3281 = vst [vmem:[#allocation3 + $0x120] sm:$0xf] %v3279
      %3282 = vst [vmem:[#allocation3 + $0x128] sm:$0xf] %v3280
      %v3283 = vld [vmem:[#allocation2 + $0x8] sm:$0xf]
      %v3284 = vld [vmem:[#allocation2 + $0x10] sm:$0xf]
      %v3285 = vld [vmem:[#allocation2 + $0x18] sm:$0xf]
      %3289 = vrot.lane.b32.xlu0 %v3283, 97
      %v3290 = vpop.permute.xlu0 %3289
      %3291 = vrot.lane.b32.xlu0 %v3284, 97
      %v3292 = vpop.permute.xlu0 %3291
      %3293 = vrot.lane.b32.xlu0 %v3285, 97
      %v3294 = vpop.permute.xlu0 %3293
      %v3295 = vsel %vm1970, %v3290, %v3292
      %v3296 = vsel %vm1970, %v3292, %v3294
      %v3299 = vsel %vm1959, %v3295, 0.0
      %v3300 = vsel %vm1960, %v3296, 0.0
      %v3303 = vrot.slane %v3299, 4
      %v3304 = vrot.slane %v3300, 4
      %3307 = vst [vmem:[#allocation3 + $0x120] sm:$0xf0] %v3303
      %3308 = vst [vmem:[#allocation3 + $0x128] sm:$0xf0] %v3304
      %v3309 = vld [vmem:[#allocation2 + $0x8] sm:$0xf]
      %v3310 = vld [vmem:[#allocation2 + $0x10] sm:$0xf]
      %v3311 = vld [vmem:[#allocation2 + $0x18] sm:$0xf]
      %3315 = vrot.lane.b32.xlu0 %v3309, 96
      %v3316 = vpop.permute.xlu0 %3315
      %3317 = vrot.lane.b32.xlu0 %v3310, 96
      %v3318 = vpop.permute.xlu0 %3317
      %3319 = vrot.lane.b32.xlu0 %v3311, 96
      %v3320 = vpop.permute.xlu0 %3319
      %v3321 = vsel %vm2005, %v3316, %v3318
      %v3322 = vsel %vm2005, %v3318, %v3320
      %v3325 = vsel %vm1994, %v3321, 0.0
      %v3326 = vsel %vm1995, %v3322, 0.0
      %3327 = vst [vmem:[#allocation3 + $0x130] sm:$0xf] %v3325
      %3328 = vst [vmem:[#allocation3 + $0x138] sm:$0xf] %v3326
      %v3329 = vld [vmem:[#allocation2 + $0x8] sm:$0xf]
      %v3330 = vld [vmem:[#allocation2 + $0x10] sm:$0xf]
      %v3331 = vld [vmem:[#allocation2 + $0x18] sm:$0xf]
      %3335 = vrot.lane.b32.xlu0 %v3329, 95
      %v3336 = vpop.permute.xlu0 %3335
      %3337 = vrot.lane.b32.xlu0 %v3330, 95
      %v3338 = vpop.permute.xlu0 %3337
      %3339 = vrot.lane.b32.xlu0 %v3331, 95
      %v3340 = vpop.permute.xlu0 %3339
      %v3341 = vsel %vm2034, %v3336, %v3338
      %v3342 = vsel %vm2034, %v3338, %v3340
      %v3345 = vsel %vm2023, %v3341, 0.0
      %v3346 = vsel %vm2024, %v3342, 0.0
      %v3349 = vrot.slane %v3345, 4
      %v3350 = vrot.slane %v3346, 4
      %3353 = vst [vmem:[#allocation3 + $0x130] sm:$0xf0] %v3349
      %3354 = vst [vmem:[#allocation3 + $0x138] sm:$0xf0] %v3350
      %v3355 = vld [vmem:[#allocation2 + $0x8] sm:$0xf]
      %v3356 = vld [vmem:[#allocation2 + $0x10] sm:$0xf]
      %v3357 = vld [vmem:[#allocation2 + $0x18] sm:$0xf]
      %3361 = vrot.lane.b32.xlu0 %v3355, 94
      %v3362 = vpop.permute.xlu0 %3361
      %3363 = vrot.lane.b32.xlu0 %v3356, 94
      %v3364 = vpop.permute.xlu0 %3363
      %3365 = vrot.lane.b32.xlu0 %v3357, 94
      %v3366 = vpop.permute.xlu0 %3365
      %v3367 = vsel %vm2069, %v3362, %v3364
      %v3368 = vsel %vm2069, %v3364, %v3366
      %v3371 = vsel %vm2058, %v3367, 0.0
      %v3372 = vsel %vm2059, %v3368, 0.0
      %3373 = vst [vmem:[#allocation3 + $0x140] sm:$0xf] %v3371
      %3374 = vst [vmem:[#allocation3 + $0x148] sm:$0xf] %v3372
      %v3375 = vld [vmem:[#allocation2 + $0x8] sm:$0xf]
      %v3376 = vld [vmem:[#allocation2 + $0x10] sm:$0xf]
      %v3377 = vld [vmem:[#allocation2 + $0x18] sm:$0xf]
      %vm3378 = vmand %vm1922, %vm2496
      %vm3379 = vmand %vm1923, %vm2497
      %vm3380 = vmand %vm3378, %vm2500
      %vm3381 = vmand %vm3379, %vm2501
      %v3382 = vsel %vm3380, 1, 0
      %v3383 = vsel %vm3381, 1, 0
      %vm3384 = vcmp.eq.s32.totalorder %v3382, 1
      %vm3385 = vcmp.eq.s32.totalorder %v3383, 1
      %3389 = vrot.lane.b32.xlu0 %v3375, 93
      %v3390 = vpop.permute.xlu0 %3389
      %3391 = vrot.lane.b32.xlu0 %v3376, 93
      %v3392 = vpop.permute.xlu0 %3391
      %3393 = vrot.lane.b32.xlu0 %v3377, 93
      %v3394 = vpop.permute.xlu0 %3393
      %vm3395 = vcmask 760832
      %v3396 = vsel %vm3395, %v3390, %v3392
      %v3397 = vsel %vm3395, %v3392, %v3394
      %v3400 = vsel %vm3384, %v3396, 0.0
      %v3401 = vsel %vm3385, %v3397, 0.0
      %v3404 = vrot.slane %v3400, 4
      %v3405 = vrot.slane %v3401, 4
      %3408 = vst [vmem:[#allocation3 + $0x140] sm:$0xf0] %v3404
      %3409 = vst [vmem:[#allocation3 + $0x148] sm:$0xf0] %v3405
      %v3410 = vld [vmem:[#allocation2 + $0x8] sm:$0xf]
      %v3411 = vld [vmem:[#allocation2 + $0x10] sm:$0xf]
      %v3412 = vld [vmem:[#allocation2 + $0x18] sm:$0xf]
      %vm3413 = vcmp.ge.s32.totalorder %v578, 4294967248
      %vm3414 = vcmp.ge.s32.totalorder %v579, 4294967248
      %vm3415 = vcmp.lt.s32.totalorder %v578, 208
      %vm3416 = vcmp.lt.s32.totalorder %v579, 208
      %vm3417 = vmand %vm3413, %vm3415
      %vm3418 = vmand %vm3414, %vm3416
      %vm3419 = vmand %vm3417, %vm2300
      %vm3420 = vmand %vm3418, %vm2301
      %vm3421 = vmand %vm3419, %vm2304
      %vm3422 = vmand %vm3420, %vm2305
      %v3423 = vsel %vm3421, 1, 0
      %v3424 = vsel %vm3422, 1, 0
      %vm3425 = vcmp.eq.s32.totalorder %v3423, 1
      %vm3426 = vcmp.eq.s32.totalorder %v3424, 1
      %3430 = vrot.lane.b32.xlu0 %v3410, 83
      %v3431 = vpop.permute.xlu0 %3430
      %3432 = vrot.lane.b32.xlu0 %v3411, 83
      %v3433 = vpop.permute.xlu0 %3432
      %3434 = vrot.lane.b32.xlu0 %v3412, 83
      %v3435 = vpop.permute.xlu0 %3434
      %vm3436 = vcmask 678912
      %v3437 = vsel %vm3436, %v3431, %v3433
      %v3438 = vsel %vm3436, %v3433, %v3435
      %v3441 = vsel %vm3425, %v3437, 0.0
      %v3442 = vsel %vm3426, %v3438, 0.0
      %3443 = vst [vmem:[#allocation3 + $0x150] sm:$0xf] %v3441
      %3444 = vst [vmem:[#allocation3 + $0x158] sm:$0xf] %v3442
      %v3445 = vld [vmem:[#allocation2 + $0x8] sm:$0xf]
      %v3446 = vld [vmem:[#allocation2 + $0x10] sm:$0xf]
      %v3447 = vld [vmem:[#allocation2 + $0x18] sm:$0xf]
      %vm3448 = vmand %vm3417, %vm1365
      %vm3449 = vmand %vm3418, %vm1366
      %vm3450 = vmand %vm3448, %vm1369
      %vm3451 = vmand %vm3449, %vm1370
      %v3452 = vsel %vm3450, 1, 0
      %v3453 = vsel %vm3451, 1, 0
      %vm3454 = vcmp.eq.s32.totalorder %v3452, 1
      %vm3455 = vcmp.eq.s32.totalorder %v3453, 1
      %3459 = vrot.lane.b32.xlu0 %v3445, 82
      %v3460 = vpop.permute.xlu0 %3459
      %3461 = vrot.lane.b32.xlu0 %v3446, 82
      %v3462 = vpop.permute.xlu0 %3461
      %3463 = vrot.lane.b32.xlu0 %v3447, 82
      %v3464 = vpop.permute.xlu0 %3463
      %vm3465 = vcmask 670720
      %v3466 = vsel %vm3465, %v3460, %v3462
      %v3467 = vsel %vm3465, %v3462, %v3464
      %v3470 = vsel %vm3454, %v3466, 0.0
      %v3471 = vsel %vm3455, %v3467, 0.0
      %v3474 = vrot.slane %v3470, 4
      %v3475 = vrot.slane %v3471, 4
      %3478 = vst [vmem:[#allocation3 + $0x150] sm:$0xf0] %v3474
      %3479 = vst [vmem:[#allocation3 + $0x158] sm:$0xf0] %v3475
      %v3480 = vld [vmem:[#allocation2 + $0x8] sm:$0xf]
      %v3481 = vld [vmem:[#allocation2 + $0x10] sm:$0xf]
      %v3482 = vld [vmem:[#allocation2 + $0x18] sm:$0xf]
      %vm3483 = vmand %vm3417, %vm596
      %vm3484 = vmand %vm3418, %vm597
      %vm3485 = vmand %vm3483, %vm600
      %vm3486 = vmand %vm3484, %vm601
      %v3487 = vsel %vm3485, 1, 0
      %v3488 = vsel %vm3486, 1, 0
      %vm3489 = vcmp.eq.s32.totalorder %v3487, 1
      %vm3490 = vcmp.eq.s32.totalorder %v3488, 1
      %3494 = vrot.lane.b32.xlu0 %v3480, 81
      %v3495 = vpop.permute.xlu0 %3494
      %3496 = vrot.lane.b32.xlu0 %v3481, 81
      %v3497 = vpop.permute.xlu0 %3496
      %3498 = vrot.lane.b32.xlu0 %v3482, 81
      %v3499 = vpop.permute.xlu0 %3498
      %vm3500 = vcmask 662528
      %v3501 = vsel %vm3500, %v3495, %v3497
      %v3502 = vsel %vm3500, %v3497, %v3499
      %v3505 = vsel %vm3489, %v3501, 0.0
      %v3506 = vsel %vm3490, %v3502, 0.0
      %3507 = vst [vmem:[#allocation3 + $0x160] sm:$0xf] %v3505
      %3508 = vst [vmem:[#allocation3 + $0x168] sm:$0xf] %v3506
      %v3509 = vld [vmem:[#allocation2 + $0x8] sm:$0xf]
      %v3510 = vld [vmem:[#allocation2 + $0x10] sm:$0xf]
      %v3511 = vld [vmem:[#allocation2 + $0x18] sm:$0xf]
      %vm3512 = vmand %vm3417, %vm629
      %vm3513 = vmand %vm3418, %vm630
      %vm3514 = vmand %vm3512, %vm633
      %vm3515 = vmand %vm3513, %vm634
      %v3516 = vsel %vm3514, 1, 0
      %v3517 = vsel %vm3515, 1, 0
      %vm3518 = vcmp.eq.s32.totalorder %v3516, 1
      %vm3519 = vcmp.eq.s32.totalorder %v3517, 1
      %3523 = vrot.lane.b32.xlu0 %v3509, 80
      %v3524 = vpop.permute.xlu0 %3523
      %3525 = vrot.lane.b32.xlu0 %v3510, 80
      %v3526 = vpop.permute.xlu0 %3525
      %3527 = vrot.lane.b32.xlu0 %v3511, 80
      %v3528 = vpop.permute.xlu0 %3527
      %vm3529 = vcmask 654336
      %v3530 = vsel %vm3529, %v3524, %v3526
      %v3531 = vsel %vm3529, %v3526, %v3528
      %v3534 = vsel %vm3518, %v3530, 0.0
      %v3535 = vsel %vm3519, %v3531, 0.0
      %v3538 = vrot.slane %v3534, 4
      %v3539 = vrot.slane %v3535, 4
      %3542 = vst [vmem:[#allocation3 + $0x160] sm:$0xf0] %v3538
      %3543 = vst [vmem:[#allocation3 + $0x168] sm:$0xf0] %v3539
      %v3544 = vld [vmem:[#allocation2 + $0x8] sm:$0xf]
      %v3545 = vld [vmem:[#allocation2 + $0x10] sm:$0xf]
      %v3546 = vld [vmem:[#allocation2 + $0x18] sm:$0xf]
      %vm3547 = vmand %vm3417, %vm668
      %vm3548 = vmand %vm3418, %vm669
      %vm3549 = vmand %vm3547, %vm672
      %vm3550 = vmand %vm3548, %vm673
      %v3551 = vsel %vm3549, 1, 0
      %v3552 = vsel %vm3550, 1, 0
      %vm3553 = vcmp.eq.s32.totalorder %v3551, 1
      %vm3554 = vcmp.eq.s32.totalorder %v3552, 1
      %3558 = vrot.lane.b32.xlu0 %v3544, 79
      %v3559 = vpop.permute.xlu0 %3558
      %3560 = vrot.lane.b32.xlu0 %v3545, 79
      %v3561 = vpop.permute.xlu0 %3560
      %3562 = vrot.lane.b32.xlu0 %v3546, 79
      %v3563 = vpop.permute.xlu0 %3562
      %vm3564 = vcmask 646144
      %v3565 = vsel %vm3564, %v3559, %v3561
      %v3566 = vsel %vm3564, %v3561, %v3563
      %v3569 = vsel %vm3553, %v3565, 0.0
      %v3570 = vsel %vm3554, %v3566, 0.0
      %3571 = vst [vmem:[#allocation3 + $0x170] sm:$0xf] %v3569
      %3572 = vst [vmem:[#allocation3 + $0x178] sm:$0xf] %v3570
      %v3573 = vld [vmem:[#allocation2 + $0x8] sm:$0xf]
      %v3574 = vld [vmem:[#allocation2 + $0x10] sm:$0xf]
      %v3575 = vld [vmem:[#allocation2 + $0x18] sm:$0xf]
      %vm3576 = vmand %vm3417, %vm1497
      %vm3577 = vmand %vm3418, %vm1498
      %vm3578 = vmand %vm3576, %vm1501
      %vm3579 = vmand %vm3577, %vm1502
      %v3580 = vsel %vm3578, 1, 0
      %v3581 = vsel %vm3579, 1, 0
      %vm3582 = vcmp.eq.s32.totalorder %v3580, 1
      %vm3583 = vcmp.eq.s32.totalorder %v3581, 1
      %3587 = vrot.lane.b32.xlu0 %v3573, 78
      %v3588 = vpop.permute.xlu0 %3587
      %3589 = vrot.lane.b32.xlu0 %v3574, 78
      %v3590 = vpop.permute.xlu0 %3589
      %3591 = vrot.lane.b32.xlu0 %v3575, 78
      %v3592 = vpop.permute.xlu0 %3591
      %vm3593 = vcmask 637952
      %v3594 = vsel %vm3593, %v3588, %v3590
      %v3595 = vsel %vm3593, %v3590, %v3592
      %v3598 = vsel %vm3582, %v3594, 0.0
      %v3599 = vsel %vm3583, %v3595, 0.0
      %v3602 = vrot.slane %v3598, 4
      %v3603 = vrot.slane %v3599, 4
      %3606 = vst [vmem:[#allocation3 + $0x170] sm:$0xf0] %v3602
      %3607 = vst [vmem:[#allocation3 + $0x178] sm:$0xf0] %v3603
      %v3608 = vld [vmem:[#allocation2 + $0x8] sm:$0xf]
      %v3609 = vld [vmem:[#allocation2 + $0x10] sm:$0xf]
      %v3610 = vld [vmem:[#allocation2 + $0x18] sm:$0xf]
      %vm3611 = vmand %vm3417, %vm2496
      %vm3612 = vmand %vm3418, %vm2497
      %vm3613 = vmand %vm3611, %vm2500
      %vm3614 = vmand %vm3612, %vm2501
      %v3615 = vsel %vm3613, 1, 0
      %v3616 = vsel %vm3614, 1, 0
      %vm3617 = vcmp.eq.s32.totalorder %v3615, 1
      %vm3618 = vcmp.eq.s32.totalorder %v3616, 1
      %3622 = vrot.lane.b32.xlu0 %v3608, 77
      %v3623 = vpop.permute.xlu0 %3622
      %3624 = vrot.lane.b32.xlu0 %v3609, 77
      %v3625 = vpop.permute.xlu0 %3624
      %3626 = vrot.lane.b32.xlu0 %v3610, 77
      %v3627 = vpop.permute.xlu0 %3626
      %vm3628 = vcmask 629760
      %v3629 = vsel %vm3628, %v3623, %v3625
      %v3630 = vsel %vm3628, %v3625, %v3627
      %v3633 = vsel %vm3617, %v3629, 0.0
      %v3634 = vsel %vm3618, %v3630, 0.0
      %3635 = vst [vmem:[#allocation3 + $0x180] sm:$0xf] %v3633
      %3636 = vst [vmem:[#allocation3 + $0x188] sm:$0xf] %v3634
      %v3637 = vld [vmem:[%s7] sm:$0xff]
      %v3638 = vld [vmem:[%s7 + $0x8] sm:$0xff]
      %v3639 = vld [vmem:[#allocation3] sm:$0xff]
      %v3640 = vld [vmem:[#allocation3 + $0x8] sm:$0xff]
      %v3641 = vld [vmem:[#allocation3 + $0x10] sm:$0xff]
      %v3642 = vld [vmem:[#allocation3 + $0x18] sm:$0xff]
      %v3643 = vld [vmem:[#allocation3 + $0x20] sm:$0xff]
      %v3644 = vld [vmem:[#allocation3 + $0x28] sm:$0xff]
      %v3645 = vld [vmem:[#allocation3 + $0x30] sm:$0xff]
      %v3646 = vld [vmem:[#allocation3 + $0x38] sm:$0xff]
      %v3647 = vld [vmem:[#allocation3 + $0x40] sm:$0xff]
      %v3648 = vld [vmem:[#allocation3 + $0x48] sm:$0xff]
      %v3649 = vld [vmem:[#allocation3 + $0x50] sm:$0xff]
      %v3650 = vld [vmem:[#allocation3 + $0x58] sm:$0xff]
      %v3651 = vld [vmem:[#allocation3 + $0x60] sm:$0xff]
      %v3652 = vld [vmem:[#allocation3 + $0x68] sm:$0xff]
      %v3653 = vld [vmem:[#allocation3 + $0x70] sm:$0xff]
      %v3654 = vld [vmem:[#allocation3 + $0x78] sm:$0xff]
      %v3655 = vld [vmem:[#allocation3 + $0x80] sm:$0xff]
      %v3656 = vld [vmem:[#allocation3 + $0x88] sm:$0xff]
      %v3657 = vld [vmem:[#allocation3 + $0x90] sm:$0xff]
      %v3658 = vld [vmem:[#allocation3 + $0x98] sm:$0xff]
      %v3659 = vld [vmem:[#allocation3 + $0xa0] sm:$0xff]
      %v3660 = vld [vmem:[#allocation3 + $0xa8] sm:$0xff]
      %v3661 = vld [vmem:[#allocation3 + $0xb0] sm:$0xff]
      %v3662 = vld [vmem:[#allocation3 + $0xb8] sm:$0xff]
      %v3663 = vld [vmem:[#allocation3 + $0xc0] sm:$0xff]
      %v3664 = vld [vmem:[#allocation3 + $0xc8] sm:$0xff]
      %v3665 = vld [vmem:[#allocation3 + $0xd0] sm:$0xff]
      %v3666 = vld [vmem:[#allocation3 + $0xd8] sm:$0xff]
      %v3667 = vld [vmem:[#allocation3 + $0xe0] sm:$0xff]
      %v3668 = vld [vmem:[#allocation3 + $0xe8] sm:$0xff]
      %v3669 = vld [vmem:[#allocation3 + $0xf0] sm:$0xff]
      %v3670 = vld [vmem:[#allocation3 + $0xf8] sm:$0xff]
      %v3671 = vld [vmem:[#allocation3 + $0x100] sm:$0xff]
      %v3672 = vld [vmem:[#allocation3 + $0x108] sm:$0xff]
      %v3673 = vld [vmem:[#allocation3 + $0x110] sm:$0xff]
      %v3674 = vld [vmem:[#allocation3 + $0x118] sm:$0xff]
      %v3675 = vld [vmem:[#allocation3 + $0x120] sm:$0xff]
      %v3676 = vld [vmem:[#allocation3 + $0x128] sm:$0xff]
      %v3677 = vld [vmem:[#allocation3 + $0x130] sm:$0xff]
      %v3678 = vld [vmem:[#allocation3 + $0x138] sm:$0xff]
      %v3679 = vld [vmem:[#allocation3 + $0x140] sm:$0xff]
      %v3680 = vld [vmem:[#allocation3 + $0x148] sm:$0xff]
      %v3681 = vld [vmem:[#allocation3 + $0x150] sm:$0xff]
      %v3682 = vld [vmem:[#allocation3 + $0x158] sm:$0xff]
      %v3683 = vld [vmem:[#allocation3 + $0x160] sm:$0xff]
      %v3684 = vld [vmem:[#allocation3 + $0x168] sm:$0xff]
      %v3685 = vld [vmem:[#allocation3 + $0x170] sm:$0xff]
      %v3686 = vld [vmem:[#allocation3 + $0x178] sm:$0xff]
      %v3687 = vld [vmem:[#allocation3 + $0x180] sm:$0xf]
      %v3688 = vld [vmem:[#allocation3 + $0x188] sm:$0xf]
      %v3689 = vld [vmem:[%s8] sm:$0xff]
      %3691 = vset.pattern.permute.xlu0 0
      %3692 = vperm.xlu0 %3691, %v3689
      %v3693 = vpop.permute.xlu0 %3692
      %vm3695 = vcmask 556032
      %v3697 = vsel %vm3695, %v3638, 0
      %v3700 = vsel %vm908, %v3687, 0
      %v3703 = vsel %vm908, %v3688, 0
      %3705 = vmatprep.subr.mxu0 %v3640
      %3706 = vmatpush1.msra.mxu0 %v3639
      %3707 = vmatprep.subr.mxu0 %v3642
      %3708 = vmatpush1.msra.mxu0 %v3641
      %3709 = vmatprep.subr.mxu0 %v3644
      %3710 = vmatpush1.msra.mxu0 %v3643
      %3711 = vmatprep.subr.mxu0 %v3646
      %3712 = vmatpush1.msra.mxu0 %v3645
      %3713 = vmatprep.subr.mxu0 %v3648
      %3714 = vmatpush1.msra.mxu0 %v3647
      %3715 = vmatprep.subr.mxu0 %v3650
      %3716 = vmatpush1.msra.mxu0 %v3649
      %3717 = vmatprep.subr.mxu0 %v3652
      %3718 = vmatpush1.msra.mxu0 %v3651
      %3719 = vmatprep.subr.mxu0 %v3654
      %3720 = vmatpush1.msra.mxu0 %v3653
      %3721 = vmatprep.subr.mxu0 %v3656
      %3722 = vmatpush1.msra.mxu0 %v3655
      %3723 = vmatprep.subr.mxu0 %v3658
      %3724 = vmatpush1.msra.mxu0 %v3657
      %3725 = vmatprep.subr.mxu0 %v3660
      %3726 = vmatpush1.msra.mxu0 %v3659
      %3727 = vmatprep.subr.mxu0 %v3662
      %3728 = vmatpush1.msra.mxu0 %v3661
      %3729 = vmatprep.subr.mxu0 %v3664
      %3730 = vmatpush1.msra.mxu0 %v3663
      %3731 = vmatprep.subr.mxu0 %v3666
      %3732 = vmatpush1.msra.mxu0 %v3665
      %3733 = vmatprep.subr.mxu0 %v3668
      %3734 = vmatpush1.msra.mxu0 %v3667
      %3735 = vmatprep.subr.mxu0 %v3670
      %3736 = vmatpush1.msra.mxu0 %v3669
      %3737 = vmatprep.subr.mxu0 %v3672
      %3738 = vmatpush1.msra.mxu0 %v3671
      %3739 = vmatprep.subr.mxu0 %v3674
      %3740 = vmatpush1.msra.mxu0 %v3673
      %3741 = vmatprep.subr.mxu0 %v3676
      %3742 = vmatpush1.msra.mxu0 %v3675
      %3743 = vmatprep.subr.mxu0 %v3678
      %3744 = vmatpush1.msra.mxu0 %v3677
      %3745 = vmatprep.subr.mxu0 %v3680
      %3746 = vmatpush1.msra.mxu0 %v3679
      %3747 = vmatprep.subr.mxu0 %v3682
      %3748 = vmatpush1.msra.mxu0 %v3681
      %3749 = vmatprep.subr.mxu0 %v3684
      %3750 = vmatpush1.msra.mxu0 %v3683
      %3751 = vmatprep.subr.mxu0 %v3686
      %3752 = vmatpush1.msra.mxu0 %v3685
      %3753 = vmatprep.subr.mxu0 %v3703
      %3754 = vmatpush1.msra.mxu0 %v3700
      %3755 = vmatprep.subr.mxu0 0.0
      %3756 = vmatpush1.msra.mxu0 0.0
      %3757 = vmatprep.subr.mxu0 0.0
      %3758 = vmatpush1.msra.mxu0 0.0
      %3759 = vmatprep.subr.mxu0 0.0
      %3760 = vmatpush1.msra.mxu0 0.0
      %3761 = vmatprep.subr.mxu0 0.0
      %3762 = vmatpush1.msra.mxu0 0.0
      %3763 = vmatprep.subr.mxu0 0.0
      %3764 = vmatpush1.msra.mxu0 0.0
      %3765 = vmatprep.subr.mxu0 0.0
      %3766 = vmatpush1.msra.mxu0 0.0
      %3767 = vmatprep.subr.mxu0 0.0
      %3768 = vmatpush1.msra.mxu0 0.0
      %3769 = vmatprep.mubr.f32.mxu0 %v3697
      %3770 = vmatmul.mubr.f32.gmra.mrb[0].mxu0 %v3637
      %v3771 = vpop.f32.mrb[0].mxu0
      %v3772 = vadd.f32 %v3693, %v3771
      %v3773 = vpop.f32.mrb[0].mxu0
      %v3774 = vadd.f32 %v3693, %v3773
      %3775 = vdwg.mxu0
      %v3776 = vmax.f32 %v3772, 0.0
      %v3777 = vmax.f32 %v3774, 0.0
      %v3778 = vld [vmem:[%s11] sm:$0xf]
      %v3780 = vsel %vm1259, %v3778, 0
      %3782 = vmatprep.subr.mxu0 %v3777
      %3783 = vmatpush1.msra.mxu0 %v3776
      %3784 = vmatprep.subr.mxu0 0.0
      %3785 = vmatpush1.msra.mxu0 0.0
      %3786 = vmatprep.subr.mxu0 0.0
      %3787 = vmatpush1.msra.mxu0 0.0
      %3788 = vmatprep.subr.mxu0 0.0
      %3789 = vmatpush1.msra.mxu0 0.0
      %3790 = vmatprep.subr.mxu0 0.0
      %3791 = vmatpush1.msra.mxu0 0.0
      %3792 = vmatprep.subr.mxu0 0.0
      %3793 = vmatpush1.msra.mxu0 0.0
      %3794 = vmatprep.subr.mxu0 0.0
      %3795 = vmatpush1.msra.mxu0 0.0
      %3796 = vmatprep.subr.mxu0 0.0
      %3797 = vmatpush1.msra.mxu0 0.0
      %3798 = vmatprep.subr.mxu0 0.0
      %3799 = vmatpush1.msra.mxu0 0.0
      %3800 = vmatprep.subr.mxu0 0.0
      %3801 = vmatpush1.msra.mxu0 0.0
      %3802 = vmatprep.subr.mxu0 0.0
      %3803 = vmatpush1.msra.mxu0 0.0
      %3804 = vmatprep.subr.mxu0 0.0
      %3805 = vmatpush1.msra.mxu0 0.0
      %3806 = vmatprep.subr.mxu0 0.0
      %3807 = vmatpush1.msra.mxu0 0.0
      %3808 = vmatprep.subr.mxu0 0.0
      %3809 = vmatpush1.msra.mxu0 0.0
      %3810 = vmatprep.subr.mxu0 0.0
      %3811 = vmatpush1.msra.mxu0 0.0
      %3812 = vmatprep.subr.mxu0 0.0
      %3813 = vmatpush1.msra.mxu0 0.0
      %3814 = vmatprep.subr.mxu0 0.0
      %3815 = vmatpush1.msra.mxu0 0.0
      %3816 = vmatprep.subr.mxu0 0.0
      %3817 = vmatpush1.msra.mxu0 0.0
      %3818 = vmatprep.subr.mxu0 0.0
      %3819 = vmatpush1.msra.mxu0 0.0
      %3820 = vmatprep.subr.mxu0 0.0
      %3821 = vmatpush1.msra.mxu0 0.0
      %3822 = vmatprep.subr.mxu0 0.0
      %3823 = vmatpush1.msra.mxu0 0.0
      %3824 = vmatprep.subr.mxu0 0.0
      %3825 = vmatpush1.msra.mxu0 0.0
      %3826 = vmatprep.subr.mxu0 0.0
      %3827 = vmatpush1.msra.mxu0 0.0
      %3828 = vmatprep.subr.mxu0 0.0
      %3829 = vmatpush1.msra.mxu0 0.0
      %3830 = vmatprep.subr.mxu0 0.0
      %3831 = vmatpush1.msra.mxu0 0.0
      %3832 = vmatprep.subr.mxu0 0.0
      %3833 = vmatpush1.msra.mxu0 0.0
      %3834 = vmatprep.subr.mxu0 0.0
      %3835 = vmatpush1.msra.mxu0 0.0
      %3836 = vmatprep.subr.mxu0 0.0
      %3837 = vmatpush1.msra.mxu0 0.0
      %3838 = vmatprep.subr.mxu0 0.0
      %3839 = vmatpush1.msra.mxu0 0.0
      %3840 = vmatprep.subr.mxu0 0.0
      %3841 = vmatpush1.msra.mxu0 0.0
      %3842 = vmatprep.subr.mxu0 0.0
      %3843 = vmatpush1.msra.mxu0 0.0
      %3844 = vmatprep.subr.mxu0 0.0
      %3845 = vmatpush1.msra.mxu0 0.0
      %3846 = vmatprep.mubr.f32.mxu0 0.0
      %3847 = vmatmul.mubr.f32.gmra.mrb[0].mxu0 %v3780
      %v3848 = vpop.f32.mrb[0].mxu0
      %v3849 = vadd.f32 0.0, %v3848
      %v3850 = vpop.f32.mrb[0].mxu0
      %v3851 = vadd.f32 0.0, %v3850
      %3852 = vdwg.mxu0
      %v3855 = vcombine.low %v3849, %v3851
      %v3857 = vadd.f32 %v576, %v3855
      %v3858 = vld [vmem:[%s12] sm:$0xf]
      %3860 = vset.pattern.permute.xlu0 0
      %3861 = vperm.xlu0 %3860, %v3858
      %v3862 = vpop.permute.xlu0 %3861
      %v3864 = vunpack.c.l.s4 839922192
      %v3865 = vunpack.c.0.s8 %v3864
      %v3866 = vlaneseq
      %v3867 = vshrl.u32 %v3866, 7
      %v3868 = vsub.s32 %v3865, %v3867
      %v3869 = vrot.slane %v3862, %v3868
      %v3871 = vadd.f32 %v3857, %v3869
      %v3872 = vmax.f32 %v3871, 0.0
      %v3873 = vld [vmem:[%s9] sm:$0xf]
      %v3874 = vld [vmem:[%s10] sm:$0xf]
      %3876 = vset.pattern.permute.xlu0 0
      %3877 = vperm.xlu0 %3876, %v3874
      %v3878 = vpop.permute.xlu0 %3877
      %vm3880 = vcmask 31744
      %v3882 = vsel %vm3880, %v3873, 0
      %v3884 = vsel %vm908, %v576, 0
      %v3886 = vsel %vm908, %v583, 0
      %3888 = vmatprep.subr.mxu0 %v3886
      %3889 = vmatpush1.msra.mxu0 %v3884
      %3890 = vmatprep.subr.mxu0 0.0
      %3891 = vmatpush1.msra.mxu0 0.0
      %3892 = vmatprep.subr.mxu0 0.0
      %3893 = vmatpush1.msra.mxu0 0.0
      %3894 = vmatprep.subr.mxu0 0.0
      %3895 = vmatpush1.msra.mxu0 0.0
      %3896 = vmatprep.subr.mxu0 0.0
      %3897 = vmatpush1.msra.mxu0 0.0
      %3898 = vmatprep.subr.mxu0 0.0
      %3899 = vmatpush1.msra.mxu0 0.0
      %3900 = vmatprep.subr.mxu0 0.0
      %3901 = vmatpush1.msra.mxu0 0.0
      %3902 = vmatprep.subr.mxu0 0.0
      %3903 = vmatpush1.msra.mxu0 0.0
      %3904 = vmatprep.subr.mxu0 0.0
      %3905 = vmatpush1.msra.mxu0 0.0
      %3906 = vmatprep.subr.mxu0 0.0
      %3907 = vmatpush1.msra.mxu0 0.0
      %3908 = vmatprep.subr.mxu0 0.0
      %3909 = vmatpush1.msra.mxu0 0.0
      %3910 = vmatprep.subr.mxu0 0.0
      %3911 = vmatpush1.msra.mxu0 0.0
      %3912 = vmatprep.subr.mxu0 0.0
      %3913 = vmatpush1.msra.mxu0 0.0
      %3914 = vmatprep.subr.mxu0 0.0
      %3915 = vmatpush1.msra.mxu0 0.0
      %3916 = vmatprep.subr.mxu0 0.0
      %3917 = vmatpush1.msra.mxu0 0.0
      %3918 = vmatprep.subr.mxu0 0.0
      %3919 = vmatpush1.msra.mxu0 0.0
      %3920 = vmatprep.subr.mxu0 0.0
      %3921 = vmatpush1.msra.mxu0 0.0
      %3922 = vmatprep.subr.mxu0 0.0
      %3923 = vmatpush1.msra.mxu0 0.0
      %3924 = vmatprep.subr.mxu0 0.0
      %3925 = vmatpush1.msra.mxu0 0.0
      %3926 = vmatprep.subr.mxu0 0.0
      %3927 = vmatpush1.msra.mxu0 0.0
      %3928 = vmatprep.subr.mxu0 0.0
      %3929 = vmatpush1.msra.mxu0 0.0
      %3930 = vmatprep.subr.mxu0 0.0
      %3931 = vmatpush1.msra.mxu0 0.0
      %3932 = vmatprep.subr.mxu0 0.0
      %3933 = vmatpush1.msra.mxu0 0.0
      %3934 = vmatprep.subr.mxu0 0.0
      %3935 = vmatpush1.msra.mxu0 0.0
      %3936 = vmatprep.subr.mxu0 0.0
      %3937 = vmatpush1.msra.mxu0 0.0
      %3938 = vmatprep.subr.mxu0 0.0
      %3939 = vmatpush1.msra.mxu0 0.0
      %3940 = vmatprep.subr.mxu0 0.0
      %3941 = vmatpush1.msra.mxu0 0.0
      %3942 = vmatprep.subr.mxu0 0.0
      %3943 = vmatpush1.msra.mxu0 0.0
      %3944 = vmatprep.subr.mxu0 0.0
      %3945 = vmatpush1.msra.mxu0 0.0
      %3946 = vmatprep.subr.mxu0 0.0
      %3947 = vmatpush1.msra.mxu0 0.0
      %3948 = vmatprep.subr.mxu0 0.0
      %3949 = vmatpush1.msra.mxu0 0.0
      %3950 = vmatprep.subr.mxu0 0.0
      %3951 = vmatpush1.msra.mxu0 0.0
      %3952 = vmatprep.mubr.f32.mxu0 0.0
      %3953 = vmatmul.mubr.f32.gmra.mrb[0].mxu0 %v3882
      %v3954 = vpop.f32.mrb[0].mxu0
      %v3955 = vadd.f32 %v3878, %v3954
      %v3956 = vpop.f32.mrb[0].mxu0
      %v3957 = vadd.f32 %v3878, %v3956
      %3958 = vdwg.mxu0
      %v3959 = vld [vmem:[%s14] sm:$0xf]
      %3961 = vrot.lane.b32.xlu0 %v3959, 124
      %v3962 = vpop.permute.xlu0 %3961
      %v3964 = vcombine.high %v2288, %v2288
      %v3965 = vsel %vm3880, %v3962, 0
      %v3967 = vsel %vm908, %v2288, 0
      %v3969 = vsel %vm908, %v3964, 0
      %3971 = vmatprep.subr.mxu0 %v3969
      %3972 = vmatpush1.msra.mxu0 %v3967
      %3973 = vmatprep.subr.mxu0 0.0
      %3974 = vmatpush1.msra.mxu0 0.0
      %3975 = vmatprep.subr.mxu0 0.0
      %3976 = vmatpush1.msra.mxu0 0.0
      %3977 = vmatprep.subr.mxu0 0.0
      %3978 = vmatpush1.msra.mxu0 0.0
      %3979 = vmatprep.subr.mxu0 0.0
      %3980 = vmatpush1.msra.mxu0 0.0
      %3981 = vmatprep.subr.mxu0 0.0
      %3982 = vmatpush1.msra.mxu0 0.0
      %3983 = vmatprep.subr.mxu0 0.0
      %3984 = vmatpush1.msra.mxu0 0.0
      %3985 = vmatprep.subr.mxu0 0.0
      %3986 = vmatpush1.msra.mxu0 0.0
      %3987 = vmatprep.subr.mxu0 0.0
      %3988 = vmatpush1.msra.mxu0 0.0
      %3989 = vmatprep.subr.mxu0 0.0
      %3990 = vmatpush1.msra.mxu0 0.0
      %3991 = vmatprep.subr.mxu0 0.0
      %3992 = vmatpush1.msra.mxu0 0.0
      %3993 = vmatprep.subr.mxu0 0.0
      %3994 = vmatpush1.msra.mxu0 0.0
      %3995 = vmatprep.subr.mxu0 0.0
      %3996 = vmatpush1.msra.mxu0 0.0
      %3997 = vmatprep.subr.mxu0 0.0
      %3998 = vmatpush1.msra.mxu0 0.0
      %3999 = vmatprep.subr.mxu0 0.0
      %4000 = vmatpush1.msra.mxu0 0.0
      %4001 = vmatprep.subr.mxu0 0.0
      %4002 = vmatpush1.msra.mxu0 0.0
      %4003 = vmatprep.subr.mxu0 0.0
      %4004 = vmatpush1.msra.mxu0 0.0
      %4005 = vmatprep.subr.mxu0 0.0
      %4006 = vmatpush1.msra.mxu0 0.0
      %4007 = vmatprep.subr.mxu0 0.0
      %4008 = vmatpush1.msra.mxu0 0.0
      %4009 = vmatprep.subr.mxu0 0.0
      %4010 = vmatpush1.msra.mxu0 0.0
      %4011 = vmatprep.subr.mxu0 0.0
      %4012 = vmatpush1.msra.mxu0 0.0
      %4013 = vmatprep.subr.mxu0 0.0
      %4014 = vmatpush1.msra.mxu0 0.0
      %4015 = vmatprep.subr.mxu0 0.0
      %4016 = vmatpush1.msra.mxu0 0.0
      %4017 = vmatprep.subr.mxu0 0.0
      %4018 = vmatpush1.msra.mxu0 0.0
      %4019 = vmatprep.subr.mxu0 0.0
      %4020 = vmatpush1.msra.mxu0 0.0
      %4021 = vmatprep.subr.mxu0 0.0
      %4022 = vmatpush1.msra.mxu0 0.0
      %4023 = vmatprep.subr.mxu0 0.0
      %4024 = vmatpush1.msra.mxu0 0.0
      %4025 = vmatprep.subr.mxu0 0.0
      %4026 = vmatpush1.msra.mxu0 0.0
      %4027 = vmatprep.subr.mxu0 0.0
      %4028 = vmatpush1.msra.mxu0 0.0
      %4029 = vmatprep.subr.mxu0 0.0
      %4030 = vmatpush1.msra.mxu0 0.0
      %4031 = vmatprep.subr.mxu0 0.0
      %4032 = vmatpush1.msra.mxu0 0.0
      %4033 = vmatprep.subr.mxu0 0.0
      %4034 = vmatpush1.msra.mxu0 0.0
      %4035 = vmatprep.mubr.f32.mxu0 0.0
      %4036 = vmatmul.mubr.f32.gmra.mrb[0].mxu0 %v3965
      %v4037 = vpop.f32.mrb[0].mxu0
      %v4038 = vadd.f32 0.0, %v4037
      %v4039 = vpop.f32.mrb[0].mxu0
      %v4040 = vadd.f32 0.0, %v4039
      %4041 = vdwg.mxu0
      %v4043 = vcombine.high %v1353, %v1353
      %v4044 = vsel %vm3880, %v3959, 0
      %v4046 = vsel %vm908, %v1353, 0
      %v4048 = vsel %vm908, %v4043, 0
      %4050 = vmatprep.subr.mxu0 %v4048
      %4051 = vmatpush1.msra.mxu0 %v4046
      %4052 = vmatprep.subr.mxu0 0.0
      %4053 = vmatpush1.msra.mxu0 0.0
      %4054 = vmatprep.subr.mxu0 0.0
      %4055 = vmatpush1.msra.mxu0 0.0
      %4056 = vmatprep.subr.mxu0 0.0
      %4057 = vmatpush1.msra.mxu0 0.0
      %4058 = vmatprep.subr.mxu0 0.0
      %4059 = vmatpush1.msra.mxu0 0.0
      %4060 = vmatprep.subr.mxu0 0.0
      %4061 = vmatpush1.msra.mxu0 0.0
      %4062 = vmatprep.subr.mxu0 0.0
      %4063 = vmatpush1.msra.mxu0 0.0
      %4064 = vmatprep.subr.mxu0 0.0
      %4065 = vmatpush1.msra.mxu0 0.0
      %4066 = vmatprep.subr.mxu0 0.0
      %4067 = vmatpush1.msra.mxu0 0.0
      %4068 = vmatprep.subr.mxu0 0.0
      %4069 = vmatpush1.msra.mxu0 0.0
      %4070 = vmatprep.subr.mxu0 0.0
      %4071 = vmatpush1.msra.mxu0 0.0
      %4072 = vmatprep.subr.mxu0 0.0
      %4073 = vmatpush1.msra.mxu0 0.0
      %4074 = vmatprep.subr.mxu0 0.0
      %4075 = vmatpush1.msra.mxu0 0.0
      %4076 = vmatprep.subr.mxu0 0.0
      %4077 = vmatpush1.msra.mxu0 0.0
      %4078 = vmatprep.subr.mxu0 0.0
      %4079 = vmatpush1.msra.mxu0 0.0
      %4080 = vmatprep.subr.mxu0 0.0
      %4081 = vmatpush1.msra.mxu0 0.0
      %4082 = vmatprep.subr.mxu0 0.0
      %4083 = vmatpush1.msra.mxu0 0.0
      %4084 = vmatprep.subr.mxu0 0.0
      %4085 = vmatpush1.msra.mxu0 0.0
      %4086 = vmatprep.subr.mxu0 0.0
      %4087 = vmatpush1.msra.mxu0 0.0
      %4088 = vmatprep.subr.mxu0 0.0
      %4089 = vmatpush1.msra.mxu0 0.0
      %4090 = vmatprep.subr.mxu0 0.0
      %4091 = vmatpush1.msra.mxu0 0.0
      %4092 = vmatprep.subr.mxu0 0.0
      %4093 = vmatpush1.msra.mxu0 0.0
      %4094 = vmatprep.subr.mxu0 0.0
      %4095 = vmatpush1.msra.mxu0 0.0
      %4096 = vmatprep.subr.mxu0 0.0
      %4097 = vmatpush1.msra.mxu0 0.0
      %4098 = vmatprep.subr.mxu0 0.0
      %4099 = vmatpush1.msra.mxu0 0.0
      %4100 = vmatprep.subr.mxu0 0.0
      %4101 = vmatpush1.msra.mxu0 0.0
      %4102 = vmatprep.subr.mxu0 0.0
      %4103 = vmatpush1.msra.mxu0 0.0
      %4104 = vmatprep.subr.mxu0 0.0
      %4105 = vmatpush1.msra.mxu0 0.0
      %4106 = vmatprep.subr.mxu0 0.0
      %4107 = vmatpush1.msra.mxu0 0.0
      %4108 = vmatprep.subr.mxu0 0.0
      %4109 = vmatpush1.msra.mxu0 0.0
      %4110 = vmatprep.subr.mxu0 0.0
      %4111 = vmatpush1.msra.mxu0 0.0
      %4112 = vmatprep.subr.mxu0 0.0
      %4113 = vmatpush1.msra.mxu0 0.0
      %4114 = vmatprep.mubr.f32.mxu0 0.0
      %4115 = vmatmul.mubr.f32.gmra.mrb[0].mxu0 %v4044
      %v4116 = vpop.f32.mrb[0].mxu0
      %v4117 = vadd.f32 %v4038, %v4116
      %v4118 = vpop.f32.mrb[0].mxu0
      %v4119 = vadd.f32 %v4040, %v4118
      %4120 = vdwg.mxu0
      %4121 = vrot.lane.b32.xlu0 %v3959, 120
      %v4122 = vpop.permute.xlu0 %4121
      %v4124 = vcombine.high %v3872, %v3872
      %v4125 = vsel %vm3880, %v4122, 0
      %v4127 = vsel %vm908, %v3872, 0
      %v4129 = vsel %vm908, %v4124, 0
      %4131 = vmatprep.subr.mxu0 %v4129
      %4132 = vmatpush1.msra.mxu0 %v4127
      %4133 = vmatprep.subr.mxu0 0.0
      %4134 = vmatpush1.msra.mxu0 0.0
      %4135 = vmatprep.subr.mxu0 0.0
      %4136 = vmatpush1.msra.mxu0 0.0
      %4137 = vmatprep.subr.mxu0 0.0
      %4138 = vmatpush1.msra.mxu0 0.0
      %4139 = vmatprep.subr.mxu0 0.0
      %4140 = vmatpush1.msra.mxu0 0.0
      %4141 = vmatprep.subr.mxu0 0.0
      %4142 = vmatpush1.msra.mxu0 0.0
      %4143 = vmatprep.subr.mxu0 0.0
      %4144 = vmatpush1.msra.mxu0 0.0
      %4145 = vmatprep.subr.mxu0 0.0
      %4146 = vmatpush1.msra.mxu0 0.0
      %4147 = vmatprep.subr.mxu0 0.0
      %4148 = vmatpush1.msra.mxu0 0.0
      %4149 = vmatprep.subr.mxu0 0.0
      %4150 = vmatpush1.msra.mxu0 0.0
      %4151 = vmatprep.subr.mxu0 0.0
      %4152 = vmatpush1.msra.mxu0 0.0
      %4153 = vmatprep.subr.mxu0 0.0
      %4154 = vmatpush1.msra.mxu0 0.0
      %4155 = vmatprep.subr.mxu0 0.0
      %4156 = vmatpush1.msra.mxu0 0.0
      %4157 = vmatprep.subr.mxu0 0.0
      %4158 = vmatpush1.msra.mxu0 0.0
      %4159 = vmatprep.subr.mxu0 0.0
      %4160 = vmatpush1.msra.mxu0 0.0
      %4161 = vmatprep.subr.mxu0 0.0
      %4162 = vmatpush1.msra.mxu0 0.0
      %4163 = vmatprep.subr.mxu0 0.0
      %4164 = vmatpush1.msra.mxu0 0.0
      %4165 = vmatprep.subr.mxu0 0.0
      %4166 = vmatpush1.msra.mxu0 0.0
      %4167 = vmatprep.subr.mxu0 0.0
      %4168 = vmatpush1.msra.mxu0 0.0
      %4169 = vmatprep.subr.mxu0 0.0
      %4170 = vmatpush1.msra.mxu0 0.0
      %4171 = vmatprep.subr.mxu0 0.0
      %4172 = vmatpush1.msra.mxu0 0.0
      %4173 = vmatprep.subr.mxu0 0.0
      %4174 = vmatpush1.msra.mxu0 0.0
      %4175 = vmatprep.subr.mxu0 0.0
      %4176 = vmatpush1.msra.mxu0 0.0
      %4177 = vmatprep.subr.mxu0 0.0
      %4178 = vmatpush1.msra.mxu0 0.0
      %4179 = vmatprep.subr.mxu0 0.0
      %4180 = vmatpush1.msra.mxu0 0.0
      %4181 = vmatprep.subr.mxu0 0.0
      %4182 = vmatpush1.msra.mxu0 0.0
      %4183 = vmatprep.subr.mxu0 0.0
      %4184 = vmatpush1.msra.mxu0 0.0
      %4185 = vmatprep.subr.mxu0 0.0
      %4186 = vmatpush1.msra.mxu0 0.0
      %4187 = vmatprep.subr.mxu0 0.0
      %4188 = vmatpush1.msra.mxu0 0.0
      %4189 = vmatprep.subr.mxu0 0.0
      %4190 = vmatpush1.msra.mxu0 0.0
      %4191 = vmatprep.subr.mxu0 0.0
      %4192 = vmatpush1.msra.mxu0 0.0
      %4193 = vmatprep.subr.mxu0 0.0
      %4194 = vmatpush1.msra.mxu0 0.0
      %4195 = vmatprep.mubr.f32.mxu0 0.0
      %4196 = vmatmul.mubr.f32.gmra.mrb[0].mxu0 %v4125
      %v4197 = vpop.f32.mrb[0].mxu0
      %v4198 = vadd.f32 0.0, %v4197
      %v4199 = vpop.f32.mrb[0].mxu0
      %v4200 = vadd.f32 0.0, %v4199
      %4201 = vdwg.mxu0
      %v4202 = vadd.f32 %v4117, %v4198
      %v4203 = vadd.f32 %v4119, %v4200
      %4204 = vrot.lane.b32.xlu0 %v3959, 116
      %v4205 = vpop.permute.xlu0 %4204
      %v4206 = vsel %vm3880, %v4205, 0
      %v4209 = vsel %vm908, %v3955, 0
      %v4212 = vsel %vm908, %v3957, 0
      %4214 = vmatprep.subr.mxu0 %v4212
      %4215 = vmatpush1.msra.mxu0 %v4209
      %4216 = vmatprep.subr.mxu0 0.0
      %4217 = vmatpush1.msra.mxu0 0.0
      %4218 = vmatprep.subr.mxu0 0.0
      %4219 = vmatpush1.msra.mxu0 0.0
      %4220 = vmatprep.subr.mxu0 0.0
      %4221 = vmatpush1.msra.mxu0 0.0
      %4222 = vmatprep.subr.mxu0 0.0
      %4223 = vmatpush1.msra.mxu0 0.0
      %4224 = vmatprep.subr.mxu0 0.0
      %4225 = vmatpush1.msra.mxu0 0.0
      %4226 = vmatprep.subr.mxu0 0.0
      %4227 = vmatpush1.msra.mxu0 0.0
      %4228 = vmatprep.subr.mxu0 0.0
      %4229 = vmatpush1.msra.mxu0 0.0
      %4230 = vmatprep.subr.mxu0 0.0
      %4231 = vmatpush1.msra.mxu0 0.0
      %4232 = vmatprep.subr.mxu0 0.0
      %4233 = vmatpush1.msra.mxu0 0.0
      %4234 = vmatprep.subr.mxu0 0.0
      %4235 = vmatpush1.msra.mxu0 0.0
      %4236 = vmatprep.subr.mxu0 0.0
      %4237 = vmatpush1.msra.mxu0 0.0
      %4238 = vmatprep.subr.mxu0 0.0
      %4239 = vmatpush1.msra.mxu0 0.0
      %4240 = vmatprep.subr.mxu0 0.0
      %4241 = vmatpush1.msra.mxu0 0.0
      %4242 = vmatprep.subr.mxu0 0.0
      %4243 = vmatpush1.msra.mxu0 0.0
      %4244 = vmatprep.subr.mxu0 0.0
      %4245 = vmatpush1.msra.mxu0 0.0
      %4246 = vmatprep.subr.mxu0 0.0
      %4247 = vmatpush1.msra.mxu0 0.0
      %4248 = vmatprep.subr.mxu0 0.0
      %4249 = vmatpush1.msra.mxu0 0.0
      %4250 = vmatprep.subr.mxu0 0.0
      %4251 = vmatpush1.msra.mxu0 0.0
      %4252 = vmatprep.subr.mxu0 0.0
      %4253 = vmatpush1.msra.mxu0 0.0
      %4254 = vmatprep.subr.mxu0 0.0
      %4255 = vmatpush1.msra.mxu0 0.0
      %4256 = vmatprep.subr.mxu0 0.0
      %4257 = vmatpush1.msra.mxu0 0.0
      %4258 = vmatprep.subr.mxu0 0.0
      %4259 = vmatpush1.msra.mxu0 0.0
      %4260 = vmatprep.subr.mxu0 0.0
      %4261 = vmatpush1.msra.mxu0 0.0
      %4262 = vmatprep.subr.mxu0 0.0
      %4263 = vmatpush1.msra.mxu0 0.0
      %4264 = vmatprep.subr.mxu0 0.0
      %4265 = vmatpush1.msra.mxu0 0.0
      %4266 = vmatprep.subr.mxu0 0.0
      %4267 = vmatpush1.msra.mxu0 0.0
      %4268 = vmatprep.subr.mxu0 0.0
      %4269 = vmatpush1.msra.mxu0 0.0
      %4270 = vmatprep.subr.mxu0 0.0
      %4271 = vmatpush1.msra.mxu0 0.0
      %4272 = vmatprep.subr.mxu0 0.0
      %4273 = vmatpush1.msra.mxu0 0.0
      %4274 = vmatprep.subr.mxu0 0.0
      %4275 = vmatpush1.msra.mxu0 0.0
      %4276 = vmatprep.subr.mxu0 0.0
      %4277 = vmatpush1.msra.mxu0 0.0
      %4278 = vmatprep.mubr.f32.mxu0 0.0
      %4279 = vmatmul.mubr.f32.gmra.mrb[0].mxu0 %v4206
      %v4280 = vpop.f32.mrb[0].mxu0
      %v4281 = vadd.f32 0.0, %v4280
      %v4282 = vpop.f32.mrb[0].mxu0
      %v4283 = vadd.f32 0.0, %v4282
      %4284 = vdwg.mxu0
      %v4285 = vadd.f32 %v4202, %v4281
      %v4286 = vadd.f32 %v4203, %v4283
      %v4289 = vcombine.low %v4285, %v4286
      %v4291 = vadd.f32 %v576, %v4289
      %v4292 = vld [vmem:[%s15] sm:$0xf]
      %4294 = vset.pattern.permute.xlu0 0
      %4295 = vperm.xlu0 %4294, %v4292
      %v4296 = vpop.permute.xlu0 %4295
      %v4298 = vunpack.c.l.s4 839922192
      %v4299 = vunpack.c.0.s8 %v4298
      %v4300 = vlaneseq
      %v4301 = vshrl.u32 %v4300, 7
      %v4302 = vsub.s32 %v4299, %v4301
      %v4303 = vrot.slane %v4296, %v4302
      %v4305 = vadd.f32 %v4291, %v4303
      %v4306 = vmax.f32 %v4305, 0.0
      %v4307 = vld [vmem:[%s16] sm:$0xff]
      %v4308 = vld [vmem:[%s17] sm:$0xff]
      %4310 = vset.pattern.permute.xlu0 0
      %4311 = vperm.xlu0 %4310, %v4308
      %v4312 = vpop.permute.xlu0 %4311
      %v4315 = vcombine.high %v4306, %v4306
      %v4317 = vsel %vm3880, %v4307, 0
      %v4319 = vsel %vm908, %v4306, 0
      %v4321 = vsel %vm908, %v4315, 0
      %4323 = vmatprep.subr.mxu0 %v4321
      %4324 = vmatpush1.msra.mxu0 %v4319
      %4325 = vmatprep.subr.mxu0 0.0
      %4326 = vmatpush1.msra.mxu0 0.0
      %4327 = vmatprep.subr.mxu0 0.0
      %4328 = vmatpush1.msra.mxu0 0.0
      %4329 = vmatprep.subr.mxu0 0.0
      %4330 = vmatpush1.msra.mxu0 0.0
      %4331 = vmatprep.subr.mxu0 0.0
      %4332 = vmatpush1.msra.mxu0 0.0
      %4333 = vmatprep.subr.mxu0 0.0
      %4334 = vmatpush1.msra.mxu0 0.0
      %4335 = vmatprep.subr.mxu0 0.0
      %4336 = vmatpush1.msra.mxu0 0.0
      %4337 = vmatprep.subr.mxu0 0.0
      %4338 = vmatpush1.msra.mxu0 0.0
      %4339 = vmatprep.subr.mxu0 0.0
      %4340 = vmatpush1.msra.mxu0 0.0
      %4341 = vmatprep.subr.mxu0 0.0
      %4342 = vmatpush1.msra.mxu0 0.0
      %4343 = vmatprep.subr.mxu0 0.0
      %4344 = vmatpush1.msra.mxu0 0.0
      %4345 = vmatprep.subr.mxu0 0.0
      %4346 = vmatpush1.msra.mxu0 0.0
      %4347 = vmatprep.subr.mxu0 0.0
      %4348 = vmatpush1.msra.mxu0 0.0
      %4349 = vmatprep.subr.mxu0 0.0
      %4350 = vmatpush1.msra.mxu0 0.0
      %4351 = vmatprep.subr.mxu0 0.0
      %4352 = vmatpush1.msra.mxu0 0.0
      %4353 = vmatprep.subr.mxu0 0.0
      %4354 = vmatpush1.msra.mxu0 0.0
      %4355 = vmatprep.subr.mxu0 0.0
      %4356 = vmatpush1.msra.mxu0 0.0
      %4357 = vmatprep.subr.mxu0 0.0
      %4358 = vmatpush1.msra.mxu0 0.0
      %4359 = vmatprep.subr.mxu0 0.0
      %4360 = vmatpush1.msra.mxu0 0.0
      %4361 = vmatprep.subr.mxu0 0.0
      %4362 = vmatpush1.msra.mxu0 0.0
      %4363 = vmatprep.subr.mxu0 0.0
      %4364 = vmatpush1.msra.mxu0 0.0
      %4365 = vmatprep.subr.mxu0 0.0
      %4366 = vmatpush1.msra.mxu0 0.0
      %4367 = vmatprep.subr.mxu0 0.0
      %4368 = vmatpush1.msra.mxu0 0.0
      %4369 = vmatprep.subr.mxu0 0.0
      %4370 = vmatpush1.msra.mxu0 0.0
      %4371 = vmatprep.subr.mxu0 0.0
      %4372 = vmatpush1.msra.mxu0 0.0
      %4373 = vmatprep.subr.mxu0 0.0
      %4374 = vmatpush1.msra.mxu0 0.0
      %4375 = vmatprep.subr.mxu0 0.0
      %4376 = vmatpush1.msra.mxu0 0.0
      %4377 = vmatprep.subr.mxu0 0.0
      %4378 = vmatpush1.msra.mxu0 0.0
      %4379 = vmatprep.subr.mxu0 0.0
      %4380 = vmatpush1.msra.mxu0 0.0
      %4381 = vmatprep.subr.mxu0 0.0
      %4382 = vmatpush1.msra.mxu0 0.0
      %4383 = vmatprep.subr.mxu0 0.0
      %4384 = vmatpush1.msra.mxu0 0.0
      %4385 = vmatprep.subr.mxu0 0.0
      %4386 = vmatpush1.msra.mxu0 0.0
      %4387 = vmatprep.mubr.f32.mxu0 0.0
      %4388 = vmatmul.mubr.f32.gmra.mrb[0].mxu0 %v4317
      %v4389 = vpop.f32.mrb[0].mxu0
      %v4390 = vadd.f32 %v4312, %v4389
      %v4391 = vpop.f32.mrb[0].mxu0
      %v4392 = vadd.f32 %v4312, %v4391
      %4393 = vdwg.mxu0
      %4394 = vst [vmem:[%s575] sm:$0xff] %v4390
      %4395 = vst [vmem:[%s575 + $0x8] sm:$0xff] %v4392
      %p4396 = scmp.lt.s32.totalorder %s29, 1
      %s4397 = scalar_select %p4396, %s29, 1
      %s4398 = smul.addr %s4397, 2
      %s4399 = smul.addr %s4398, 8
      %s4400 = scalar_lea.vmem %s18, %s4399
      // Predicated region
      $region93: #{_lambda_.1} parent=91 // pred_check
        %p4401 = pneg %p430
      $region94: #{_lambda_.1} parent=91 // pred_check_branch
        %4403 = sbr.rel (%p4401) target = $region96
      $region95: #{_lambda_.1} parent=91 // pred_region
        _
      $region96: #{_lambda_.1} parent=91 // pred_fallthru
        _
    $region92: #{_lambda_.1} parent=5 // pred_fallthru
      _
    %p4404 = scmp.le.s32.totalorder 2, %s24
    // Predicated region
    $region97: #{_lambda_.1} parent=5 // pred_check
      %p4405 = pneg %p4404
    $region98: #{_lambda_.1} parent=5 // pred_check_branch
      %4407 = sbr.rel (%p4405) target = $region100
    $region99: #{_lambda_.1} parent=5 // pred_region
      %s4408 = ssub.s32 %s24, 2
      // Predicated region
      $region101: #{_lambda_.1} parent=99 // pred_check
        %p4409 = pneg %p436
      $region102: #{_lambda_.1} parent=99 // pred_check_branch
        %4411 = sbr.rel (%p4409) target = $region104
      $region103: #{_lambda_.1} parent=99 // pred_region
        %p4412 = scmp.lt.s32.totalorder %s30, 1
        %s4413 = scalar_select %p4412, %s30, 1
        %s4414 = smul.addr %s4413, 2
        %s4415 = smul.addr %s4414, 8
        %s4416 = scalar_lea.vmem %s18, %s4415
      $region104: #{_lambda_.1} parent=99 // pred_fallthru
        _
    $region100: #{_lambda_.1} parent=5 // pred_fallthru
      _
  $region6: #{_lambda_.1} parent=0 // loop_footer
    %s28 = sadd.s32 1, %s24
  $region7: #{_lambda_.1} parent=0 // loop_footer_branch
    %23 = sbr.rel target = $region3
  $region8: #{_lambda_.1} parent=0 // loop_exit
    _

</llo_original>
